<compile_context>
chip_gen: v7x
topology: tpu7x:2x2x1
jax: 0.10.0
libtpu: 0.0.40
codegen_flags: <defaults>
</compile_context>

<pallas_src>
import functools

import jax
import jax.numpy as jnp
from jax.experimental import pallas as pl
from jax.experimental.pallas import tpu as pltpu

LATENT_DIM = 32
HIDDEN = 512
IMG_DIM = 784 * 3            # 2352
IMG_PAD = 19 * 128           # 2432 (lane-dense padding of the 2352 feature dim)
MU_PAD = 128                 # fused [mu || logvar] head padded to one lane tile

# Packed-bias layout: [b1 | b2 | b3(pad 128) | db1 | db2 | db3 | db4(pad 2432)]
_BIAS_WIDTHS = (HIDDEN, HIDDEN, MU_PAD, HIDDEN, HIDDEN, HIDDEN, IMG_PAD)
_BIAS_OFFSETS = tuple(int(sum(_BIAS_WIDTHS[:i])) for i in range(len(_BIAS_WIDTHS)))
_BIAS_TOTAL = int(sum(_BIAS_WIDTHS))          # 5120 = 40 * 128


def _round_up(x, m):
    return (x + m - 1) // m * m


def _swish(x):
    # swish(x) = x * sigmoid(x); sigmoid via tanh is overflow-free and EUP-friendly.
    return x * (0.5 * jnp.tanh(0.5 * x) + 0.5)


# ---------------------------------------------------------------------------
# Feature probe: single-buffered (Buffered(1)) weight residency.  Evaluated
# eagerly at import (outside any jit trace); falls back cleanly if unsupported.
# ---------------------------------------------------------------------------
def _probe_kernel(x_ref, w_ref, o_ref):
    o_ref[...] = x_ref[...] + w_ref[...]


def _probe_buffered_one():
    try:
        x = jnp.arange(16 * 128, dtype=jnp.float32).reshape(16, 128)
        w = jnp.full((8, 128), 2.0, jnp.float32)
        fn = pl.pallas_call(
            _probe_kernel,
            out_shape=jax.ShapeDtypeStruct((16, 128), jnp.float32),
            grid=(2,),
            in_specs=[
                pl.BlockSpec((8, 128), lambda i: (i, 0)),
                pl.BlockSpec((8, 128), lambda i: (0, 0),
                             pipeline_mode=pl.Buffered(1)),
            ],
            out_specs=pl.BlockSpec((8, 128), lambda i: (i, 0)),
            compiler_params=pltpu.CompilerParams(
                dimension_semantics=("parallel",)),
        )
        out = jax.block_until_ready(fn(x, w))
        return bool(jnp.allclose(out, x + 2.0))
    except Exception:
        return False


_BUFFERED_ONE = _probe_buffered_one()


def _weight_spec(shape):
    """Full-array, VMEM-resident weight block (constant index map)."""
    if _BUFFERED_ONE:
        return pl.BlockSpec(shape, lambda i: (0, 0), pipeline_mode=pl.Buffered(1))
    return pl.BlockSpec(shape, lambda i: (0, 0))


@functools.lru_cache(maxsize=1)
def _tb_max():
    """Max batch-tile rows: 256 on v6e/v7x (2x256 MXU), 128 on v5e and older."""
    try:
        kind = jax.devices()[0].device_kind.lower()
    except Exception:
        return 128
    if "v6" in kind or "v7" in kind or "7x" in kind:
        return 256
    return 128


# ---------------------------------------------------------------------------
# Kernel
# ---------------------------------------------------------------------------
def ssvae_kernel(training, *refs):
    if training:
        (x_ref, eps_ref,
         w1_ref, w2_ref, w3_ref, dw1_ref, dw2_ref, dw3_ref, dw4_ref, bias_ref,
         reconst_ref, mulogvar_ref) = refs
    else:
        (x_ref,
         w1_ref, w2_ref, w3_ref, dw1_ref, dw2_ref, dw3_ref, dw4_ref, bias_ref,
         reconst_ref, mulogvar_ref) = refs
        eps_ref = None

    b1o, b2o, b3o, db1o, db2o, db3o, db4o = _BIAS_OFFSETS

    def dense(a, w_ref, off, width):
        # bf16 x bf16 on the MXU, f32 accumulate, f32 bias add.
        # (astype is a no-op when `a` is already bf16, e.g. the x input.)
        acc = jnp.dot(a.astype(jnp.bfloat16), w_ref[...],
                      preferred_element_type=jnp.float32)
        return acc + bias_ref[:, off:off + width]

    # ---- Encoder ----
    h = _swish(dense(x_ref[...], w1_ref, b1o, HIDDEN))
    h = _swish(dense(h, w2_ref, b2o, HIDDEN))
    s = dense(h, w3_ref, b3o, MU_PAD)          # (TB, 128) = [mu | logvar | 0]
    L = LATENT_DIM
    mu = s[:, :L]
    logvar = s[:, L:2 * L]

    # ---- Reparameterization ----
    if training:
        z = mu + eps_ref[...] * jnp.exp(logvar * 0.5)
    else:
        z = mu

    # ---- Decoder ----
    d = _swish(dense(z, dw1_ref, db1o, HIDDEN))
    d = _swish(dense(d, dw2_ref, db2o, HIDDEN))
    d = _swish(dense(d, dw3_ref, db3o, HIDDEN))
    reconst_ref[...] = dense(d, dw4_ref, db4o, IMG_PAD).astype(reconst_ref.dtype)
    mulogvar_ref[...] = s


# ---------------------------------------------------------------------------
# Parameters
# ---------------------------------------------------------------------------
def init_params(key, latent_dim=LATENT_DIM):
    """PyTorch-equivalent f32 parameters. Weights stored as (in, out)."""
    def linear(key, fan_in, fan_out):
        kw, kb = jax.random.split(key)
        bound = 1.0 / jnp.sqrt(fan_in)
        w = jax.random.uniform(kw, (fan_in, fan_out), jnp.float32, -bound, bound)
        b = jax.random.uniform(kb, (1, fan_out), jnp.float32, -bound, bound)
        return w, b

    keys = jax.random.split(key, 8)
    w1, b1 = linear(keys[0], IMG_DIM, HIDDEN)
    w2, b2 = linear(keys[1], HIDDEN, HIDDEN)
    w31, b31 = linear(keys[2], HIDDEN, latent_dim)
    w32, b32 = linear(keys[3], HIDDEN, latent_dim)
    dw1, db1 = linear(keys[4], latent_dim, HIDDEN)
    dw2, db2 = linear(keys[5], HIDDEN, HIDDEN)
    dw3, db3 = linear(keys[6], HIDDEN, HIDDEN)
    dw4, db4 = linear(keys[7], HIDDEN, IMG_DIM)
    return (w1, b1, w2, b2, w31, b31, w32, b32,
            dw1, db1, dw2, db2, dw3, db3, dw4, db4)


def prepare_params(params):
    """One-time prep: fuse+pad mu/logvar head, pad 2352->2432, pack biases, cast weights bf16."""
    (w1, b1, w2, b2, w31, b31, w32, b32,
     dw1, db1, dw2, db2, dw3, db3, dw4, db4) = params
    assert 2 * LATENT_DIM <= MU_PAD

    w3 = jnp.concatenate([w31, w32], axis=1)                      # (512, 2L)
    b3 = jnp.concatenate([b31, b32], axis=1)                      # (1, 2L)
    w3p = jnp.pad(w3, ((0, 0), (0, MU_PAD - w3.shape[1])))        # (512, 128)
    b3p = jnp.pad(b3, ((0, 0), (0, MU_PAD - b3.shape[1])))        # (1, 128)
    w1p = jnp.pad(w1, ((0, IMG_PAD - IMG_DIM), (0, 0)))           # (2432, 512)
    dw4p = jnp.pad(dw4, ((0, 0), (0, IMG_PAD - IMG_DIM)))         # (512, 2432)
    db4p = jnp.pad(db4, ((0, 0), (0, IMG_PAD - IMG_DIM)))         # (1, 2432)

    bias_pack = jnp.concatenate([b1, b2, b3p, db1, db2, db3, db4p],
                                axis=1).astype(jnp.float32)       # (1, 5120)
    assert bias_pack.shape == (1, _BIAS_TOTAL)

    bf16 = lambda w: w.astype(jnp.bfloat16)
    return (bf16(w1p), bf16(w2), bf16(w3p),
            bf16(dw1), bf16(dw2), bf16(dw3), bf16(dw4p), bias_pack)


# ---------------------------------------------------------------------------
# Forward
# ---------------------------------------------------------------------------
@functools.partial(jax.jit, static_argnames=("training",))
def ssvae_forward(x_img, y, eps, prep_params, training=True):
    """SSVAE forward.

    x_img: (B, 3, 28, 28) f32; y: labels (unused, kept for parity with forward(x, y));
    eps: (B, latent_dim) N(0,1) draw (ignored in eval mode).
    Returns (img_reconst (B, 2352) f32, mu (B, L) f32, logvar (B, L) f32).
    """
    del y  # unused in SSVAE.forward, as in the reference module
    B = x_img.shape[0]
    L = LATENT_DIM

    # Batch tiling:
    #   B <= 16           : single full-array tile (no padding constraints).
    #   16 < B <= 2*TBmax : exactly 2 tiles (16-row aligned for bf16 sublane
    #                       packing) so the "parallel" axis uses both v7x TCs.
    #   larger            : TBmax-row tiles (256 on v6e/v7x, 128 on v5e).
    tb_max = _tb_max()
    if B <= 16:
        TB = _round_up(B, 8)
        B_pad = TB
    elif B <= 2 * tb_max:
        TB = _round_up(B, 32) // 2
        B_pad = 2 * TB
    else:
        TB = tb_max
        B_pad = _round_up(B, TB)
    grid = (B_pad // TB,)

    # Fused reshape + bf16 cast + pad: halves the x HBM stream into the kernel.
    x_p = jnp.pad(x_img.reshape(B, IMG_DIM).astype(jnp.bfloat16),
                  ((0, B_pad - B), (0, IMG_PAD - IMG_DIM)))

    inputs = [x_p]
    in_specs = [pl.BlockSpec((TB, IMG_PAD), lambda i: (i, 0))]
    if training:
        eps_p = jnp.pad(eps.astype(jnp.float32), ((0, B_pad - B), (0, 0)))
        inputs.append(eps_p)
        in_specs.append(pl.BlockSpec((TB, L), lambda i: (i, 0)))
    for p in prep_params:
        inputs.append(p)
        # Full-array block, constant index map (single-buffered when supported)
        # -> weights/biases stay VMEM-resident across batch tiles.
        in_specs.append(_weight_spec(p.shape))

    out_shapes = (
        jax.ShapeDtypeStruct((B_pad, IMG_PAD), jnp.bfloat16),   # padded reconst (bf16 writeback)
        jax.ShapeDtypeStruct((B_pad, MU_PAD), jnp.float32),     # [mu | logvar | 0]
    )
    out_specs = (
        pl.BlockSpec((TB, IMG_PAD), lambda i: (i, 0)),
        pl.BlockSpec((TB, MU_PAD), lambda i: (i, 0)),
    )

    reconst_p, mulogvar = pl.pallas_call(
        functools.partial(ssvae_kernel, training),
        out_shape=out_shapes,
        grid=grid,
        in_specs=in_specs,
        out_specs=out_specs,
        compiler_params=pltpu.CompilerParams(
            dimension_semantics=("parallel",),
            # ~6.5 MiB bf16 weights (x1 buffer when Buffered(1) is available,
            # x2 otherwise) + <=256-row bf16 I/O tiles: comfortably under the
            # 40 MiB limit, which itself is below v7x's 64 MiB physical VMEM.
            vmem_limit_bytes=40 << 20,
        ),
    )(*inputs)

    reconst = reconst_p[:B, :IMG_DIM].astype(jnp.float32)
    mu = mulogvar[:B, :L]
    logvar = mulogvar[:B, L:2 * L]
    return reconst, mu, logvar


# ---------------------------------------------------------------------------
# Reference + test
# ---------------------------------------------------------------------------
def ssvae_reference(x_img, eps, params, training=True):
    """Pure-JAX (XLA) reference mirroring the kernel's bf16 matmul quantization."""
    (w1, b1, w2, b2, w31, b31, w32, b32,
     dw1, db1, dw2, db2, dw3, db3, dw4, db4) = params
    B = x_img.shape[0]
    x = x_img.reshape(B, IMG_DIM)
    swish = lambda h: h * jax.nn.sigmoid(h)

    def dense(a, w, b):
        return jnp.dot(a.astype(jnp.bfloat16), w.astype(jnp.bfloat16),
                       preferred_element_type=jnp.float32) + b

    h = swish(dense(x, w1, b1))
    h = swish(dense(h, w2, b2))
    mu = dense(h, w31, b31)
    logvar = dense(h, w32, b32)
    z = mu + eps * jnp.exp(logvar / 2) if training else mu
    d = swish(dense(z, dw1, db1))
    d = swish(dense(d, dw2, db2))
    d = swish(dense(d, dw3, db3))
    reconst = dense(d, dw4, db4)
    return reconst, mu, logvar


def _check(got, want, atol=2e-2, rtol=2e-2):
    for g, w in zip(got, want):
        assert g.shape == w.shape, (g.shape, w.shape)
        assert jnp.allclose(g, w, atol=atol, rtol=rtol), float(jnp.max(jnp.abs(g - w)))


if __name__ == "__main__":
    key = jax.random.PRNGKey(0)
    k_x, k_eps, k_p, k_x2, k_eps2 = jax.random.split(key, 5)

    params = init_params(k_p, LATENT_DIM)
    prep = prepare_params(params)          # one-time: fuse / pad / pack / bf16-cast

    # --- small batch, training mode (single batch tile) ---
    B = 8
    x = jax.random.normal(k_x, (B, 3, 28, 28), jnp.float32)
    y = jnp.zeros((B,), jnp.int32)
    eps = jax.random.normal(k_eps, (B, LATENT_DIM), jnp.float32)

    out = ssvae_forward(x, y, eps, prep, training=True)
    jax.block_until_ready(out)
    _check(out, ssvae_reference(x, eps, params, training=True))
    assert out[0].shape == (B, IMG_DIM) and out[1].shape == (B, LATENT_DIM)

    # --- eval mode: eps input is dropped entirely (z = mu) ---
    out_eval = ssvae_forward(x, y, eps, prep, training=False)
    jax.block_until_ready(out_eval)
    _check(out_eval, ssvae_reference(x, eps, params, training=False))

    # --- larger batch: exercises the 2-tile parallel batch grid + row padding ---
    B2 = 160
    x2 = jax.random.normal(k_x2, (B2, 3, 28, 28), jnp.float32)
    y2 = jnp.zeros((B2,), jnp.int32)
    eps2 = jax.random.normal(k_eps2, (B2, LATENT_DIM), jnp.float32)
    out2 = ssvae_forward(x2, y2, eps2, prep, training=True)
    jax.block_until_ready(out2)
    _check(out2, ssvae_reference(x2, eps2, params, training=True))

    print("KERNEL_OK")
</pallas_src>

<mosaic_0001>
module attributes {stable_mosaic.version = 11 : i64} {
  func.func @_probe_kernel(%arg0: i32, %arg1: memref<8x128xf32, #tpu.memory_space<vmem>>, %arg2: memref<8x128xf32, #tpu.memory_space<vmem>>, %arg3: memref<8x128xf32, #tpu.memory_space<vmem>>) attributes {dimension_semantics = [#tpu.dimension_semantics<parallel>], iteration_bounds = array<i64: 2>, scalar_prefetch = 0 : i64, scratch_operands = 0 : i64, tpu.core_type = #tpu.core_type<tc>, window_params = [{transform_indices = @transform_0, window_bounds = array<i64: 8, 128>}, {pipeline_mode = #tpu.pipeline_mode<synchronous>, transform_indices = @transform_1, window_bounds = array<i64: 8, 128>}, {transform_indices = @transform_2, window_bounds = array<i64: 8, 128>}]} {
    %c0 = arith.constant 0 : index
    %c0_0 = arith.constant 0 : index
    %0 = vector.load %arg1[%c0, %c0_0] : memref<8x128xf32, #tpu.memory_space<vmem>>, vector<8x128xf32>
    %c0_1 = arith.constant 0 : index
    %c0_2 = arith.constant 0 : index
    %1 = vector.load %arg2[%c0_1, %c0_2] : memref<8x128xf32, #tpu.memory_space<vmem>>, vector<8x128xf32>
    %2 = arith.addf %0, %1 : vector<8x128xf32>
    %c0_3 = arith.constant 0 : index
    %c0_4 = arith.constant 0 : index
    %3 = vector.load %arg3[%c0_3, %c0_4] : memref<8x128xf32, #tpu.memory_space<vmem>>, vector<8x128xf32>
    tpu.vector_store %arg3[%c0_3, %c0_4], %2 {strides = array<i32>} : memref<8x128xf32, #tpu.memory_space<vmem>>, vector<8x128xf32>,
    return
  }
  func.func @transform_0(%arg0: i32) -> (i32, i32) {
    %c0_i32 = arith.constant 0 : i32
    %c0_i32_0 = arith.constant 0 : i32
    return %arg0, %c0_i32 : i32, i32
  }
  func.func @transform_1(%arg0: i32) -> (i32, i32) {
    %c0_i32 = arith.constant 0 : i32
    %c0_i32_0 = arith.constant 0 : i32
    %c0_i32_1 = arith.constant 0 : i32
    return %c0_i32, %c0_i32_0 : i32, i32
  }
  func.func @transform_2(%arg0: i32) -> (i32, i32) {
    %c0_i32 = arith.constant 0 : i32
    %c0_i32_0 = arith.constant 0 : i32
    return %arg0, %c0_i32 : i32, i32
  }
}

module attributes {stable_mosaic.version = 11 : i64} {
  func.func @ssvae_kernel(%arg0: i32, %arg1: memref<8x2432xbf16, #tpu.memory_space<vmem>>, %arg2: memref<8x32xf32, #tpu.memory_space<vmem>>, %arg3: memref<2432x512xbf16, #tpu.memory_space<vmem>>, %arg4: memref<512x512xbf16, #tpu.memory_space<vmem>>, %arg5: memref<512x128xbf16, #tpu.memory_space<vmem>>, %arg6: memref<32x512xbf16, #tpu.memory_space<vmem>>, %arg7: memref<512x512xbf16, #tpu.memory_space<vmem>>, %arg8: memref<512x512xbf16, #tpu.memory_space<vmem>>, %arg9: memref<512x2432xbf16, #tpu.memory_space<vmem>>, %arg10: memref<1x5120xf32, #tpu.memory_space<vmem>>, %arg11: memref<8x2432xbf16, #tpu.memory_space<vmem>>, %arg12: memref<8x128xf32, #tpu.memory_space<vmem>>) attributes {dimension_semantics = [#tpu.dimension_semantics<parallel>], iteration_bounds = array<i64: 1>, scalar_prefetch = 0 : i64, scratch_operands = 0 : i64, tpu.core_type = #tpu.core_type<tc>, window_params = [{transform_indices = @transform_0, window_bounds = array<i64: 8, 2432>}, {transform_indices = @transform_1, window_bounds = array<i64: 8, 32>}, {pipeline_mode = #tpu.pipeline_mode<synchronous>, transform_indices = @transform_2, window_bounds = array<i64: 2432, 512>}, {pipeline_mode = #tpu.pipeline_mode<synchronous>, transform_indices = @transform_3, window_bounds = array<i64: 512, 512>}, {pipeline_mode = #tpu.pipeline_mode<synchronous>, transform_indices = @transform_4, window_bounds = array<i64: 512, 128>}, {pipeline_mode = #tpu.pipeline_mode<synchronous>, transform_indices = @transform_5, window_bounds = array<i64: 32, 512>}, {pipeline_mode = #tpu.pipeline_mode<synchronous>, transform_indices = @transform_6, window_bounds = array<i64: 512, 512>}, {pipeline_mode = #tpu.pipeline_mode<synchronous>, transform_indices = @transform_7, window_bounds = array<i64: 512, 512>}, {pipeline_mode = #tpu.pipeline_mode<synchronous>, transform_indices = @transform_8, window_bounds = array<i64: 512, 2432>}, {pipeline_mode = #tpu.pipeline_mode<synchronous>, transform_indices = @transform_9, window_bounds = array<i64: 1, 5120>}, {transform_indices = @transform_10, window_bounds = array<i64: 8, 2432>}, {transform_indices = @transform_11, window_bounds = array<i64: 8, 128>}]} {
    %c0 = arith.constant 0 : index
    %c0_0 = arith.constant 0 : index
    %0 = vector.load %arg1[%c0, %c0_0] : memref<8x2432xbf16, #tpu.memory_space<vmem>>, vector<8x2432xbf16>
    %c0_1 = arith.constant 0 : index
    %c0_2 = arith.constant 0 : index
    %1 = vector.load %arg3[%c0_1, %c0_2] : memref<2432x512xbf16, #tpu.memory_space<vmem>>, vector<2432x512xbf16>
    %cst = arith.constant dense<0.000000e+00> : vector<8x512xf32>
    %2 = tpu.matmul %0, %1, %cst {dimension_numbers = #tpu.dot_dimension_numbers<[1], [0], [0], [1], [0, 0, 1, 1], [], []>} : vector<8x2432xbf16>, vector<2432x512xbf16>, vector<8x512xf32> -> vector<8x512xf32>
    %c0_3 = arith.constant 0 : index
    %c0_4 = arith.constant 0 : index
    %3 = vector.load %arg10[%c0_3, %c0_4] : memref<1x5120xf32, #tpu.memory_space<vmem>>, vector<1x512xf32>
    %4 = vector.broadcast %3 : vector<1x512xf32> to vector<8x512xf32>
    %5 = arith.addf %2, %4 : vector<8x512xf32>
    %cst_5 = arith.constant 5.000000e-01 : f32
    %6 = vector.broadcast %cst_5 : f32 to vector<8x512xf32>
    %7 = arith.mulf %6, %5 : vector<8x512xf32>
    %8 = math.tanh %7 : vector<8x512xf32>
    %cst_6 = arith.constant 5.000000e-01 : f32
    %9 = vector.broadcast %cst_6 : f32 to vector<8x512xf32>
    %10 = arith.mulf %9, %8 : vector<8x512xf32>
    %cst_7 = arith.constant 5.000000e-01 : f32
    %11 = vector.broadcast %cst_7 : f32 to vector<8x512xf32>
    %12 = arith.addf %10, %11 : vector<8x512xf32>
    %13 = arith.mulf %5, %12 : vector<8x512xf32>
    %14 = arith.truncf %13 : vector<8x512xf32> to vector<8x512xbf16>
    %c0_8 = arith.constant 0 : index
    %c0_9 = arith.constant 0 : index
    %15 = vector.load %arg4[%c0_8, %c0_9] : memref<512x512xbf16, #tpu.memory_space<vmem>>, vector<512x512xbf16>
    %cst_10 = arith.constant dense<0.000000e+00> : vector<8x512xf32>
    %16 = tpu.matmul %14, %15, %cst_10 {dimension_numbers = #tpu.dot_dimension_numbers<[1], [0], [0], [1], [0, 0, 1, 1], [], []>} : vector<8x512xbf16>, vector<512x512xbf16>, vector<8x512xf32> -> vector<8x512xf32>
    %c0_11 = arith.constant 0 : index
    %c512 = arith.constant 512 : index
    %17 = vector.load %arg10[%c0_11, %c512] : memref<1x5120xf32, #tpu.memory_space<vmem>>, vector<1x512xf32>
    %18 = vector.broadcast %17 : vector<1x512xf32> to vector<8x512xf32>
    %19 = arith.addf %16, %18 : vector<8x512xf32>
    %cst_12 = arith.constant 5.000000e-01 : f32
    %20 = vector.broadcast %cst_12 : f32 to vector<8x512xf32>
    %21 = arith.mulf %20, %19 : vector<8x512xf32>
    %22 = math.tanh %21 : vector<8x512xf32>
    %cst_13 = arith.constant 5.000000e-01 : f32
    %23 = vector.broadcast %cst_13 : f32 to vector<8x512xf32>
    %24 = arith.mulf %23, %22 : vector<8x512xf32>
    %cst_14 = arith.constant 5.000000e-01 : f32
    %25 = vector.broadcast %cst_14 : f32 to vector<8x512xf32>
    %26 = arith.addf %24, %25 : vector<8x512xf32>
    %27 = arith.mulf %19, %26 : vector<8x512xf32>
    %28 = arith.truncf %27 : vector<8x512xf32> to vector<8x512xbf16>
    %c0_15 = arith.constant 0 : index
    %c0_16 = arith.constant 0 : index
    %29 = vector.load %arg5[%c0_15, %c0_16] : memref<512x128xbf16, #tpu.memory_space<vmem>>, vector<512x128xbf16>
    %cst_17 = arith.constant dense<0.000000e+00> : vector<8x128xf32>
    %30 = tpu.matmul %28, %29, %cst_17 {dimension_numbers = #tpu.dot_dimension_numbers<[1], [0], [0], [1], [0, 0, 1, 1], [], []>} : vector<8x512xbf16>, vector<512x128xbf16>, vector<8x128xf32> -> vector<8x128xf32>
    %c0_18 = arith.constant 0 : index
    %c1024 = arith.constant 1024 : index
    %31 = vector.load %arg10[%c0_18, %c1024] : memref<1x5120xf32, #tpu.memory_space<vmem>>, vector<1x128xf32>
    %32 = vector.broadcast %31 : vector<1x128xf32> to vector<8x128xf32>
    %33 = arith.addf %30, %32 : vector<8x128xf32>
    %34 = vector.extract_strided_slice %33 {offsets = [0, 0], sizes = [8, 32], strides = [1, 1]} : vector<8x128xf32> to vector<8x32xf32>
    %35 = vector.extract_strided_slice %33 {offsets = [0, 32], sizes = [8, 32], strides = [1, 1]} : vector<8x128xf32> to vector<8x32xf32>
    %c0_19 = arith.constant 0 : index
    %c0_20 = arith.constant 0 : index
    %36 = vector.load %arg2[%c0_19, %c0_20] : memref<8x32xf32, #tpu.memory_space<vmem>>, vector<8x32xf32>
    %cst_21 = arith.constant 5.000000e-01 : f32
    %37 = vector.broadcast %cst_21 : f32 to vector<8x32xf32>
    %38 = arith.mulf %35, %37 : vector<8x32xf32>
    %39 = math.exp %38 : vector<8x32xf32>
    %40 = arith.mulf %36, %39 : vector<8x32xf32>
    %41 = arith.addf %34, %40 : vector<8x32xf32>
    %42 = arith.truncf %41 : vector<8x32xf32> to vector<8x32xbf16>
    %c0_22 = arith.constant 0 : index
    %c0_23 = arith.constant 0 : index
    %43 = vector.load %arg6[%c0_22, %c0_23] : memref<32x512xbf16, #tpu.memory_space<vmem>>, vector<32x512xbf16>
    %cst_24 = arith.constant dense<0.000000e+00> : vector<8x512xf32>
    %44 = tpu.matmul %42, %43, %cst_24 {dimension_numbers = #tpu.dot_dimension_numbers<[1], [0], [0], [1], [0, 0, 1, 1], [], []>} : vector<8x32xbf16>, vector<32x512xbf16>, vector<8x512xf32> -> vector<8x512xf32>
    %c0_25 = arith.constant 0 : index
    %c1152 = arith.constant 1152 : index
    %45 = vector.load %arg10[%c0_25, %c1152] : memref<1x5120xf32, #tpu.memory_space<vmem>>, vector<1x512xf32>
    %46 = vector.broadcast %45 : vector<1x512xf32> to vector<8x512xf32>
    %47 = arith.addf %44, %46 : vector<8x512xf32>
    %cst_26 = arith.constant 5.000000e-01 : f32
    %48 = vector.broadcast %cst_26 : f32 to vector<8x512xf32>
    %49 = arith.mulf %48, %47 : vector<8x512xf32>
    %50 = math.tanh %49 : vector<8x512xf32>
    %cst_27 = arith.constant 5.000000e-01 : f32
    %51 = vector.broadcast %cst_27 : f32 to vector<8x512xf32>
    %52 = arith.mulf %51, %50 : vector<8x512xf32>
    %cst_28 = arith.constant 5.000000e-01 : f32
    %53 = vector.broadcast %cst_28 : f32 to vector<8x512xf32>
    %54 = arith.addf %52, %53 : vector<8x512xf32>
    %55 = arith.mulf %47, %54 : vector<8x512xf32>
    %56 = arith.truncf %55 : vector<8x512xf32> to vector<8x512xbf16>
    %c0_29 = arith.constant 0 : index
    %c0_30 = arith.constant 0 : index
    %57 = vector.load %arg7[%c0_29, %c0_30] : memref<512x512xbf16, #tpu.memory_space<vmem>>, vector<512x512xbf16>
    %cst_31 = arith.constant dense<0.000000e+00> : vector<8x512xf32>
    %58 = tpu.matmul %56, %57, %cst_31 {dimension_numbers = #tpu.dot_dimension_numbers<[1], [0], [0], [1], [0, 0, 1, 1], [], []>} : vector<8x512xbf16>, vector<512x512xbf16>, vector<8x512xf32> -> vector<8x512xf32>
    %c0_32 = arith.constant 0 : index
    %c1664 = arith.constant 1664 : index
    %59 = vector.load %arg10[%c0_32, %c1664] : memref<1x5120xf32, #tpu.memory_space<vmem>>, vector<1x512xf32>
    %60 = vector.broadcast %59 : vector<1x512xf32> to vector<8x512xf32>
    %61 = arith.addf %58, %60 : vector<8x512xf32>
    %cst_33 = arith.constant 5.000000e-01 : f32
    %62 = vector.broadcast %cst_33 : f32 to vector<8x512xf32>
    %63 = arith.mulf %62, %61 : vector<8x512xf32>
    %64 = math.tanh %63 : vector<8x512xf32>
    %cst_34 = arith.constant 5.000000e-01 : f32
    %65 = vector.broadcast %cst_34 : f32 to vector<8x512xf32>
    %66 = arith.mulf %65, %64 : vector<8x512xf32>
    %cst_35 = arith.constant 5.000000e-01 : f32
    %67 = vector.broadcast %cst_35 : f32 to vector<8x512xf32>
    %68 = arith.addf %66, %67 : vector<8x512xf32>
    %69 = arith.mulf %61, %68 : vector<8x512xf32>
    %70 = arith.truncf %69 : vector<8x512xf32> to vector<8x512xbf16>
    %c0_36 = arith.constant 0 : index
    %c0_37 = arith.constant 0 : index
    %71 = vector.load %arg8[%c0_36, %c0_37] : memref<512x512xbf16, #tpu.memory_space<vmem>>, vector<512x512xbf16>
    %cst_38 = arith.constant dense<0.000000e+00> : vector<8x512xf32>
    %72 = tpu.matmul %70, %71, %cst_38 {dimension_numbers = #tpu.dot_dimension_numbers<[1], [0], [0], [1], [0, 0, 1, 1], [], []>} : vector<8x512xbf16>, vector<512x512xbf16>, vector<8x512xf32> -> vector<8x512xf32>
    %c0_39 = arith.constant 0 : index
    %c2176 = arith.constant 2176 : index
    %73 = vector.load %arg10[%c0_39, %c2176] : memref<1x5120xf32, #tpu.memory_space<vmem>>, vector<1x512xf32>
    %74 = vector.broadcast %73 : vector<1x512xf32> to vector<8x512xf32>
    %75 = arith.addf %72, %74 : vector<8x512xf32>
    %cst_40 = arith.constant 5.000000e-01 : f32
    %76 = vector.broadcast %cst_40 : f32 to vector<8x512xf32>
    %77 = arith.mulf %76, %75 : vector<8x512xf32>
    %78 = math.tanh %77 : vector<8x512xf32>
    %cst_41 = arith.constant 5.000000e-01 : f32
    %79 = vector.broadcast %cst_41 : f32 to vector<8x512xf32>
    %80 = arith.mulf %79, %78 : vector<8x512xf32>
    %cst_42 = arith.constant 5.000000e-01 : f32
    %81 = vector.broadcast %cst_42 : f32 to vector<8x512xf32>
    %82 = arith.addf %80, %81 : vector<8x512xf32>
    %83 = arith.mulf %75, %82 : vector<8x512xf32>
    %84 = arith.truncf %83 : vector<8x512xf32> to vector<8x512xbf16>
    %c0_43 = arith.constant 0 : index
    %c0_44 = arith.constant 0 : index
    %85 = vector.load %arg9[%c0_43, %c0_44] : memref<512x2432xbf16, #tpu.memory_space<vmem>>, vector<512x2432xbf16>
    %cst_45 = arith.constant dense<0.000000e+00> : vector<8x2432xf32>
    %86 = tpu.matmul %84, %85, %cst_45 {dimension_numbers = #tpu.dot_dimension_numbers<[1], [0], [0], [1], [0, 0, 1, 1], [], []>} : vector<8x512xbf16>, vector<512x2432xbf16>, vector<8x2432xf32> -> vector<8x2432xf32>
    %c0_46 = arith.constant 0 : index
    %c2688 = arith.constant 2688 : index
    %87 = vector.load %arg10[%c0_46, %c2688] : memref<1x5120xf32, #tpu.memory_space<vmem>>, vector<1x2432xf32>
    %88 = vector.broadcast %87 : vector<1x2432xf32> to vector<8x2432xf32>
    %89 = arith.addf %86, %88 : vector<8x2432xf32>
    %90 = arith.truncf %89 : vector<8x2432xf32> to vector<8x2432xbf16>
    %c0_47 = arith.constant 0 : index
    %c0_48 = arith.constant 0 : index
    %91 = vector.load %arg11[%c0_47, %c0_48] : memref<8x2432xbf16, #tpu.memory_space<vmem>>, vector<8x2432xbf16>
    tpu.vector_store %arg11[%c0_47, %c0_48], %90 {strides = array<i32>} : memref<8x2432xbf16, #tpu.memory_space<vmem>>, vector<8x2432xbf16>,
    %c0_49 = arith.constant 0 : index
    %c0_50 = arith.constant 0 : index
    %92 = vector.load %arg12[%c0_49, %c0_50] : memref<8x128xf32, #tpu.memory_space<vmem>>, vector<8x128xf32>
    tpu.vector_store %arg12[%c0_49, %c0_50], %33 {strides = array<i32>} : memref<8x128xf32, #tpu.memory_space<vmem>>, vector<8x128xf32>,
    return
  }
  func.func @transform_0(%arg0: i32) -> (i32, i32) {
    %c0_i32 = arith.constant 0 : i32
    %c0_i32_0 = arith.constant 0 : i32
    return %arg0, %c0_i32 : i32, i32
  }
  func.func @transform_1(%arg0: i32) -> (i32, i32) {
    %c0_i32 = arith.constant 0 : i32
    %c0_i32_0 = arith.constant 0 : i32
    return %arg0, %c0_i32 : i32, i32
  }
  func.func @transform_2(%arg0: i32) -> (i32, i32) {
    %c0_i32 = arith.constant 0 : i32
    %c0_i32_0 = arith.constant 0 : i32
    %c0_i32_1 = arith.constant 0 : i32
    return %c0_i32, %c0_i32_0 : i32, i32
  }
  func.func @transform_3(%arg0: i32) -> (i32, i32) {
    %c0_i32 = arith.constant 0 : i32
    %c0_i32_0 = arith.constant 0 : i32
    %c0_i32_1 = arith.constant 0 : i32
    return %c0_i32, %c0_i32_0 : i32, i32
  }
  func.func @transform_4(%arg0: i32) -> (i32, i32) {
    %c0_i32 = arith.constant 0 : i32
    %c0_i32_0 = arith.constant 0 : i32
    %c0_i32_1 = arith.constant 0 : i32
    return %c0_i32, %c0_i32_0 : i32, i32
  }
  func.func @transform_5(%arg0: i32) -> (i32, i32) {
    %c0_i32 = arith.constant 0 : i32
    %c0_i32_0 = arith.constant 0 : i32
    %c0_i32_1 = arith.constant 0 : i32
    return %c0_i32, %c0_i32_0 : i32, i32
  }
  func.func @transform_6(%arg0: i32) -> (i32, i32) {
    %c0_i32 = arith.constant 0 : i32
    %c0_i32_0 = arith.constant 0 : i32
    %c0_i32_1 = arith.constant 0 : i32
    return %c0_i32, %c0_i32_0 : i32, i32
  }
  func.func @transform_7(%arg0: i32) -> (i32, i32) {
    %c0_i32 = arith.constant 0 : i32
    %c0_i32_0 = arith.constant 0 : i32
    %c0_i32_1 = arith.constant 0 : i32
    return %c0_i32, %c0_i32_0 : i32, i32
  }
  func.func @transform_8(%arg0: i32) -> (i32, i32) {
    %c0_i32 = arith.constant 0 : i32
    %c0_i32_0 = arith.constant 0 : i32
    %c0_i32_1 = arith.constant 0 : i32
    return %c0_i32, %c0_i32_0 : i32, i32
  }
  func.func @transform_9(%arg0: i32) -> (i32, i32) {
    %c0_i32 = arith.constant 0 : i32
    %c0_i32_0 = arith.constant 0 : i32
    %c0_i32_1 = arith.constant 0 : i32
    return %c0_i32, %c0_i32_0 : i32, i32
  }
  func.func @transform_10(%arg0: i32) -> (i32, i32) {
    %c0_i32 = arith.constant 0 : i32
    %c0_i32_0 = arith.constant 0 : i32
    return %arg0, %c0_i32 : i32, i32
  }
  func.func @transform_11(%arg0: i32) -> (i32, i32) {
    %c0_i32 = arith.constant 0 : i32
    %c0_i32_0 = arith.constant 0 : i32
    return %arg0, %c0_i32 : i32, i32
  }
}

</mosaic_0001>

<llo_original>
// kernel: tpu_custom_call.1
$region0: #{tpu_custom_call.1}
  #allocation0 [shape = 'u32[]', space=smem, size = 0x4, offset = 0x4, fixed_abs, tag = 'smem constant byte address 0x4 - core index']
  #allocation1 [shape = 'u32[144,128]{1,0:T(1,128)}', space=vmem, size = 0x12000, scoped, tag = 'internal scratch']
  %s0 = inlined_call_operand.hbm [shape: f32[16,128], index: 0, kind: input, shape index: {}]
  %s1 = inlined_call_operand.hbm [shape: f32[8,128], index: 1, kind: input, shape index: {}]
  %s2 = inlined_call_operand.hbm [shape: f32[16,128], index: 2, kind: output, shape index: {}]
  %s3 = sld [smem:[#allocation0]]
  $region49: #{tpu_custom_call.1} parent=0
    _
  %s5 = ssub.s32 1, %s3
  %s6 = scalar_select 0, %s5, %s3
  $region1: #{tpu_custom_call.1} parent=0
    #allocation2 [shape = 'u8[8192]{0}', space=vmem, size = 0x2000, scoped, tag = 'input window, operand 0']
    #allocation3 [shape = 's32[2]{0}', space=sflag, size = 0x8, scoped, tag = 'scoped memory for tpu_custom_call.1']
    #allocation4 [shape = 's32[2]{0}', space=sflag, size = 0x8, scoped, tag = 'scoped memory for tpu_custom_call.1']
    #allocation5 [shape = 'u8[4096]{0}', space=vmem, size = 0x1000, scoped, tag = 'input window, operand 1, single buffered']
    #allocation6 [shape = 's32[1]{0}', space=sflag, size = 0x4, scoped, tag = 'scoped memory for tpu_custom_call.1']
    #allocation7 [shape = 'u8[8192]{0}', space=vmem, size = 0x2000, scoped, tag = 'output window, operand 0']
    %7 = vsyncpa [#allocation3], 0
    %s8 = scalar_lea.sflag [#allocation3], 1
    %9 = vsyncpa %s8, 0
    %10 = vsyncpa [#allocation6], 0
    %11 = vsyncpa [#allocation4], 0
    %s12 = scalar_lea.sflag [#allocation4], 1
    %13 = vsyncpa %s12, 0
    loop: start=0, step=1, limit=4
    $region2: #{tpu_custom_call.1} parent=1 // loop_pre_header
      _
    $region3: #{tpu_custom_call.1} parent=1 // loop_header
      %s15 = sphi 0, %s19
      %p16 = scmp.ge.s32.totalorder %s15, 4
      %s25 = sphi 0, %s27
      %s28 = sphi 0, %s25
      %s29 = sphi 0, %s28
      %s45 = sphi 0, %s29
      %s49 = sphi 0, %s49
      %s51 = sphi 0, %s49
      %s52 = sphi 0, %s51
      %s66 = sphi 0, %s52
      %s72 = sphi 0, %s74
      %s75 = sphi 0, %s72
      %s76 = sphi 0, %s75
      %s92 = sphi 0, %s76
    $region4: #{tpu_custom_call.1} parent=1 // loop_header_branch
      %18 = sbr.rel (%p16) target = $region8
    $region5: #{tpu_custom_call.1} parent=1 // loop_body
      %s20 = ssub.s32 %s15, 1
      %s21 = ssub.s32 %s15, 2
      %s22 = sadd.s32 %s15, 1
      %s23 = ssub.s32 %s15, %s22
      %p24 = scmp.eq.s32.totalorder %s23, 0
      %s26 = sadd.s32 %s25, 1
      %s27 = scalar_select %p24, %s25, %s26
      %p30 = pneg %p24
      %p31 = scmp.eq.s32.totalorder %s15, 1
      %p32 = por %p30, %p31
      %p33 = scmp.ne.s32.totalorder %s25, %s28
      %p34 = scmp.eq.s32.totalorder %s15, 0
      %p35 = por %p33, %p34
      %p36 = scmp.ne.s32.totalorder %s25, %s28
      %p37 = scmp.eq.s32.totalorder %s20, 1
      %p38 = por %p36, %p37
      %p39 = scmp.ne.s32.totalorder %s28, %s29
      %p40 = scmp.eq.s32.totalorder %s20, 0
      %p41 = por %p39, %p40
      %p42 = scmp.ne.s32.totalorder %s28, %s29
      %p43 = scmp.eq.s32.totalorder %s21, 1
      %p44 = por %p42, %p43
      %p46 = scmp.ne.s32.totalorder %s29, %s45
      %p47 = scmp.eq.s32.totalorder %s21, 0
      %p48 = por %p46, %p47
      %s50 = sadd.s32 %s49, 1
      %p53 = scmp.eq.s32.totalorder %s15, 1
      %p54 = scmp.ne.s32.totalorder %s49, %s51
      %p55 = scmp.eq.s32.totalorder %s15, 0
      %p56 = por %p54, %p55
      %p57 = scmp.ne.s32.totalorder %s49, %s51
      %p58 = scmp.eq.s32.totalorder %s20, 1
      %p59 = por %p57, %p58
      %p60 = scmp.ne.s32.totalorder %s51, %s52
      %p61 = scmp.eq.s32.totalorder %s20, 0
      %p62 = por %p60, %p61
      %p63 = scmp.ne.s32.totalorder %s51, %s52
      %p64 = scmp.eq.s32.totalorder %s21, 1
      %p65 = por %p63, %p64
      %p67 = scmp.ne.s32.totalorder %s52, %s66
      %p68 = scmp.eq.s32.totalorder %s21, 0
      %p69 = por %p67, %p68
      %s70 = ssub.s32 %s15, %s22
      %p71 = scmp.eq.s32.totalorder %s70, 0
      %s73 = sadd.s32 %s72, 1
      %s74 = scalar_select %p71, %s72, %s73
      %p77 = pneg %p71
      %p78 = scmp.eq.s32.totalorder %s15, 1
      %p79 = por %p77, %p78
      %p80 = scmp.ne.s32.totalorder %s72, %s75
      %p81 = scmp.eq.s32.totalorder %s15, 0
      %p82 = por %p80, %p81
      %p83 = scmp.ne.s32.totalorder %s72, %s75
      %p84 = scmp.eq.s32.totalorder %s20, 1
      %p85 = por %p83, %p84
      %p86 = scmp.ne.s32.totalorder %s75, %s76
      %p87 = scmp.eq.s32.totalorder %s20, 0
      %p88 = por %p86, %p87
      %p89 = scmp.ne.s32.totalorder %s75, %s76
      %p90 = scmp.eq.s32.totalorder %s21, 1
      %p91 = por %p89, %p90
      %p93 = scmp.ne.s32.totalorder %s76, %s92
      %p94 = scmp.eq.s32.totalorder %s21, 0
      %p95 = por %p93, %p94
      %p96 = scmp.le.s32.totalorder 1, %s15
      %p97 = scmp.lt.s32.totalorder %s15, 3
      %p98 = pnand %p96, %p97
      %p99 = pneg %p98
      // Predicated region
      $region9: #{tpu_custom_call.1} parent=5 // pred_check
        _
      $region10: #{tpu_custom_call.1} parent=5 // pred_check_branch
        %101 = sbr.rel (%p98) target = $region12
      $region11: #{tpu_custom_call.1} parent=5 // pred_region
        %s102 = ssub.s32 %s15, 1
        // Predicated region
        $region13: #{tpu_custom_call.1} parent=11 // pred_check
          %p103 = pneg %p62
        $region14: #{tpu_custom_call.1} parent=11 // pred_check_branch
          %105 = sbr.rel (%p103) target = $region16
        $region15: #{tpu_custom_call.1} parent=11 // pred_region
          %s107 = ssub.s32 128, 128
          %108 = vsyncadd [#allocation6], %s107
          %s110 = sshll.u32 [#allocation5], 4
          %s111 = int_to_ptr.vmem [resolvable:$true] %s110
          %113 = dma.hbm_to_vmem [thread:$0]  %s1, 128, %s111, [#allocation6]
        $region16: #{tpu_custom_call.1} parent=11 // pred_fallthru
          _
      $region12: #{tpu_custom_call.1} parent=5 // pred_fallthru
        _
      %p114 = scmp.lt.s32.totalorder %s15, 2
      // Predicated region
      $region17: #{tpu_custom_call.1} parent=5 // pred_check
        %p115 = pneg %p114
      $region18: #{tpu_custom_call.1} parent=5 // pred_check_branch
        %117 = sbr.rel (%p115) target = $region20
      $region19: #{tpu_custom_call.1} parent=5 // pred_region
        // Predicated region
        $region21: #{tpu_custom_call.1} parent=19 // pred_check
          %p118 = pneg %p35
        $region22: #{tpu_custom_call.1} parent=19 // pred_check_branch
          %120 = sbr.rel (%p118) target = $region24
        $region23: #{tpu_custom_call.1} parent=19 // pred_region
          %s121 = sand.u32 %s25, 1
          %s122 = scalar_lea.sflag [#allocation3], %s121
          %s123 = sand.u32 %s25, 1
          %s124 = smul.addr %s123, 8
          %s125 = scalar_lea.vmem [#allocation2], %s124
          %s127 = ssub.s32 128, 128
          %128 = vsyncadd %s122, %s127
          %s129 = smul.addr %s15, 128
          %s130 = scalar_lea.hbm %s0, %s129
          %s132 = sshll.u32 %s125, 4
          %s133 = int_to_ptr.vmem [resolvable:$true] %s132
          %135 = dma.hbm_to_vmem [thread:$0]  %s130, 128, %s133, %s122
        $region24: #{tpu_custom_call.1} parent=19 // pred_fallthru
          _
      $region20: #{tpu_custom_call.1} parent=5 // pred_fallthru
        _
      %p136 = scmp.le.s32.totalorder 1, %s15
      %p137 = scmp.lt.s32.totalorder %s15, 3
      %p138 = pnand %p136, %p137
      %p139 = pneg %p138
      // Predicated region
      $region25: #{tpu_custom_call.1} parent=5 // pred_check
        _
      $region26: #{tpu_custom_call.1} parent=5 // pred_check_branch
        %141 = sbr.rel (%p138) target = $region28
      $region27: #{tpu_custom_call.1} parent=5 // pred_region
        %s142 = ssub.s32 %s15, 1
        %s143 = sand.u32 %s28, 1
        %s144 = scalar_lea.sflag [#allocation3], %s143
        %s145 = sand.u32 %s28, 1
        %s146 = smul.addr %s145, 8
        %s147 = scalar_lea.vmem [#allocation2], %s146
        // Predicated region
        $region29: #{tpu_custom_call.1} parent=27 // pred_check
          %p148 = pneg %p41
        $region30: #{tpu_custom_call.1} parent=27 // pred_check_branch
          %150 = sbr.rel (%p148) target = $region32
        $region31: #{tpu_custom_call.1} parent=27 // pred_region
          %151 = dma.done %s144, 128
        $region32: #{tpu_custom_call.1} parent=27 // pred_fallthru
          _
        // Predicated region
        $region33: #{tpu_custom_call.1} parent=27 // pred_check
          %p152 = pneg %p62
        $region34: #{tpu_custom_call.1} parent=27 // pred_check_branch
          %154 = sbr.rel (%p152) target = $region36
        $region35: #{tpu_custom_call.1} parent=27 // pred_region
          %155 = dma.done [#allocation6], 128
        $region36: #{tpu_custom_call.1} parent=27 // pred_fallthru
          _
        %s156 = sand.u32 %s28, 1
        %s157 = scalar_lea.sflag [#allocation3], %s156
        %s158 = sand.u32 %s28, 1
        %s159 = smul.addr %s158, 8
        %s160 = scalar_lea.vmem [#allocation2], %s159
        %p161 = pneg %p41
        %p162 = pneg %p38
        %p163 = pneg %p62
        %p164 = pneg %p59
        %p165 = pneg %p88
        %p166 = pneg %p85
        %s167 = sand.u32 %s75, 1
        %s168 = scalar_lea.sflag [#allocation4], %s167
        %s169 = sand.u32 %s75, 1
        %s170 = smul.addr %s169, 8
        %s171 = scalar_lea.vmem [#allocation7], %s170
        %v172 = vld [vmem:[%s147] sm:$0xff]
        %v173 = vld [vmem:[#allocation5] sm:$0xff]
        %v174 = vadd.f32 %v172, %v173
        %175 = vst [vmem:[%s171] sm:$0xff] %v174
        %s176 = sand.u32 %s75, 1
        %s177 = scalar_lea.sflag [#allocation4], %s176
        %s178 = sand.u32 %s75, 1
        %s179 = smul.addr %s178, 8
        %s180 = scalar_lea.vmem [#allocation7], %s179
        // Predicated region
        $region37: #{tpu_custom_call.1} parent=27 // pred_check
          %p181 = pneg %p85
        $region38: #{tpu_custom_call.1} parent=27 // pred_check_branch
          %183 = sbr.rel (%p181) target = $region40
        $region39: #{tpu_custom_call.1} parent=27 // pred_region
          %s185 = ssub.s32 128, 128
          %186 = vsyncadd %s177, %s185
          %s187 = smul.addr %s20, 128
          %s188 = scalar_lea.hbm %s2, %s187
          %s190 = sshll.u32 %s180, 4
          %s191 = int_to_ptr.vmem [resolvable:$true] %s190
          %193 = dma.vmem_to_hbm [thread:$0]  %s191, 128, %s188, %s177
        $region40: #{tpu_custom_call.1} parent=27 // pred_fallthru
          _
      $region28: #{tpu_custom_call.1} parent=5 // pred_fallthru
        _
      %p194 = scmp.le.s32.totalorder 2, %s15
      // Predicated region
      $region41: #{tpu_custom_call.1} parent=5 // pred_check
        %p195 = pneg %p194
      $region42: #{tpu_custom_call.1} parent=5 // pred_check_branch
        %197 = sbr.rel (%p195) target = $region44
      $region43: #{tpu_custom_call.1} parent=5 // pred_region
        %s198 = ssub.s32 %s15, 2
        // Predicated region
        $region45: #{tpu_custom_call.1} parent=43 // pred_check
          %p199 = pneg %p91
        $region46: #{tpu_custom_call.1} parent=43 // pred_check_branch
          %201 = sbr.rel (%p199) target = $region48
        $region47: #{tpu_custom_call.1} parent=43 // pred_region
          %s202 = sand.u32 %s76, 1
          %s203 = scalar_lea.sflag [#allocation4], %s202
          %s204 = sand.u32 %s76, 1
          %s205 = smul.addr %s204, 8
          %s206 = scalar_lea.vmem [#allocation7], %s205
          %207 = dma.done %s203, 128
        $region48: #{tpu_custom_call.1} parent=43 // pred_fallthru
          _
      $region44: #{tpu_custom_call.1} parent=5 // pred_fallthru
        _
    $region6: #{tpu_custom_call.1} parent=1 // loop_footer
      %s19 = sadd.s32 1, %s15
    $region7: #{tpu_custom_call.1} parent=1 // loop_footer_branch
      %14 = sbr.rel target = $region3
    $region8: #{tpu_custom_call.1} parent=1 // loop_exit
      _
    %208 = vsyncpa [#allocation3], 1
    %s209 = scalar_lea.sflag [#allocation3], 1
    %210 = vsyncpa %s209, 1
    %211 = vsyncpa [#allocation6], 1
    %212 = vsyncpa [#allocation4], 1
    %s213 = scalar_lea.sflag [#allocation4], 1
    %214 = vsyncpa %s213, 1

// kernel: ssvae_forward.1
$region0: #{ssvae_forward.1}
  #allocation0 [shape = 'u32[]', space=smem, size = 0x4, offset = 0x4, fixed_abs, tag = 'smem constant byte address 0x4 - core index']
  #allocation1 [shape = 'u32[144,128]{1,0:T(1,128)}', space=vmem, size = 0x12000, scoped, tag = 'internal scratch']
  %s0 = inlined_call_operand.vmem [shape: bf16[8,2432], index: 0, kind: input, shape index: {}]
  %s1 = inlined_call_operand.hbm [shape: f32[8,32], index: 1, kind: input, shape index: {}]
  %s2 = inlined_call_operand.hbm [shape: bf16[2432,512], index: 2, kind: input, shape index: {}]
  %s3 = inlined_call_operand.hbm [shape: bf16[512,512], index: 3, kind: input, shape index: {}]
  %s4 = inlined_call_operand.hbm [shape: bf16[512,128], index: 4, kind: input, shape index: {}]
  %s5 = inlined_call_operand.hbm [shape: bf16[32,512], index: 5, kind: input, shape index: {}]
  %s6 = inlined_call_operand.hbm [shape: bf16[512,512], index: 6, kind: input, shape index: {}]
  %s7 = inlined_call_operand.hbm [shape: bf16[512,512], index: 7, kind: input, shape index: {}]
  %s8 = inlined_call_operand.hbm [shape: bf16[512,2432], index: 8, kind: input, shape index: {}]
  %s9 = inlined_call_operand.hbm [shape: f32[1,5120], index: 9, kind: input, shape index: {}]
  %s10 = inlined_call_operand.vmem [shape: bf16[8,2432], index: 10, kind: output, shape index: {0}]
  %s11 = inlined_call_operand.vmem [shape: f32[8,128], index: 11, kind: output, shape index: {1}]
  %12 = xla_tuple %s10, %s11
  %s13 = sld [smem:[#allocation0]]
  $region94: #{ssvae_forward.1} parent=0
    _
  %s15 = ssub.s32 1, %s13
  %s16 = scalar_select 0, %s15, %s13
  $region1: #{ssvae_forward.1} parent=0
    #allocation2 [shape = 'u8[4096]{0}', space=vmem, size = 0x1000, scoped, tag = 'input window, operand 1, single buffered']
    #allocation3 [shape = 's32[1]{0}', space=sflag, size = 0x4, scoped, tag = 'scoped memory for ssvae_forward.1']
    #allocation4 [shape = 'u8[2490368]{0}', space=vmem, size = 0x260000, scoped, tag = 'input window, operand 2, single buffered']
    #allocation5 [shape = 's32[1]{0}', space=sflag, size = 0x4, scoped, tag = 'scoped memory for ssvae_forward.1']
    #allocation6 [shape = 'u8[524288]{0}', space=vmem, size = 0x80000, scoped, tag = 'input window, operand 3, single buffered']
    #allocation7 [shape = 'u8[131072]{0}', space=vmem, size = 0x20000, scoped, tag = 'input window, operand 4, single buffered']
    #allocation8 [shape = 's32[1]{0}', space=sflag, size = 0x4, scoped, tag = 'scoped memory for ssvae_forward.1']
    #allocation9 [shape = 'u8[32768]{0}', space=vmem, size = 0x8000, scoped, tag = 'input window, operand 5, single buffered']
    #allocation10 [shape = 'u8[524288]{0}', space=vmem, size = 0x80000, scoped, tag = 'input window, operand 6, single buffered']
    #allocation11 [shape = 's32[1]{0}', space=sflag, size = 0x4, scoped, tag = 'scoped memory for ssvae_forward.1']
    #allocation12 [shape = 'u8[524288]{0}', space=vmem, size = 0x80000, scoped, tag = 'input window, operand 7, single buffered']
    #allocation13 [shape = 'u8[2490368]{0}', space=vmem, size = 0x260000, scoped, tag = 'input window, operand 8, single buffered']
    #allocation14 [shape = 's32[1]{0}', space=sflag, size = 0x4, scoped, tag = 'scoped memory for ssvae_forward.1']
    #allocation15 [shape = 'u8[20480]{0}', space=vmem, size = 0x5000, scoped, tag = 'input window, operand 9, single buffered']
    %17 = vsyncpa [#allocation3], 0
    %18 = vsyncpa [#allocation5], 0
    %19 = vsyncpa [#allocation8], 0
    %20 = vsyncpa [#allocation11], 0
    %21 = vsyncpa [#allocation14], 0
    // Predicated region
    $region2: #{ssvae_forward.1} parent=1 // pred_check
      _
    $region3: #{ssvae_forward.1} parent=1 // pred_check_branch
      %23 = sbr.rel (0) target = $region5
    $region4: #{ssvae_forward.1} parent=1 // pred_region
      _
    $region5: #{ssvae_forward.1} parent=1 // pred_fallthru
      _
    // Predicated region
    $region6: #{ssvae_forward.1} parent=1 // pred_check
      _
    $region7: #{ssvae_forward.1} parent=1 // pred_check_branch
      %25 = sbr.rel (0) target = $region9
    $region8: #{ssvae_forward.1} parent=1 // pred_region
      %s27 = ssub.s32 128, 128
      %28 = vsyncadd [#allocation3], %s27
      %s30 = sshll.u32 [#allocation2], 4
      %s31 = int_to_ptr.vmem [resolvable:$true] %s30
      %33 = dma.hbm_to_vmem [thread:$0]  %s1, 128, %s31, [#allocation3]
    $region9: #{ssvae_forward.1} parent=1 // pred_fallthru
      _
    // Predicated region
    $region10: #{ssvae_forward.1} parent=1 // pred_check
      _
    $region11: #{ssvae_forward.1} parent=1 // pred_check_branch
      %35 = sbr.rel (0) target = $region13
    $region12: #{ssvae_forward.1} parent=1 // pred_region
      %s37 = ssub.s32 77824, 77824
      %38 = vsyncadd [#allocation5], %s37
      %s39 = sshll.u32 [#allocation4], 4
      %s40 = int_to_ptr.vmem [resolvable:$true] %s39
      %45 = dma.hbm_to_vmem [thread:$0]  %s2, 77824, %s40, [#allocation5], 256, 256, 16
    $region13: #{ssvae_forward.1} parent=1 // pred_fallthru
      _
    // Predicated region
    $region14: #{ssvae_forward.1} parent=1 // pred_check
      _
    $region15: #{ssvae_forward.1} parent=1 // pred_check_branch
      %47 = sbr.rel (0) target = $region17
    $region16: #{ssvae_forward.1} parent=1 // pred_region
      %s49 = ssub.s32 16384, 16384
      %50 = vsyncadd [#allocation5], %s49
      %s51 = sshll.u32 [#allocation6], 4
      %s52 = int_to_ptr.vmem [resolvable:$true] %s51
      %57 = dma.hbm_to_vmem [thread:$0]  %s3, 16384, %s52, [#allocation5], 256, 256, 16
    $region17: #{ssvae_forward.1} parent=1 // pred_fallthru
      _
    // Predicated region
    $region18: #{ssvae_forward.1} parent=1 // pred_check
      _
    $region19: #{ssvae_forward.1} parent=1 // pred_check_branch
      %59 = sbr.rel (0) target = $region21
    $region20: #{ssvae_forward.1} parent=1 // pred_region
      %s61 = ssub.s32 4096, 4096
      %62 = vsyncadd [#allocation8], %s61
      %s63 = sshll.u32 [#allocation7], 4
      %s64 = int_to_ptr.vmem [resolvable:$true] %s63
      %69 = dma.hbm_to_vmem [thread:$0]  %s4, 4096, %s64, [#allocation8], 64, 64, 4
    $region21: #{ssvae_forward.1} parent=1 // pred_fallthru
      _
    // Predicated region
    $region22: #{ssvae_forward.1} parent=1 // pred_check
      _
    $region23: #{ssvae_forward.1} parent=1 // pred_check_branch
      %71 = sbr.rel (0) target = $region25
    $region24: #{ssvae_forward.1} parent=1 // pred_region
      %s73 = ssub.s32 1024, 1024
      %74 = vsyncadd [#allocation8], %s73
      %s75 = sshll.u32 [#allocation9], 4
      %s76 = int_to_ptr.vmem [resolvable:$true] %s75
      %81 = dma.hbm_to_vmem [thread:$0]  %s5, 1024, %s76, [#allocation8], 256, 256, 16
    $region25: #{ssvae_forward.1} parent=1 // pred_fallthru
      _
    // Predicated region
    $region26: #{ssvae_forward.1} parent=1 // pred_check
      _
    $region27: #{ssvae_forward.1} parent=1 // pred_check_branch
      %83 = sbr.rel (0) target = $region29
    $region28: #{ssvae_forward.1} parent=1 // pred_region
      %s85 = ssub.s32 16384, 16384
      %86 = vsyncadd [#allocation11], %s85
      %s87 = sshll.u32 [#allocation10], 4
      %s88 = int_to_ptr.vmem [resolvable:$true] %s87
      %93 = dma.hbm_to_vmem [thread:$0]  %s6, 16384, %s88, [#allocation11], 256, 256, 16
    $region29: #{ssvae_forward.1} parent=1 // pred_fallthru
      _
    // Predicated region
    $region30: #{ssvae_forward.1} parent=1 // pred_check
      _
    $region31: #{ssvae_forward.1} parent=1 // pred_check_branch
      %95 = sbr.rel (0) target = $region33
    $region32: #{ssvae_forward.1} parent=1 // pred_region
      %s97 = ssub.s32 16384, 16384
      %98 = vsyncadd [#allocation11], %s97
      %s99 = sshll.u32 [#allocation12], 4
      %s100 = int_to_ptr.vmem [resolvable:$true] %s99
      %105 = dma.hbm_to_vmem [thread:$0]  %s7, 16384, %s100, [#allocation11], 256, 256, 16
    $region33: #{ssvae_forward.1} parent=1 // pred_fallthru
      _
    // Predicated region
    $region34: #{ssvae_forward.1} parent=1 // pred_check
      _
    $region35: #{ssvae_forward.1} parent=1 // pred_check_branch
      %107 = sbr.rel (0) target = $region37
    $region36: #{ssvae_forward.1} parent=1 // pred_region
      %s109 = ssub.s32 77824, 77824
      %110 = vsyncadd [#allocation14], %s109
      %s111 = sshll.u32 [#allocation13], 4
      %s112 = int_to_ptr.vmem [resolvable:$true] %s111
      %117 = dma.hbm_to_vmem [thread:$0]  %s8, 77824, %s112, [#allocation14], 1216, 1216, 76
    $region37: #{ssvae_forward.1} parent=1 // pred_fallthru
      _
    // Predicated region
    $region38: #{ssvae_forward.1} parent=1 // pred_check
      _
    $region39: #{ssvae_forward.1} parent=1 // pred_check_branch
      %119 = sbr.rel (0) target = $region41
    $region40: #{ssvae_forward.1} parent=1 // pred_region
      %s121 = ssub.s32 640, 640
      %122 = vsyncadd [#allocation14], %s121
      %s124 = sshll.u32 [#allocation15], 4
      %s125 = int_to_ptr.vmem [resolvable:$true] %s124
      %127 = dma.hbm_to_vmem [thread:$0]  %s9, 640, %s125, [#allocation14]
    $region41: #{ssvae_forward.1} parent=1 // pred_fallthru
      _
    // Predicated region
    $region42: #{ssvae_forward.1} parent=1 // pred_check
      _
    $region43: #{ssvae_forward.1} parent=1 // pred_check_branch
      %129 = sbr.rel (0) target = $region45
    $region44: #{ssvae_forward.1} parent=1 // pred_region
      %130 = dma.done [#allocation3], 128
    $region45: #{ssvae_forward.1} parent=1 // pred_fallthru
      _
    // Predicated region
    $region46: #{ssvae_forward.1} parent=1 // pred_check
      _
    $region47: #{ssvae_forward.1} parent=1 // pred_check_branch
      %132 = sbr.rel (0) target = $region49
    $region48: #{ssvae_forward.1} parent=1 // pred_region
      %133 = dma.done [#allocation5], 77824
    $region49: #{ssvae_forward.1} parent=1 // pred_fallthru
      _
    // Predicated region
    $region50: #{ssvae_forward.1} parent=1 // pred_check
      _
    $region51: #{ssvae_forward.1} parent=1 // pred_check_branch
      %135 = sbr.rel (0) target = $region53
    $region52: #{ssvae_forward.1} parent=1 // pred_region
      %136 = dma.done [#allocation5], 16384
    $region53: #{ssvae_forward.1} parent=1 // pred_fallthru
      _
    // Predicated region
    $region54: #{ssvae_forward.1} parent=1 // pred_check
      _
    $region55: #{ssvae_forward.1} parent=1 // pred_check_branch
      %138 = sbr.rel (0) target = $region57
    $region56: #{ssvae_forward.1} parent=1 // pred_region
      %139 = dma.done [#allocation8], 4096
    $region57: #{ssvae_forward.1} parent=1 // pred_fallthru
      _
    // Predicated region
    $region58: #{ssvae_forward.1} parent=1 // pred_check
      _
    $region59: #{ssvae_forward.1} parent=1 // pred_check_branch
      %141 = sbr.rel (0) target = $region61
    $region60: #{ssvae_forward.1} parent=1 // pred_region
      %142 = dma.done [#allocation8], 1024
    $region61: #{ssvae_forward.1} parent=1 // pred_fallthru
      _
    // Predicated region
    $region62: #{ssvae_forward.1} parent=1 // pred_check
      _
    $region63: #{ssvae_forward.1} parent=1 // pred_check_branch
      %144 = sbr.rel (0) target = $region65
    $region64: #{ssvae_forward.1} parent=1 // pred_region
      %145 = dma.done [#allocation11], 16384
    $region65: #{ssvae_forward.1} parent=1 // pred_fallthru
      _
    // Predicated region
    $region66: #{ssvae_forward.1} parent=1 // pred_check
      _
    $region67: #{ssvae_forward.1} parent=1 // pred_check_branch
      %147 = sbr.rel (0) target = $region69
    $region68: #{ssvae_forward.1} parent=1 // pred_region
      %148 = dma.done [#allocation11], 16384
    $region69: #{ssvae_forward.1} parent=1 // pred_fallthru
      _
    // Predicated region
    $region70: #{ssvae_forward.1} parent=1 // pred_check
      _
    $region71: #{ssvae_forward.1} parent=1 // pred_check_branch
      %150 = sbr.rel (0) target = $region73
    $region72: #{ssvae_forward.1} parent=1 // pred_region
      %151 = dma.done [#allocation14], 77824
    $region73: #{ssvae_forward.1} parent=1 // pred_fallthru
      _
    // Predicated region
    $region74: #{ssvae_forward.1} parent=1 // pred_check
      _
    $region75: #{ssvae_forward.1} parent=1 // pred_check_branch
      %153 = sbr.rel (0) target = $region77
    $region76: #{ssvae_forward.1} parent=1 // pred_region
      %154 = dma.done [#allocation14], 640
    $region77: #{ssvae_forward.1} parent=1 // pred_fallthru
      _
    %v156 = vld [vmem:[%s0] sm:$0xff]
    %v157 = vld [vmem:[%s0 + $0x8] sm:$0xff]
    %v158 = vld [vmem:[%s0 + $0x10] sm:$0xff]
    %v159 = vld [vmem:[%s0 + $0x18] sm:$0xff]
    %v160 = vld [vmem:[%s0 + $0x20] sm:$0xff]
    %v161 = vld [vmem:[%s0 + $0x28] sm:$0xff]
    %v162 = vld [vmem:[%s0 + $0x30] sm:$0xff]
    %v163 = vld [vmem:[%s0 + $0x38] sm:$0xff]
    %v164 = vld [vmem:[%s0 + $0x40] sm:$0xff]
    %v165 = vld [vmem:[%s0 + $0x48] sm:$0xf]
    %v166 = vld [vmem:[#allocation4] sm:$0xff]
    %v167 = vld [vmem:[#allocation4 + $0x8] sm:$0xff]
    %v168 = vld [vmem:[#allocation4 + $0x10] sm:$0xff]
    %v169 = vld [vmem:[#allocation4 + $0x18] sm:$0xff]
    %v170 = vld [vmem:[#allocation4 + $0x20] sm:$0xff]
    %v171 = vld [vmem:[#allocation4 + $0x28] sm:$0xff]
    %v172 = vld [vmem:[#allocation4 + $0x30] sm:$0xff]
    %v173 = vld [vmem:[#allocation4 + $0x38] sm:$0xff]
    %v174 = vld [vmem:[#allocation4 + $0x40] sm:$0xff]
    %v175 = vld [vmem:[#allocation4 + $0x48] sm:$0xff]
    %v176 = vld [vmem:[#allocation4 + $0x50] sm:$0xff]
    %v177 = vld [vmem:[#allocation4 + $0x58] sm:$0xff]
    %v178 = vld [vmem:[#allocation4 + $0x60] sm:$0xff]
    %v179 = vld [vmem:[#allocation4 + $0x68] sm:$0xff]
    %v180 = vld [vmem:[#allocation4 + $0x70] sm:$0xff]
    %v181 = vld [vmem:[#allocation4 + $0x78] sm:$0xff]
    %v182 = vld [vmem:[#allocation4 + $0x80] sm:$0xff]
    %v183 = vld [vmem:[#allocation4 + $0x88] sm:$0xff]
    %v184 = vld [vmem:[#allocation4 + $0x90] sm:$0xff]
    %v185 = vld [vmem:[#allocation4 + $0x98] sm:$0xff]
    %v186 = vld [vmem:[#allocation4 + $0xa0] sm:$0xff]
    %v187 = vld [vmem:[#allocation4 + $0xa8] sm:$0xff]
    %v188 = vld [vmem:[#allocation4 + $0xb0] sm:$0xff]
    %v189 = vld [vmem:[#allocation4 + $0xb8] sm:$0xff]
    %v190 = vld [vmem:[#allocation4 + $0xc0] sm:$0xff]
    %v191 = vld [vmem:[#allocation4 + $0xc8] sm:$0xff]
    %v192 = vld [vmem:[#allocation4 + $0xd0] sm:$0xff]
    %v193 = vld [vmem:[#allocation4 + $0xd8] sm:$0xff]
    %v194 = vld [vmem:[#allocation4 + $0xe0] sm:$0xff]
    %v195 = vld [vmem:[#allocation4 + $0xe8] sm:$0xff]
    %v196 = vld [vmem:[#allocation4 + $0xf0] sm:$0xff]
    %v197 = vld [vmem:[#allocation4 + $0xf8] sm:$0xff]
    %v198 = vld [vmem:[#allocation4 + $0x100] sm:$0xff]
    %v199 = vld [vmem:[#allocation4 + $0x108] sm:$0xff]
    %v200 = vld [vmem:[#allocation4 + $0x110] sm:$0xff]
    %v201 = vld [vmem:[#allocation4 + $0x118] sm:$0xff]
    %v202 = vld [vmem:[#allocation4 + $0x120] sm:$0xff]
    %v203 = vld [vmem:[#allocation4 + $0x128] sm:$0xff]
    %v204 = vld [vmem:[#allocation4 + $0x130] sm:$0xff]
    %v205 = vld [vmem:[#allocation4 + $0x138] sm:$0xff]
    %v206 = vld [vmem:[#allocation4 + $0x140] sm:$0xff]
    %v207 = vld [vmem:[#allocation4 + $0x148] sm:$0xff]
    %v208 = vld [vmem:[#allocation4 + $0x150] sm:$0xff]
    %v209 = vld [vmem:[#allocation4 + $0x158] sm:$0xff]
    %v210 = vld [vmem:[#allocation4 + $0x160] sm:$0xff]
    %v211 = vld [vmem:[#allocation4 + $0x168] sm:$0xff]
    %v212 = vld [vmem:[#allocation4 + $0x170] sm:$0xff]
    %v213 = vld [vmem:[#allocation4 + $0x178] sm:$0xff]
    %v214 = vld [vmem:[#allocation4 + $0x180] sm:$0xff]
    %v215 = vld [vmem:[#allocation4 + $0x188] sm:$0xff]
    %v216 = vld [vmem:[#allocation4 + $0x190] sm:$0xff]
    %v217 = vld [vmem:[#allocation4 + $0x198] sm:$0xff]
    %v218 = vld [vmem:[#allocation4 + $0x1a0] sm:$0xff]
    %v219 = vld [vmem:[#allocation4 + $0x1a8] sm:$0xff]
    %v220 = vld [vmem:[#allocation4 + $0x1b0] sm:$0xff]
    %v221 = vld [vmem:[#allocation4 + $0x1b8] sm:$0xff]
    %v222 = vld [vmem:[#allocation4 + $0x1c0] sm:$0xff]
    %v223 = vld [vmem:[#allocation4 + $0x1c8] sm:$0xff]
    %v224 = vld [vmem:[#allocation4 + $0x1d0] sm:$0xff]
    %v225 = vld [vmem:[#allocation4 + $0x1d8] sm:$0xff]
    %v226 = vld [vmem:[#allocation4 + $0x1e0] sm:$0xff]
    %v227 = vld [vmem:[#allocation4 + $0x1e8] sm:$0xff]
    %v228 = vld [vmem:[#allocation4 + $0x1f0] sm:$0xff]
    %v229 = vld [vmem:[#allocation4 + $0x1f8] sm:$0xff]
    %v230 = vld [vmem:[#allocation4 + $0x200] sm:$0xff]
    %v231 = vld [vmem:[#allocation4 + $0x208] sm:$0xff]
    %v232 = vld [vmem:[#allocation4 + $0x210] sm:$0xff]
    %v233 = vld [vmem:[#allocation4 + $0x218] sm:$0xff]
    %v234 = vld [vmem:[#allocation4 + $0x220] sm:$0xff]
    %v235 = vld [vmem:[#allocation4 + $0x228] sm:$0xff]
    %v236 = vld [vmem:[#allocation4 + $0x230] sm:$0xff]
    %v237 = vld [vmem:[#allocation4 + $0x238] sm:$0xff]
    %v238 = vld [vmem:[#allocation4 + $0x240] sm:$0xff]
    %v239 = vld [vmem:[#allocation4 + $0x248] sm:$0xff]
    %v240 = vld [vmem:[#allocation4 + $0x250] sm:$0xff]
    %v241 = vld [vmem:[#allocation4 + $0x258] sm:$0xff]
    %v242 = vld [vmem:[#allocation4 + $0x260] sm:$0xff]
    %v243 = vld [vmem:[#allocation4 + $0x268] sm:$0xff]
    %v244 = vld [vmem:[#allocation4 + $0x270] sm:$0xff]
    %v245 = vld [vmem:[#allocation4 + $0x278] sm:$0xff]
    %v246 = vld [vmem:[#allocation4 + $0x280] sm:$0xff]
    %v247 = vld [vmem:[#allocation4 + $0x288] sm:$0xff]
    %v248 = vld [vmem:[#allocation4 + $0x290] sm:$0xff]
    %v249 = vld [vmem:[#allocation4 + $0x298] sm:$0xff]
    %v250 = vld [vmem:[#allocation4 + $0x2a0] sm:$0xff]
    %v251 = vld [vmem:[#allocation4 + $0x2a8] sm:$0xff]
    %v252 = vld [vmem:[#allocation4 + $0x2b0] sm:$0xff]
    %v253 = vld [vmem:[#allocation4 + $0x2b8] sm:$0xff]
    %v254 = vld [vmem:[#allocation4 + $0x2c0] sm:$0xff]
    %v255 = vld [vmem:[#allocation4 + $0x2c8] sm:$0xff]
    %v256 = vld [vmem:[#allocation4 + $0x2d0] sm:$0xff]
    %v257 = vld [vmem:[#allocation4 + $0x2d8] sm:$0xff]
    %v258 = vld [vmem:[#allocation4 + $0x2e0] sm:$0xff]
    %v259 = vld [vmem:[#allocation4 + $0x2e8] sm:$0xff]
    %v260 = vld [vmem:[#allocation4 + $0x2f0] sm:$0xff]
    %v261 = vld [vmem:[#allocation4 + $0x2f8] sm:$0xff]
    %v262 = vld [vmem:[#allocation4 + $0x300] sm:$0xff]
    %v263 = vld [vmem:[#allocation4 + $0x308] sm:$0xff]
    %v264 = vld [vmem:[#allocation4 + $0x310] sm:$0xff]
    %v265 = vld [vmem:[#allocation4 + $0x318] sm:$0xff]
    %v266 = vld [vmem:[#allocation4 + $0x320] sm:$0xff]
    %v267 = vld [vmem:[#allocation4 + $0x328] sm:$0xff]
    %v268 = vld [vmem:[#allocation4 + $0x330] sm:$0xff]
    %v269 = vld [vmem:[#allocation4 + $0x338] sm:$0xff]
    %v270 = vld [vmem:[#allocation4 + $0x340] sm:$0xff]
    %v271 = vld [vmem:[#allocation4 + $0x348] sm:$0xff]
    %v272 = vld [vmem:[#allocation4 + $0x350] sm:$0xff]
    %v273 = vld [vmem:[#allocation4 + $0x358] sm:$0xff]
    %v274 = vld [vmem:[#allocation4 + $0x360] sm:$0xff]
    %v275 = vld [vmem:[#allocation4 + $0x368] sm:$0xff]
    %v276 = vld [vmem:[#allocation4 + $0x370] sm:$0xff]
    %v277 = vld [vmem:[#allocation4 + $0x378] sm:$0xff]
    %v278 = vld [vmem:[#allocation4 + $0x380] sm:$0xff]
    %v279 = vld [vmem:[#allocation4 + $0x388] sm:$0xff]
    %v280 = vld [vmem:[#allocation4 + $0x390] sm:$0xff]
    %v281 = vld [vmem:[#allocation4 + $0x398] sm:$0xff]
    %v282 = vld [vmem:[#allocation4 + $0x3a0] sm:$0xff]
    %v283 = vld [vmem:[#allocation4 + $0x3a8] sm:$0xff]
    %v284 = vld [vmem:[#allocation4 + $0x3b0] sm:$0xff]
    %v285 = vld [vmem:[#allocation4 + $0x3b8] sm:$0xff]
    %v286 = vld [vmem:[#allocation4 + $0x3c0] sm:$0xff]
    %v287 = vld [vmem:[#allocation4 + $0x3c8] sm:$0xff]
    %v288 = vld [vmem:[#allocation4 + $0x3d0] sm:$0xff]
    %v289 = vld [vmem:[#allocation4 + $0x3d8] sm:$0xff]
    %v290 = vld [vmem:[#allocation4 + $0x3e0] sm:$0xff]
    %v291 = vld [vmem:[#allocation4 + $0x3e8] sm:$0xff]
    %v292 = vld [vmem:[#allocation4 + $0x3f0] sm:$0xff]
    %v293 = vld [vmem:[#allocation4 + $0x3f8] sm:$0xff]
    %v294 = vld [vmem:[#allocation4 + $0x400] sm:$0xff]
    %v295 = vld [vmem:[#allocation4 + $0x408] sm:$0xff]
    %v296 = vld [vmem:[#allocation4 + $0x410] sm:$0xff]
    %v297 = vld [vmem:[#allocation4 + $0x418] sm:$0xff]
    %v298 = vld [vmem:[#allocation4 + $0x420] sm:$0xff]
    %v299 = vld [vmem:[#allocation4 + $0x428] sm:$0xff]
    %v300 = vld [vmem:[#allocation4 + $0x430] sm:$0xff]
    %v301 = vld [vmem:[#allocation4 + $0x438] sm:$0xff]
    %v302 = vld [vmem:[#allocation4 + $0x440] sm:$0xff]
    %v303 = vld [vmem:[#allocation4 + $0x448] sm:$0xff]
    %v304 = vld [vmem:[#allocation4 + $0x450] sm:$0xff]
    %v305 = vld [vmem:[#allocation4 + $0x458] sm:$0xff]
    %v306 = vld [vmem:[#allocation4 + $0x460] sm:$0xff]
    %v307 = vld [vmem:[#allocation4 + $0x468] sm:$0xff]
    %v308 = vld [vmem:[#allocation4 + $0x470] sm:$0xff]
    %v309 = vld [vmem:[#allocation4 + $0x478] sm:$0xff]
    %v310 = vld [vmem:[#allocation4 + $0x480] sm:$0xff]
    %v311 = vld [vmem:[#allocation4 + $0x488] sm:$0xff]
    %v312 = vld [vmem:[#allocation4 + $0x490] sm:$0xff]
    %v313 = vld [vmem:[#allocation4 + $0x498] sm:$0xff]
    %v314 = vld [vmem:[#allocation4 + $0x4a0] sm:$0xff]
    %v315 = vld [vmem:[#allocation4 + $0x4a8] sm:$0xff]
    %v316 = vld [vmem:[#allocation4 + $0x4b0] sm:$0xff]
    %v317 = vld [vmem:[#allocation4 + $0x4b8] sm:$0xff]
    %v318 = vld [vmem:[#allocation4 + $0x4c0] sm:$0xff]
    %v319 = vld [vmem:[#allocation4 + $0x4c8] sm:$0xff]
    %v320 = vld [vmem:[#allocation4 + $0x4d0] sm:$0xff]
    %v321 = vld [vmem:[#allocation4 + $0x4d8] sm:$0xff]
    %v322 = vld [vmem:[#allocation4 + $0x4e0] sm:$0xff]
    %v323 = vld [vmem:[#allocation4 + $0x4e8] sm:$0xff]
    %v324 = vld [vmem:[#allocation4 + $0x4f0] sm:$0xff]
    %v325 = vld [vmem:[#allocation4 + $0x4f8] sm:$0xff]
    %v326 = vld [vmem:[#allocation4 + $0x500] sm:$0xff]
    %v327 = vld [vmem:[#allocation4 + $0x508] sm:$0xff]
    %v328 = vld [vmem:[#allocation4 + $0x510] sm:$0xff]
    %v329 = vld [vmem:[#allocation4 + $0x518] sm:$0xff]
    %v330 = vld [vmem:[#allocation4 + $0x520] sm:$0xff]
    %v331 = vld [vmem:[#allocation4 + $0x528] sm:$0xff]
    %v332 = vld [vmem:[#allocation4 + $0x530] sm:$0xff]
    %v333 = vld [vmem:[#allocation4 + $0x538] sm:$0xff]
    %v334 = vld [vmem:[#allocation4 + $0x540] sm:$0xff]
    %v335 = vld [vmem:[#allocation4 + $0x548] sm:$0xff]
    %v336 = vld [vmem:[#allocation4 + $0x550] sm:$0xff]
    %v337 = vld [vmem:[#allocation4 + $0x558] sm:$0xff]
    %v338 = vld [vmem:[#allocation4 + $0x560] sm:$0xff]
    %v339 = vld [vmem:[#allocation4 + $0x568] sm:$0xff]
    %v340 = vld [vmem:[#allocation4 + $0x570] sm:$0xff]
    %v341 = vld [vmem:[#allocation4 + $0x578] sm:$0xff]
    %v342 = vld [vmem:[#allocation4 + $0x580] sm:$0xff]
    %v343 = vld [vmem:[#allocation4 + $0x588] sm:$0xff]
    %v344 = vld [vmem:[#allocation4 + $0x590] sm:$0xff]
    %v345 = vld [vmem:[#allocation4 + $0x598] sm:$0xff]
    %v346 = vld [vmem:[#allocation4 + $0x5a0] sm:$0xff]
    %v347 = vld [vmem:[#allocation4 + $0x5a8] sm:$0xff]
    %v348 = vld [vmem:[#allocation4 + $0x5b0] sm:$0xff]
    %v349 = vld [vmem:[#allocation4 + $0x5b8] sm:$0xff]
    %v350 = vld [vmem:[#allocation4 + $0x5c0] sm:$0xff]
    %v351 = vld [vmem:[#allocation4 + $0x5c8] sm:$0xff]
    %v352 = vld [vmem:[#allocation4 + $0x5d0] sm:$0xff]
    %v353 = vld [vmem:[#allocation4 + $0x5d8] sm:$0xff]
    %v354 = vld [vmem:[#allocation4 + $0x5e0] sm:$0xff]
    %v355 = vld [vmem:[#allocation4 + $0x5e8] sm:$0xff]
    %v356 = vld [vmem:[#allocation4 + $0x5f0] sm:$0xff]
    %v357 = vld [vmem:[#allocation4 + $0x5f8] sm:$0xff]
    %v358 = vld [vmem:[#allocation4 + $0x600] sm:$0xff]
    %v359 = vld [vmem:[#allocation4 + $0x608] sm:$0xff]
    %v360 = vld [vmem:[#allocation4 + $0x610] sm:$0xff]
    %v361 = vld [vmem:[#allocation4 + $0x618] sm:$0xff]
    %v362 = vld [vmem:[#allocation4 + $0x620] sm:$0xff]
    %v363 = vld [vmem:[#allocation4 + $0x628] sm:$0xff]
    %v364 = vld [vmem:[#allocation4 + $0x630] sm:$0xff]
    %v365 = vld [vmem:[#allocation4 + $0x638] sm:$0xff]
    %v366 = vld [vmem:[#allocation4 + $0x640] sm:$0xff]
    %v367 = vld [vmem:[#allocation4 + $0x648] sm:$0xff]
    %v368 = vld [vmem:[#allocation4 + $0x650] sm:$0xff]
    %v369 = vld [vmem:[#allocation4 + $0x658] sm:$0xff]
    %v370 = vld [vmem:[#allocation4 + $0x660] sm:$0xff]
    %v371 = vld [vmem:[#allocation4 + $0x668] sm:$0xff]
    %v372 = vld [vmem:[#allocation4 + $0x670] sm:$0xff]
    %v373 = vld [vmem:[#allocation4 + $0x678] sm:$0xff]
    %v374 = vld [vmem:[#allocation4 + $0x680] sm:$0xff]
    %v375 = vld [vmem:[#allocation4 + $0x688] sm:$0xff]
    %v376 = vld [vmem:[#allocation4 + $0x690] sm:$0xff]
    %v377 = vld [vmem:[#allocation4 + $0x698] sm:$0xff]
    %v378 = vld [vmem:[#allocation4 + $0x6a0] sm:$0xff]
    %v379 = vld [vmem:[#allocation4 + $0x6a8] sm:$0xff]
    %v380 = vld [vmem:[#allocation4 + $0x6b0] sm:$0xff]
    %v381 = vld [vmem:[#allocation4 + $0x6b8] sm:$0xff]
    %v382 = vld [vmem:[#allocation4 + $0x6c0] sm:$0xff]
    %v383 = vld [vmem:[#allocation4 + $0x6c8] sm:$0xff]
    %v384 = vld [vmem:[#allocation4 + $0x6d0] sm:$0xff]
    %v385 = vld [vmem:[#allocation4 + $0x6d8] sm:$0xff]
    %v386 = vld [vmem:[#allocation4 + $0x6e0] sm:$0xff]
    %v387 = vld [vmem:[#allocation4 + $0x6e8] sm:$0xff]
    %v388 = vld [vmem:[#allocation4 + $0x6f0] sm:$0xff]
    %v389 = vld [vmem:[#allocation4 + $0x6f8] sm:$0xff]
    %v390 = vld [vmem:[#allocation4 + $0x700] sm:$0xff]
    %v391 = vld [vmem:[#allocation4 + $0x708] sm:$0xff]
    %v392 = vld [vmem:[#allocation4 + $0x710] sm:$0xff]
    %v393 = vld [vmem:[#allocation4 + $0x718] sm:$0xff]
    %v394 = vld [vmem:[#allocation4 + $0x720] sm:$0xff]
    %v395 = vld [vmem:[#allocation4 + $0x728] sm:$0xff]
    %v396 = vld [vmem:[#allocation4 + $0x730] sm:$0xff]
    %v397 = vld [vmem:[#allocation4 + $0x738] sm:$0xff]
    %v398 = vld [vmem:[#allocation4 + $0x740] sm:$0xff]
    %v399 = vld [vmem:[#allocation4 + $0x748] sm:$0xff]
    %v400 = vld [vmem:[#allocation4 + $0x750] sm:$0xff]
    %v401 = vld [vmem:[#allocation4 + $0x758] sm:$0xff]
    %v402 = vld [vmem:[#allocation4 + $0x760] sm:$0xff]
    %v403 = vld [vmem:[#allocation4 + $0x768] sm:$0xff]
    %v404 = vld [vmem:[#allocation4 + $0x770] sm:$0xff]
    %v405 = vld [vmem:[#allocation4 + $0x778] sm:$0xff]
    %v406 = vld [vmem:[#allocation4 + $0x780] sm:$0xff]
    %v407 = vld [vmem:[#allocation4 + $0x788] sm:$0xff]
    %v408 = vld [vmem:[#allocation4 + $0x790] sm:$0xff]
    %v409 = vld [vmem:[#allocation4 + $0x798] sm:$0xff]
    %v410 = vld [vmem:[#allocation4 + $0x7a0] sm:$0xff]
    %v411 = vld [vmem:[#allocation4 + $0x7a8] sm:$0xff]
    %v412 = vld [vmem:[#allocation4 + $0x7b0] sm:$0xff]
    %v413 = vld [vmem:[#allocation4 + $0x7b8] sm:$0xff]
    %v414 = vld [vmem:[#allocation4 + $0x7c0] sm:$0xff]
    %v415 = vld [vmem:[#allocation4 + $0x7c8] sm:$0xff]
    %v416 = vld [vmem:[#allocation4 + $0x7d0] sm:$0xff]
    %v417 = vld [vmem:[#allocation4 + $0x7d8] sm:$0xff]
    %v418 = vld [vmem:[#allocation4 + $0x7e0] sm:$0xff]
    %v419 = vld [vmem:[#allocation4 + $0x7e8] sm:$0xff]
    %v420 = vld [vmem:[#allocation4 + $0x7f0] sm:$0xff]
    %v421 = vld [vmem:[#allocation4 + $0x7f8] sm:$0xff]
    %v422 = vld [vmem:[#allocation4 + $0x800] sm:$0xff]
    %v423 = vld [vmem:[#allocation4 + $0x808] sm:$0xff]
    %v424 = vld [vmem:[#allocation4 + $0x810] sm:$0xff]
    %v425 = vld [vmem:[#allocation4 + $0x818] sm:$0xff]
    %v426 = vld [vmem:[#allocation4 + $0x820] sm:$0xff]
    %v427 = vld [vmem:[#allocation4 + $0x828] sm:$0xff]
    %v428 = vld [vmem:[#allocation4 + $0x830] sm:$0xff]
    %v429 = vld [vmem:[#allocation4 + $0x838] sm:$0xff]
    %v430 = vld [vmem:[#allocation4 + $0x840] sm:$0xff]
    %v431 = vld [vmem:[#allocation4 + $0x848] sm:$0xff]
    %v432 = vld [vmem:[#allocation4 + $0x850] sm:$0xff]
    %v433 = vld [vmem:[#allocation4 + $0x858] sm:$0xff]
    %v434 = vld [vmem:[#allocation4 + $0x860] sm:$0xff]
    %v435 = vld [vmem:[#allocation4 + $0x868] sm:$0xff]
    %v436 = vld [vmem:[#allocation4 + $0x870] sm:$0xff]
    %v437 = vld [vmem:[#allocation4 + $0x878] sm:$0xff]
    %v438 = vld [vmem:[#allocation4 + $0x880] sm:$0xff]
    %v439 = vld [vmem:[#allocation4 + $0x888] sm:$0xff]
    %v440 = vld [vmem:[#allocation4 + $0x890] sm:$0xff]
    %v441 = vld [vmem:[#allocation4 + $0x898] sm:$0xff]
    %v442 = vld [vmem:[#allocation4 + $0x8a0] sm:$0xff]
    %v443 = vld [vmem:[#allocation4 + $0x8a8] sm:$0xff]
    %v444 = vld [vmem:[#allocation4 + $0x8b0] sm:$0xff]
    %v445 = vld [vmem:[#allocation4 + $0x8b8] sm:$0xff]
    %v446 = vld [vmem:[#allocation4 + $0x8c0] sm:$0xff]
    %v447 = vld [vmem:[#allocation4 + $0x8c8] sm:$0xff]
    %v448 = vld [vmem:[#allocation4 + $0x8d0] sm:$0xff]
    %v449 = vld [vmem:[#allocation4 + $0x8d8] sm:$0xff]
    %v450 = vld [vmem:[#allocation4 + $0x8e0] sm:$0xff]
    %v451 = vld [vmem:[#allocation4 + $0x8e8] sm:$0xff]
    %v452 = vld [vmem:[#allocation4 + $0x8f0] sm:$0xff]
    %v453 = vld [vmem:[#allocation4 + $0x8f8] sm:$0xff]
    %v454 = vld [vmem:[#allocation4 + $0x900] sm:$0xff]
    %v455 = vld [vmem:[#allocation4 + $0x908] sm:$0xff]
    %v456 = vld [vmem:[#allocation4 + $0x910] sm:$0xff]
    %v457 = vld [vmem:[#allocation4 + $0x918] sm:$0xff]
    %v458 = vld [vmem:[#allocation4 + $0x920] sm:$0xff]
    %v459 = vld [vmem:[#allocation4 + $0x928] sm:$0xff]
    %v460 = vld [vmem:[#allocation4 + $0x930] sm:$0xff]
    %v461 = vld [vmem:[#allocation4 + $0x938] sm:$0xff]
    %v462 = vld [vmem:[#allocation4 + $0x940] sm:$0xff]
    %v463 = vld [vmem:[#allocation4 + $0x948] sm:$0xff]
    %v464 = vld [vmem:[#allocation4 + $0x950] sm:$0xff]
    %v465 = vld [vmem:[#allocation4 + $0x958] sm:$0xff]
    %v466 = vld [vmem:[#allocation4 + $0x960] sm:$0xff]
    %v467 = vld [vmem:[#allocation4 + $0x968] sm:$0xff]
    %v468 = vld [vmem:[#allocation4 + $0x970] sm:$0xff]
    %v469 = vld [vmem:[#allocation4 + $0x978] sm:$0xff]
    %v470 = vld [vmem:[#allocation4 + $0x980] sm:$0xff]
    %v471 = vld [vmem:[#allocation4 + $0x988] sm:$0xff]
    %v472 = vld [vmem:[#allocation4 + $0x990] sm:$0xff]
    %v473 = vld [vmem:[#allocation4 + $0x998] sm:$0xff]
    %v474 = vld [vmem:[#allocation4 + $0x9a0] sm:$0xff]
    %v475 = vld [vmem:[#allocation4 + $0x9a8] sm:$0xff]
    %v476 = vld [vmem:[#allocation4 + $0x9b0] sm:$0xff]
    %v477 = vld [vmem:[#allocation4 + $0x9b8] sm:$0xff]
    %v478 = vld [vmem:[#allocation4 + $0x9c0] sm:$0xff]
    %v479 = vld [vmem:[#allocation4 + $0x9c8] sm:$0xff]
    %v480 = vld [vmem:[#allocation4 + $0x9d0] sm:$0xff]
    %v481 = vld [vmem:[#allocation4 + $0x9d8] sm:$0xff]
    %v482 = vld [vmem:[#allocation4 + $0x9e0] sm:$0xff]
    %v483 = vld [vmem:[#allocation4 + $0x9e8] sm:$0xff]
    %v484 = vld [vmem:[#allocation4 + $0x9f0] sm:$0xff]
    %v485 = vld [vmem:[#allocation4 + $0x9f8] sm:$0xff]
    %v486 = vld [vmem:[#allocation4 + $0xa00] sm:$0xff]
    %v487 = vld [vmem:[#allocation4 + $0xa08] sm:$0xff]
    %v488 = vld [vmem:[#allocation4 + $0xa10] sm:$0xff]
    %v489 = vld [vmem:[#allocation4 + $0xa18] sm:$0xff]
    %v490 = vld [vmem:[#allocation4 + $0xa20] sm:$0xff]
    %v491 = vld [vmem:[#allocation4 + $0xa28] sm:$0xff]
    %v492 = vld [vmem:[#allocation4 + $0xa30] sm:$0xff]
    %v493 = vld [vmem:[#allocation4 + $0xa38] sm:$0xff]
    %v494 = vld [vmem:[#allocation4 + $0xa40] sm:$0xff]
    %v495 = vld [vmem:[#allocation4 + $0xa48] sm:$0xff]
    %v496 = vld [vmem:[#allocation4 + $0xa50] sm:$0xff]
    %v497 = vld [vmem:[#allocation4 + $0xa58] sm:$0xff]
    %v498 = vld [vmem:[#allocation4 + $0xa60] sm:$0xff]
    %v499 = vld [vmem:[#allocation4 + $0xa68] sm:$0xff]
    %v500 = vld [vmem:[#allocation4 + $0xa70] sm:$0xff]
    %v501 = vld [vmem:[#allocation4 + $0xa78] sm:$0xff]
    %v502 = vld [vmem:[#allocation4 + $0xa80] sm:$0xff]
    %v503 = vld [vmem:[#allocation4 + $0xa88] sm:$0xff]
    %v504 = vld [vmem:[#allocation4 + $0xa90] sm:$0xff]
    %v505 = vld [vmem:[#allocation4 + $0xa98] sm:$0xff]
    %v506 = vld [vmem:[#allocation4 + $0xaa0] sm:$0xff]
    %v507 = vld [vmem:[#allocation4 + $0xaa8] sm:$0xff]
    %v508 = vld [vmem:[#allocation4 + $0xab0] sm:$0xff]
    %v509 = vld [vmem:[#allocation4 + $0xab8] sm:$0xff]
    %v510 = vld [vmem:[#allocation4 + $0xac0] sm:$0xff]
    %v511 = vld [vmem:[#allocation4 + $0xac8] sm:$0xff]
    %v512 = vld [vmem:[#allocation4 + $0xad0] sm:$0xff]
    %v513 = vld [vmem:[#allocation4 + $0xad8] sm:$0xff]
    %v514 = vld [vmem:[#allocation4 + $0xae0] sm:$0xff]
    %v515 = vld [vmem:[#allocation4 + $0xae8] sm:$0xff]
    %v516 = vld [vmem:[#allocation4 + $0xaf0] sm:$0xff]
    %v517 = vld [vmem:[#allocation4 + $0xaf8] sm:$0xff]
    %v518 = vld [vmem:[#allocation4 + $0xb00] sm:$0xff]
    %v519 = vld [vmem:[#allocation4 + $0xb08] sm:$0xff]
    %v520 = vld [vmem:[#allocation4 + $0xb10] sm:$0xff]
    %v521 = vld [vmem:[#allocation4 + $0xb18] sm:$0xff]
    %v522 = vld [vmem:[#allocation4 + $0xb20] sm:$0xff]
    %v523 = vld [vmem:[#allocation4 + $0xb28] sm:$0xff]
    %v524 = vld [vmem:[#allocation4 + $0xb30] sm:$0xff]
    %v525 = vld [vmem:[#allocation4 + $0xb38] sm:$0xff]
    %v526 = vld [vmem:[#allocation4 + $0xb40] sm:$0xff]
    %v527 = vld [vmem:[#allocation4 + $0xb48] sm:$0xff]
    %v528 = vld [vmem:[#allocation4 + $0xb50] sm:$0xff]
    %v529 = vld [vmem:[#allocation4 + $0xb58] sm:$0xff]
    %v530 = vld [vmem:[#allocation4 + $0xb60] sm:$0xff]
    %v531 = vld [vmem:[#allocation4 + $0xb68] sm:$0xff]
    %v532 = vld [vmem:[#allocation4 + $0xb70] sm:$0xff]
    %v533 = vld [vmem:[#allocation4 + $0xb78] sm:$0xff]
    %v534 = vld [vmem:[#allocation4 + $0xb80] sm:$0xff]
    %v535 = vld [vmem:[#allocation4 + $0xb88] sm:$0xff]
    %v536 = vld [vmem:[#allocation4 + $0xb90] sm:$0xff]
    %v537 = vld [vmem:[#allocation4 + $0xb98] sm:$0xff]
    %v538 = vld [vmem:[#allocation4 + $0xba0] sm:$0xff]
    %v539 = vld [vmem:[#allocation4 + $0xba8] sm:$0xff]
    %v540 = vld [vmem:[#allocation4 + $0xbb0] sm:$0xff]
    %v541 = vld [vmem:[#allocation4 + $0xbb8] sm:$0xff]
    %v542 = vld [vmem:[#allocation4 + $0xbc0] sm:$0xff]
    %v543 = vld [vmem:[#allocation4 + $0xbc8] sm:$0xff]
    %v544 = vld [vmem:[#allocation4 + $0xbd0] sm:$0xff]
    %v545 = vld [vmem:[#allocation4 + $0xbd8] sm:$0xff]
    %v546 = vld [vmem:[#allocation4 + $0xbe0] sm:$0xff]
    %v547 = vld [vmem:[#allocation4 + $0xbe8] sm:$0xff]
    %v548 = vld [vmem:[#allocation4 + $0xbf0] sm:$0xff]
    %v549 = vld [vmem:[#allocation4 + $0xbf8] sm:$0xff]
    %v550 = vld [vmem:[#allocation4 + $0xc00] sm:$0xff]
    %v551 = vld [vmem:[#allocation4 + $0xc08] sm:$0xff]
    %v552 = vld [vmem:[#allocation4 + $0xc10] sm:$0xff]
    %v553 = vld [vmem:[#allocation4 + $0xc18] sm:$0xff]
    %v554 = vld [vmem:[#allocation4 + $0xc20] sm:$0xff]
    %v555 = vld [vmem:[#allocation4 + $0xc28] sm:$0xff]
    %v556 = vld [vmem:[#allocation4 + $0xc30] sm:$0xff]
    %v557 = vld [vmem:[#allocation4 + $0xc38] sm:$0xff]
    %v558 = vld [vmem:[#allocation4 + $0xc40] sm:$0xff]
    %v559 = vld [vmem:[#allocation4 + $0xc48] sm:$0xff]
    %v560 = vld [vmem:[#allocation4 + $0xc50] sm:$0xff]
    %v561 = vld [vmem:[#allocation4 + $0xc58] sm:$0xff]
    %v562 = vld [vmem:[#allocation4 + $0xc60] sm:$0xff]
    %v563 = vld [vmem:[#allocation4 + $0xc68] sm:$0xff]
    %v564 = vld [vmem:[#allocation4 + $0xc70] sm:$0xff]
    %v565 = vld [vmem:[#allocation4 + $0xc78] sm:$0xff]
    %v566 = vld [vmem:[#allocation4 + $0xc80] sm:$0xff]
    %v567 = vld [vmem:[#allocation4 + $0xc88] sm:$0xff]
    %v568 = vld [vmem:[#allocation4 + $0xc90] sm:$0xff]
    %v569 = vld [vmem:[#allocation4 + $0xc98] sm:$0xff]
    %v570 = vld [vmem:[#allocation4 + $0xca0] sm:$0xff]
    %v571 = vld [vmem:[#allocation4 + $0xca8] sm:$0xff]
    %v572 = vld [vmem:[#allocation4 + $0xcb0] sm:$0xff]
    %v573 = vld [vmem:[#allocation4 + $0xcb8] sm:$0xff]
    %v574 = vld [vmem:[#allocation4 + $0xcc0] sm:$0xff]
    %v575 = vld [vmem:[#allocation4 + $0xcc8] sm:$0xff]
    %v576 = vld [vmem:[#allocation4 + $0xcd0] sm:$0xff]
    %v577 = vld [vmem:[#allocation4 + $0xcd8] sm:$0xff]
    %v578 = vld [vmem:[#allocation4 + $0xce0] sm:$0xff]
    %v579 = vld [vmem:[#allocation4 + $0xce8] sm:$0xff]
    %v580 = vld [vmem:[#allocation4 + $0xcf0] sm:$0xff]
    %v581 = vld [vmem:[#allocation4 + $0xcf8] sm:$0xff]
    %v582 = vld [vmem:[#allocation4 + $0xd00] sm:$0xff]
    %v583 = vld [vmem:[#allocation4 + $0xd08] sm:$0xff]
    %v584 = vld [vmem:[#allocation4 + $0xd10] sm:$0xff]
    %v585 = vld [vmem:[#allocation4 + $0xd18] sm:$0xff]
    %v586 = vld [vmem:[#allocation4 + $0xd20] sm:$0xff]
    %v587 = vld [vmem:[#allocation4 + $0xd28] sm:$0xff]
    %v588 = vld [vmem:[#allocation4 + $0xd30] sm:$0xff]
    %v589 = vld [vmem:[#allocation4 + $0xd38] sm:$0xff]
    %v590 = vld [vmem:[#allocation4 + $0xd40] sm:$0xff]
    %v591 = vld [vmem:[#allocation4 + $0xd48] sm:$0xff]
    %v592 = vld [vmem:[#allocation4 + $0xd50] sm:$0xff]
    %v593 = vld [vmem:[#allocation4 + $0xd58] sm:$0xff]
    %v594 = vld [vmem:[#allocation4 + $0xd60] sm:$0xff]
    %v595 = vld [vmem:[#allocation4 + $0xd68] sm:$0xff]
    %v596 = vld [vmem:[#allocation4 + $0xd70] sm:$0xff]
    %v597 = vld [vmem:[#allocation4 + $0xd78] sm:$0xff]
    %v598 = vld [vmem:[#allocation4 + $0xd80] sm:$0xff]
    %v599 = vld [vmem:[#allocation4 + $0xd88] sm:$0xff]
    %v600 = vld [vmem:[#allocation4 + $0xd90] sm:$0xff]
    %v601 = vld [vmem:[#allocation4 + $0xd98] sm:$0xff]
    %v602 = vld [vmem:[#allocation4 + $0xda0] sm:$0xff]
    %v603 = vld [vmem:[#allocation4 + $0xda8] sm:$0xff]
    %v604 = vld [vmem:[#allocation4 + $0xdb0] sm:$0xff]
    %v605 = vld [vmem:[#allocation4 + $0xdb8] sm:$0xff]
    %v606 = vld [vmem:[#allocation4 + $0xdc0] sm:$0xff]
    %v607 = vld [vmem:[#allocation4 + $0xdc8] sm:$0xff]
    %v608 = vld [vmem:[#allocation4 + $0xdd0] sm:$0xff]
    %v609 = vld [vmem:[#allocation4 + $0xdd8] sm:$0xff]
    %v610 = vld [vmem:[#allocation4 + $0xde0] sm:$0xff]
    %v611 = vld [vmem:[#allocation4 + $0xde8] sm:$0xff]
    %v612 = vld [vmem:[#allocation4 + $0xdf0] sm:$0xff]
    %v613 = vld [vmem:[#allocation4 + $0xdf8] sm:$0xff]
    %v614 = vld [vmem:[#allocation4 + $0xe00] sm:$0xff]
    %v615 = vld [vmem:[#allocation4 + $0xe08] sm:$0xff]
    %v616 = vld [vmem:[#allocation4 + $0xe10] sm:$0xff]
    %v617 = vld [vmem:[#allocation4 + $0xe18] sm:$0xff]
    %v618 = vld [vmem:[#allocation4 + $0xe20] sm:$0xff]
    %v619 = vld [vmem:[#allocation4 + $0xe28] sm:$0xff]
    %v620 = vld [vmem:[#allocation4 + $0xe30] sm:$0xff]
    %v621 = vld [vmem:[#allocation4 + $0xe38] sm:$0xff]
    %v622 = vld [vmem:[#allocation4 + $0xe40] sm:$0xff]
    %v623 = vld [vmem:[#allocation4 + $0xe48] sm:$0xff]
    %v624 = vld [vmem:[#allocation4 + $0xe50] sm:$0xff]
    %v625 = vld [vmem:[#allocation4 + $0xe58] sm:$0xff]
    %v626 = vld [vmem:[#allocation4 + $0xe60] sm:$0xff]
    %v627 = vld [vmem:[#allocation4 + $0xe68] sm:$0xff]
    %v628 = vld [vmem:[#allocation4 + $0xe70] sm:$0xff]
    %v629 = vld [vmem:[#allocation4 + $0xe78] sm:$0xff]
    %v630 = vld [vmem:[#allocation4 + $0xe80] sm:$0xff]
    %v631 = vld [vmem:[#allocation4 + $0xe88] sm:$0xff]
    %v632 = vld [vmem:[#allocation4 + $0xe90] sm:$0xff]
    %v633 = vld [vmem:[#allocation4 + $0xe98] sm:$0xff]
    %v634 = vld [vmem:[#allocation4 + $0xea0] sm:$0xff]
    %v635 = vld [vmem:[#allocation4 + $0xea8] sm:$0xff]
    %v636 = vld [vmem:[#allocation4 + $0xeb0] sm:$0xff]
    %v637 = vld [vmem:[#allocation4 + $0xeb8] sm:$0xff]
    %v638 = vld [vmem:[#allocation4 + $0xec0] sm:$0xff]
    %v639 = vld [vmem:[#allocation4 + $0xec8] sm:$0xff]
    %v640 = vld [vmem:[#allocation4 + $0xed0] sm:$0xff]
    %v641 = vld [vmem:[#allocation4 + $0xed8] sm:$0xff]
    %v642 = vld [vmem:[#allocation4 + $0xee0] sm:$0xff]
    %v643 = vld [vmem:[#allocation4 + $0xee8] sm:$0xff]
    %v644 = vld [vmem:[#allocation4 + $0xef0] sm:$0xff]
    %v645 = vld [vmem:[#allocation4 + $0xef8] sm:$0xff]
    %v646 = vld [vmem:[#allocation4 + $0xf00] sm:$0xff]
    %v647 = vld [vmem:[#allocation4 + $0xf08] sm:$0xff]
    %v648 = vld [vmem:[#allocation4 + $0xf10] sm:$0xff]
    %v649 = vld [vmem:[#allocation4 + $0xf18] sm:$0xff]
    %v650 = vld [vmem:[#allocation4 + $0xf20] sm:$0xff]
    %v651 = vld [vmem:[#allocation4 + $0xf28] sm:$0xff]
    %v652 = vld [vmem:[#allocation4 + $0xf30] sm:$0xff]
    %v653 = vld [vmem:[#allocation4 + $0xf38] sm:$0xff]
    %v654 = vld [vmem:[#allocation4 + $0xf40] sm:$0xff]
    %v655 = vld [vmem:[#allocation4 + $0xf48] sm:$0xff]
    %v656 = vld [vmem:[#allocation4 + $0xf50] sm:$0xff]
    %v657 = vld [vmem:[#allocation4 + $0xf58] sm:$0xff]
    %v658 = vld [vmem:[#allocation4 + $0xf60] sm:$0xff]
    %v659 = vld [vmem:[#allocation4 + $0xf68] sm:$0xff]
    %v660 = vld [vmem:[#allocation4 + $0xf70] sm:$0xff]
    %v661 = vld [vmem:[#allocation4 + $0xf78] sm:$0xff]
    %v662 = vld [vmem:[#allocation4 + $0xf80] sm:$0xff]
    %v663 = vld [vmem:[#allocation4 + $0xf88] sm:$0xff]
    %v664 = vld [vmem:[#allocation4 + $0xf90] sm:$0xff]
    %v665 = vld [vmem:[#allocation4 + $0xf98] sm:$0xff]
    %v666 = vld [vmem:[#allocation4 + $0xfa0] sm:$0xff]
    %v667 = vld [vmem:[#allocation4 + $0xfa8] sm:$0xff]
    %v668 = vld [vmem:[#allocation4 + $0xfb0] sm:$0xff]
    %v669 = vld [vmem:[#allocation4 + $0xfb8] sm:$0xff]
    %v670 = vld [vmem:[#allocation4 + $0xfc0] sm:$0xff]
    %v671 = vld [vmem:[#allocation4 + $0xfc8] sm:$0xff]
    %v672 = vld [vmem:[#allocation4 + $0xfd0] sm:$0xff]
    %v673 = vld [vmem:[#allocation4 + $0xfd8] sm:$0xff]
    %v674 = vld [vmem:[#allocation4 + $0xfe0] sm:$0xff]
    %v675 = vld [vmem:[#allocation4 + $0xfe8] sm:$0xff]
    %v676 = vld [vmem:[#allocation4 + $0xff0] sm:$0xff]
    %v677 = vld [vmem:[#allocation4 + $0xff8] sm:$0xff]
    %v678 = vld [vmem:[#allocation4 + $0x1000] sm:$0xff]
    %v679 = vld [vmem:[#allocation4 + $0x1008] sm:$0xff]
    %v680 = vld [vmem:[#allocation4 + $0x1010] sm:$0xff]
    %v681 = vld [vmem:[#allocation4 + $0x1018] sm:$0xff]
    %v682 = vld [vmem:[#allocation4 + $0x1020] sm:$0xff]
    %v683 = vld [vmem:[#allocation4 + $0x1028] sm:$0xff]
    %v684 = vld [vmem:[#allocation4 + $0x1030] sm:$0xff]
    %v685 = vld [vmem:[#allocation4 + $0x1038] sm:$0xff]
    %v686 = vld [vmem:[#allocation4 + $0x1040] sm:$0xff]
    %v687 = vld [vmem:[#allocation4 + $0x1048] sm:$0xff]
    %v688 = vld [vmem:[#allocation4 + $0x1050] sm:$0xff]
    %v689 = vld [vmem:[#allocation4 + $0x1058] sm:$0xff]
    %v690 = vld [vmem:[#allocation4 + $0x1060] sm:$0xff]
    %v691 = vld [vmem:[#allocation4 + $0x1068] sm:$0xff]
    %v692 = vld [vmem:[#allocation4 + $0x1070] sm:$0xff]
    %v693 = vld [vmem:[#allocation4 + $0x1078] sm:$0xff]
    %v694 = vld [vmem:[#allocation4 + $0x1080] sm:$0xff]
    %v695 = vld [vmem:[#allocation4 + $0x1088] sm:$0xff]
    %v696 = vld [vmem:[#allocation4 + $0x1090] sm:$0xff]
    %v697 = vld [vmem:[#allocation4 + $0x1098] sm:$0xff]
    %v698 = vld [vmem:[#allocation4 + $0x10a0] sm:$0xff]
    %v699 = vld [vmem:[#allocation4 + $0x10a8] sm:$0xff]
    %v700 = vld [vmem:[#allocation4 + $0x10b0] sm:$0xff]
    %v701 = vld [vmem:[#allocation4 + $0x10b8] sm:$0xff]
    %v702 = vld [vmem:[#allocation4 + $0x10c0] sm:$0xff]
    %v703 = vld [vmem:[#allocation4 + $0x10c8] sm:$0xff]
    %v704 = vld [vmem:[#allocation4 + $0x10d0] sm:$0xff]
    %v705 = vld [vmem:[#allocation4 + $0x10d8] sm:$0xff]
    %v706 = vld [vmem:[#allocation4 + $0x10e0] sm:$0xff]
    %v707 = vld [vmem:[#allocation4 + $0x10e8] sm:$0xff]
    %v708 = vld [vmem:[#allocation4 + $0x10f0] sm:$0xff]
    %v709 = vld [vmem:[#allocation4 + $0x10f8] sm:$0xff]
    %v710 = vld [vmem:[#allocation4 + $0x1100] sm:$0xff]
    %v711 = vld [vmem:[#allocation4 + $0x1108] sm:$0xff]
    %v712 = vld [vmem:[#allocation4 + $0x1110] sm:$0xff]
    %v713 = vld [vmem:[#allocation4 + $0x1118] sm:$0xff]
    %v714 = vld [vmem:[#allocation4 + $0x1120] sm:$0xff]
    %v715 = vld [vmem:[#allocation4 + $0x1128] sm:$0xff]
    %v716 = vld [vmem:[#allocation4 + $0x1130] sm:$0xff]
    %v717 = vld [vmem:[#allocation4 + $0x1138] sm:$0xff]
    %v718 = vld [vmem:[#allocation4 + $0x1140] sm:$0xff]
    %v719 = vld [vmem:[#allocation4 + $0x1148] sm:$0xff]
    %v720 = vld [vmem:[#allocation4 + $0x1150] sm:$0xff]
    %v721 = vld [vmem:[#allocation4 + $0x1158] sm:$0xff]
    %v722 = vld [vmem:[#allocation4 + $0x1160] sm:$0xff]
    %v723 = vld [vmem:[#allocation4 + $0x1168] sm:$0xff]
    %v724 = vld [vmem:[#allocation4 + $0x1170] sm:$0xff]
    %v725 = vld [vmem:[#allocation4 + $0x1178] sm:$0xff]
    %v726 = vld [vmem:[#allocation4 + $0x1180] sm:$0xff]
    %v727 = vld [vmem:[#allocation4 + $0x1188] sm:$0xff]
    %v728 = vld [vmem:[#allocation4 + $0x1190] sm:$0xff]
    %v729 = vld [vmem:[#allocation4 + $0x1198] sm:$0xff]
    %v730 = vld [vmem:[#allocation4 + $0x11a0] sm:$0xff]
    %v731 = vld [vmem:[#allocation4 + $0x11a8] sm:$0xff]
    %v732 = vld [vmem:[#allocation4 + $0x11b0] sm:$0xff]
    %v733 = vld [vmem:[#allocation4 + $0x11b8] sm:$0xff]
    %v734 = vld [vmem:[#allocation4 + $0x11c0] sm:$0xff]
    %v735 = vld [vmem:[#allocation4 + $0x11c8] sm:$0xff]
    %v736 = vld [vmem:[#allocation4 + $0x11d0] sm:$0xff]
    %v737 = vld [vmem:[#allocation4 + $0x11d8] sm:$0xff]
    %v738 = vld [vmem:[#allocation4 + $0x11e0] sm:$0xff]
    %v739 = vld [vmem:[#allocation4 + $0x11e8] sm:$0xff]
    %v740 = vld [vmem:[#allocation4 + $0x11f0] sm:$0xff]
    %v741 = vld [vmem:[#allocation4 + $0x11f8] sm:$0xff]
    %v742 = vld [vmem:[#allocation4 + $0x1200] sm:$0xff]
    %v743 = vld [vmem:[#allocation4 + $0x1208] sm:$0xff]
    %v744 = vld [vmem:[#allocation4 + $0x1210] sm:$0xff]
    %v745 = vld [vmem:[#allocation4 + $0x1218] sm:$0xff]
    %v746 = vld [vmem:[#allocation4 + $0x1220] sm:$0xff]
    %v747 = vld [vmem:[#allocation4 + $0x1228] sm:$0xff]
    %v748 = vld [vmem:[#allocation4 + $0x1230] sm:$0xff]
    %v749 = vld [vmem:[#allocation4 + $0x1238] sm:$0xff]
    %v750 = vld [vmem:[#allocation4 + $0x1240] sm:$0xff]
    %v751 = vld [vmem:[#allocation4 + $0x1248] sm:$0xff]
    %v752 = vld [vmem:[#allocation4 + $0x1250] sm:$0xff]
    %v753 = vld [vmem:[#allocation4 + $0x1258] sm:$0xff]
    %v754 = vld [vmem:[#allocation4 + $0x1260] sm:$0xff]
    %v755 = vld [vmem:[#allocation4 + $0x1268] sm:$0xff]
    %v756 = vld [vmem:[#allocation4 + $0x1270] sm:$0xff]
    %v757 = vld [vmem:[#allocation4 + $0x1278] sm:$0xff]
    %v758 = vld [vmem:[#allocation4 + $0x1280] sm:$0xff]
    %v759 = vld [vmem:[#allocation4 + $0x1288] sm:$0xff]
    %v760 = vld [vmem:[#allocation4 + $0x1290] sm:$0xff]
    %v761 = vld [vmem:[#allocation4 + $0x1298] sm:$0xff]
    %v762 = vld [vmem:[#allocation4 + $0x12a0] sm:$0xff]
    %v763 = vld [vmem:[#allocation4 + $0x12a8] sm:$0xff]
    %v764 = vld [vmem:[#allocation4 + $0x12b0] sm:$0xff]
    %v765 = vld [vmem:[#allocation4 + $0x12b8] sm:$0xff]
    %v766 = vld [vmem:[#allocation4 + $0x12c0] sm:$0xff]
    %v767 = vld [vmem:[#allocation4 + $0x12c8] sm:$0xff]
    %v768 = vld [vmem:[#allocation4 + $0x12d0] sm:$0xff]
    %v769 = vld [vmem:[#allocation4 + $0x12d8] sm:$0xff]
    %v770 = vld [vmem:[#allocation4 + $0x12e0] sm:$0xff]
    %v771 = vld [vmem:[#allocation4 + $0x12e8] sm:$0xff]
    %v772 = vld [vmem:[#allocation4 + $0x12f0] sm:$0xff]
    %v773 = vld [vmem:[#allocation4 + $0x12f8] sm:$0xff]
    %v774 = vld [vmem:[#allocation15] sm:$0xf]
    %v776 = vlaneseq
    %v777 = vshrl.u32 %v776, 7
    %v778 = vsub.s32 0, %v777
    %v779 = vrot.slane %v774, %v778
    %v780 = vlaneseq
    %v781 = vshrl.u32 %v780, 7
    %v782 = vsub.s32 1, %v781
    %v783 = vrot.slane %v774, %v782
    %v784 = vlaneseq
    %v785 = vshrl.u32 %v784, 7
    %v786 = vsub.s32 2, %v785
    %v787 = vrot.slane %v774, %v786
    %v788 = vlaneseq
    %v789 = vshrl.u32 %v788, 7
    %v790 = vsub.s32 3, %v789
    %v791 = vrot.slane %v774, %v790
    %v806 = vunpack.c.l.b16 %v156
    %v807 = vunpack.c.h.b16 %v156
    %v808 = vunpack.c.l.b16 %v157
    %v809 = vunpack.c.h.b16 %v157
    %v810 = vunpack.c.l.b16 %v158
    %v811 = vunpack.c.h.b16 %v158
    %v812 = vunpack.c.l.b16 %v159
    %v813 = vunpack.c.h.b16 %v159
    %v814 = vunpack.c.l.b16 %v160
    %v815 = vunpack.c.h.b16 %v160
    %v816 = vunpack.c.l.b16 %v161
    %v817 = vunpack.c.h.b16 %v161
    %v818 = vunpack.c.l.b16 %v162
    %v819 = vunpack.c.h.b16 %v162
    %v820 = vunpack.c.l.b16 %v163
    %v821 = vunpack.c.h.b16 %v163
    %v822 = vunpack.c.l.b16 %v164
    %v823 = vunpack.c.h.b16 %v164
    %v824 = vunpack.c.l.b16 %v165
    %v825 = vpack.c.b16 %v806, %v806
    %v826 = vpack.c.b16 %v807, %v807
    %v827 = vpack.c.b16 %v808, %v808
    %v828 = vpack.c.b16 %v809, %v809
    %v829 = vpack.c.b16 %v810, %v810
    %v830 = vpack.c.b16 %v811, %v811
    %v831 = vpack.c.b16 %v812, %v812
    %v832 = vpack.c.b16 %v813, %v813
    %v833 = vpack.c.b16 %v814, %v814
    %v834 = vpack.c.b16 %v815, %v815
    %v835 = vpack.c.b16 %v816, %v816
    %v836 = vpack.c.b16 %v817, %v817
    %v837 = vpack.c.b16 %v818, %v818
    %v838 = vpack.c.b16 %v819, %v819
    %v839 = vpack.c.b16 %v820, %v820
    %v840 = vpack.c.b16 %v821, %v821
    %v841 = vpack.c.b16 %v822, %v822
    %v842 = vpack.c.b16 %v823, %v823
    %v843 = vpack.c.b16 %v824, %v824
    %v1471 = vunpack.c.l.b16 %v166
    %v1472 = vunpack.c.h.b16 %v166
    %v1473 = vunpack.c.l.b16 %v167
    %v1474 = vunpack.c.h.b16 %v167
    %v1475 = vunpack.c.l.b16 %v168
    %v1476 = vunpack.c.h.b16 %v168
    %v1477 = vunpack.c.l.b16 %v169
    %v1478 = vunpack.c.h.b16 %v169
    %v1479 = vunpack.c.l.b16 %v170
    %v1480 = vunpack.c.h.b16 %v170
    %v1481 = vunpack.c.l.b16 %v171
    %v1482 = vunpack.c.h.b16 %v171
    %v1483 = vunpack.c.l.b16 %v172
    %v1484 = vunpack.c.h.b16 %v172
    %v1485 = vunpack.c.l.b16 %v173
    %v1486 = vunpack.c.h.b16 %v173
    %v1487 = vunpack.c.l.b16 %v174
    %v1488 = vunpack.c.h.b16 %v174
    %v1489 = vunpack.c.l.b16 %v175
    %v1490 = vunpack.c.h.b16 %v175
    %v1491 = vunpack.c.l.b16 %v176
    %v1492 = vunpack.c.h.b16 %v176
    %v1493 = vunpack.c.l.b16 %v177
    %v1494 = vunpack.c.h.b16 %v177
    %v1495 = vunpack.c.l.b16 %v178
    %v1496 = vunpack.c.h.b16 %v178
    %v1497 = vunpack.c.l.b16 %v179
    %v1498 = vunpack.c.h.b16 %v179
    %v1499 = vunpack.c.l.b16 %v180
    %v1500 = vunpack.c.h.b16 %v180
    %v1501 = vunpack.c.l.b16 %v181
    %v1502 = vunpack.c.h.b16 %v181
    %v1503 = vunpack.c.l.b16 %v182
    %v1504 = vunpack.c.h.b16 %v182
    %v1505 = vunpack.c.l.b16 %v183
    %v1506 = vunpack.c.h.b16 %v183
    %v1507 = vunpack.c.l.b16 %v184
    %v1508 = vunpack.c.h.b16 %v184
    %v1509 = vunpack.c.l.b16 %v185
    %v1510 = vunpack.c.h.b16 %v185
    %v1511 = vunpack.c.l.b16 %v186
    %v1512 = vunpack.c.h.b16 %v186
    %v1513 = vunpack.c.l.b16 %v187
    %v1514 = vunpack.c.h.b16 %v187
    %v1515 = vunpack.c.l.b16 %v188
    %v1516 = vunpack.c.h.b16 %v188
    %v1517 = vunpack.c.l.b16 %v189
    %v1518 = vunpack.c.h.b16 %v189
    %v1519 = vunpack.c.l.b16 %v190
    %v1520 = vunpack.c.h.b16 %v190
    %v1521 = vunpack.c.l.b16 %v191
    %v1522 = vunpack.c.h.b16 %v191
    %v1523 = vunpack.c.l.b16 %v192
    %v1524 = vunpack.c.h.b16 %v192
    %v1525 = vunpack.c.l.b16 %v193
    %v1526 = vunpack.c.h.b16 %v193
    %v1527 = vunpack.c.l.b16 %v194
    %v1528 = vunpack.c.h.b16 %v194
    %v1529 = vunpack.c.l.b16 %v195
    %v1530 = vunpack.c.h.b16 %v195
    %v1531 = vunpack.c.l.b16 %v196
    %v1532 = vunpack.c.h.b16 %v196
    %v1533 = vunpack.c.l.b16 %v197
    %v1534 = vunpack.c.h.b16 %v197
    %v1535 = vunpack.c.l.b16 %v198
    %v1536 = vunpack.c.h.b16 %v198
    %v1537 = vunpack.c.l.b16 %v199
    %v1538 = vunpack.c.h.b16 %v199
    %v1539 = vunpack.c.l.b16 %v200
    %v1540 = vunpack.c.h.b16 %v200
    %v1541 = vunpack.c.l.b16 %v201
    %v1542 = vunpack.c.h.b16 %v201
    %v1543 = vunpack.c.l.b16 %v202
    %v1544 = vunpack.c.h.b16 %v202
    %v1545 = vunpack.c.l.b16 %v203
    %v1546 = vunpack.c.h.b16 %v203
    %v1547 = vunpack.c.l.b16 %v204
    %v1548 = vunpack.c.h.b16 %v204
    %v1549 = vunpack.c.l.b16 %v205
    %v1550 = vunpack.c.h.b16 %v205
    %v1551 = vunpack.c.l.b16 %v206
    %v1552 = vunpack.c.h.b16 %v206
    %v1553 = vunpack.c.l.b16 %v207
    %v1554 = vunpack.c.h.b16 %v207
    %v1555 = vunpack.c.l.b16 %v208
    %v1556 = vunpack.c.h.b16 %v208
    %v1557 = vunpack.c.l.b16 %v209
    %v1558 = vunpack.c.h.b16 %v209
    %v1559 = vunpack.c.l.b16 %v210
    %v1560 = vunpack.c.h.b16 %v210
    %v1561 = vunpack.c.l.b16 %v211
    %v1562 = vunpack.c.h.b16 %v211
    %v1563 = vunpack.c.l.b16 %v212
    %v1564 = vunpack.c.h.b16 %v212
    %v1565 = vunpack.c.l.b16 %v213
    %v1566 = vunpack.c.h.b16 %v213
    %v1567 = vunpack.c.l.b16 %v214
    %v1568 = vunpack.c.h.b16 %v214
    %v1569 = vunpack.c.l.b16 %v215
    %v1570 = vunpack.c.h.b16 %v215
    %v1571 = vunpack.c.l.b16 %v216
    %v1572 = vunpack.c.h.b16 %v216
    %v1573 = vunpack.c.l.b16 %v217
    %v1574 = vunpack.c.h.b16 %v217
    %v1575 = vunpack.c.l.b16 %v218
    %v1576 = vunpack.c.h.b16 %v218
    %v1577 = vunpack.c.l.b16 %v219
    %v1578 = vunpack.c.h.b16 %v219
    %v1579 = vunpack.c.l.b16 %v220
    %v1580 = vunpack.c.h.b16 %v220
    %v1581 = vunpack.c.l.b16 %v221
    %v1582 = vunpack.c.h.b16 %v221
    %v1583 = vunpack.c.l.b16 %v222
    %v1584 = vunpack.c.h.b16 %v222
    %v1585 = vunpack.c.l.b16 %v223
    %v1586 = vunpack.c.h.b16 %v223
    %v1587 = vunpack.c.l.b16 %v224
    %v1588 = vunpack.c.h.b16 %v224
    %v1589 = vunpack.c.l.b16 %v225
    %v1590 = vunpack.c.h.b16 %v225
    %v1591 = vunpack.c.l.b16 %v226
    %v1592 = vunpack.c.h.b16 %v226
    %v1593 = vunpack.c.l.b16 %v227
    %v1594 = vunpack.c.h.b16 %v227
    %v1595 = vunpack.c.l.b16 %v228
    %v1596 = vunpack.c.h.b16 %v228
    %v1597 = vunpack.c.l.b16 %v229
    %v1598 = vunpack.c.h.b16 %v229
    %v1599 = vunpack.c.l.b16 %v230
    %v1600 = vunpack.c.h.b16 %v230
    %v1601 = vunpack.c.l.b16 %v231
    %v1602 = vunpack.c.h.b16 %v231
    %v1603 = vunpack.c.l.b16 %v232
    %v1604 = vunpack.c.h.b16 %v232
    %v1605 = vunpack.c.l.b16 %v233
    %v1606 = vunpack.c.h.b16 %v233
    %v1607 = vunpack.c.l.b16 %v234
    %v1608 = vunpack.c.h.b16 %v234
    %v1609 = vunpack.c.l.b16 %v235
    %v1610 = vunpack.c.h.b16 %v235
    %v1611 = vunpack.c.l.b16 %v236
    %v1612 = vunpack.c.h.b16 %v236
    %v1613 = vunpack.c.l.b16 %v237
    %v1614 = vunpack.c.h.b16 %v237
    %v1615 = vunpack.c.l.b16 %v238
    %v1616 = vunpack.c.h.b16 %v238
    %v1617 = vunpack.c.l.b16 %v239
    %v1618 = vunpack.c.h.b16 %v239
    %v1619 = vunpack.c.l.b16 %v240
    %v1620 = vunpack.c.h.b16 %v240
    %v1621 = vunpack.c.l.b16 %v241
    %v1622 = vunpack.c.h.b16 %v241
    %v1623 = vunpack.c.l.b16 %v242
    %v1624 = vunpack.c.h.b16 %v242
    %v1625 = vunpack.c.l.b16 %v243
    %v1626 = vunpack.c.h.b16 %v243
    %v1627 = vunpack.c.l.b16 %v244
    %v1628 = vunpack.c.h.b16 %v244
    %v1629 = vunpack.c.l.b16 %v245
    %v1630 = vunpack.c.h.b16 %v245
    %v1631 = vunpack.c.l.b16 %v246
    %v1632 = vunpack.c.h.b16 %v246
    %v1633 = vunpack.c.l.b16 %v247
    %v1634 = vunpack.c.h.b16 %v247
    %v1635 = vunpack.c.l.b16 %v248
    %v1636 = vunpack.c.h.b16 %v248
    %v1637 = vunpack.c.l.b16 %v249
    %v1638 = vunpack.c.h.b16 %v249
    %v1639 = vunpack.c.l.b16 %v250
    %v1640 = vunpack.c.h.b16 %v250
    %v1641 = vunpack.c.l.b16 %v251
    %v1642 = vunpack.c.h.b16 %v251
    %v1643 = vunpack.c.l.b16 %v252
    %v1644 = vunpack.c.h.b16 %v252
    %v1645 = vunpack.c.l.b16 %v253
    %v1646 = vunpack.c.h.b16 %v253
    %v1647 = vunpack.c.l.b16 %v254
    %v1648 = vunpack.c.h.b16 %v254
    %v1649 = vunpack.c.l.b16 %v255
    %v1650 = vunpack.c.h.b16 %v255
    %v1651 = vunpack.c.l.b16 %v256
    %v1652 = vunpack.c.h.b16 %v256
    %v1653 = vunpack.c.l.b16 %v257
    %v1654 = vunpack.c.h.b16 %v257
    %v1655 = vunpack.c.l.b16 %v258
    %v1656 = vunpack.c.h.b16 %v258
    %v1657 = vunpack.c.l.b16 %v259
    %v1658 = vunpack.c.h.b16 %v259
    %v1659 = vunpack.c.l.b16 %v260
    %v1660 = vunpack.c.h.b16 %v260
    %v1661 = vunpack.c.l.b16 %v261
    %v1662 = vunpack.c.h.b16 %v261
    %v1663 = vunpack.c.l.b16 %v262
    %v1664 = vunpack.c.h.b16 %v262
    %v1665 = vunpack.c.l.b16 %v263
    %v1666 = vunpack.c.h.b16 %v263
    %v1667 = vunpack.c.l.b16 %v264
    %v1668 = vunpack.c.h.b16 %v264
    %v1669 = vunpack.c.l.b16 %v265
    %v1670 = vunpack.c.h.b16 %v265
    %v1671 = vunpack.c.l.b16 %v266
    %v1672 = vunpack.c.h.b16 %v266
    %v1673 = vunpack.c.l.b16 %v267
    %v1674 = vunpack.c.h.b16 %v267
    %v1675 = vunpack.c.l.b16 %v268
    %v1676 = vunpack.c.h.b16 %v268
    %v1677 = vunpack.c.l.b16 %v269
    %v1678 = vunpack.c.h.b16 %v269
    %v1679 = vunpack.c.l.b16 %v270
    %v1680 = vunpack.c.h.b16 %v270
    %v1681 = vunpack.c.l.b16 %v271
    %v1682 = vunpack.c.h.b16 %v271
    %v1683 = vunpack.c.l.b16 %v272
    %v1684 = vunpack.c.h.b16 %v272
    %v1685 = vunpack.c.l.b16 %v273
    %v1686 = vunpack.c.h.b16 %v273
    %v1687 = vunpack.c.l.b16 %v274
    %v1688 = vunpack.c.h.b16 %v274
    %v1689 = vunpack.c.l.b16 %v275
    %v1690 = vunpack.c.h.b16 %v275
    %v1691 = vunpack.c.l.b16 %v276
    %v1692 = vunpack.c.h.b16 %v276
    %v1693 = vunpack.c.l.b16 %v277
    %v1694 = vunpack.c.h.b16 %v277
    %v1695 = vunpack.c.l.b16 %v278
    %v1696 = vunpack.c.h.b16 %v278
    %v1697 = vunpack.c.l.b16 %v279
    %v1698 = vunpack.c.h.b16 %v279
    %v1699 = vunpack.c.l.b16 %v280
    %v1700 = vunpack.c.h.b16 %v280
    %v1701 = vunpack.c.l.b16 %v281
    %v1702 = vunpack.c.h.b16 %v281
    %v1703 = vunpack.c.l.b16 %v282
    %v1704 = vunpack.c.h.b16 %v282
    %v1705 = vunpack.c.l.b16 %v283
    %v1706 = vunpack.c.h.b16 %v283
    %v1707 = vunpack.c.l.b16 %v284
    %v1708 = vunpack.c.h.b16 %v284
    %v1709 = vunpack.c.l.b16 %v285
    %v1710 = vunpack.c.h.b16 %v285
    %v1711 = vunpack.c.l.b16 %v286
    %v1712 = vunpack.c.h.b16 %v286
    %v1713 = vunpack.c.l.b16 %v287
    %v1714 = vunpack.c.h.b16 %v287
    %v1715 = vunpack.c.l.b16 %v288
    %v1716 = vunpack.c.h.b16 %v288
    %v1717 = vunpack.c.l.b16 %v289
    %v1718 = vunpack.c.h.b16 %v289
    %v1719 = vunpack.c.l.b16 %v290
    %v1720 = vunpack.c.h.b16 %v290
    %v1721 = vunpack.c.l.b16 %v291
    %v1722 = vunpack.c.h.b16 %v291
    %v1723 = vunpack.c.l.b16 %v292
    %v1724 = vunpack.c.h.b16 %v292
    %v1725 = vunpack.c.l.b16 %v293
    %v1726 = vunpack.c.h.b16 %v293
    %v1727 = vunpack.c.l.b16 %v294
    %v1728 = vunpack.c.h.b16 %v294
    %v1729 = vunpack.c.l.b16 %v295
    %v1730 = vunpack.c.h.b16 %v295
    %v1731 = vunpack.c.l.b16 %v296
    %v1732 = vunpack.c.h.b16 %v296
    %v1733 = vunpack.c.l.b16 %v297
    %v1734 = vunpack.c.h.b16 %v297
    %v1735 = vunpack.c.l.b16 %v298
    %v1736 = vunpack.c.h.b16 %v298
    %v1737 = vunpack.c.l.b16 %v299
    %v1738 = vunpack.c.h.b16 %v299
    %v1739 = vunpack.c.l.b16 %v300
    %v1740 = vunpack.c.h.b16 %v300
    %v1741 = vunpack.c.l.b16 %v301
    %v1742 = vunpack.c.h.b16 %v301
    %v1743 = vunpack.c.l.b16 %v302
    %v1744 = vunpack.c.h.b16 %v302
    %v1745 = vunpack.c.l.b16 %v303
    %v1746 = vunpack.c.h.b16 %v303
    %v1747 = vunpack.c.l.b16 %v304
    %v1748 = vunpack.c.h.b16 %v304
    %v1749 = vunpack.c.l.b16 %v305
    %v1750 = vunpack.c.h.b16 %v305
    %v1751 = vunpack.c.l.b16 %v306
    %v1752 = vunpack.c.h.b16 %v306
    %v1753 = vunpack.c.l.b16 %v307
    %v1754 = vunpack.c.h.b16 %v307
    %v1755 = vunpack.c.l.b16 %v308
    %v1756 = vunpack.c.h.b16 %v308
    %v1757 = vunpack.c.l.b16 %v309
    %v1758 = vunpack.c.h.b16 %v309
    %v1759 = vunpack.c.l.b16 %v310
    %v1760 = vunpack.c.h.b16 %v310
    %v1761 = vunpack.c.l.b16 %v311
    %v1762 = vunpack.c.h.b16 %v311
    %v1763 = vunpack.c.l.b16 %v312
    %v1764 = vunpack.c.h.b16 %v312
    %v1765 = vunpack.c.l.b16 %v313
    %v1766 = vunpack.c.h.b16 %v313
    %v1767 = vunpack.c.l.b16 %v314
    %v1768 = vunpack.c.h.b16 %v314
    %v1769 = vunpack.c.l.b16 %v315
    %v1770 = vunpack.c.h.b16 %v315
    %v1771 = vunpack.c.l.b16 %v316
    %v1772 = vunpack.c.h.b16 %v316
    %v1773 = vunpack.c.l.b16 %v317
    %v1774 = vunpack.c.h.b16 %v317
    %v1775 = vunpack.c.l.b16 %v318
    %v1776 = vunpack.c.h.b16 %v318
    %v1777 = vunpack.c.l.b16 %v319
    %v1778 = vunpack.c.h.b16 %v319
    %v1779 = vunpack.c.l.b16 %v320
    %v1780 = vunpack.c.h.b16 %v320
    %v1781 = vunpack.c.l.b16 %v321
    %v1782 = vunpack.c.h.b16 %v321
    %v1783 = vunpack.c.l.b16 %v322
    %v1784 = vunpack.c.h.b16 %v322
    %v1785 = vunpack.c.l.b16 %v323
    %v1786 = vunpack.c.h.b16 %v323
    %v1787 = vunpack.c.l.b16 %v324
    %v1788 = vunpack.c.h.b16 %v324
    %v1789 = vunpack.c.l.b16 %v325
    %v1790 = vunpack.c.h.b16 %v325
    %v1791 = vunpack.c.l.b16 %v326
    %v1792 = vunpack.c.h.b16 %v326
    %v1793 = vunpack.c.l.b16 %v327
    %v1794 = vunpack.c.h.b16 %v327
    %v1795 = vunpack.c.l.b16 %v328
    %v1796 = vunpack.c.h.b16 %v328
    %v1797 = vunpack.c.l.b16 %v329
    %v1798 = vunpack.c.h.b16 %v329
    %v1799 = vunpack.c.l.b16 %v330
    %v1800 = vunpack.c.h.b16 %v330
    %v1801 = vunpack.c.l.b16 %v331
    %v1802 = vunpack.c.h.b16 %v331
    %v1803 = vunpack.c.l.b16 %v332
    %v1804 = vunpack.c.h.b16 %v332
    %v1805 = vunpack.c.l.b16 %v333
    %v1806 = vunpack.c.h.b16 %v333
    %v1807 = vunpack.c.l.b16 %v334
    %v1808 = vunpack.c.h.b16 %v334
    %v1809 = vunpack.c.l.b16 %v335
    %v1810 = vunpack.c.h.b16 %v335
    %v1811 = vunpack.c.l.b16 %v336
    %v1812 = vunpack.c.h.b16 %v336
    %v1813 = vunpack.c.l.b16 %v337
    %v1814 = vunpack.c.h.b16 %v337
    %v1815 = vunpack.c.l.b16 %v338
    %v1816 = vunpack.c.h.b16 %v338
    %v1817 = vunpack.c.l.b16 %v339
    %v1818 = vunpack.c.h.b16 %v339
    %v1819 = vunpack.c.l.b16 %v340
    %v1820 = vunpack.c.h.b16 %v340
    %v1821 = vunpack.c.l.b16 %v341
    %v1822 = vunpack.c.h.b16 %v341
    %v1823 = vunpack.c.l.b16 %v342
    %v1824 = vunpack.c.h.b16 %v342
    %v1825 = vunpack.c.l.b16 %v343
    %v1826 = vunpack.c.h.b16 %v343
    %v1827 = vunpack.c.l.b16 %v344
    %v1828 = vunpack.c.h.b16 %v344
    %v1829 = vunpack.c.l.b16 %v345
    %v1830 = vunpack.c.h.b16 %v345
    %v1831 = vunpack.c.l.b16 %v346
    %v1832 = vunpack.c.h.b16 %v346
    %v1833 = vunpack.c.l.b16 %v347
    %v1834 = vunpack.c.h.b16 %v347
    %v1835 = vunpack.c.l.b16 %v348
    %v1836 = vunpack.c.h.b16 %v348
    %v1837 = vunpack.c.l.b16 %v349
    %v1838 = vunpack.c.h.b16 %v349
    %v1839 = vunpack.c.l.b16 %v350
    %v1840 = vunpack.c.h.b16 %v350
    %v1841 = vunpack.c.l.b16 %v351
    %v1842 = vunpack.c.h.b16 %v351
    %v1843 = vunpack.c.l.b16 %v352
    %v1844 = vunpack.c.h.b16 %v352
    %v1845 = vunpack.c.l.b16 %v353
    %v1846 = vunpack.c.h.b16 %v353
    %v1847 = vunpack.c.l.b16 %v354
    %v1848 = vunpack.c.h.b16 %v354
    %v1849 = vunpack.c.l.b16 %v355
    %v1850 = vunpack.c.h.b16 %v355
    %v1851 = vunpack.c.l.b16 %v356
    %v1852 = vunpack.c.h.b16 %v356
    %v1853 = vunpack.c.l.b16 %v357
    %v1854 = vunpack.c.h.b16 %v357
    %v1855 = vunpack.c.l.b16 %v358
    %v1856 = vunpack.c.h.b16 %v358
    %v1857 = vunpack.c.l.b16 %v359
    %v1858 = vunpack.c.h.b16 %v359
    %v1859 = vunpack.c.l.b16 %v360
    %v1860 = vunpack.c.h.b16 %v360
    %v1861 = vunpack.c.l.b16 %v361
    %v1862 = vunpack.c.h.b16 %v361
    %v1863 = vunpack.c.l.b16 %v362
    %v1864 = vunpack.c.h.b16 %v362
    %v1865 = vunpack.c.l.b16 %v363
    %v1866 = vunpack.c.h.b16 %v363
    %v1867 = vunpack.c.l.b16 %v364
    %v1868 = vunpack.c.h.b16 %v364
    %v1869 = vunpack.c.l.b16 %v365
    %v1870 = vunpack.c.h.b16 %v365
    %v1871 = vunpack.c.l.b16 %v366
    %v1872 = vunpack.c.h.b16 %v366
    %v1873 = vunpack.c.l.b16 %v367
    %v1874 = vunpack.c.h.b16 %v367
    %v1875 = vunpack.c.l.b16 %v368
    %v1876 = vunpack.c.h.b16 %v368
    %v1877 = vunpack.c.l.b16 %v369
    %v1878 = vunpack.c.h.b16 %v369
    %v1879 = vunpack.c.l.b16 %v370
    %v1880 = vunpack.c.h.b16 %v370
    %v1881 = vunpack.c.l.b16 %v371
    %v1882 = vunpack.c.h.b16 %v371
    %v1883 = vunpack.c.l.b16 %v372
    %v1884 = vunpack.c.h.b16 %v372
    %v1885 = vunpack.c.l.b16 %v373
    %v1886 = vunpack.c.h.b16 %v373
    %v1887 = vunpack.c.l.b16 %v374
    %v1888 = vunpack.c.h.b16 %v374
    %v1889 = vunpack.c.l.b16 %v375
    %v1890 = vunpack.c.h.b16 %v375
    %v1891 = vunpack.c.l.b16 %v376
    %v1892 = vunpack.c.h.b16 %v376
    %v1893 = vunpack.c.l.b16 %v377
    %v1894 = vunpack.c.h.b16 %v377
    %v1895 = vunpack.c.l.b16 %v378
    %v1896 = vunpack.c.h.b16 %v378
    %v1897 = vunpack.c.l.b16 %v379
    %v1898 = vunpack.c.h.b16 %v379
    %v1899 = vunpack.c.l.b16 %v380
    %v1900 = vunpack.c.h.b16 %v380
    %v1901 = vunpack.c.l.b16 %v381
    %v1902 = vunpack.c.h.b16 %v381
    %v1903 = vunpack.c.l.b16 %v382
    %v1904 = vunpack.c.h.b16 %v382
    %v1905 = vunpack.c.l.b16 %v383
    %v1906 = vunpack.c.h.b16 %v383
    %v1907 = vunpack.c.l.b16 %v384
    %v1908 = vunpack.c.h.b16 %v384
    %v1909 = vunpack.c.l.b16 %v385
    %v1910 = vunpack.c.h.b16 %v385
    %v1911 = vunpack.c.l.b16 %v386
    %v1912 = vunpack.c.h.b16 %v386
    %v1913 = vunpack.c.l.b16 %v387
    %v1914 = vunpack.c.h.b16 %v387
    %v1915 = vunpack.c.l.b16 %v388
    %v1916 = vunpack.c.h.b16 %v388
    %v1917 = vunpack.c.l.b16 %v389
    %v1918 = vunpack.c.h.b16 %v389
    %v1919 = vunpack.c.l.b16 %v390
    %v1920 = vunpack.c.h.b16 %v390
    %v1921 = vunpack.c.l.b16 %v391
    %v1922 = vunpack.c.h.b16 %v391
    %v1923 = vunpack.c.l.b16 %v392
    %v1924 = vunpack.c.h.b16 %v392
    %v1925 = vunpack.c.l.b16 %v393
    %v1926 = vunpack.c.h.b16 %v393
    %v1927 = vunpack.c.l.b16 %v394
    %v1928 = vunpack.c.h.b16 %v394
    %v1929 = vunpack.c.l.b16 %v395
    %v1930 = vunpack.c.h.b16 %v395
    %v1931 = vunpack.c.l.b16 %v396
    %v1932 = vunpack.c.h.b16 %v396
    %v1933 = vunpack.c.l.b16 %v397
    %v1934 = vunpack.c.h.b16 %v397
    %v1935 = vunpack.c.l.b16 %v398
    %v1936 = vunpack.c.h.b16 %v398
    %v1937 = vunpack.c.l.b16 %v399
    %v1938 = vunpack.c.h.b16 %v399
    %v1939 = vunpack.c.l.b16 %v400
    %v1940 = vunpack.c.h.b16 %v400
    %v1941 = vunpack.c.l.b16 %v401
    %v1942 = vunpack.c.h.b16 %v401
    %v1943 = vunpack.c.l.b16 %v402
    %v1944 = vunpack.c.h.b16 %v402
    %v1945 = vunpack.c.l.b16 %v403
    %v1946 = vunpack.c.h.b16 %v403
    %v1947 = vunpack.c.l.b16 %v404
    %v1948 = vunpack.c.h.b16 %v404
    %v1949 = vunpack.c.l.b16 %v405
    %v1950 = vunpack.c.h.b16 %v405
    %v1951 = vunpack.c.l.b16 %v406
    %v1952 = vunpack.c.h.b16 %v406
    %v1953 = vunpack.c.l.b16 %v407
    %v1954 = vunpack.c.h.b16 %v407
    %v1955 = vunpack.c.l.b16 %v408
    %v1956 = vunpack.c.h.b16 %v408
    %v1957 = vunpack.c.l.b16 %v409
    %v1958 = vunpack.c.h.b16 %v409
    %v1959 = vunpack.c.l.b16 %v410
    %v1960 = vunpack.c.h.b16 %v410
    %v1961 = vunpack.c.l.b16 %v411
    %v1962 = vunpack.c.h.b16 %v411
    %v1963 = vunpack.c.l.b16 %v412
    %v1964 = vunpack.c.h.b16 %v412
    %v1965 = vunpack.c.l.b16 %v413
    %v1966 = vunpack.c.h.b16 %v413
    %v1967 = vunpack.c.l.b16 %v414
    %v1968 = vunpack.c.h.b16 %v414
    %v1969 = vunpack.c.l.b16 %v415
    %v1970 = vunpack.c.h.b16 %v415
    %v1971 = vunpack.c.l.b16 %v416
    %v1972 = vunpack.c.h.b16 %v416
    %v1973 = vunpack.c.l.b16 %v417
    %v1974 = vunpack.c.h.b16 %v417
    %v1975 = vunpack.c.l.b16 %v418
    %v1976 = vunpack.c.h.b16 %v418
    %v1977 = vunpack.c.l.b16 %v419
    %v1978 = vunpack.c.h.b16 %v419
    %v1979 = vunpack.c.l.b16 %v420
    %v1980 = vunpack.c.h.b16 %v420
    %v1981 = vunpack.c.l.b16 %v421
    %v1982 = vunpack.c.h.b16 %v421
    %v1983 = vunpack.c.l.b16 %v422
    %v1984 = vunpack.c.h.b16 %v422
    %v1985 = vunpack.c.l.b16 %v423
    %v1986 = vunpack.c.h.b16 %v423
    %v1987 = vunpack.c.l.b16 %v424
    %v1988 = vunpack.c.h.b16 %v424
    %v1989 = vunpack.c.l.b16 %v425
    %v1990 = vunpack.c.h.b16 %v425
    %v1991 = vunpack.c.l.b16 %v426
    %v1992 = vunpack.c.h.b16 %v426
    %v1993 = vunpack.c.l.b16 %v427
    %v1994 = vunpack.c.h.b16 %v427
    %v1995 = vunpack.c.l.b16 %v428
    %v1996 = vunpack.c.h.b16 %v428
    %v1997 = vunpack.c.l.b16 %v429
    %v1998 = vunpack.c.h.b16 %v429
    %v1999 = vunpack.c.l.b16 %v430
    %v2000 = vunpack.c.h.b16 %v430
    %v2001 = vunpack.c.l.b16 %v431
    %v2002 = vunpack.c.h.b16 %v431
    %v2003 = vunpack.c.l.b16 %v432
    %v2004 = vunpack.c.h.b16 %v432
    %v2005 = vunpack.c.l.b16 %v433
    %v2006 = vunpack.c.h.b16 %v433
    %v2007 = vunpack.c.l.b16 %v434
    %v2008 = vunpack.c.h.b16 %v434
    %v2009 = vunpack.c.l.b16 %v435
    %v2010 = vunpack.c.h.b16 %v435
    %v2011 = vunpack.c.l.b16 %v436
    %v2012 = vunpack.c.h.b16 %v436
    %v2013 = vunpack.c.l.b16 %v437
    %v2014 = vunpack.c.h.b16 %v437
    %v2015 = vunpack.c.l.b16 %v438
    %v2016 = vunpack.c.h.b16 %v438
    %v2017 = vunpack.c.l.b16 %v439
    %v2018 = vunpack.c.h.b16 %v439
    %v2019 = vunpack.c.l.b16 %v440
    %v2020 = vunpack.c.h.b16 %v440
    %v2021 = vunpack.c.l.b16 %v441
    %v2022 = vunpack.c.h.b16 %v441
    %v2023 = vunpack.c.l.b16 %v442
    %v2024 = vunpack.c.h.b16 %v442
    %v2025 = vunpack.c.l.b16 %v443
    %v2026 = vunpack.c.h.b16 %v443
    %v2027 = vunpack.c.l.b16 %v444
    %v2028 = vunpack.c.h.b16 %v444
    %v2029 = vunpack.c.l.b16 %v445
    %v2030 = vunpack.c.h.b16 %v445
    %v2031 = vunpack.c.l.b16 %v446
    %v2032 = vunpack.c.h.b16 %v446
    %v2033 = vunpack.c.l.b16 %v447
    %v2034 = vunpack.c.h.b16 %v447
    %v2035 = vunpack.c.l.b16 %v448
    %v2036 = vunpack.c.h.b16 %v448
    %v2037 = vunpack.c.l.b16 %v449
    %v2038 = vunpack.c.h.b16 %v449
    %v2039 = vunpack.c.l.b16 %v450
    %v2040 = vunpack.c.h.b16 %v450
    %v2041 = vunpack.c.l.b16 %v451
    %v2042 = vunpack.c.h.b16 %v451
    %v2043 = vunpack.c.l.b16 %v452
    %v2044 = vunpack.c.h.b16 %v452
    %v2045 = vunpack.c.l.b16 %v453
    %v2046 = vunpack.c.h.b16 %v453
    %v2047 = vunpack.c.l.b16 %v454
    %v2048 = vunpack.c.h.b16 %v454
    %v2049 = vunpack.c.l.b16 %v455
    %v2050 = vunpack.c.h.b16 %v455
    %v2051 = vunpack.c.l.b16 %v456
    %v2052 = vunpack.c.h.b16 %v456
    %v2053 = vunpack.c.l.b16 %v457
    %v2054 = vunpack.c.h.b16 %v457
    %v2055 = vunpack.c.l.b16 %v458
    %v2056 = vunpack.c.h.b16 %v458
    %v2057 = vunpack.c.l.b16 %v459
    %v2058 = vunpack.c.h.b16 %v459
    %v2059 = vunpack.c.l.b16 %v460
    %v2060 = vunpack.c.h.b16 %v460
    %v2061 = vunpack.c.l.b16 %v461
    %v2062 = vunpack.c.h.b16 %v461
    %v2063 = vunpack.c.l.b16 %v462
    %v2064 = vunpack.c.h.b16 %v462
    %v2065 = vunpack.c.l.b16 %v463
    %v2066 = vunpack.c.h.b16 %v463
    %v2067 = vunpack.c.l.b16 %v464
    %v2068 = vunpack.c.h.b16 %v464
    %v2069 = vunpack.c.l.b16 %v465
    %v2070 = vunpack.c.h.b16 %v465
    %v2071 = vunpack.c.l.b16 %v466
    %v2072 = vunpack.c.h.b16 %v466
    %v2073 = vunpack.c.l.b16 %v467
    %v2074 = vunpack.c.h.b16 %v467
    %v2075 = vunpack.c.l.b16 %v468
    %v2076 = vunpack.c.h.b16 %v468
    %v2077 = vunpack.c.l.b16 %v469
    %v2078 = vunpack.c.h.b16 %v469
    %v2079 = vunpack.c.l.b16 %v470
    %v2080 = vunpack.c.h.b16 %v470
    %v2081 = vunpack.c.l.b16 %v471
    %v2082 = vunpack.c.h.b16 %v471
    %v2083 = vunpack.c.l.b16 %v472
    %v2084 = vunpack.c.h.b16 %v472
    %v2085 = vunpack.c.l.b16 %v473
    %v2086 = vunpack.c.h.b16 %v473
    %v2087 = vunpack.c.l.b16 %v474
    %v2088 = vunpack.c.h.b16 %v474
    %v2089 = vunpack.c.l.b16 %v475
    %v2090 = vunpack.c.h.b16 %v475
    %v2091 = vunpack.c.l.b16 %v476
    %v2092 = vunpack.c.h.b16 %v476
    %v2093 = vunpack.c.l.b16 %v477
    %v2094 = vunpack.c.h.b16 %v477
    %v2095 = vunpack.c.l.b16 %v478
    %v2096 = vunpack.c.h.b16 %v478
    %v2097 = vunpack.c.l.b16 %v479
    %v2098 = vunpack.c.h.b16 %v479
    %v2099 = vunpack.c.l.b16 %v480
    %v2100 = vunpack.c.h.b16 %v480
    %v2101 = vunpack.c.l.b16 %v481
    %v2102 = vunpack.c.h.b16 %v481
    %v2103 = vunpack.c.l.b16 %v482
    %v2104 = vunpack.c.h.b16 %v482
    %v2105 = vunpack.c.l.b16 %v483
    %v2106 = vunpack.c.h.b16 %v483
    %v2107 = vunpack.c.l.b16 %v484
    %v2108 = vunpack.c.h.b16 %v484
    %v2109 = vunpack.c.l.b16 %v485
    %v2110 = vunpack.c.h.b16 %v485
    %v2111 = vunpack.c.l.b16 %v486
    %v2112 = vunpack.c.h.b16 %v486
    %v2113 = vunpack.c.l.b16 %v487
    %v2114 = vunpack.c.h.b16 %v487
    %v2115 = vunpack.c.l.b16 %v488
    %v2116 = vunpack.c.h.b16 %v488
    %v2117 = vunpack.c.l.b16 %v489
    %v2118 = vunpack.c.h.b16 %v489
    %v2119 = vunpack.c.l.b16 %v490
    %v2120 = vunpack.c.h.b16 %v490
    %v2121 = vunpack.c.l.b16 %v491
    %v2122 = vunpack.c.h.b16 %v491
    %v2123 = vunpack.c.l.b16 %v492
    %v2124 = vunpack.c.h.b16 %v492
    %v2125 = vunpack.c.l.b16 %v493
    %v2126 = vunpack.c.h.b16 %v493
    %v2127 = vunpack.c.l.b16 %v494
    %v2128 = vunpack.c.h.b16 %v494
    %v2129 = vunpack.c.l.b16 %v495
    %v2130 = vunpack.c.h.b16 %v495
    %v2131 = vunpack.c.l.b16 %v496
    %v2132 = vunpack.c.h.b16 %v496
    %v2133 = vunpack.c.l.b16 %v497
    %v2134 = vunpack.c.h.b16 %v497
    %v2135 = vunpack.c.l.b16 %v498
    %v2136 = vunpack.c.h.b16 %v498
    %v2137 = vunpack.c.l.b16 %v499
    %v2138 = vunpack.c.h.b16 %v499
    %v2139 = vunpack.c.l.b16 %v500
    %v2140 = vunpack.c.h.b16 %v500
    %v2141 = vunpack.c.l.b16 %v501
    %v2142 = vunpack.c.h.b16 %v501
    %v2143 = vunpack.c.l.b16 %v502
    %v2144 = vunpack.c.h.b16 %v502
    %v2145 = vunpack.c.l.b16 %v503
    %v2146 = vunpack.c.h.b16 %v503
    %v2147 = vunpack.c.l.b16 %v504
    %v2148 = vunpack.c.h.b16 %v504
    %v2149 = vunpack.c.l.b16 %v505
    %v2150 = vunpack.c.h.b16 %v505
    %v2151 = vunpack.c.l.b16 %v506
    %v2152 = vunpack.c.h.b16 %v506
    %v2153 = vunpack.c.l.b16 %v507
    %v2154 = vunpack.c.h.b16 %v507
    %v2155 = vunpack.c.l.b16 %v508
    %v2156 = vunpack.c.h.b16 %v508
    %v2157 = vunpack.c.l.b16 %v509
    %v2158 = vunpack.c.h.b16 %v509
    %v2159 = vunpack.c.l.b16 %v510
    %v2160 = vunpack.c.h.b16 %v510
    %v2161 = vunpack.c.l.b16 %v511
    %v2162 = vunpack.c.h.b16 %v511
    %v2163 = vunpack.c.l.b16 %v512
    %v2164 = vunpack.c.h.b16 %v512
    %v2165 = vunpack.c.l.b16 %v513
    %v2166 = vunpack.c.h.b16 %v513
    %v2167 = vunpack.c.l.b16 %v514
    %v2168 = vunpack.c.h.b16 %v514
    %v2169 = vunpack.c.l.b16 %v515
    %v2170 = vunpack.c.h.b16 %v515
    %v2171 = vunpack.c.l.b16 %v516
    %v2172 = vunpack.c.h.b16 %v516
    %v2173 = vunpack.c.l.b16 %v517
    %v2174 = vunpack.c.h.b16 %v517
    %v2175 = vunpack.c.l.b16 %v518
    %v2176 = vunpack.c.h.b16 %v518
    %v2177 = vunpack.c.l.b16 %v519
    %v2178 = vunpack.c.h.b16 %v519
    %v2179 = vunpack.c.l.b16 %v520
    %v2180 = vunpack.c.h.b16 %v520
    %v2181 = vunpack.c.l.b16 %v521
    %v2182 = vunpack.c.h.b16 %v521
    %v2183 = vunpack.c.l.b16 %v522
    %v2184 = vunpack.c.h.b16 %v522
    %v2185 = vunpack.c.l.b16 %v523
    %v2186 = vunpack.c.h.b16 %v523
    %v2187 = vunpack.c.l.b16 %v524
    %v2188 = vunpack.c.h.b16 %v524
    %v2189 = vunpack.c.l.b16 %v525
    %v2190 = vunpack.c.h.b16 %v525
    %v2191 = vunpack.c.l.b16 %v526
    %v2192 = vunpack.c.h.b16 %v526
    %v2193 = vunpack.c.l.b16 %v527
    %v2194 = vunpack.c.h.b16 %v527
    %v2195 = vunpack.c.l.b16 %v528
    %v2196 = vunpack.c.h.b16 %v528
    %v2197 = vunpack.c.l.b16 %v529
    %v2198 = vunpack.c.h.b16 %v529
    %v2199 = vunpack.c.l.b16 %v530
    %v2200 = vunpack.c.h.b16 %v530
    %v2201 = vunpack.c.l.b16 %v531
    %v2202 = vunpack.c.h.b16 %v531
    %v2203 = vunpack.c.l.b16 %v532
    %v2204 = vunpack.c.h.b16 %v532
    %v2205 = vunpack.c.l.b16 %v533
    %v2206 = vunpack.c.h.b16 %v533
    %v2207 = vunpack.c.l.b16 %v534
    %v2208 = vunpack.c.h.b16 %v534
    %v2209 = vunpack.c.l.b16 %v535
    %v2210 = vunpack.c.h.b16 %v535
    %v2211 = vunpack.c.l.b16 %v536
    %v2212 = vunpack.c.h.b16 %v536
    %v2213 = vunpack.c.l.b16 %v537
    %v2214 = vunpack.c.h.b16 %v537
    %v2215 = vunpack.c.l.b16 %v538
    %v2216 = vunpack.c.h.b16 %v538
    %v2217 = vunpack.c.l.b16 %v539
    %v2218 = vunpack.c.h.b16 %v539
    %v2219 = vunpack.c.l.b16 %v540
    %v2220 = vunpack.c.h.b16 %v540
    %v2221 = vunpack.c.l.b16 %v541
    %v2222 = vunpack.c.h.b16 %v541
    %v2223 = vunpack.c.l.b16 %v542
    %v2224 = vunpack.c.h.b16 %v542
    %v2225 = vunpack.c.l.b16 %v543
    %v2226 = vunpack.c.h.b16 %v543
    %v2227 = vunpack.c.l.b16 %v544
    %v2228 = vunpack.c.h.b16 %v544
    %v2229 = vunpack.c.l.b16 %v545
    %v2230 = vunpack.c.h.b16 %v545
    %v2231 = vunpack.c.l.b16 %v546
    %v2232 = vunpack.c.h.b16 %v546
    %v2233 = vunpack.c.l.b16 %v547
    %v2234 = vunpack.c.h.b16 %v547
    %v2235 = vunpack.c.l.b16 %v548
    %v2236 = vunpack.c.h.b16 %v548
    %v2237 = vunpack.c.l.b16 %v549
    %v2238 = vunpack.c.h.b16 %v549
    %v2239 = vunpack.c.l.b16 %v550
    %v2240 = vunpack.c.h.b16 %v550
    %v2241 = vunpack.c.l.b16 %v551
    %v2242 = vunpack.c.h.b16 %v551
    %v2243 = vunpack.c.l.b16 %v552
    %v2244 = vunpack.c.h.b16 %v552
    %v2245 = vunpack.c.l.b16 %v553
    %v2246 = vunpack.c.h.b16 %v553
    %v2247 = vunpack.c.l.b16 %v554
    %v2248 = vunpack.c.h.b16 %v554
    %v2249 = vunpack.c.l.b16 %v555
    %v2250 = vunpack.c.h.b16 %v555
    %v2251 = vunpack.c.l.b16 %v556
    %v2252 = vunpack.c.h.b16 %v556
    %v2253 = vunpack.c.l.b16 %v557
    %v2254 = vunpack.c.h.b16 %v557
    %v2255 = vunpack.c.l.b16 %v558
    %v2256 = vunpack.c.h.b16 %v558
    %v2257 = vunpack.c.l.b16 %v559
    %v2258 = vunpack.c.h.b16 %v559
    %v2259 = vunpack.c.l.b16 %v560
    %v2260 = vunpack.c.h.b16 %v560
    %v2261 = vunpack.c.l.b16 %v561
    %v2262 = vunpack.c.h.b16 %v561
    %v2263 = vunpack.c.l.b16 %v562
    %v2264 = vunpack.c.h.b16 %v562
    %v2265 = vunpack.c.l.b16 %v563
    %v2266 = vunpack.c.h.b16 %v563
    %v2267 = vunpack.c.l.b16 %v564
    %v2268 = vunpack.c.h.b16 %v564
    %v2269 = vunpack.c.l.b16 %v565
    %v2270 = vunpack.c.h.b16 %v565
    %v2271 = vunpack.c.l.b16 %v566
    %v2272 = vunpack.c.h.b16 %v566
    %v2273 = vunpack.c.l.b16 %v567
    %v2274 = vunpack.c.h.b16 %v567
    %v2275 = vunpack.c.l.b16 %v568
    %v2276 = vunpack.c.h.b16 %v568
    %v2277 = vunpack.c.l.b16 %v569
    %v2278 = vunpack.c.h.b16 %v569
    %v2279 = vunpack.c.l.b16 %v570
    %v2280 = vunpack.c.h.b16 %v570
    %v2281 = vunpack.c.l.b16 %v571
    %v2282 = vunpack.c.h.b16 %v571
    %v2283 = vunpack.c.l.b16 %v572
    %v2284 = vunpack.c.h.b16 %v572
    %v2285 = vunpack.c.l.b16 %v573
    %v2286 = vunpack.c.h.b16 %v573
    %v2287 = vunpack.c.l.b16 %v574
    %v2288 = vunpack.c.h.b16 %v574
    %v2289 = vunpack.c.l.b16 %v575
    %v2290 = vunpack.c.h.b16 %v575
    %v2291 = vunpack.c.l.b16 %v576
    %v2292 = vunpack.c.h.b16 %v576
    %v2293 = vunpack.c.l.b16 %v577
    %v2294 = vunpack.c.h.b16 %v577
    %v2295 = vunpack.c.l.b16 %v578
    %v2296 = vunpack.c.h.b16 %v578
    %v2297 = vunpack.c.l.b16 %v579
    %v2298 = vunpack.c.h.b16 %v579
    %v2299 = vunpack.c.l.b16 %v580
    %v2300 = vunpack.c.h.b16 %v580
    %v2301 = vunpack.c.l.b16 %v581
    %v2302 = vunpack.c.h.b16 %v581
    %v2303 = vunpack.c.l.b16 %v582
    %v2304 = vunpack.c.h.b16 %v582
    %v2305 = vunpack.c.l.b16 %v583
    %v2306 = vunpack.c.h.b16 %v583
    %v2307 = vunpack.c.l.b16 %v584
    %v2308 = vunpack.c.h.b16 %v584
    %v2309 = vunpack.c.l.b16 %v585
    %v2310 = vunpack.c.h.b16 %v585
    %v2311 = vunpack.c.l.b16 %v586
    %v2312 = vunpack.c.h.b16 %v586
    %v2313 = vunpack.c.l.b16 %v587
    %v2314 = vunpack.c.h.b16 %v587
    %v2315 = vunpack.c.l.b16 %v588
    %v2316 = vunpack.c.h.b16 %v588
    %v2317 = vunpack.c.l.b16 %v589
    %v2318 = vunpack.c.h.b16 %v589
    %v2319 = vunpack.c.l.b16 %v590
    %v2320 = vunpack.c.h.b16 %v590
    %v2321 = vunpack.c.l.b16 %v591
    %v2322 = vunpack.c.h.b16 %v591
    %v2323 = vunpack.c.l.b16 %v592
    %v2324 = vunpack.c.h.b16 %v592
    %v2325 = vunpack.c.l.b16 %v593
    %v2326 = vunpack.c.h.b16 %v593
    %v2327 = vunpack.c.l.b16 %v594
    %v2328 = vunpack.c.h.b16 %v594
    %v2329 = vunpack.c.l.b16 %v595
    %v2330 = vunpack.c.h.b16 %v595
    %v2331 = vunpack.c.l.b16 %v596
    %v2332 = vunpack.c.h.b16 %v596
    %v2333 = vunpack.c.l.b16 %v597
    %v2334 = vunpack.c.h.b16 %v597
    %v2335 = vunpack.c.l.b16 %v598
    %v2336 = vunpack.c.h.b16 %v598
    %v2337 = vunpack.c.l.b16 %v599
    %v2338 = vunpack.c.h.b16 %v599
    %v2339 = vunpack.c.l.b16 %v600
    %v2340 = vunpack.c.h.b16 %v600
    %v2341 = vunpack.c.l.b16 %v601
    %v2342 = vunpack.c.h.b16 %v601
    %v2343 = vunpack.c.l.b16 %v602
    %v2344 = vunpack.c.h.b16 %v602
    %v2345 = vunpack.c.l.b16 %v603
    %v2346 = vunpack.c.h.b16 %v603
    %v2347 = vunpack.c.l.b16 %v604
    %v2348 = vunpack.c.h.b16 %v604
    %v2349 = vunpack.c.l.b16 %v605
    %v2350 = vunpack.c.h.b16 %v605
    %v2351 = vunpack.c.l.b16 %v606
    %v2352 = vunpack.c.h.b16 %v606
    %v2353 = vunpack.c.l.b16 %v607
    %v2354 = vunpack.c.h.b16 %v607
    %v2355 = vunpack.c.l.b16 %v608
    %v2356 = vunpack.c.h.b16 %v608
    %v2357 = vunpack.c.l.b16 %v609
    %v2358 = vunpack.c.h.b16 %v609
    %v2359 = vunpack.c.l.b16 %v610
    %v2360 = vunpack.c.h.b16 %v610
    %v2361 = vunpack.c.l.b16 %v611
    %v2362 = vunpack.c.h.b16 %v611
    %v2363 = vunpack.c.l.b16 %v612
    %v2364 = vunpack.c.h.b16 %v612
    %v2365 = vunpack.c.l.b16 %v613
    %v2366 = vunpack.c.h.b16 %v613
    %v2367 = vunpack.c.l.b16 %v614
    %v2368 = vunpack.c.h.b16 %v614
    %v2369 = vunpack.c.l.b16 %v615
    %v2370 = vunpack.c.h.b16 %v615
    %v2371 = vunpack.c.l.b16 %v616
    %v2372 = vunpack.c.h.b16 %v616
    %v2373 = vunpack.c.l.b16 %v617
    %v2374 = vunpack.c.h.b16 %v617
    %v2375 = vunpack.c.l.b16 %v618
    %v2376 = vunpack.c.h.b16 %v618
    %v2377 = vunpack.c.l.b16 %v619
    %v2378 = vunpack.c.h.b16 %v619
    %v2379 = vunpack.c.l.b16 %v620
    %v2380 = vunpack.c.h.b16 %v620
    %v2381 = vunpack.c.l.b16 %v621
    %v2382 = vunpack.c.h.b16 %v621
    %v2383 = vunpack.c.l.b16 %v622
    %v2384 = vunpack.c.h.b16 %v622
    %v2385 = vunpack.c.l.b16 %v623
    %v2386 = vunpack.c.h.b16 %v623
    %v2387 = vunpack.c.l.b16 %v624
    %v2388 = vunpack.c.h.b16 %v624
    %v2389 = vunpack.c.l.b16 %v625
    %v2390 = vunpack.c.h.b16 %v625
    %v2391 = vunpack.c.l.b16 %v626
    %v2392 = vunpack.c.h.b16 %v626
    %v2393 = vunpack.c.l.b16 %v627
    %v2394 = vunpack.c.h.b16 %v627
    %v2395 = vunpack.c.l.b16 %v628
    %v2396 = vunpack.c.h.b16 %v628
    %v2397 = vunpack.c.l.b16 %v629
    %v2398 = vunpack.c.h.b16 %v629
    %v2399 = vunpack.c.l.b16 %v630
    %v2400 = vunpack.c.h.b16 %v630
    %v2401 = vunpack.c.l.b16 %v631
    %v2402 = vunpack.c.h.b16 %v631
    %v2403 = vunpack.c.l.b16 %v632
    %v2404 = vunpack.c.h.b16 %v632
    %v2405 = vunpack.c.l.b16 %v633
    %v2406 = vunpack.c.h.b16 %v633
    %v2407 = vunpack.c.l.b16 %v634
    %v2408 = vunpack.c.h.b16 %v634
    %v2409 = vunpack.c.l.b16 %v635
    %v2410 = vunpack.c.h.b16 %v635
    %v2411 = vunpack.c.l.b16 %v636
    %v2412 = vunpack.c.h.b16 %v636
    %v2413 = vunpack.c.l.b16 %v637
    %v2414 = vunpack.c.h.b16 %v637
    %v2415 = vunpack.c.l.b16 %v638
    %v2416 = vunpack.c.h.b16 %v638
    %v2417 = vunpack.c.l.b16 %v639
    %v2418 = vunpack.c.h.b16 %v639
    %v2419 = vunpack.c.l.b16 %v640
    %v2420 = vunpack.c.h.b16 %v640
    %v2421 = vunpack.c.l.b16 %v641
    %v2422 = vunpack.c.h.b16 %v641
    %v2423 = vunpack.c.l.b16 %v642
    %v2424 = vunpack.c.h.b16 %v642
    %v2425 = vunpack.c.l.b16 %v643
    %v2426 = vunpack.c.h.b16 %v643
    %v2427 = vunpack.c.l.b16 %v644
    %v2428 = vunpack.c.h.b16 %v644
    %v2429 = vunpack.c.l.b16 %v645
    %v2430 = vunpack.c.h.b16 %v645
    %v2431 = vunpack.c.l.b16 %v646
    %v2432 = vunpack.c.h.b16 %v646
    %v2433 = vunpack.c.l.b16 %v647
    %v2434 = vunpack.c.h.b16 %v647
    %v2435 = vunpack.c.l.b16 %v648
    %v2436 = vunpack.c.h.b16 %v648
    %v2437 = vunpack.c.l.b16 %v649
    %v2438 = vunpack.c.h.b16 %v649
    %v2439 = vunpack.c.l.b16 %v650
    %v2440 = vunpack.c.h.b16 %v650
    %v2441 = vunpack.c.l.b16 %v651
    %v2442 = vunpack.c.h.b16 %v651
    %v2443 = vunpack.c.l.b16 %v652
    %v2444 = vunpack.c.h.b16 %v652
    %v2445 = vunpack.c.l.b16 %v653
    %v2446 = vunpack.c.h.b16 %v653
    %v2447 = vunpack.c.l.b16 %v654
    %v2448 = vunpack.c.h.b16 %v654
    %v2449 = vunpack.c.l.b16 %v655
    %v2450 = vunpack.c.h.b16 %v655
    %v2451 = vunpack.c.l.b16 %v656
    %v2452 = vunpack.c.h.b16 %v656
    %v2453 = vunpack.c.l.b16 %v657
    %v2454 = vunpack.c.h.b16 %v657
    %v2455 = vunpack.c.l.b16 %v658
    %v2456 = vunpack.c.h.b16 %v658
    %v2457 = vunpack.c.l.b16 %v659
    %v2458 = vunpack.c.h.b16 %v659
    %v2459 = vunpack.c.l.b16 %v660
    %v2460 = vunpack.c.h.b16 %v660
    %v2461 = vunpack.c.l.b16 %v661
    %v2462 = vunpack.c.h.b16 %v661
    %v2463 = vunpack.c.l.b16 %v662
    %v2464 = vunpack.c.h.b16 %v662
    %v2465 = vunpack.c.l.b16 %v663
    %v2466 = vunpack.c.h.b16 %v663
    %v2467 = vunpack.c.l.b16 %v664
    %v2468 = vunpack.c.h.b16 %v664
    %v2469 = vunpack.c.l.b16 %v665
    %v2470 = vunpack.c.h.b16 %v665
    %v2471 = vunpack.c.l.b16 %v666
    %v2472 = vunpack.c.h.b16 %v666
    %v2473 = vunpack.c.l.b16 %v667
    %v2474 = vunpack.c.h.b16 %v667
    %v2475 = vunpack.c.l.b16 %v668
    %v2476 = vunpack.c.h.b16 %v668
    %v2477 = vunpack.c.l.b16 %v669
    %v2478 = vunpack.c.h.b16 %v669
    %v2479 = vunpack.c.l.b16 %v670
    %v2480 = vunpack.c.h.b16 %v670
    %v2481 = vunpack.c.l.b16 %v671
    %v2482 = vunpack.c.h.b16 %v671
    %v2483 = vunpack.c.l.b16 %v672
    %v2484 = vunpack.c.h.b16 %v672
    %v2485 = vunpack.c.l.b16 %v673
    %v2486 = vunpack.c.h.b16 %v673
    %v2487 = vunpack.c.l.b16 %v674
    %v2488 = vunpack.c.h.b16 %v674
    %v2489 = vunpack.c.l.b16 %v675
    %v2490 = vunpack.c.h.b16 %v675
    %v2491 = vunpack.c.l.b16 %v676
    %v2492 = vunpack.c.h.b16 %v676
    %v2493 = vunpack.c.l.b16 %v677
    %v2494 = vunpack.c.h.b16 %v677
    %v2495 = vunpack.c.l.b16 %v678
    %v2496 = vunpack.c.h.b16 %v678
    %v2497 = vunpack.c.l.b16 %v679
    %v2498 = vunpack.c.h.b16 %v679
    %v2499 = vunpack.c.l.b16 %v680
    %v2500 = vunpack.c.h.b16 %v680
    %v2501 = vunpack.c.l.b16 %v681
    %v2502 = vunpack.c.h.b16 %v681
    %v2503 = vunpack.c.l.b16 %v682
    %v2504 = vunpack.c.h.b16 %v682
    %v2505 = vunpack.c.l.b16 %v683
    %v2506 = vunpack.c.h.b16 %v683
    %v2507 = vunpack.c.l.b16 %v684
    %v2508 = vunpack.c.h.b16 %v684
    %v2509 = vunpack.c.l.b16 %v685
    %v2510 = vunpack.c.h.b16 %v685
    %v2511 = vunpack.c.l.b16 %v686
    %v2512 = vunpack.c.h.b16 %v686
    %v2513 = vunpack.c.l.b16 %v687
    %v2514 = vunpack.c.h.b16 %v687
    %v2515 = vunpack.c.l.b16 %v688
    %v2516 = vunpack.c.h.b16 %v688
    %v2517 = vunpack.c.l.b16 %v689
    %v2518 = vunpack.c.h.b16 %v689
    %v2519 = vunpack.c.l.b16 %v690
    %v2520 = vunpack.c.h.b16 %v690
    %v2521 = vunpack.c.l.b16 %v691
    %v2522 = vunpack.c.h.b16 %v691
    %v2523 = vunpack.c.l.b16 %v692
    %v2524 = vunpack.c.h.b16 %v692
    %v2525 = vunpack.c.l.b16 %v693
    %v2526 = vunpack.c.h.b16 %v693
    %v2527 = vunpack.c.l.b16 %v694
    %v2528 = vunpack.c.h.b16 %v694
    %v2529 = vunpack.c.l.b16 %v695
    %v2530 = vunpack.c.h.b16 %v695
    %v2531 = vunpack.c.l.b16 %v696
    %v2532 = vunpack.c.h.b16 %v696
    %v2533 = vunpack.c.l.b16 %v697
    %v2534 = vunpack.c.h.b16 %v697
    %v2535 = vunpack.c.l.b16 %v698
    %v2536 = vunpack.c.h.b16 %v698
    %v2537 = vunpack.c.l.b16 %v699
    %v2538 = vunpack.c.h.b16 %v699
    %v2539 = vunpack.c.l.b16 %v700
    %v2540 = vunpack.c.h.b16 %v700
    %v2541 = vunpack.c.l.b16 %v701
    %v2542 = vunpack.c.h.b16 %v701
    %v2543 = vunpack.c.l.b16 %v702
    %v2544 = vunpack.c.h.b16 %v702
    %v2545 = vunpack.c.l.b16 %v703
    %v2546 = vunpack.c.h.b16 %v703
    %v2547 = vunpack.c.l.b16 %v704
    %v2548 = vunpack.c.h.b16 %v704
    %v2549 = vunpack.c.l.b16 %v705
    %v2550 = vunpack.c.h.b16 %v705
    %v2551 = vunpack.c.l.b16 %v706
    %v2552 = vunpack.c.h.b16 %v706
    %v2553 = vunpack.c.l.b16 %v707
    %v2554 = vunpack.c.h.b16 %v707
    %v2555 = vunpack.c.l.b16 %v708
    %v2556 = vunpack.c.h.b16 %v708
    %v2557 = vunpack.c.l.b16 %v709
    %v2558 = vunpack.c.h.b16 %v709
    %v2559 = vunpack.c.l.b16 %v710
    %v2560 = vunpack.c.h.b16 %v710
    %v2561 = vunpack.c.l.b16 %v711
    %v2562 = vunpack.c.h.b16 %v711
    %v2563 = vunpack.c.l.b16 %v712
    %v2564 = vunpack.c.h.b16 %v712
    %v2565 = vunpack.c.l.b16 %v713
    %v2566 = vunpack.c.h.b16 %v713
    %v2567 = vunpack.c.l.b16 %v714
    %v2568 = vunpack.c.h.b16 %v714
    %v2569 = vunpack.c.l.b16 %v715
    %v2570 = vunpack.c.h.b16 %v715
    %v2571 = vunpack.c.l.b16 %v716
    %v2572 = vunpack.c.h.b16 %v716
    %v2573 = vunpack.c.l.b16 %v717
    %v2574 = vunpack.c.h.b16 %v717
    %v2575 = vunpack.c.l.b16 %v718
    %v2576 = vunpack.c.h.b16 %v718
    %v2577 = vunpack.c.l.b16 %v719
    %v2578 = vunpack.c.h.b16 %v719
    %v2579 = vunpack.c.l.b16 %v720
    %v2580 = vunpack.c.h.b16 %v720
    %v2581 = vunpack.c.l.b16 %v721
    %v2582 = vunpack.c.h.b16 %v721
    %v2583 = vunpack.c.l.b16 %v722
    %v2584 = vunpack.c.h.b16 %v722
    %v2585 = vunpack.c.l.b16 %v723
    %v2586 = vunpack.c.h.b16 %v723
    %v2587 = vunpack.c.l.b16 %v724
    %v2588 = vunpack.c.h.b16 %v724
    %v2589 = vunpack.c.l.b16 %v725
    %v2590 = vunpack.c.h.b16 %v725
    %v2591 = vunpack.c.l.b16 %v726
    %v2592 = vunpack.c.h.b16 %v726
    %v2593 = vunpack.c.l.b16 %v727
    %v2594 = vunpack.c.h.b16 %v727
    %v2595 = vunpack.c.l.b16 %v728
    %v2596 = vunpack.c.h.b16 %v728
    %v2597 = vunpack.c.l.b16 %v729
    %v2598 = vunpack.c.h.b16 %v729
    %v2599 = vunpack.c.l.b16 %v730
    %v2600 = vunpack.c.h.b16 %v730
    %v2601 = vunpack.c.l.b16 %v731
    %v2602 = vunpack.c.h.b16 %v731
    %v2603 = vunpack.c.l.b16 %v732
    %v2604 = vunpack.c.h.b16 %v732
    %v2605 = vunpack.c.l.b16 %v733
    %v2606 = vunpack.c.h.b16 %v733
    %v2607 = vunpack.c.l.b16 %v734
    %v2608 = vunpack.c.h.b16 %v734
    %v2609 = vunpack.c.l.b16 %v735
    %v2610 = vunpack.c.h.b16 %v735
    %v2611 = vunpack.c.l.b16 %v736
    %v2612 = vunpack.c.h.b16 %v736
    %v2613 = vunpack.c.l.b16 %v737
    %v2614 = vunpack.c.h.b16 %v737
    %v2615 = vunpack.c.l.b16 %v738
    %v2616 = vunpack.c.h.b16 %v738
    %v2617 = vunpack.c.l.b16 %v739
    %v2618 = vunpack.c.h.b16 %v739
    %v2619 = vunpack.c.l.b16 %v740
    %v2620 = vunpack.c.h.b16 %v740
    %v2621 = vunpack.c.l.b16 %v741
    %v2622 = vunpack.c.h.b16 %v741
    %v2623 = vunpack.c.l.b16 %v742
    %v2624 = vunpack.c.h.b16 %v742
    %v2625 = vunpack.c.l.b16 %v743
    %v2626 = vunpack.c.h.b16 %v743
    %v2627 = vunpack.c.l.b16 %v744
    %v2628 = vunpack.c.h.b16 %v744
    %v2629 = vunpack.c.l.b16 %v745
    %v2630 = vunpack.c.h.b16 %v745
    %v2631 = vunpack.c.l.b16 %v746
    %v2632 = vunpack.c.h.b16 %v746
    %v2633 = vunpack.c.l.b16 %v747
    %v2634 = vunpack.c.h.b16 %v747
    %v2635 = vunpack.c.l.b16 %v748
    %v2636 = vunpack.c.h.b16 %v748
    %v2637 = vunpack.c.l.b16 %v749
    %v2638 = vunpack.c.h.b16 %v749
    %v2639 = vunpack.c.l.b16 %v750
    %v2640 = vunpack.c.h.b16 %v750
    %v2641 = vunpack.c.l.b16 %v751
    %v2642 = vunpack.c.h.b16 %v751
    %v2643 = vunpack.c.l.b16 %v752
    %v2644 = vunpack.c.h.b16 %v752
    %v2645 = vunpack.c.l.b16 %v753
    %v2646 = vunpack.c.h.b16 %v753
    %v2647 = vunpack.c.l.b16 %v754
    %v2648 = vunpack.c.h.b16 %v754
    %v2649 = vunpack.c.l.b16 %v755
    %v2650 = vunpack.c.h.b16 %v755
    %v2651 = vunpack.c.l.b16 %v756
    %v2652 = vunpack.c.h.b16 %v756
    %v2653 = vunpack.c.l.b16 %v757
    %v2654 = vunpack.c.h.b16 %v757
    %v2655 = vunpack.c.l.b16 %v758
    %v2656 = vunpack.c.h.b16 %v758
    %v2657 = vunpack.c.l.b16 %v759
    %v2658 = vunpack.c.h.b16 %v759
    %v2659 = vunpack.c.l.b16 %v760
    %v2660 = vunpack.c.h.b16 %v760
    %v2661 = vunpack.c.l.b16 %v761
    %v2662 = vunpack.c.h.b16 %v761
    %v2663 = vunpack.c.l.b16 %v762
    %v2664 = vunpack.c.h.b16 %v762
    %v2665 = vunpack.c.l.b16 %v763
    %v2666 = vunpack.c.h.b16 %v763
    %v2667 = vunpack.c.l.b16 %v764
    %v2668 = vunpack.c.h.b16 %v764
    %v2669 = vunpack.c.l.b16 %v765
    %v2670 = vunpack.c.h.b16 %v765
    %v2671 = vunpack.c.l.b16 %v766
    %v2672 = vunpack.c.h.b16 %v766
    %v2673 = vunpack.c.l.b16 %v767
    %v2674 = vunpack.c.h.b16 %v767
    %v2675 = vunpack.c.l.b16 %v768
    %v2676 = vunpack.c.h.b16 %v768
    %v2677 = vunpack.c.l.b16 %v769
    %v2678 = vunpack.c.h.b16 %v769
    %v2679 = vunpack.c.l.b16 %v770
    %v2680 = vunpack.c.h.b16 %v770
    %v2681 = vunpack.c.l.b16 %v771
    %v2682 = vunpack.c.h.b16 %v771
    %v2683 = vunpack.c.l.b16 %v772
    %v2684 = vunpack.c.h.b16 %v772
    %v2685 = vunpack.c.l.b16 %v773
    %v2686 = vunpack.c.h.b16 %v773
    %v2687 = vpack.c.b16 %v1475, %v1471
    %v2688 = vpack.c.b16 %v1476, %v1472
    %v2689 = vpack.c.b16 %v1477, %v1473
    %v2690 = vpack.c.b16 %v1478, %v1474
    %v2691 = vpack.c.b16 %v1483, %v1479
    %v2692 = vpack.c.b16 %v1484, %v1480
    %v2693 = vpack.c.b16 %v1485, %v1481
    %v2694 = vpack.c.b16 %v1486, %v1482
    %v2695 = vpack.c.b16 %v1491, %v1487
    %v2696 = vpack.c.b16 %v1492, %v1488
    %v2697 = vpack.c.b16 %v1493, %v1489
    %v2698 = vpack.c.b16 %v1494, %v1490
    %v2699 = vpack.c.b16 %v1499, %v1495
    %v2700 = vpack.c.b16 %v1500, %v1496
    %v2701 = vpack.c.b16 %v1501, %v1497
    %v2702 = vpack.c.b16 %v1502, %v1498
    %v2703 = vpack.c.b16 %v1507, %v1503
    %v2704 = vpack.c.b16 %v1508, %v1504
    %v2705 = vpack.c.b16 %v1509, %v1505
    %v2706 = vpack.c.b16 %v1510, %v1506
    %v2707 = vpack.c.b16 %v1515, %v1511
    %v2708 = vpack.c.b16 %v1516, %v1512
    %v2709 = vpack.c.b16 %v1517, %v1513
    %v2710 = vpack.c.b16 %v1518, %v1514
    %v2711 = vpack.c.b16 %v1523, %v1519
    %v2712 = vpack.c.b16 %v1524, %v1520
    %v2713 = vpack.c.b16 %v1525, %v1521
    %v2714 = vpack.c.b16 %v1526, %v1522
    %v2715 = vpack.c.b16 %v1531, %v1527
    %v2716 = vpack.c.b16 %v1532, %v1528
    %v2717 = vpack.c.b16 %v1533, %v1529
    %v2718 = vpack.c.b16 %v1534, %v1530
    %v2719 = vpack.c.b16 %v1539, %v1535
    %v2720 = vpack.c.b16 %v1540, %v1536
    %v2721 = vpack.c.b16 %v1541, %v1537
    %v2722 = vpack.c.b16 %v1542, %v1538
    %v2723 = vpack.c.b16 %v1547, %v1543
    %v2724 = vpack.c.b16 %v1548, %v1544
    %v2725 = vpack.c.b16 %v1549, %v1545
    %v2726 = vpack.c.b16 %v1550, %v1546
    %v2727 = vpack.c.b16 %v1555, %v1551
    %v2728 = vpack.c.b16 %v1556, %v1552
    %v2729 = vpack.c.b16 %v1557, %v1553
    %v2730 = vpack.c.b16 %v1558, %v1554
    %v2731 = vpack.c.b16 %v1563, %v1559
    %v2732 = vpack.c.b16 %v1564, %v1560
    %v2733 = vpack.c.b16 %v1565, %v1561
    %v2734 = vpack.c.b16 %v1566, %v1562
    %v2735 = vpack.c.b16 %v1571, %v1567
    %v2736 = vpack.c.b16 %v1572, %v1568
    %v2737 = vpack.c.b16 %v1573, %v1569
    %v2738 = vpack.c.b16 %v1574, %v1570
    %v2739 = vpack.c.b16 %v1579, %v1575
    %v2740 = vpack.c.b16 %v1580, %v1576
    %v2741 = vpack.c.b16 %v1581, %v1577
    %v2742 = vpack.c.b16 %v1582, %v1578
    %v2743 = vpack.c.b16 %v1587, %v1583
    %v2744 = vpack.c.b16 %v1588, %v1584
    %v2745 = vpack.c.b16 %v1589, %v1585
    %v2746 = vpack.c.b16 %v1590, %v1586
    %v2747 = vpack.c.b16 %v1595, %v1591
    %v2748 = vpack.c.b16 %v1596, %v1592
    %v2749 = vpack.c.b16 %v1597, %v1593
    %v2750 = vpack.c.b16 %v1598, %v1594
    %v2751 = vpack.c.b16 %v1603, %v1599
    %v2752 = vpack.c.b16 %v1604, %v1600
    %v2753 = vpack.c.b16 %v1605, %v1601
    %v2754 = vpack.c.b16 %v1606, %v1602
    %v2755 = vpack.c.b16 %v1611, %v1607
    %v2756 = vpack.c.b16 %v1612, %v1608
    %v2757 = vpack.c.b16 %v1613, %v1609
    %v2758 = vpack.c.b16 %v1614, %v1610
    %v2759 = vpack.c.b16 %v1619, %v1615
    %v2760 = vpack.c.b16 %v1620, %v1616
    %v2761 = vpack.c.b16 %v1621, %v1617
    %v2762 = vpack.c.b16 %v1622, %v1618
    %v2763 = vpack.c.b16 %v1627, %v1623
    %v2764 = vpack.c.b16 %v1628, %v1624
    %v2765 = vpack.c.b16 %v1629, %v1625
    %v2766 = vpack.c.b16 %v1630, %v1626
    %v2767 = vpack.c.b16 %v1635, %v1631
    %v2768 = vpack.c.b16 %v1636, %v1632
    %v2769 = vpack.c.b16 %v1637, %v1633
    %v2770 = vpack.c.b16 %v1638, %v1634
    %v2771 = vpack.c.b16 %v1643, %v1639
    %v2772 = vpack.c.b16 %v1644, %v1640
    %v2773 = vpack.c.b16 %v1645, %v1641
    %v2774 = vpack.c.b16 %v1646, %v1642
    %v2775 = vpack.c.b16 %v1651, %v1647
    %v2776 = vpack.c.b16 %v1652, %v1648
    %v2777 = vpack.c.b16 %v1653, %v1649
    %v2778 = vpack.c.b16 %v1654, %v1650
    %v2779 = vpack.c.b16 %v1659, %v1655
    %v2780 = vpack.c.b16 %v1660, %v1656
    %v2781 = vpack.c.b16 %v1661, %v1657
    %v2782 = vpack.c.b16 %v1662, %v1658
    %v2783 = vpack.c.b16 %v1667, %v1663
    %v2784 = vpack.c.b16 %v1668, %v1664
    %v2785 = vpack.c.b16 %v1669, %v1665
    %v2786 = vpack.c.b16 %v1670, %v1666
    %v2787 = vpack.c.b16 %v1675, %v1671
    %v2788 = vpack.c.b16 %v1676, %v1672
    %v2789 = vpack.c.b16 %v1677, %v1673
    %v2790 = vpack.c.b16 %v1678, %v1674
    %v2791 = vpack.c.b16 %v1683, %v1679
    %v2792 = vpack.c.b16 %v1684, %v1680
    %v2793 = vpack.c.b16 %v1685, %v1681
    %v2794 = vpack.c.b16 %v1686, %v1682
    %v2795 = vpack.c.b16 %v1691, %v1687
    %v2796 = vpack.c.b16 %v1692, %v1688
    %v2797 = vpack.c.b16 %v1693, %v1689
    %v2798 = vpack.c.b16 %v1694, %v1690
    %v2799 = vpack.c.b16 %v1699, %v1695
    %v2800 = vpack.c.b16 %v1700, %v1696
    %v2801 = vpack.c.b16 %v1701, %v1697
    %v2802 = vpack.c.b16 %v1702, %v1698
    %v2803 = vpack.c.b16 %v1707, %v1703
    %v2804 = vpack.c.b16 %v1708, %v1704
    %v2805 = vpack.c.b16 %v1709, %v1705
    %v2806 = vpack.c.b16 %v1710, %v1706
    %v2807 = vpack.c.b16 %v1715, %v1711
    %v2808 = vpack.c.b16 %v1716, %v1712
    %v2809 = vpack.c.b16 %v1717, %v1713
    %v2810 = vpack.c.b16 %v1718, %v1714
    %v2811 = vpack.c.b16 %v1723, %v1719
    %v2812 = vpack.c.b16 %v1724, %v1720
    %v2813 = vpack.c.b16 %v1725, %v1721
    %v2814 = vpack.c.b16 %v1726, %v1722
    %v2815 = vpack.c.b16 %v1731, %v1727
    %v2816 = vpack.c.b16 %v1732, %v1728
    %v2817 = vpack.c.b16 %v1733, %v1729
    %v2818 = vpack.c.b16 %v1734, %v1730
    %v2819 = vpack.c.b16 %v1739, %v1735
    %v2820 = vpack.c.b16 %v1740, %v1736
    %v2821 = vpack.c.b16 %v1741, %v1737
    %v2822 = vpack.c.b16 %v1742, %v1738
    %v2823 = vpack.c.b16 %v1747, %v1743
    %v2824 = vpack.c.b16 %v1748, %v1744
    %v2825 = vpack.c.b16 %v1749, %v1745
    %v2826 = vpack.c.b16 %v1750, %v1746
    %v2827 = vpack.c.b16 %v1755, %v1751
    %v2828 = vpack.c.b16 %v1756, %v1752
    %v2829 = vpack.c.b16 %v1757, %v1753
    %v2830 = vpack.c.b16 %v1758, %v1754
    %v2831 = vpack.c.b16 %v1763, %v1759
    %v2832 = vpack.c.b16 %v1764, %v1760
    %v2833 = vpack.c.b16 %v1765, %v1761
    %v2834 = vpack.c.b16 %v1766, %v1762
    %v2835 = vpack.c.b16 %v1771, %v1767
    %v2836 = vpack.c.b16 %v1772, %v1768
    %v2837 = vpack.c.b16 %v1773, %v1769
    %v2838 = vpack.c.b16 %v1774, %v1770
    %v2839 = vpack.c.b16 %v1779, %v1775
    %v2840 = vpack.c.b16 %v1780, %v1776
    %v2841 = vpack.c.b16 %v1781, %v1777
    %v2842 = vpack.c.b16 %v1782, %v1778
    %v2843 = vpack.c.b16 %v1787, %v1783
    %v2844 = vpack.c.b16 %v1788, %v1784
    %v2845 = vpack.c.b16 %v1789, %v1785
    %v2846 = vpack.c.b16 %v1790, %v1786
    %v2847 = vpack.c.b16 %v1795, %v1791
    %v2848 = vpack.c.b16 %v1796, %v1792
    %v2849 = vpack.c.b16 %v1797, %v1793
    %v2850 = vpack.c.b16 %v1798, %v1794
    %v2851 = vpack.c.b16 %v1803, %v1799
    %v2852 = vpack.c.b16 %v1804, %v1800
    %v2853 = vpack.c.b16 %v1805, %v1801
    %v2854 = vpack.c.b16 %v1806, %v1802
    %v2855 = vpack.c.b16 %v1811, %v1807
    %v2856 = vpack.c.b16 %v1812, %v1808
    %v2857 = vpack.c.b16 %v1813, %v1809
    %v2858 = vpack.c.b16 %v1814, %v1810
    %v2859 = vpack.c.b16 %v1819, %v1815
    %v2860 = vpack.c.b16 %v1820, %v1816
    %v2861 = vpack.c.b16 %v1821, %v1817
    %v2862 = vpack.c.b16 %v1822, %v1818
    %v2863 = vpack.c.b16 %v1827, %v1823
    %v2864 = vpack.c.b16 %v1828, %v1824
    %v2865 = vpack.c.b16 %v1829, %v1825
    %v2866 = vpack.c.b16 %v1830, %v1826
    %v2867 = vpack.c.b16 %v1835, %v1831
    %v2868 = vpack.c.b16 %v1836, %v1832
    %v2869 = vpack.c.b16 %v1837, %v1833
    %v2870 = vpack.c.b16 %v1838, %v1834
    %v2871 = vpack.c.b16 %v1843, %v1839
    %v2872 = vpack.c.b16 %v1844, %v1840
    %v2873 = vpack.c.b16 %v1845, %v1841
    %v2874 = vpack.c.b16 %v1846, %v1842
    %v2875 = vpack.c.b16 %v1851, %v1847
    %v2876 = vpack.c.b16 %v1852, %v1848
    %v2877 = vpack.c.b16 %v1853, %v1849
    %v2878 = vpack.c.b16 %v1854, %v1850
    %v2879 = vpack.c.b16 %v1859, %v1855
    %v2880 = vpack.c.b16 %v1860, %v1856
    %v2881 = vpack.c.b16 %v1861, %v1857
    %v2882 = vpack.c.b16 %v1862, %v1858
    %v2883 = vpack.c.b16 %v1867, %v1863
    %v2884 = vpack.c.b16 %v1868, %v1864
    %v2885 = vpack.c.b16 %v1869, %v1865
    %v2886 = vpack.c.b16 %v1870, %v1866
    %v2887 = vpack.c.b16 %v1875, %v1871
    %v2888 = vpack.c.b16 %v1876, %v1872
    %v2889 = vpack.c.b16 %v1877, %v1873
    %v2890 = vpack.c.b16 %v1878, %v1874
    %v2891 = vpack.c.b16 %v1883, %v1879
    %v2892 = vpack.c.b16 %v1884, %v1880
    %v2893 = vpack.c.b16 %v1885, %v1881
    %v2894 = vpack.c.b16 %v1886, %v1882
    %v2895 = vpack.c.b16 %v1891, %v1887
    %v2896 = vpack.c.b16 %v1892, %v1888
    %v2897 = vpack.c.b16 %v1893, %v1889
    %v2898 = vpack.c.b16 %v1894, %v1890
    %v2899 = vpack.c.b16 %v1899, %v1895
    %v2900 = vpack.c.b16 %v1900, %v1896
    %v2901 = vpack.c.b16 %v1901, %v1897
    %v2902 = vpack.c.b16 %v1902, %v1898
    %v2903 = vpack.c.b16 %v1907, %v1903
    %v2904 = vpack.c.b16 %v1908, %v1904
    %v2905 = vpack.c.b16 %v1909, %v1905
    %v2906 = vpack.c.b16 %v1910, %v1906
    %v2907 = vpack.c.b16 %v1915, %v1911
    %v2908 = vpack.c.b16 %v1916, %v1912
    %v2909 = vpack.c.b16 %v1917, %v1913
    %v2910 = vpack.c.b16 %v1918, %v1914
    %v2911 = vpack.c.b16 %v1923, %v1919
    %v2912 = vpack.c.b16 %v1924, %v1920
    %v2913 = vpack.c.b16 %v1925, %v1921
    %v2914 = vpack.c.b16 %v1926, %v1922
    %v2915 = vpack.c.b16 %v1931, %v1927
    %v2916 = vpack.c.b16 %v1932, %v1928
    %v2917 = vpack.c.b16 %v1933, %v1929
    %v2918 = vpack.c.b16 %v1934, %v1930
    %v2919 = vpack.c.b16 %v1939, %v1935
    %v2920 = vpack.c.b16 %v1940, %v1936
    %v2921 = vpack.c.b16 %v1941, %v1937
    %v2922 = vpack.c.b16 %v1942, %v1938
    %v2923 = vpack.c.b16 %v1947, %v1943
    %v2924 = vpack.c.b16 %v1948, %v1944
    %v2925 = vpack.c.b16 %v1949, %v1945
    %v2926 = vpack.c.b16 %v1950, %v1946
    %v2927 = vpack.c.b16 %v1955, %v1951
    %v2928 = vpack.c.b16 %v1956, %v1952
    %v2929 = vpack.c.b16 %v1957, %v1953
    %v2930 = vpack.c.b16 %v1958, %v1954
    %v2931 = vpack.c.b16 %v1963, %v1959
    %v2932 = vpack.c.b16 %v1964, %v1960
    %v2933 = vpack.c.b16 %v1965, %v1961
    %v2934 = vpack.c.b16 %v1966, %v1962
    %v2935 = vpack.c.b16 %v1971, %v1967
    %v2936 = vpack.c.b16 %v1972, %v1968
    %v2937 = vpack.c.b16 %v1973, %v1969
    %v2938 = vpack.c.b16 %v1974, %v1970
    %v2939 = vpack.c.b16 %v1979, %v1975
    %v2940 = vpack.c.b16 %v1980, %v1976
    %v2941 = vpack.c.b16 %v1981, %v1977
    %v2942 = vpack.c.b16 %v1982, %v1978
    %v2943 = vpack.c.b16 %v1987, %v1983
    %v2944 = vpack.c.b16 %v1988, %v1984
    %v2945 = vpack.c.b16 %v1989, %v1985
    %v2946 = vpack.c.b16 %v1990, %v1986
    %v2947 = vpack.c.b16 %v1995, %v1991
    %v2948 = vpack.c.b16 %v1996, %v1992
    %v2949 = vpack.c.b16 %v1997, %v1993
    %v2950 = vpack.c.b16 %v1998, %v1994
    %v2951 = vpack.c.b16 %v2003, %v1999
    %v2952 = vpack.c.b16 %v2004, %v2000
    %v2953 = vpack.c.b16 %v2005, %v2001
    %v2954 = vpack.c.b16 %v2006, %v2002
    %v2955 = vpack.c.b16 %v2011, %v2007
    %v2956 = vpack.c.b16 %v2012, %v2008
    %v2957 = vpack.c.b16 %v2013, %v2009
    %v2958 = vpack.c.b16 %v2014, %v2010
    %v2959 = vpack.c.b16 %v2019, %v2015
    %v2960 = vpack.c.b16 %v2020, %v2016
    %v2961 = vpack.c.b16 %v2021, %v2017
    %v2962 = vpack.c.b16 %v2022, %v2018
    %v2963 = vpack.c.b16 %v2027, %v2023
    %v2964 = vpack.c.b16 %v2028, %v2024
    %v2965 = vpack.c.b16 %v2029, %v2025
    %v2966 = vpack.c.b16 %v2030, %v2026
    %v2967 = vpack.c.b16 %v2035, %v2031
    %v2968 = vpack.c.b16 %v2036, %v2032
    %v2969 = vpack.c.b16 %v2037, %v2033
    %v2970 = vpack.c.b16 %v2038, %v2034
    %v2971 = vpack.c.b16 %v2043, %v2039
    %v2972 = vpack.c.b16 %v2044, %v2040
    %v2973 = vpack.c.b16 %v2045, %v2041
    %v2974 = vpack.c.b16 %v2046, %v2042
    %v2975 = vpack.c.b16 %v2051, %v2047
    %v2976 = vpack.c.b16 %v2052, %v2048
    %v2977 = vpack.c.b16 %v2053, %v2049
    %v2978 = vpack.c.b16 %v2054, %v2050
    %v2979 = vpack.c.b16 %v2059, %v2055
    %v2980 = vpack.c.b16 %v2060, %v2056
    %v2981 = vpack.c.b16 %v2061, %v2057
    %v2982 = vpack.c.b16 %v2062, %v2058
    %v2983 = vpack.c.b16 %v2067, %v2063
    %v2984 = vpack.c.b16 %v2068, %v2064
    %v2985 = vpack.c.b16 %v2069, %v2065
    %v2986 = vpack.c.b16 %v2070, %v2066
    %v2987 = vpack.c.b16 %v2075, %v2071
    %v2988 = vpack.c.b16 %v2076, %v2072
    %v2989 = vpack.c.b16 %v2077, %v2073
    %v2990 = vpack.c.b16 %v2078, %v2074
    %v2991 = vpack.c.b16 %v2083, %v2079
    %v2992 = vpack.c.b16 %v2084, %v2080
    %v2993 = vpack.c.b16 %v2085, %v2081
    %v2994 = vpack.c.b16 %v2086, %v2082
    %v2995 = vpack.c.b16 %v2091, %v2087
    %v2996 = vpack.c.b16 %v2092, %v2088
    %v2997 = vpack.c.b16 %v2093, %v2089
    %v2998 = vpack.c.b16 %v2094, %v2090
    %v2999 = vpack.c.b16 %v2099, %v2095
    %v3000 = vpack.c.b16 %v2100, %v2096
    %v3001 = vpack.c.b16 %v2101, %v2097
    %v3002 = vpack.c.b16 %v2102, %v2098
    %v3003 = vpack.c.b16 %v2107, %v2103
    %v3004 = vpack.c.b16 %v2108, %v2104
    %v3005 = vpack.c.b16 %v2109, %v2105
    %v3006 = vpack.c.b16 %v2110, %v2106
    %v3007 = vpack.c.b16 %v2115, %v2111
    %v3008 = vpack.c.b16 %v2116, %v2112
    %v3009 = vpack.c.b16 %v2117, %v2113
    %v3010 = vpack.c.b16 %v2118, %v2114
    %v3011 = vpack.c.b16 %v2123, %v2119
    %v3012 = vpack.c.b16 %v2124, %v2120
    %v3013 = vpack.c.b16 %v2125, %v2121
    %v3014 = vpack.c.b16 %v2126, %v2122
    %v3015 = vpack.c.b16 %v2131, %v2127
    %v3016 = vpack.c.b16 %v2132, %v2128
    %v3017 = vpack.c.b16 %v2133, %v2129
    %v3018 = vpack.c.b16 %v2134, %v2130
    %v3019 = vpack.c.b16 %v2139, %v2135
    %v3020 = vpack.c.b16 %v2140, %v2136
    %v3021 = vpack.c.b16 %v2141, %v2137
    %v3022 = vpack.c.b16 %v2142, %v2138
    %v3023 = vpack.c.b16 %v2147, %v2143
    %v3024 = vpack.c.b16 %v2148, %v2144
    %v3025 = vpack.c.b16 %v2149, %v2145
    %v3026 = vpack.c.b16 %v2150, %v2146
    %v3027 = vpack.c.b16 %v2155, %v2151
    %v3028 = vpack.c.b16 %v2156, %v2152
    %v3029 = vpack.c.b16 %v2157, %v2153
    %v3030 = vpack.c.b16 %v2158, %v2154
    %v3031 = vpack.c.b16 %v2163, %v2159
    %v3032 = vpack.c.b16 %v2164, %v2160
    %v3033 = vpack.c.b16 %v2165, %v2161
    %v3034 = vpack.c.b16 %v2166, %v2162
    %v3035 = vpack.c.b16 %v2171, %v2167
    %v3036 = vpack.c.b16 %v2172, %v2168
    %v3037 = vpack.c.b16 %v2173, %v2169
    %v3038 = vpack.c.b16 %v2174, %v2170
    %v3039 = vpack.c.b16 %v2179, %v2175
    %v3040 = vpack.c.b16 %v2180, %v2176
    %v3041 = vpack.c.b16 %v2181, %v2177
    %v3042 = vpack.c.b16 %v2182, %v2178
    %v3043 = vpack.c.b16 %v2187, %v2183
    %v3044 = vpack.c.b16 %v2188, %v2184
    %v3045 = vpack.c.b16 %v2189, %v2185
    %v3046 = vpack.c.b16 %v2190, %v2186
    %v3047 = vpack.c.b16 %v2195, %v2191
    %v3048 = vpack.c.b16 %v2196, %v2192
    %v3049 = vpack.c.b16 %v2197, %v2193
    %v3050 = vpack.c.b16 %v2198, %v2194
    %v3051 = vpack.c.b16 %v2203, %v2199
    %v3052 = vpack.c.b16 %v2204, %v2200
    %v3053 = vpack.c.b16 %v2205, %v2201
    %v3054 = vpack.c.b16 %v2206, %v2202
    %v3055 = vpack.c.b16 %v2211, %v2207
    %v3056 = vpack.c.b16 %v2212, %v2208
    %v3057 = vpack.c.b16 %v2213, %v2209
    %v3058 = vpack.c.b16 %v2214, %v2210
    %v3059 = vpack.c.b16 %v2219, %v2215
    %v3060 = vpack.c.b16 %v2220, %v2216
    %v3061 = vpack.c.b16 %v2221, %v2217
    %v3062 = vpack.c.b16 %v2222, %v2218
    %v3063 = vpack.c.b16 %v2227, %v2223
    %v3064 = vpack.c.b16 %v2228, %v2224
    %v3065 = vpack.c.b16 %v2229, %v2225
    %v3066 = vpack.c.b16 %v2230, %v2226
    %v3067 = vpack.c.b16 %v2235, %v2231
    %v3068 = vpack.c.b16 %v2236, %v2232
    %v3069 = vpack.c.b16 %v2237, %v2233
    %v3070 = vpack.c.b16 %v2238, %v2234
    %v3071 = vpack.c.b16 %v2243, %v2239
    %v3072 = vpack.c.b16 %v2244, %v2240
    %v3073 = vpack.c.b16 %v2245, %v2241
    %v3074 = vpack.c.b16 %v2246, %v2242
    %v3075 = vpack.c.b16 %v2251, %v2247
    %v3076 = vpack.c.b16 %v2252, %v2248
    %v3077 = vpack.c.b16 %v2253, %v2249
    %v3078 = vpack.c.b16 %v2254, %v2250
    %v3079 = vpack.c.b16 %v2259, %v2255
    %v3080 = vpack.c.b16 %v2260, %v2256
    %v3081 = vpack.c.b16 %v2261, %v2257
    %v3082 = vpack.c.b16 %v2262, %v2258
    %v3083 = vpack.c.b16 %v2267, %v2263
    %v3084 = vpack.c.b16 %v2268, %v2264
    %v3085 = vpack.c.b16 %v2269, %v2265
    %v3086 = vpack.c.b16 %v2270, %v2266
    %v3087 = vpack.c.b16 %v2275, %v2271
    %v3088 = vpack.c.b16 %v2276, %v2272
    %v3089 = vpack.c.b16 %v2277, %v2273
    %v3090 = vpack.c.b16 %v2278, %v2274
    %v3091 = vpack.c.b16 %v2283, %v2279
    %v3092 = vpack.c.b16 %v2284, %v2280
    %v3093 = vpack.c.b16 %v2285, %v2281
    %v3094 = vpack.c.b16 %v2286, %v2282
    %v3095 = vpack.c.b16 %v2291, %v2287
    %v3096 = vpack.c.b16 %v2292, %v2288
    %v3097 = vpack.c.b16 %v2293, %v2289
    %v3098 = vpack.c.b16 %v2294, %v2290
    %v3099 = vpack.c.b16 %v2299, %v2295
    %v3100 = vpack.c.b16 %v2300, %v2296
    %v3101 = vpack.c.b16 %v2301, %v2297
    %v3102 = vpack.c.b16 %v2302, %v2298
    %v3103 = vpack.c.b16 %v2307, %v2303
    %v3104 = vpack.c.b16 %v2308, %v2304
    %v3105 = vpack.c.b16 %v2309, %v2305
    %v3106 = vpack.c.b16 %v2310, %v2306
    %v3107 = vpack.c.b16 %v2315, %v2311
    %v3108 = vpack.c.b16 %v2316, %v2312
    %v3109 = vpack.c.b16 %v2317, %v2313
    %v3110 = vpack.c.b16 %v2318, %v2314
    %v3111 = vpack.c.b16 %v2323, %v2319
    %v3112 = vpack.c.b16 %v2324, %v2320
    %v3113 = vpack.c.b16 %v2325, %v2321
    %v3114 = vpack.c.b16 %v2326, %v2322
    %v3115 = vpack.c.b16 %v2331, %v2327
    %v3116 = vpack.c.b16 %v2332, %v2328
    %v3117 = vpack.c.b16 %v2333, %v2329
    %v3118 = vpack.c.b16 %v2334, %v2330
    %v3119 = vpack.c.b16 %v2339, %v2335
    %v3120 = vpack.c.b16 %v2340, %v2336
    %v3121 = vpack.c.b16 %v2341, %v2337
    %v3122 = vpack.c.b16 %v2342, %v2338
    %v3123 = vpack.c.b16 %v2347, %v2343
    %v3124 = vpack.c.b16 %v2348, %v2344
    %v3125 = vpack.c.b16 %v2349, %v2345
    %v3126 = vpack.c.b16 %v2350, %v2346
    %v3127 = vpack.c.b16 %v2355, %v2351
    %v3128 = vpack.c.b16 %v2356, %v2352
    %v3129 = vpack.c.b16 %v2357, %v2353
    %v3130 = vpack.c.b16 %v2358, %v2354
    %v3131 = vpack.c.b16 %v2363, %v2359
    %v3132 = vpack.c.b16 %v2364, %v2360
    %v3133 = vpack.c.b16 %v2365, %v2361
    %v3134 = vpack.c.b16 %v2366, %v2362
    %v3135 = vpack.c.b16 %v2371, %v2367
    %v3136 = vpack.c.b16 %v2372, %v2368
    %v3137 = vpack.c.b16 %v2373, %v2369
    %v3138 = vpack.c.b16 %v2374, %v2370
    %v3139 = vpack.c.b16 %v2379, %v2375
    %v3140 = vpack.c.b16 %v2380, %v2376
    %v3141 = vpack.c.b16 %v2381, %v2377
    %v3142 = vpack.c.b16 %v2382, %v2378
    %v3143 = vpack.c.b16 %v2387, %v2383
    %v3144 = vpack.c.b16 %v2388, %v2384
    %v3145 = vpack.c.b16 %v2389, %v2385
    %v3146 = vpack.c.b16 %v2390, %v2386
    %v3147 = vpack.c.b16 %v2395, %v2391
    %v3148 = vpack.c.b16 %v2396, %v2392
    %v3149 = vpack.c.b16 %v2397, %v2393
    %v3150 = vpack.c.b16 %v2398, %v2394
    %v3151 = vpack.c.b16 %v2403, %v2399
    %v3152 = vpack.c.b16 %v2404, %v2400
    %v3153 = vpack.c.b16 %v2405, %v2401
    %v3154 = vpack.c.b16 %v2406, %v2402
    %v3155 = vpack.c.b16 %v2411, %v2407
    %v3156 = vpack.c.b16 %v2412, %v2408
    %v3157 = vpack.c.b16 %v2413, %v2409
    %v3158 = vpack.c.b16 %v2414, %v2410
    %v3159 = vpack.c.b16 %v2419, %v2415
    %v3160 = vpack.c.b16 %v2420, %v2416
    %v3161 = vpack.c.b16 %v2421, %v2417
    %v3162 = vpack.c.b16 %v2422, %v2418
    %v3163 = vpack.c.b16 %v2427, %v2423
    %v3164 = vpack.c.b16 %v2428, %v2424
    %v3165 = vpack.c.b16 %v2429, %v2425
    %v3166 = vpack.c.b16 %v2430, %v2426
    %v3167 = vpack.c.b16 %v2435, %v2431
    %v3168 = vpack.c.b16 %v2436, %v2432
    %v3169 = vpack.c.b16 %v2437, %v2433
    %v3170 = vpack.c.b16 %v2438, %v2434
    %v3171 = vpack.c.b16 %v2443, %v2439
    %v3172 = vpack.c.b16 %v2444, %v2440
    %v3173 = vpack.c.b16 %v2445, %v2441
    %v3174 = vpack.c.b16 %v2446, %v2442
    %v3175 = vpack.c.b16 %v2451, %v2447
    %v3176 = vpack.c.b16 %v2452, %v2448
    %v3177 = vpack.c.b16 %v2453, %v2449
    %v3178 = vpack.c.b16 %v2454, %v2450
    %v3179 = vpack.c.b16 %v2459, %v2455
    %v3180 = vpack.c.b16 %v2460, %v2456
    %v3181 = vpack.c.b16 %v2461, %v2457
    %v3182 = vpack.c.b16 %v2462, %v2458
    %v3183 = vpack.c.b16 %v2467, %v2463
    %v3184 = vpack.c.b16 %v2468, %v2464
    %v3185 = vpack.c.b16 %v2469, %v2465
    %v3186 = vpack.c.b16 %v2470, %v2466
    %v3187 = vpack.c.b16 %v2475, %v2471
    %v3188 = vpack.c.b16 %v2476, %v2472
    %v3189 = vpack.c.b16 %v2477, %v2473
    %v3190 = vpack.c.b16 %v2478, %v2474
    %v3191 = vpack.c.b16 %v2483, %v2479
    %v3192 = vpack.c.b16 %v2484, %v2480
    %v3193 = vpack.c.b16 %v2485, %v2481
    %v3194 = vpack.c.b16 %v2486, %v2482
    %v3195 = vpack.c.b16 %v2491, %v2487
    %v3196 = vpack.c.b16 %v2492, %v2488
    %v3197 = vpack.c.b16 %v2493, %v2489
    %v3198 = vpack.c.b16 %v2494, %v2490
    %v3199 = vpack.c.b16 %v2499, %v2495
    %v3200 = vpack.c.b16 %v2500, %v2496
    %v3201 = vpack.c.b16 %v2501, %v2497
    %v3202 = vpack.c.b16 %v2502, %v2498
    %v3203 = vpack.c.b16 %v2507, %v2503
    %v3204 = vpack.c.b16 %v2508, %v2504
    %v3205 = vpack.c.b16 %v2509, %v2505
    %v3206 = vpack.c.b16 %v2510, %v2506
    %v3207 = vpack.c.b16 %v2515, %v2511
    %v3208 = vpack.c.b16 %v2516, %v2512
    %v3209 = vpack.c.b16 %v2517, %v2513
    %v3210 = vpack.c.b16 %v2518, %v2514
    %v3211 = vpack.c.b16 %v2523, %v2519
    %v3212 = vpack.c.b16 %v2524, %v2520
    %v3213 = vpack.c.b16 %v2525, %v2521
    %v3214 = vpack.c.b16 %v2526, %v2522
    %v3215 = vpack.c.b16 %v2531, %v2527
    %v3216 = vpack.c.b16 %v2532, %v2528
    %v3217 = vpack.c.b16 %v2533, %v2529
    %v3218 = vpack.c.b16 %v2534, %v2530
    %v3219 = vpack.c.b16 %v2539, %v2535
    %v3220 = vpack.c.b16 %v2540, %v2536
    %v3221 = vpack.c.b16 %v2541, %v2537
    %v3222 = vpack.c.b16 %v2542, %v2538
    %v3223 = vpack.c.b16 %v2547, %v2543
    %v3224 = vpack.c.b16 %v2548, %v2544
    %v3225 = vpack.c.b16 %v2549, %v2545
    %v3226 = vpack.c.b16 %v2550, %v2546
    %v3227 = vpack.c.b16 %v2555, %v2551
    %v3228 = vpack.c.b16 %v2556, %v2552
    %v3229 = vpack.c.b16 %v2557, %v2553
    %v3230 = vpack.c.b16 %v2558, %v2554
    %v3231 = vpack.c.b16 %v2563, %v2559
    %v3232 = vpack.c.b16 %v2564, %v2560
    %v3233 = vpack.c.b16 %v2565, %v2561
    %v3234 = vpack.c.b16 %v2566, %v2562
    %v3235 = vpack.c.b16 %v2571, %v2567
    %v3236 = vpack.c.b16 %v2572, %v2568
    %v3237 = vpack.c.b16 %v2573, %v2569
    %v3238 = vpack.c.b16 %v2574, %v2570
    %v3239 = vpack.c.b16 %v2579, %v2575
    %v3240 = vpack.c.b16 %v2580, %v2576
    %v3241 = vpack.c.b16 %v2581, %v2577
    %v3242 = vpack.c.b16 %v2582, %v2578
    %v3243 = vpack.c.b16 %v2587, %v2583
    %v3244 = vpack.c.b16 %v2588, %v2584
    %v3245 = vpack.c.b16 %v2589, %v2585
    %v3246 = vpack.c.b16 %v2590, %v2586
    %v3247 = vpack.c.b16 %v2595, %v2591
    %v3248 = vpack.c.b16 %v2596, %v2592
    %v3249 = vpack.c.b16 %v2597, %v2593
    %v3250 = vpack.c.b16 %v2598, %v2594
    %v3251 = vpack.c.b16 %v2603, %v2599
    %v3252 = vpack.c.b16 %v2604, %v2600
    %v3253 = vpack.c.b16 %v2605, %v2601
    %v3254 = vpack.c.b16 %v2606, %v2602
    %v3255 = vpack.c.b16 %v2611, %v2607
    %v3256 = vpack.c.b16 %v2612, %v2608
    %v3257 = vpack.c.b16 %v2613, %v2609
    %v3258 = vpack.c.b16 %v2614, %v2610
    %v3259 = vpack.c.b16 %v2619, %v2615
    %v3260 = vpack.c.b16 %v2620, %v2616
    %v3261 = vpack.c.b16 %v2621, %v2617
    %v3262 = vpack.c.b16 %v2622, %v2618
    %v3263 = vpack.c.b16 %v2627, %v2623
    %v3264 = vpack.c.b16 %v2628, %v2624
    %v3265 = vpack.c.b16 %v2629, %v2625
    %v3266 = vpack.c.b16 %v2630, %v2626
    %v3267 = vpack.c.b16 %v2635, %v2631
    %v3268 = vpack.c.b16 %v2636, %v2632
    %v3269 = vpack.c.b16 %v2637, %v2633
    %v3270 = vpack.c.b16 %v2638, %v2634
    %v3271 = vpack.c.b16 %v2643, %v2639
    %v3272 = vpack.c.b16 %v2644, %v2640
    %v3273 = vpack.c.b16 %v2645, %v2641
    %v3274 = vpack.c.b16 %v2646, %v2642
    %v3275 = vpack.c.b16 %v2651, %v2647
    %v3276 = vpack.c.b16 %v2652, %v2648
    %v3277 = vpack.c.b16 %v2653, %v2649
    %v3278 = vpack.c.b16 %v2654, %v2650
    %v3279 = vpack.c.b16 %v2659, %v2655
    %v3280 = vpack.c.b16 %v2660, %v2656
    %v3281 = vpack.c.b16 %v2661, %v2657
    %v3282 = vpack.c.b16 %v2662, %v2658
    %v3283 = vpack.c.b16 %v2667, %v2663
    %v3284 = vpack.c.b16 %v2668, %v2664
    %v3285 = vpack.c.b16 %v2669, %v2665
    %v3286 = vpack.c.b16 %v2670, %v2666
    %v3287 = vpack.c.b16 %v2675, %v2671
    %v3288 = vpack.c.b16 %v2676, %v2672
    %v3289 = vpack.c.b16 %v2677, %v2673
    %v3290 = vpack.c.b16 %v2678, %v2674
    %v3291 = vpack.c.b16 %v2683, %v2679
    %v3292 = vpack.c.b16 %v2684, %v2680
    %v3293 = vpack.c.b16 %v2685, %v2681
    %v3294 = vpack.c.b16 %v2686, %v2682
    %3903 = vmatprep.subr.bf16.mxu0 %v2688
    %3904 = vmatpush1.bf16.msra.mxu0 %v2687
    %3905 = vmatprep.subr.bf16.mxu0 %v2692
    %3906 = vmatpush1.bf16.msra.mxu0 %v2691
    %3907 = vmatprep.subr.bf16.mxu0 %v2696
    %3908 = vmatpush1.bf16.msra.mxu0 %v2695
    %3909 = vmatprep.subr.bf16.mxu0 %v2700
    %3910 = vmatpush1.bf16.msra.mxu0 %v2699
    %3911 = vmatprep.subr.bf16.mxu0 %v2704
    %3912 = vmatpush1.bf16.msra.mxu0 %v2703
    %3913 = vmatprep.subr.bf16.mxu0 %v2708
    %3914 = vmatpush1.bf16.msra.mxu0 %v2707
    %3915 = vmatprep.subr.bf16.mxu0 %v2712
    %3916 = vmatpush1.bf16.msra.mxu0 %v2711
    %3917 = vmatprep.subr.bf16.mxu0 %v2716
    %3918 = vmatpush1.bf16.msra.mxu0 %v2715
    %3919 = vmatprep.subr.bf16.mxu0 %v2720
    %3920 = vmatpush1.bf16.msra.mxu0 %v2719
    %3921 = vmatprep.subr.bf16.mxu0 %v2724
    %3922 = vmatpush1.bf16.msra.mxu0 %v2723
    %3923 = vmatprep.subr.bf16.mxu0 %v2728
    %3924 = vmatpush1.bf16.msra.mxu0 %v2727
    %3925 = vmatprep.subr.bf16.mxu0 %v2732
    %3926 = vmatpush1.bf16.msra.mxu0 %v2731
    %3927 = vmatprep.subr.bf16.mxu0 %v2736
    %3928 = vmatpush1.bf16.msra.mxu0 %v2735
    %3929 = vmatprep.subr.bf16.mxu0 %v2740
    %3930 = vmatpush1.bf16.msra.mxu0 %v2739
    %3931 = vmatprep.subr.bf16.mxu0 %v2744
    %3932 = vmatpush1.bf16.msra.mxu0 %v2743
    %3933 = vmatprep.subr.bf16.mxu0 %v2748
    %3934 = vmatpush1.bf16.msra.mxu0 %v2747
    %3935 = vmatprep.mubr.bf16.mxu0 %v826
    %3936 = vmatmul.mubr.bf16.gmra.mrb[0].mxu0 %v825
    %v3937 = vpop.f32.mrb[0].mxu0
    %v3938 = vadd.f32 %v779, %v3937
    %v3939 = vpop.f32.mrb[0].mxu0
    %v3940 = vadd.f32 %v783, %v3939
    %v3941 = vpop.f32.mrb[0].mxu0
    %v3942 = vpop.f32.mrb[0].mxu0
    %3943 = vdwg.mxu0
    %3944 = vmatprep.subr.bf16.mxu0 %v2752
    %3945 = vmatpush1.bf16.msra.mxu0 %v2751
    %3946 = vmatprep.subr.bf16.mxu0 %v2756
    %3947 = vmatpush1.bf16.msra.mxu0 %v2755
    %3948 = vmatprep.subr.bf16.mxu0 %v2760
    %3949 = vmatpush1.bf16.msra.mxu0 %v2759
    %3950 = vmatprep.subr.bf16.mxu0 %v2764
    %3951 = vmatpush1.bf16.msra.mxu0 %v2763
    %3952 = vmatprep.subr.bf16.mxu0 %v2768
    %3953 = vmatpush1.bf16.msra.mxu0 %v2767
    %3954 = vmatprep.subr.bf16.mxu0 %v2772
    %3955 = vmatpush1.bf16.msra.mxu0 %v2771
    %3956 = vmatprep.subr.bf16.mxu0 %v2776
    %3957 = vmatpush1.bf16.msra.mxu0 %v2775
    %3958 = vmatprep.subr.bf16.mxu0 %v2780
    %3959 = vmatpush1.bf16.msra.mxu0 %v2779
    %3960 = vmatprep.subr.bf16.mxu0 %v2784
    %3961 = vmatpush1.bf16.msra.mxu0 %v2783
    %3962 = vmatprep.subr.bf16.mxu0 %v2788
    %3963 = vmatpush1.bf16.msra.mxu0 %v2787
    %3964 = vmatprep.subr.bf16.mxu0 %v2792
    %3965 = vmatpush1.bf16.msra.mxu0 %v2791
    %3966 = vmatprep.subr.bf16.mxu0 %v2796
    %3967 = vmatpush1.bf16.msra.mxu0 %v2795
    %3968 = vmatprep.subr.bf16.mxu0 %v2800
    %3969 = vmatpush1.bf16.msra.mxu0 %v2799
    %3970 = vmatprep.subr.bf16.mxu0 %v2804
    %3971 = vmatpush1.bf16.msra.mxu0 %v2803
    %3972 = vmatprep.subr.bf16.mxu0 %v2808
    %3973 = vmatpush1.bf16.msra.mxu0 %v2807
    %3974 = vmatprep.subr.bf16.mxu0 %v2812
    %3975 = vmatpush1.bf16.msra.mxu0 %v2811
    %3976 = vmatprep.mubr.bf16.mxu0 %v828
    %3977 = vmatmul.mubr.bf16.gmra.mrb[0].mxu0 %v827
    %v3978 = vpop.f32.mrb[0].mxu0
    %v3979 = vadd.f32 %v3938, %v3978
    %v3980 = vpop.f32.mrb[0].mxu0
    %v3981 = vadd.f32 %v3940, %v3980
    %v3982 = vpop.f32.mrb[0].mxu0
    %v3983 = vpop.f32.mrb[0].mxu0
    %3984 = vdwg.mxu0
    %3985 = vmatprep.subr.bf16.mxu0 %v2816
    %3986 = vmatpush1.bf16.msra.mxu0 %v2815
    %3987 = vmatprep.subr.bf16.mxu0 %v2820
    %3988 = vmatpush1.bf16.msra.mxu0 %v2819
    %3989 = vmatprep.subr.bf16.mxu0 %v2824
    %3990 = vmatpush1.bf16.msra.mxu0 %v2823
    %3991 = vmatprep.subr.bf16.mxu0 %v2828
    %3992 = vmatpush1.bf16.msra.mxu0 %v2827
    %3993 = vmatprep.subr.bf16.mxu0 %v2832
    %3994 = vmatpush1.bf16.msra.mxu0 %v2831
    %3995 = vmatprep.subr.bf16.mxu0 %v2836
    %3996 = vmatpush1.bf16.msra.mxu0 %v2835
    %3997 = vmatprep.subr.bf16.mxu0 %v2840
    %3998 = vmatpush1.bf16.msra.mxu0 %v2839
    %3999 = vmatprep.subr.bf16.mxu0 %v2844
    %4000 = vmatpush1.bf16.msra.mxu0 %v2843
    %4001 = vmatprep.subr.bf16.mxu0 %v2848
    %4002 = vmatpush1.bf16.msra.mxu0 %v2847
    %4003 = vmatprep.subr.bf16.mxu0 %v2852
    %4004 = vmatpush1.bf16.msra.mxu0 %v2851
    %4005 = vmatprep.subr.bf16.mxu0 %v2856
    %4006 = vmatpush1.bf16.msra.mxu0 %v2855
    %4007 = vmatprep.subr.bf16.mxu0 %v2860
    %4008 = vmatpush1.bf16.msra.mxu0 %v2859
    %4009 = vmatprep.subr.bf16.mxu0 %v2864
    %4010 = vmatpush1.bf16.msra.mxu0 %v2863
    %4011 = vmatprep.subr.bf16.mxu0 %v2868
    %4012 = vmatpush1.bf16.msra.mxu0 %v2867
    %4013 = vmatprep.subr.bf16.mxu0 %v2872
    %4014 = vmatpush1.bf16.msra.mxu0 %v2871
    %4015 = vmatprep.subr.bf16.mxu0 %v2876
    %4016 = vmatpush1.bf16.msra.mxu0 %v2875
    %4017 = vmatprep.mubr.bf16.mxu0 %v830
    %4018 = vmatmul.mubr.bf16.gmra.mrb[0].mxu0 %v829
    %v4019 = vpop.f32.mrb[0].mxu0
    %v4020 = vadd.f32 %v3979, %v4019
    %v4021 = vpop.f32.mrb[0].mxu0
    %v4022 = vadd.f32 %v3981, %v4021
    %v4023 = vpop.f32.mrb[0].mxu0
    %v4024 = vpop.f32.mrb[0].mxu0
    %4025 = vdwg.mxu0
    %4026 = vmatprep.subr.bf16.mxu0 %v2880
    %4027 = vmatpush1.bf16.msra.mxu0 %v2879
    %4028 = vmatprep.subr.bf16.mxu0 %v2884
    %4029 = vmatpush1.bf16.msra.mxu0 %v2883
    %4030 = vmatprep.subr.bf16.mxu0 %v2888
    %4031 = vmatpush1.bf16.msra.mxu0 %v2887
    %4032 = vmatprep.subr.bf16.mxu0 %v2892
    %4033 = vmatpush1.bf16.msra.mxu0 %v2891
    %4034 = vmatprep.subr.bf16.mxu0 %v2896
    %4035 = vmatpush1.bf16.msra.mxu0 %v2895
    %4036 = vmatprep.subr.bf16.mxu0 %v2900
    %4037 = vmatpush1.bf16.msra.mxu0 %v2899
    %4038 = vmatprep.subr.bf16.mxu0 %v2904
    %4039 = vmatpush1.bf16.msra.mxu0 %v2903
    %4040 = vmatprep.subr.bf16.mxu0 %v2908
    %4041 = vmatpush1.bf16.msra.mxu0 %v2907
    %4042 = vmatprep.subr.bf16.mxu0 %v2912
    %4043 = vmatpush1.bf16.msra.mxu0 %v2911
    %4044 = vmatprep.subr.bf16.mxu0 %v2916
    %4045 = vmatpush1.bf16.msra.mxu0 %v2915
    %4046 = vmatprep.subr.bf16.mxu0 %v2920
    %4047 = vmatpush1.bf16.msra.mxu0 %v2919
    %4048 = vmatprep.subr.bf16.mxu0 %v2924
    %4049 = vmatpush1.bf16.msra.mxu0 %v2923
    %4050 = vmatprep.subr.bf16.mxu0 %v2928
    %4051 = vmatpush1.bf16.msra.mxu0 %v2927
    %4052 = vmatprep.subr.bf16.mxu0 %v2932
    %4053 = vmatpush1.bf16.msra.mxu0 %v2931
    %4054 = vmatprep.subr.bf16.mxu0 %v2936
    %4055 = vmatpush1.bf16.msra.mxu0 %v2935
    %4056 = vmatprep.subr.bf16.mxu0 %v2940
    %4057 = vmatpush1.bf16.msra.mxu0 %v2939
    %4058 = vmatprep.mubr.bf16.mxu0 %v832
    %4059 = vmatmul.mubr.bf16.gmra.mrb[0].mxu0 %v831
    %v4060 = vpop.f32.mrb[0].mxu0
    %v4061 = vadd.f32 %v4020, %v4060
    %v4062 = vpop.f32.mrb[0].mxu0
    %v4063 = vadd.f32 %v4022, %v4062
    %v4064 = vpop.f32.mrb[0].mxu0
    %v4065 = vpop.f32.mrb[0].mxu0
    %4066 = vdwg.mxu0
    %4067 = vmatprep.subr.bf16.mxu0 %v2944
    %4068 = vmatpush1.bf16.msra.mxu0 %v2943
    %4069 = vmatprep.subr.bf16.mxu0 %v2948
    %4070 = vmatpush1.bf16.msra.mxu0 %v2947
    %4071 = vmatprep.subr.bf16.mxu0 %v2952
    %4072 = vmatpush1.bf16.msra.mxu0 %v2951
    %4073 = vmatprep.subr.bf16.mxu0 %v2956
    %4074 = vmatpush1.bf16.msra.mxu0 %v2955
    %4075 = vmatprep.subr.bf16.mxu0 %v2960
    %4076 = vmatpush1.bf16.msra.mxu0 %v2959
    %4077 = vmatprep.subr.bf16.mxu0 %v2964
    %4078 = vmatpush1.bf16.msra.mxu0 %v2963
    %4079 = vmatprep.subr.bf16.mxu0 %v2968
    %4080 = vmatpush1.bf16.msra.mxu0 %v2967
    %4081 = vmatprep.subr.bf16.mxu0 %v2972
    %4082 = vmatpush1.bf16.msra.mxu0 %v2971
    %4083 = vmatprep.subr.bf16.mxu0 %v2976
    %4084 = vmatpush1.bf16.msra.mxu0 %v2975
    %4085 = vmatprep.subr.bf16.mxu0 %v2980
    %4086 = vmatpush1.bf16.msra.mxu0 %v2979
    %4087 = vmatprep.subr.bf16.mxu0 %v2984
    %4088 = vmatpush1.bf16.msra.mxu0 %v2983
    %4089 = vmatprep.subr.bf16.mxu0 %v2988
    %4090 = vmatpush1.bf16.msra.mxu0 %v2987
    %4091 = vmatprep.subr.bf16.mxu0 %v2992
    %4092 = vmatpush1.bf16.msra.mxu0 %v2991
    %4093 = vmatprep.subr.bf16.mxu0 %v2996
    %4094 = vmatpush1.bf16.msra.mxu0 %v2995
    %4095 = vmatprep.subr.bf16.mxu0 %v3000
    %4096 = vmatpush1.bf16.msra.mxu0 %v2999
    %4097 = vmatprep.subr.bf16.mxu0 %v3004
    %4098 = vmatpush1.bf16.msra.mxu0 %v3003
    %4099 = vmatprep.mubr.bf16.mxu0 %v834
    %4100 = vmatmul.mubr.bf16.gmra.mrb[0].mxu0 %v833
    %v4101 = vpop.f32.mrb[0].mxu0
    %v4102 = vadd.f32 %v4061, %v4101
    %v4103 = vpop.f32.mrb[0].mxu0
    %v4104 = vadd.f32 %v4063, %v4103
    %v4105 = vpop.f32.mrb[0].mxu0
    %v4106 = vpop.f32.mrb[0].mxu0
    %4107 = vdwg.mxu0
    %4108 = vmatprep.subr.bf16.mxu0 %v3008
    %4109 = vmatpush1.bf16.msra.mxu0 %v3007
    %4110 = vmatprep.subr.bf16.mxu0 %v3012
    %4111 = vmatpush1.bf16.msra.mxu0 %v3011
    %4112 = vmatprep.subr.bf16.mxu0 %v3016
    %4113 = vmatpush1.bf16.msra.mxu0 %v3015
    %4114 = vmatprep.subr.bf16.mxu0 %v3020
    %4115 = vmatpush1.bf16.msra.mxu0 %v3019
    %4116 = vmatprep.subr.bf16.mxu0 %v3024
    %4117 = vmatpush1.bf16.msra.mxu0 %v3023
    %4118 = vmatprep.subr.bf16.mxu0 %v3028
    %4119 = vmatpush1.bf16.msra.mxu0 %v3027
    %4120 = vmatprep.subr.bf16.mxu0 %v3032
    %4121 = vmatpush1.bf16.msra.mxu0 %v3031
    %4122 = vmatprep.subr.bf16.mxu0 %v3036
    %4123 = vmatpush1.bf16.msra.mxu0 %v3035
    %4124 = vmatprep.subr.bf16.mxu0 %v3040
    %4125 = vmatpush1.bf16.msra.mxu0 %v3039
    %4126 = vmatprep.subr.bf16.mxu0 %v3044
    %4127 = vmatpush1.bf16.msra.mxu0 %v3043
    %4128 = vmatprep.subr.bf16.mxu0 %v3048
    %4129 = vmatpush1.bf16.msra.mxu0 %v3047
    %4130 = vmatprep.subr.bf16.mxu0 %v3052
    %4131 = vmatpush1.bf16.msra.mxu0 %v3051
    %4132 = vmatprep.subr.bf16.mxu0 %v3056
    %4133 = vmatpush1.bf16.msra.mxu0 %v3055
    %4134 = vmatprep.subr.bf16.mxu0 %v3060
    %4135 = vmatpush1.bf16.msra.mxu0 %v3059
    %4136 = vmatprep.subr.bf16.mxu0 %v3064
    %4137 = vmatpush1.bf16.msra.mxu0 %v3063
    %4138 = vmatprep.subr.bf16.mxu0 %v3068
    %4139 = vmatpush1.bf16.msra.mxu0 %v3067
    %4140 = vmatprep.mubr.bf16.mxu0 %v836
    %4141 = vmatmul.mubr.bf16.gmra.mrb[0].mxu0 %v835
    %v4142 = vpop.f32.mrb[0].mxu0
    %v4143 = vadd.f32 %v4102, %v4142
    %v4144 = vpop.f32.mrb[0].mxu0
    %v4145 = vadd.f32 %v4104, %v4144
    %v4146 = vpop.f32.mrb[0].mxu0
    %v4147 = vpop.f32.mrb[0].mxu0
    %4148 = vdwg.mxu0
    %4149 = vmatprep.subr.bf16.mxu0 %v3072
    %4150 = vmatpush1.bf16.msra.mxu0 %v3071
    %4151 = vmatprep.subr.bf16.mxu0 %v3076
    %4152 = vmatpush1.bf16.msra.mxu0 %v3075
    %4153 = vmatprep.subr.bf16.mxu0 %v3080
    %4154 = vmatpush1.bf16.msra.mxu0 %v3079
    %4155 = vmatprep.subr.bf16.mxu0 %v3084
    %4156 = vmatpush1.bf16.msra.mxu0 %v3083
    %4157 = vmatprep.subr.bf16.mxu0 %v3088
    %4158 = vmatpush1.bf16.msra.mxu0 %v3087
    %4159 = vmatprep.subr.bf16.mxu0 %v3092
    %4160 = vmatpush1.bf16.msra.mxu0 %v3091
    %4161 = vmatprep.subr.bf16.mxu0 %v3096
    %4162 = vmatpush1.bf16.msra.mxu0 %v3095
    %4163 = vmatprep.subr.bf16.mxu0 %v3100
    %4164 = vmatpush1.bf16.msra.mxu0 %v3099
    %4165 = vmatprep.subr.bf16.mxu0 %v3104
    %4166 = vmatpush1.bf16.msra.mxu0 %v3103
    %4167 = vmatprep.subr.bf16.mxu0 %v3108
    %4168 = vmatpush1.bf16.msra.mxu0 %v3107
    %4169 = vmatprep.subr.bf16.mxu0 %v3112
    %4170 = vmatpush1.bf16.msra.mxu0 %v3111
    %4171 = vmatprep.subr.bf16.mxu0 %v3116
    %4172 = vmatpush1.bf16.msra.mxu0 %v3115
    %4173 = vmatprep.subr.bf16.mxu0 %v3120
    %4174 = vmatpush1.bf16.msra.mxu0 %v3119
    %4175 = vmatprep.subr.bf16.mxu0 %v3124
    %4176 = vmatpush1.bf16.msra.mxu0 %v3123
    %4177 = vmatprep.subr.bf16.mxu0 %v3128
    %4178 = vmatpush1.bf16.msra.mxu0 %v3127
    %4179 = vmatprep.subr.bf16.mxu0 %v3132
    %4180 = vmatpush1.bf16.msra.mxu0 %v3131
    %4181 = vmatprep.mubr.bf16.mxu0 %v838
    %4182 = vmatmul.mubr.bf16.gmra.mrb[0].mxu0 %v837
    %v4183 = vpop.f32.mrb[0].mxu0
    %v4184 = vadd.f32 %v4143, %v4183
    %v4185 = vpop.f32.mrb[0].mxu0
    %v4186 = vadd.f32 %v4145, %v4185
    %v4187 = vpop.f32.mrb[0].mxu0
    %v4188 = vpop.f32.mrb[0].mxu0
    %4189 = vdwg.mxu0
    %4190 = vmatprep.subr.bf16.mxu0 %v3136
    %4191 = vmatpush1.bf16.msra.mxu0 %v3135
    %4192 = vmatprep.subr.bf16.mxu0 %v3140
    %4193 = vmatpush1.bf16.msra.mxu0 %v3139
    %4194 = vmatprep.subr.bf16.mxu0 %v3144
    %4195 = vmatpush1.bf16.msra.mxu0 %v3143
    %4196 = vmatprep.subr.bf16.mxu0 %v3148
    %4197 = vmatpush1.bf16.msra.mxu0 %v3147
    %4198 = vmatprep.subr.bf16.mxu0 %v3152
    %4199 = vmatpush1.bf16.msra.mxu0 %v3151
    %4200 = vmatprep.subr.bf16.mxu0 %v3156
    %4201 = vmatpush1.bf16.msra.mxu0 %v3155
    %4202 = vmatprep.subr.bf16.mxu0 %v3160
    %4203 = vmatpush1.bf16.msra.mxu0 %v3159
    %4204 = vmatprep.subr.bf16.mxu0 %v3164
    %4205 = vmatpush1.bf16.msra.mxu0 %v3163
    %4206 = vmatprep.subr.bf16.mxu0 %v3168
    %4207 = vmatpush1.bf16.msra.mxu0 %v3167
    %4208 = vmatprep.subr.bf16.mxu0 %v3172
    %4209 = vmatpush1.bf16.msra.mxu0 %v3171
    %4210 = vmatprep.subr.bf16.mxu0 %v3176
    %4211 = vmatpush1.bf16.msra.mxu0 %v3175
    %4212 = vmatprep.subr.bf16.mxu0 %v3180
    %4213 = vmatpush1.bf16.msra.mxu0 %v3179
    %4214 = vmatprep.subr.bf16.mxu0 %v3184
    %4215 = vmatpush1.bf16.msra.mxu0 %v3183
    %4216 = vmatprep.subr.bf16.mxu0 %v3188
    %4217 = vmatpush1.bf16.msra.mxu0 %v3187
    %4218 = vmatprep.subr.bf16.mxu0 %v3192
    %4219 = vmatpush1.bf16.msra.mxu0 %v3191
    %4220 = vmatprep.subr.bf16.mxu0 %v3196
    %4221 = vmatpush1.bf16.msra.mxu0 %v3195
    %4222 = vmatprep.mubr.bf16.mxu0 %v840
    %4223 = vmatmul.mubr.bf16.gmra.mrb[0].mxu0 %v839
    %v4224 = vpop.f32.mrb[0].mxu0
    %v4225 = vadd.f32 %v4184, %v4224
    %v4226 = vpop.f32.mrb[0].mxu0
    %v4227 = vadd.f32 %v4186, %v4226
    %v4228 = vpop.f32.mrb[0].mxu0
    %v4229 = vpop.f32.mrb[0].mxu0
    %4230 = vdwg.mxu0
    %4231 = vmatprep.subr.bf16.mxu0 %v3200
    %4232 = vmatpush1.bf16.msra.mxu0 %v3199
    %4233 = vmatprep.subr.bf16.mxu0 %v3204
    %4234 = vmatpush1.bf16.msra.mxu0 %v3203
    %4235 = vmatprep.subr.bf16.mxu0 %v3208
    %4236 = vmatpush1.bf16.msra.mxu0 %v3207
    %4237 = vmatprep.subr.bf16.mxu0 %v3212
    %4238 = vmatpush1.bf16.msra.mxu0 %v3211
    %4239 = vmatprep.subr.bf16.mxu0 %v3216
    %4240 = vmatpush1.bf16.msra.mxu0 %v3215
    %4241 = vmatprep.subr.bf16.mxu0 %v3220
    %4242 = vmatpush1.bf16.msra.mxu0 %v3219
    %4243 = vmatprep.subr.bf16.mxu0 %v3224
    %4244 = vmatpush1.bf16.msra.mxu0 %v3223
    %4245 = vmatprep.subr.bf16.mxu0 %v3228
    %4246 = vmatpush1.bf16.msra.mxu0 %v3227
    %4247 = vmatprep.subr.bf16.mxu0 %v3232
    %4248 = vmatpush1.bf16.msra.mxu0 %v3231
    %4249 = vmatprep.subr.bf16.mxu0 %v3236
    %4250 = vmatpush1.bf16.msra.mxu0 %v3235
    %4251 = vmatprep.subr.bf16.mxu0 %v3240
    %4252 = vmatpush1.bf16.msra.mxu0 %v3239
    %4253 = vmatprep.subr.bf16.mxu0 %v3244
    %4254 = vmatpush1.bf16.msra.mxu0 %v3243
    %4255 = vmatprep.subr.bf16.mxu0 %v3248
    %4256 = vmatpush1.bf16.msra.mxu0 %v3247
    %4257 = vmatprep.subr.bf16.mxu0 %v3252
    %4258 = vmatpush1.bf16.msra.mxu0 %v3251
    %4259 = vmatprep.subr.bf16.mxu0 %v3256
    %4260 = vmatpush1.bf16.msra.mxu0 %v3255
    %4261 = vmatprep.subr.bf16.mxu0 %v3260
    %4262 = vmatpush1.bf16.msra.mxu0 %v3259
    %4263 = vmatprep.mubr.bf16.mxu0 %v842
    %4264 = vmatmul.mubr.bf16.gmra.mrb[0].mxu0 %v841
    %v4265 = vpop.f32.mrb[0].mxu0
    %v4266 = vadd.f32 %v4225, %v4265
    %v4267 = vpop.f32.mrb[0].mxu0
    %v4268 = vadd.f32 %v4227, %v4267
    %v4269 = vpop.f32.mrb[0].mxu0
    %v4270 = vpop.f32.mrb[0].mxu0
    %4271 = vdwg.mxu0
    %4272 = vmatprep.subr.bf16.mxu0 %v3264
    %4273 = vmatpush1.bf16.msra.mxu0 %v3263
    %4274 = vmatprep.subr.bf16.mxu0 %v3268
    %4275 = vmatpush1.bf16.msra.mxu0 %v3267
    %4276 = vmatprep.subr.bf16.mxu0 %v3272
    %4277 = vmatpush1.bf16.msra.mxu0 %v3271
    %4278 = vmatprep.subr.bf16.mxu0 %v3276
    %4279 = vmatpush1.bf16.msra.mxu0 %v3275
    %4280 = vmatprep.subr.bf16.mxu0 %v3280
    %4281 = vmatpush1.bf16.msra.mxu0 %v3279
    %4282 = vmatprep.subr.bf16.mxu0 %v3284
    %4283 = vmatpush1.bf16.msra.mxu0 %v3283
    %4284 = vmatprep.subr.bf16.mxu0 %v3288
    %4285 = vmatpush1.bf16.msra.mxu0 %v3287
    %4286 = vmatprep.subr.bf16.mxu0 %v3292
    %4287 = vmatpush1.bf16.msra.mxu0 %v3291
    %4288 = vmatprep.subr.bf16.mxu0 0
    %4289 = vmatpush1.bf16.msra.mxu0 0
    %4290 = vmatprep.subr.bf16.mxu0 0
    %4291 = vmatpush1.bf16.msra.mxu0 0
    %4292 = vmatprep.subr.bf16.mxu0 0
    %4293 = vmatpush1.bf16.msra.mxu0 0
    %4294 = vmatprep.subr.bf16.mxu0 0
    %4295 = vmatpush1.bf16.msra.mxu0 0
    %4296 = vmatprep.subr.bf16.mxu0 0
    %4297 = vmatpush1.bf16.msra.mxu0 0
    %4298 = vmatprep.subr.bf16.mxu0 0
    %4299 = vmatpush1.bf16.msra.mxu0 0
    %4300 = vmatprep.subr.bf16.mxu0 0
    %4301 = vmatpush1.bf16.msra.mxu0 0
    %4302 = vmatprep.subr.bf16.mxu0 0
    %4303 = vmatpush1.bf16.msra.mxu0 0
    %4304 = vmatprep.mubr.bf16.mxu0 0
    %4305 = vmatmul.mubr.bf16.gmra.mrb[0].mxu0 %v843
    %v4306 = vpop.f32.mrb[0].mxu0
    %v4307 = vadd.f32 %v4266, %v4306
    %v4308 = vpop.f32.mrb[0].mxu0
    %v4309 = vadd.f32 %v4268, %v4308
    %v4310 = vpop.f32.mrb[0].mxu0
    %v4311 = vpop.f32.mrb[0].mxu0
    %4312 = vdwg.mxu0
    %4313 = vmatprep.subr.bf16.mxu0 %v2690
    %4314 = vmatpush1.bf16.msra.mxu0 %v2689
    %4315 = vmatprep.subr.bf16.mxu0 %v2694
    %4316 = vmatpush1.bf16.msra.mxu0 %v2693
    %4317 = vmatprep.subr.bf16.mxu0 %v2698
    %4318 = vmatpush1.bf16.msra.mxu0 %v2697
    %4319 = vmatprep.subr.bf16.mxu0 %v2702
    %4320 = vmatpush1.bf16.msra.mxu0 %v2701
    %4321 = vmatprep.subr.bf16.mxu0 %v2706
    %4322 = vmatpush1.bf16.msra.mxu0 %v2705
    %4323 = vmatprep.subr.bf16.mxu0 %v2710
    %4324 = vmatpush1.bf16.msra.mxu0 %v2709
    %4325 = vmatprep.subr.bf16.mxu0 %v2714
    %4326 = vmatpush1.bf16.msra.mxu0 %v2713
    %4327 = vmatprep.subr.bf16.mxu0 %v2718
    %4328 = vmatpush1.bf16.msra.mxu0 %v2717
    %4329 = vmatprep.subr.bf16.mxu0 %v2722
    %4330 = vmatpush1.bf16.msra.mxu0 %v2721
    %4331 = vmatprep.subr.bf16.mxu0 %v2726
    %4332 = vmatpush1.bf16.msra.mxu0 %v2725
    %4333 = vmatprep.subr.bf16.mxu0 %v2730
    %4334 = vmatpush1.bf16.msra.mxu0 %v2729
    %4335 = vmatprep.subr.bf16.mxu0 %v2734
    %4336 = vmatpush1.bf16.msra.mxu0 %v2733
    %4337 = vmatprep.subr.bf16.mxu0 %v2738
    %4338 = vmatpush1.bf16.msra.mxu0 %v2737
    %4339 = vmatprep.subr.bf16.mxu0 %v2742
    %4340 = vmatpush1.bf16.msra.mxu0 %v2741
    %4341 = vmatprep.subr.bf16.mxu0 %v2746
    %4342 = vmatpush1.bf16.msra.mxu0 %v2745
    %4343 = vmatprep.subr.bf16.mxu0 %v2750
    %4344 = vmatpush1.bf16.msra.mxu0 %v2749
    %4345 = vmatprep.mubr.bf16.mxu0 %v826
    %4346 = vmatmul.mubr.bf16.gmra.mrb[0].mxu0 %v825
    %v4347 = vpop.f32.mrb[0].mxu0
    %v4348 = vadd.f32 %v787, %v4347
    %v4349 = vpop.f32.mrb[0].mxu0
    %v4350 = vadd.f32 %v791, %v4349
    %v4351 = vpop.f32.mrb[0].mxu0
    %v4352 = vpop.f32.mrb[0].mxu0
    %4353 = vdwg.mxu0
    %4354 = vmatprep.subr.bf16.mxu0 %v2754
    %4355 = vmatpush1.bf16.msra.mxu0 %v2753
    %4356 = vmatprep.subr.bf16.mxu0 %v2758
    %4357 = vmatpush1.bf16.msra.mxu0 %v2757
    %4358 = vmatprep.subr.bf16.mxu0 %v2762
    %4359 = vmatpush1.bf16.msra.mxu0 %v2761
    %4360 = vmatprep.subr.bf16.mxu0 %v2766
    %4361 = vmatpush1.bf16.msra.mxu0 %v2765
    %4362 = vmatprep.subr.bf16.mxu0 %v2770
    %4363 = vmatpush1.bf16.msra.mxu0 %v2769
    %4364 = vmatprep.subr.bf16.mxu0 %v2774
    %4365 = vmatpush1.bf16.msra.mxu0 %v2773
    %4366 = vmatprep.subr.bf16.mxu0 %v2778
    %4367 = vmatpush1.bf16.msra.mxu0 %v2777
    %4368 = vmatprep.subr.bf16.mxu0 %v2782
    %4369 = vmatpush1.bf16.msra.mxu0 %v2781
    %4370 = vmatprep.subr.bf16.mxu0 %v2786
    %4371 = vmatpush1.bf16.msra.mxu0 %v2785
    %4372 = vmatprep.subr.bf16.mxu0 %v2790
    %4373 = vmatpush1.bf16.msra.mxu0 %v2789
    %4374 = vmatprep.subr.bf16.mxu0 %v2794
    %4375 = vmatpush1.bf16.msra.mxu0 %v2793
    %4376 = vmatprep.subr.bf16.mxu0 %v2798
    %4377 = vmatpush1.bf16.msra.mxu0 %v2797
    %4378 = vmatprep.subr.bf16.mxu0 %v2802
    %4379 = vmatpush1.bf16.msra.mxu0 %v2801
    %4380 = vmatprep.subr.bf16.mxu0 %v2806
    %4381 = vmatpush1.bf16.msra.mxu0 %v2805
    %4382 = vmatprep.subr.bf16.mxu0 %v2810
    %4383 = vmatpush1.bf16.msra.mxu0 %v2809
    %4384 = vmatprep.subr.bf16.mxu0 %v2814
    %4385 = vmatpush1.bf16.msra.mxu0 %v2813
    %4386 = vmatprep.mubr.bf16.mxu0 %v828
    %4387 = vmatmul.mubr.bf16.gmra.mrb[0].mxu0 %v827
    %v4388 = vpop.f32.mrb[0].mxu0
    %v4389 = vadd.f32 %v4348, %v4388
    %v4390 = vpop.f32.mrb[0].mxu0
    %v4391 = vadd.f32 %v4350, %v4390
    %v4392 = vpop.f32.mrb[0].mxu0
    %v4393 = vpop.f32.mrb[0].mxu0
    %4394 = vdwg.mxu0
    %4395 = vmatprep.subr.bf16.mxu0 %v2818
    %4396 = vmatpush1.bf16.msra.mxu0 %v2817
    %4397 = vmatprep.subr.bf16.mxu0 %v2822
    %4398 = vmatpush1.bf16.msra.mxu0 %v2821
    %4399 = vmatprep.subr.bf16.mxu0 %v2826
    %4400 = vmatpush1.bf16.msra.mxu0 %v2825
    %4401 = vmatprep.subr.bf16.mxu0 %v2830
    %4402 = vmatpush1.bf16.msra.mxu0 %v2829
    %4403 = vmatprep.subr.bf16.mxu0 %v2834
    %4404 = vmatpush1.bf16.msra.mxu0 %v2833
    %4405 = vmatprep.subr.bf16.mxu0 %v2838
    %4406 = vmatpush1.bf16.msra.mxu0 %v2837
    %4407 = vmatprep.subr.bf16.mxu0 %v2842
    %4408 = vmatpush1.bf16.msra.mxu0 %v2841
    %4409 = vmatprep.subr.bf16.mxu0 %v2846
    %4410 = vmatpush1.bf16.msra.mxu0 %v2845
    %4411 = vmatprep.subr.bf16.mxu0 %v2850
    %4412 = vmatpush1.bf16.msra.mxu0 %v2849
    %4413 = vmatprep.subr.bf16.mxu0 %v2854
    %4414 = vmatpush1.bf16.msra.mxu0 %v2853
    %4415 = vmatprep.subr.bf16.mxu0 %v2858
    %4416 = vmatpush1.bf16.msra.mxu0 %v2857
    %4417 = vmatprep.subr.bf16.mxu0 %v2862
    %4418 = vmatpush1.bf16.msra.mxu0 %v2861
    %4419 = vmatprep.subr.bf16.mxu0 %v2866
    %4420 = vmatpush1.bf16.msra.mxu0 %v2865
    %4421 = vmatprep.subr.bf16.mxu0 %v2870
    %4422 = vmatpush1.bf16.msra.mxu0 %v2869
    %4423 = vmatprep.subr.bf16.mxu0 %v2874
    %4424 = vmatpush1.bf16.msra.mxu0 %v2873
    %4425 = vmatprep.subr.bf16.mxu0 %v2878
    %4426 = vmatpush1.bf16.msra.mxu0 %v2877
    %4427 = vmatprep.mubr.bf16.mxu0 %v830
    %4428 = vmatmul.mubr.bf16.gmra.mrb[0].mxu0 %v829
    %v4429 = vpop.f32.mrb[0].mxu0
    %v4430 = vadd.f32 %v4389, %v4429
    %v4431 = vpop.f32.mrb[0].mxu0
    %v4432 = vadd.f32 %v4391, %v4431
    %v4433 = vpop.f32.mrb[0].mxu0
    %v4434 = vpop.f32.mrb[0].mxu0
    %4435 = vdwg.mxu0
    %4436 = vmatprep.subr.bf16.mxu0 %v2882
    %4437 = vmatpush1.bf16.msra.mxu0 %v2881
    %4438 = vmatprep.subr.bf16.mxu0 %v2886
    %4439 = vmatpush1.bf16.msra.mxu0 %v2885
    %4440 = vmatprep.subr.bf16.mxu0 %v2890
    %4441 = vmatpush1.bf16.msra.mxu0 %v2889
    %4442 = vmatprep.subr.bf16.mxu0 %v2894
    %4443 = vmatpush1.bf16.msra.mxu0 %v2893
    %4444 = vmatprep.subr.bf16.mxu0 %v2898
    %4445 = vmatpush1.bf16.msra.mxu0 %v2897
    %4446 = vmatprep.subr.bf16.mxu0 %v2902
    %4447 = vmatpush1.bf16.msra.mxu0 %v2901
    %4448 = vmatprep.subr.bf16.mxu0 %v2906
    %4449 = vmatpush1.bf16.msra.mxu0 %v2905
    %4450 = vmatprep.subr.bf16.mxu0 %v2910
    %4451 = vmatpush1.bf16.msra.mxu0 %v2909
    %4452 = vmatprep.subr.bf16.mxu0 %v2914
    %4453 = vmatpush1.bf16.msra.mxu0 %v2913
    %4454 = vmatprep.subr.bf16.mxu0 %v2918
    %4455 = vmatpush1.bf16.msra.mxu0 %v2917
    %4456 = vmatprep.subr.bf16.mxu0 %v2922
    %4457 = vmatpush1.bf16.msra.mxu0 %v2921
    %4458 = vmatprep.subr.bf16.mxu0 %v2926
    %4459 = vmatpush1.bf16.msra.mxu0 %v2925
    %4460 = vmatprep.subr.bf16.mxu0 %v2930
    %4461 = vmatpush1.bf16.msra.mxu0 %v2929
    %4462 = vmatprep.subr.bf16.mxu0 %v2934
    %4463 = vmatpush1.bf16.msra.mxu0 %v2933
    %4464 = vmatprep.subr.bf16.mxu0 %v2938
    %4465 = vmatpush1.bf16.msra.mxu0 %v2937
    %4466 = vmatprep.subr.bf16.mxu0 %v2942
    %4467 = vmatpush1.bf16.msra.mxu0 %v2941
    %4468 = vmatprep.mubr.bf16.mxu0 %v832
    %4469 = vmatmul.mubr.bf16.gmra.mrb[0].mxu0 %v831
    %v4470 = vpop.f32.mrb[0].mxu0
    %v4471 = vadd.f32 %v4430, %v4470
    %v4472 = vpop.f32.mrb[0].mxu0
    %v4473 = vadd.f32 %v4432, %v4472
    %v4474 = vpop.f32.mrb[0].mxu0
    %v4475 = vpop.f32.mrb[0].mxu0
    %4476 = vdwg.mxu0
    %4477 = vmatprep.subr.bf16.mxu0 %v2946
    %4478 = vmatpush1.bf16.msra.mxu0 %v2945
    %4479 = vmatprep.subr.bf16.mxu0 %v2950
    %4480 = vmatpush1.bf16.msra.mxu0 %v2949
    %4481 = vmatprep.subr.bf16.mxu0 %v2954
    %4482 = vmatpush1.bf16.msra.mxu0 %v2953
    %4483 = vmatprep.subr.bf16.mxu0 %v2958
    %4484 = vmatpush1.bf16.msra.mxu0 %v2957
    %4485 = vmatprep.subr.bf16.mxu0 %v2962
    %4486 = vmatpush1.bf16.msra.mxu0 %v2961
    %4487 = vmatprep.subr.bf16.mxu0 %v2966
    %4488 = vmatpush1.bf16.msra.mxu0 %v2965
    %4489 = vmatprep.subr.bf16.mxu0 %v2970
    %4490 = vmatpush1.bf16.msra.mxu0 %v2969
    %4491 = vmatprep.subr.bf16.mxu0 %v2974
    %4492 = vmatpush1.bf16.msra.mxu0 %v2973
    %4493 = vmatprep.subr.bf16.mxu0 %v2978
    %4494 = vmatpush1.bf16.msra.mxu0 %v2977
    %4495 = vmatprep.subr.bf16.mxu0 %v2982
    %4496 = vmatpush1.bf16.msra.mxu0 %v2981
    %4497 = vmatprep.subr.bf16.mxu0 %v2986
    %4498 = vmatpush1.bf16.msra.mxu0 %v2985
    %4499 = vmatprep.subr.bf16.mxu0 %v2990
    %4500 = vmatpush1.bf16.msra.mxu0 %v2989
    %4501 = vmatprep.subr.bf16.mxu0 %v2994
    %4502 = vmatpush1.bf16.msra.mxu0 %v2993
    %4503 = vmatprep.subr.bf16.mxu0 %v2998
    %4504 = vmatpush1.bf16.msra.mxu0 %v2997
    %4505 = vmatprep.subr.bf16.mxu0 %v3002
    %4506 = vmatpush1.bf16.msra.mxu0 %v3001
    %4507 = vmatprep.subr.bf16.mxu0 %v3006
    %4508 = vmatpush1.bf16.msra.mxu0 %v3005
    %4509 = vmatprep.mubr.bf16.mxu0 %v834
    %4510 = vmatmul.mubr.bf16.gmra.mrb[0].mxu0 %v833
    %v4511 = vpop.f32.mrb[0].mxu0
    %v4512 = vadd.f32 %v4471, %v4511
    %v4513 = vpop.f32.mrb[0].mxu0
    %v4514 = vadd.f32 %v4473, %v4513
    %v4515 = vpop.f32.mrb[0].mxu0
    %v4516 = vpop.f32.mrb[0].mxu0
    %4517 = vdwg.mxu0
    %4518 = vmatprep.subr.bf16.mxu0 %v3010
    %4519 = vmatpush1.bf16.msra.mxu0 %v3009
    %4520 = vmatprep.subr.bf16.mxu0 %v3014
    %4521 = vmatpush1.bf16.msra.mxu0 %v3013
    %4522 = vmatprep.subr.bf16.mxu0 %v3018
    %4523 = vmatpush1.bf16.msra.mxu0 %v3017
    %4524 = vmatprep.subr.bf16.mxu0 %v3022
    %4525 = vmatpush1.bf16.msra.mxu0 %v3021
    %4526 = vmatprep.subr.bf16.mxu0 %v3026
    %4527 = vmatpush1.bf16.msra.mxu0 %v3025
    %4528 = vmatprep.subr.bf16.mxu0 %v3030
    %4529 = vmatpush1.bf16.msra.mxu0 %v3029
    %4530 = vmatprep.subr.bf16.mxu0 %v3034
    %4531 = vmatpush1.bf16.msra.mxu0 %v3033
    %4532 = vmatprep.subr.bf16.mxu0 %v3038
    %4533 = vmatpush1.bf16.msra.mxu0 %v3037
    %4534 = vmatprep.subr.bf16.mxu0 %v3042
    %4535 = vmatpush1.bf16.msra.mxu0 %v3041
    %4536 = vmatprep.subr.bf16.mxu0 %v3046
    %4537 = vmatpush1.bf16.msra.mxu0 %v3045
    %4538 = vmatprep.subr.bf16.mxu0 %v3050
    %4539 = vmatpush1.bf16.msra.mxu0 %v3049
    %4540 = vmatprep.subr.bf16.mxu0 %v3054
    %4541 = vmatpush1.bf16.msra.mxu0 %v3053
    %4542 = vmatprep.subr.bf16.mxu0 %v3058
    %4543 = vmatpush1.bf16.msra.mxu0 %v3057
    %4544 = vmatprep.subr.bf16.mxu0 %v3062
    %4545 = vmatpush1.bf16.msra.mxu0 %v3061
    %4546 = vmatprep.subr.bf16.mxu0 %v3066
    %4547 = vmatpush1.bf16.msra.mxu0 %v3065
    %4548 = vmatprep.subr.bf16.mxu0 %v3070
    %4549 = vmatpush1.bf16.msra.mxu0 %v3069
    %4550 = vmatprep.mubr.bf16.mxu0 %v836
    %4551 = vmatmul.mubr.bf16.gmra.mrb[0].mxu0 %v835
    %v4552 = vpop.f32.mrb[0].mxu0
    %v4553 = vadd.f32 %v4512, %v4552
    %v4554 = vpop.f32.mrb[0].mxu0
    %v4555 = vadd.f32 %v4514, %v4554
    %v4556 = vpop.f32.mrb[0].mxu0
    %v4557 = vpop.f32.mrb[0].mxu0
    %4558 = vdwg.mxu0
    %4559 = vmatprep.subr.bf16.mxu0 %v3074
    %4560 = vmatpush1.bf16.msra.mxu0 %v3073
    %4561 = vmatprep.subr.bf16.mxu0 %v3078
    %4562 = vmatpush1.bf16.msra.mxu0 %v3077
    %4563 = vmatprep.subr.bf16.mxu0 %v3082
    %4564 = vmatpush1.bf16.msra.mxu0 %v3081
    %4565 = vmatprep.subr.bf16.mxu0 %v3086
    %4566 = vmatpush1.bf16.msra.mxu0 %v3085
    %4567 = vmatprep.subr.bf16.mxu0 %v3090
    %4568 = vmatpush1.bf16.msra.mxu0 %v3089
    %4569 = vmatprep.subr.bf16.mxu0 %v3094
    %4570 = vmatpush1.bf16.msra.mxu0 %v3093
    %4571 = vmatprep.subr.bf16.mxu0 %v3098
    %4572 = vmatpush1.bf16.msra.mxu0 %v3097
    %4573 = vmatprep.subr.bf16.mxu0 %v3102
    %4574 = vmatpush1.bf16.msra.mxu0 %v3101
    %4575 = vmatprep.subr.bf16.mxu0 %v3106
    %4576 = vmatpush1.bf16.msra.mxu0 %v3105
    %4577 = vmatprep.subr.bf16.mxu0 %v3110
    %4578 = vmatpush1.bf16.msra.mxu0 %v3109
    %4579 = vmatprep.subr.bf16.mxu0 %v3114
    %4580 = vmatpush1.bf16.msra.mxu0 %v3113
    %4581 = vmatprep.subr.bf16.mxu0 %v3118
    %4582 = vmatpush1.bf16.msra.mxu0 %v3117
    %4583 = vmatprep.subr.bf16.mxu0 %v3122
    %4584 = vmatpush1.bf16.msra.mxu0 %v3121
    %4585 = vmatprep.subr.bf16.mxu0 %v3126
    %4586 = vmatpush1.bf16.msra.mxu0 %v3125
    %4587 = vmatprep.subr.bf16.mxu0 %v3130
    %4588 = vmatpush1.bf16.msra.mxu0 %v3129
    %4589 = vmatprep.subr.bf16.mxu0 %v3134
    %4590 = vmatpush1.bf16.msra.mxu0 %v3133
    %4591 = vmatprep.mubr.bf16.mxu0 %v838
    %4592 = vmatmul.mubr.bf16.gmra.mrb[0].mxu0 %v837
    %v4593 = vpop.f32.mrb[0].mxu0
    %v4594 = vadd.f32 %v4553, %v4593
    %v4595 = vpop.f32.mrb[0].mxu0
    %v4596 = vadd.f32 %v4555, %v4595
    %v4597 = vpop.f32.mrb[0].mxu0
    %v4598 = vpop.f32.mrb[0].mxu0
    %4599 = vdwg.mxu0
    %4600 = vmatprep.subr.bf16.mxu0 %v3138
    %4601 = vmatpush1.bf16.msra.mxu0 %v3137
    %4602 = vmatprep.subr.bf16.mxu0 %v3142
    %4603 = vmatpush1.bf16.msra.mxu0 %v3141
    %4604 = vmatprep.subr.bf16.mxu0 %v3146
    %4605 = vmatpush1.bf16.msra.mxu0 %v3145
    %4606 = vmatprep.subr.bf16.mxu0 %v3150
    %4607 = vmatpush1.bf16.msra.mxu0 %v3149
    %4608 = vmatprep.subr.bf16.mxu0 %v3154
    %4609 = vmatpush1.bf16.msra.mxu0 %v3153
    %4610 = vmatprep.subr.bf16.mxu0 %v3158
    %4611 = vmatpush1.bf16.msra.mxu0 %v3157
    %4612 = vmatprep.subr.bf16.mxu0 %v3162
    %4613 = vmatpush1.bf16.msra.mxu0 %v3161
    %4614 = vmatprep.subr.bf16.mxu0 %v3166
    %4615 = vmatpush1.bf16.msra.mxu0 %v3165
    %4616 = vmatprep.subr.bf16.mxu0 %v3170
    %4617 = vmatpush1.bf16.msra.mxu0 %v3169
    %4618 = vmatprep.subr.bf16.mxu0 %v3174
    %4619 = vmatpush1.bf16.msra.mxu0 %v3173
    %4620 = vmatprep.subr.bf16.mxu0 %v3178
    %4621 = vmatpush1.bf16.msra.mxu0 %v3177
    %4622 = vmatprep.subr.bf16.mxu0 %v3182
    %4623 = vmatpush1.bf16.msra.mxu0 %v3181
    %4624 = vmatprep.subr.bf16.mxu0 %v3186
    %4625 = vmatpush1.bf16.msra.mxu0 %v3185
    %4626 = vmatprep.subr.bf16.mxu0 %v3190
    %4627 = vmatpush1.bf16.msra.mxu0 %v3189
    %4628 = vmatprep.subr.bf16.mxu0 %v3194
    %4629 = vmatpush1.bf16.msra.mxu0 %v3193
    %4630 = vmatprep.subr.bf16.mxu0 %v3198
    %4631 = vmatpush1.bf16.msra.mxu0 %v3197
    %4632 = vmatprep.mubr.bf16.mxu0 %v840
    %4633 = vmatmul.mubr.bf16.gmra.mrb[0].mxu0 %v839
    %v4634 = vpop.f32.mrb[0].mxu0
    %v4635 = vadd.f32 %v4594, %v4634
    %v4636 = vpop.f32.mrb[0].mxu0
    %v4637 = vadd.f32 %v4596, %v4636
    %v4638 = vpop.f32.mrb[0].mxu0
    %v4639 = vpop.f32.mrb[0].mxu0
    %4640 = vdwg.mxu0
    %4641 = vmatprep.subr.bf16.mxu0 %v3202
    %4642 = vmatpush1.bf16.msra.mxu0 %v3201
    %4643 = vmatprep.subr.bf16.mxu0 %v3206
    %4644 = vmatpush1.bf16.msra.mxu0 %v3205
    %4645 = vmatprep.subr.bf16.mxu0 %v3210
    %4646 = vmatpush1.bf16.msra.mxu0 %v3209
    %4647 = vmatprep.subr.bf16.mxu0 %v3214
    %4648 = vmatpush1.bf16.msra.mxu0 %v3213
    %4649 = vmatprep.subr.bf16.mxu0 %v3218
    %4650 = vmatpush1.bf16.msra.mxu0 %v3217
    %4651 = vmatprep.subr.bf16.mxu0 %v3222
    %4652 = vmatpush1.bf16.msra.mxu0 %v3221
    %4653 = vmatprep.subr.bf16.mxu0 %v3226
    %4654 = vmatpush1.bf16.msra.mxu0 %v3225
    %4655 = vmatprep.subr.bf16.mxu0 %v3230
    %4656 = vmatpush1.bf16.msra.mxu0 %v3229
    %4657 = vmatprep.subr.bf16.mxu0 %v3234
    %4658 = vmatpush1.bf16.msra.mxu0 %v3233
    %4659 = vmatprep.subr.bf16.mxu0 %v3238
    %4660 = vmatpush1.bf16.msra.mxu0 %v3237
    %4661 = vmatprep.subr.bf16.mxu0 %v3242
    %4662 = vmatpush1.bf16.msra.mxu0 %v3241
    %4663 = vmatprep.subr.bf16.mxu0 %v3246
    %4664 = vmatpush1.bf16.msra.mxu0 %v3245
    %4665 = vmatprep.subr.bf16.mxu0 %v3250
    %4666 = vmatpush1.bf16.msra.mxu0 %v3249
    %4667 = vmatprep.subr.bf16.mxu0 %v3254
    %4668 = vmatpush1.bf16.msra.mxu0 %v3253
    %4669 = vmatprep.subr.bf16.mxu0 %v3258
    %4670 = vmatpush1.bf16.msra.mxu0 %v3257
    %4671 = vmatprep.subr.bf16.mxu0 %v3262
    %4672 = vmatpush1.bf16.msra.mxu0 %v3261
    %4673 = vmatprep.mubr.bf16.mxu0 %v842
    %4674 = vmatmul.mubr.bf16.gmra.mrb[0].mxu0 %v841
    %v4675 = vpop.f32.mrb[0].mxu0
    %v4676 = vadd.f32 %v4635, %v4675
    %v4677 = vpop.f32.mrb[0].mxu0
    %v4678 = vadd.f32 %v4637, %v4677
    %v4679 = vpop.f32.mrb[0].mxu0
    %v4680 = vpop.f32.mrb[0].mxu0
    %4681 = vdwg.mxu0
    %4682 = vmatprep.subr.bf16.mxu0 %v3266
    %4683 = vmatpush1.bf16.msra.mxu0 %v3265
    %4684 = vmatprep.subr.bf16.mxu0 %v3270
    %4685 = vmatpush1.bf16.msra.mxu0 %v3269
    %4686 = vmatprep.subr.bf16.mxu0 %v3274
    %4687 = vmatpush1.bf16.msra.mxu0 %v3273
    %4688 = vmatprep.subr.bf16.mxu0 %v3278
    %4689 = vmatpush1.bf16.msra.mxu0 %v3277
    %4690 = vmatprep.subr.bf16.mxu0 %v3282
    %4691 = vmatpush1.bf16.msra.mxu0 %v3281
    %4692 = vmatprep.subr.bf16.mxu0 %v3286
    %4693 = vmatpush1.bf16.msra.mxu0 %v3285
    %4694 = vmatprep.subr.bf16.mxu0 %v3290
    %4695 = vmatpush1.bf16.msra.mxu0 %v3289
    %4696 = vmatprep.subr.bf16.mxu0 %v3294
    %4697 = vmatpush1.bf16.msra.mxu0 %v3293
    %4698 = vmatprep.subr.bf16.mxu0 0
    %4699 = vmatpush1.bf16.msra.mxu0 0
    %4700 = vmatprep.subr.bf16.mxu0 0
    %4701 = vmatpush1.bf16.msra.mxu0 0
    %4702 = vmatprep.subr.bf16.mxu0 0
    %4703 = vmatpush1.bf16.msra.mxu0 0
    %4704 = vmatprep.subr.bf16.mxu0 0
    %4705 = vmatpush1.bf16.msra.mxu0 0
    %4706 = vmatprep.subr.bf16.mxu0 0
    %4707 = vmatpush1.bf16.msra.mxu0 0
    %4708 = vmatprep.subr.bf16.mxu0 0
    %4709 = vmatpush1.bf16.msra.mxu0 0
    %4710 = vmatprep.subr.bf16.mxu0 0
    %4711 = vmatpush1.bf16.msra.mxu0 0
    %4712 = vmatprep.subr.bf16.mxu0 0
    %4713 = vmatpush1.bf16.msra.mxu0 0
    %4714 = vmatprep.mubr.bf16.mxu0 0
    %4715 = vmatmul.mubr.bf16.gmra.mrb[0].mxu0 %v843
    %v4716 = vpop.f32.mrb[0].mxu0
    %v4717 = vadd.f32 %v4676, %v4716
    %v4718 = vpop.f32.mrb[0].mxu0
    %v4719 = vadd.f32 %v4678, %v4718
    %v4720 = vpop.f32.mrb[0].mxu0
    %v4721 = vpop.f32.mrb[0].mxu0
    %4722 = vdwg.mxu0
    %v4723 = vmul.f32 %v4307, 0.5
    %v4724 = vmul.f32 %v4309, 0.5
    %v4725 = vmul.f32 %v4717, 0.5
    %v4726 = vmul.f32 %v4719, 0.5
    %v4727 = vtanh.pop %v4723
    %v4728 = vtanh.pop %v4724
    %v4729 = vtanh.pop %v4725
    %v4730 = vtanh.pop %v4726
    %v4731 = vmul.f32 %v4727, 0.5
    %v4732 = vmul.f32 %v4728, 0.5
    %v4733 = vmul.f32 %v4729, 0.5
    %v4734 = vmul.f32 %v4730, 0.5
    %v4735 = vadd.f32 %v4731, 0.5
    %v4736 = vadd.f32 %v4732, 0.5
    %v4737 = vadd.f32 %v4733, 0.5
    %v4738 = vadd.f32 %v4734, 0.5
    %v4739 = vmul.f32 %v4307, %v4735
    %v4740 = vmul.f32 %v4309, %v4736
    %v4741 = vmul.f32 %v4717, %v4737
    %v4742 = vmul.f32 %v4719, %v4738
    %v4743 = vpack.c.bf16 %v4739, %v4739
    %v4744 = vpack.c.bf16 %v4740, %v4740
    %v4745 = vpack.c.bf16 %v4741, %v4741
    %v4746 = vpack.c.bf16 %v4742, %v4742
    %v4747 = vld [vmem:[#allocation6] sm:$0xff]
    %v4748 = vld [vmem:[#allocation6 + $0x8] sm:$0xff]
    %v4749 = vld [vmem:[#allocation6 + $0x10] sm:$0xff]
    %v4750 = vld [vmem:[#allocation6 + $0x18] sm:$0xff]
    %v4751 = vld [vmem:[#allocation6 + $0x20] sm:$0xff]
    %v4752 = vld [vmem:[#allocation6 + $0x28] sm:$0xff]
    %v4753 = vld [vmem:[#allocation6 + $0x30] sm:$0xff]
    %v4754 = vld [vmem:[#allocation6 + $0x38] sm:$0xff]
    %v4755 = vld [vmem:[#allocation6 + $0x40] sm:$0xff]
    %v4756 = vld [vmem:[#allocation6 + $0x48] sm:$0xff]
    %v4757 = vld [vmem:[#allocation6 + $0x50] sm:$0xff]
    %v4758 = vld [vmem:[#allocation6 + $0x58] sm:$0xff]
    %v4759 = vld [vmem:[#allocation6 + $0x60] sm:$0xff]
    %v4760 = vld [vmem:[#allocation6 + $0x68] sm:$0xff]
    %v4761 = vld [vmem:[#allocation6 + $0x70] sm:$0xff]
    %v4762 = vld [vmem:[#allocation6 + $0x78] sm:$0xff]
    %v4763 = vld [vmem:[#allocation6 + $0x80] sm:$0xff]
    %v4764 = vld [vmem:[#allocation6 + $0x88] sm:$0xff]
    %v4765 = vld [vmem:[#allocation6 + $0x90] sm:$0xff]
    %v4766 = vld [vmem:[#allocation6 + $0x98] sm:$0xff]
    %v4767 = vld [vmem:[#allocation6 + $0xa0] sm:$0xff]
    %v4768 = vld [vmem:[#allocation6 + $0xa8] sm:$0xff]
    %v4769 = vld [vmem:[#allocation6 + $0xb0] sm:$0xff]
    %v4770 = vld [vmem:[#allocation6 + $0xb8] sm:$0xff]
    %v4771 = vld [vmem:[#allocation6 + $0xc0] sm:$0xff]
    %v4772 = vld [vmem:[#allocation6 + $0xc8] sm:$0xff]
    %v4773 = vld [vmem:[#allocation6 + $0xd0] sm:$0xff]
    %v4774 = vld [vmem:[#allocation6 + $0xd8] sm:$0xff]
    %v4775 = vld [vmem:[#allocation6 + $0xe0] sm:$0xff]
    %v4776 = vld [vmem:[#allocation6 + $0xe8] sm:$0xff]
    %v4777 = vld [vmem:[#allocation6 + $0xf0] sm:$0xff]
    %v4778 = vld [vmem:[#allocation6 + $0xf8] sm:$0xff]
    %v4779 = vld [vmem:[#allocation6 + $0x100] sm:$0xff]
    %v4780 = vld [vmem:[#allocation6 + $0x108] sm:$0xff]
    %v4781 = vld [vmem:[#allocation6 + $0x110] sm:$0xff]
    %v4782 = vld [vmem:[#allocation6 + $0x118] sm:$0xff]
    %v4783 = vld [vmem:[#allocation6 + $0x120] sm:$0xff]
    %v4784 = vld [vmem:[#allocation6 + $0x128] sm:$0xff]
    %v4785 = vld [vmem:[#allocation6 + $0x130] sm:$0xff]
    %v4786 = vld [vmem:[#allocation6 + $0x138] sm:$0xff]
    %v4787 = vld [vmem:[#allocation6 + $0x140] sm:$0xff]
    %v4788 = vld [vmem:[#allocation6 + $0x148] sm:$0xff]
    %v4789 = vld [vmem:[#allocation6 + $0x150] sm:$0xff]
    %v4790 = vld [vmem:[#allocation6 + $0x158] sm:$0xff]
    %v4791 = vld [vmem:[#allocation6 + $0x160] sm:$0xff]
    %v4792 = vld [vmem:[#allocation6 + $0x168] sm:$0xff]
    %v4793 = vld [vmem:[#allocation6 + $0x170] sm:$0xff]
    %v4794 = vld [vmem:[#allocation6 + $0x178] sm:$0xff]
    %v4795 = vld [vmem:[#allocation6 + $0x180] sm:$0xff]
    %v4796 = vld [vmem:[#allocation6 + $0x188] sm:$0xff]
    %v4797 = vld [vmem:[#allocation6 + $0x190] sm:$0xff]
    %v4798 = vld [vmem:[#allocation6 + $0x198] sm:$0xff]
    %v4799 = vld [vmem:[#allocation6 + $0x1a0] sm:$0xff]
    %v4800 = vld [vmem:[#allocation6 + $0x1a8] sm:$0xff]
    %v4801 = vld [vmem:[#allocation6 + $0x1b0] sm:$0xff]
    %v4802 = vld [vmem:[#allocation6 + $0x1b8] sm:$0xff]
    %v4803 = vld [vmem:[#allocation6 + $0x1c0] sm:$0xff]
    %v4804 = vld [vmem:[#allocation6 + $0x1c8] sm:$0xff]
    %v4805 = vld [vmem:[#allocation6 + $0x1d0] sm:$0xff]
    %v4806 = vld [vmem:[#allocation6 + $0x1d8] sm:$0xff]
    %v4807 = vld [vmem:[#allocation6 + $0x1e0] sm:$0xff]
    %v4808 = vld [vmem:[#allocation6 + $0x1e8] sm:$0xff]
    %v4809 = vld [vmem:[#allocation6 + $0x1f0] sm:$0xff]
    %v4810 = vld [vmem:[#allocation6 + $0x1f8] sm:$0xff]
    %v4811 = vld [vmem:[#allocation6 + $0x200] sm:$0xff]
    %v4812 = vld [vmem:[#allocation6 + $0x208] sm:$0xff]
    %v4813 = vld [vmem:[#allocation6 + $0x210] sm:$0xff]
    %v4814 = vld [vmem:[#allocation6 + $0x218] sm:$0xff]
    %v4815 = vld [vmem:[#allocation6 + $0x220] sm:$0xff]
    %v4816 = vld [vmem:[#allocation6 + $0x228] sm:$0xff]
    %v4817 = vld [vmem:[#allocation6 + $0x230] sm:$0xff]
    %v4818 = vld [vmem:[#allocation6 + $0x238] sm:$0xff]
    %v4819 = vld [vmem:[#allocation6 + $0x240] sm:$0xff]
    %v4820 = vld [vmem:[#allocation6 + $0x248] sm:$0xff]
    %v4821 = vld [vmem:[#allocation6 + $0x250] sm:$0xff]
    %v4822 = vld [vmem:[#allocation6 + $0x258] sm:$0xff]
    %v4823 = vld [vmem:[#allocation6 + $0x260] sm:$0xff]
    %v4824 = vld [vmem:[#allocation6 + $0x268] sm:$0xff]
    %v4825 = vld [vmem:[#allocation6 + $0x270] sm:$0xff]
    %v4826 = vld [vmem:[#allocation6 + $0x278] sm:$0xff]
    %v4827 = vld [vmem:[#allocation6 + $0x280] sm:$0xff]
    %v4828 = vld [vmem:[#allocation6 + $0x288] sm:$0xff]
    %v4829 = vld [vmem:[#allocation6 + $0x290] sm:$0xff]
    %v4830 = vld [vmem:[#allocation6 + $0x298] sm:$0xff]
    %v4831 = vld [vmem:[#allocation6 + $0x2a0] sm:$0xff]
    %v4832 = vld [vmem:[#allocation6 + $0x2a8] sm:$0xff]
    %v4833 = vld [vmem:[#allocation6 + $0x2b0] sm:$0xff]
    %v4834 = vld [vmem:[#allocation6 + $0x2b8] sm:$0xff]
    %v4835 = vld [vmem:[#allocation6 + $0x2c0] sm:$0xff]
    %v4836 = vld [vmem:[#allocation6 + $0x2c8] sm:$0xff]
    %v4837 = vld [vmem:[#allocation6 + $0x2d0] sm:$0xff]
    %v4838 = vld [vmem:[#allocation6 + $0x2d8] sm:$0xff]
    %v4839 = vld [vmem:[#allocation6 + $0x2e0] sm:$0xff]
    %v4840 = vld [vmem:[#allocation6 + $0x2e8] sm:$0xff]
    %v4841 = vld [vmem:[#allocation6 + $0x2f0] sm:$0xff]
    %v4842 = vld [vmem:[#allocation6 + $0x2f8] sm:$0xff]
    %v4843 = vld [vmem:[#allocation6 + $0x300] sm:$0xff]
    %v4844 = vld [vmem:[#allocation6 + $0x308] sm:$0xff]
    %v4845 = vld [vmem:[#allocation6 + $0x310] sm:$0xff]
    %v4846 = vld [vmem:[#allocation6 + $0x318] sm:$0xff]
    %v4847 = vld [vmem:[#allocation6 + $0x320] sm:$0xff]
    %v4848 = vld [vmem:[#allocation6 + $0x328] sm:$0xff]
    %v4849 = vld [vmem:[#allocation6 + $0x330] sm:$0xff]
    %v4850 = vld [vmem:[#allocation6 + $0x338] sm:$0xff]
    %v4851 = vld [vmem:[#allocation6 + $0x340] sm:$0xff]
    %v4852 = vld [vmem:[#allocation6 + $0x348] sm:$0xff]
    %v4853 = vld [vmem:[#allocation6 + $0x350] sm:$0xff]
    %v4854 = vld [vmem:[#allocation6 + $0x358] sm:$0xff]
    %v4855 = vld [vmem:[#allocation6 + $0x360] sm:$0xff]
    %v4856 = vld [vmem:[#allocation6 + $0x368] sm:$0xff]
    %v4857 = vld [vmem:[#allocation6 + $0x370] sm:$0xff]
    %v4858 = vld [vmem:[#allocation6 + $0x378] sm:$0xff]
    %v4859 = vld [vmem:[#allocation6 + $0x380] sm:$0xff]
    %v4860 = vld [vmem:[#allocation6 + $0x388] sm:$0xff]
    %v4861 = vld [vmem:[#allocation6 + $0x390] sm:$0xff]
    %v4862 = vld [vmem:[#allocation6 + $0x398] sm:$0xff]
    %v4863 = vld [vmem:[#allocation6 + $0x3a0] sm:$0xff]
    %v4864 = vld [vmem:[#allocation6 + $0x3a8] sm:$0xff]
    %v4865 = vld [vmem:[#allocation6 + $0x3b0] sm:$0xff]
    %v4866 = vld [vmem:[#allocation6 + $0x3b8] sm:$0xff]
    %v4867 = vld [vmem:[#allocation6 + $0x3c0] sm:$0xff]
    %v4868 = vld [vmem:[#allocation6 + $0x3c8] sm:$0xff]
    %v4869 = vld [vmem:[#allocation6 + $0x3d0] sm:$0xff]
    %v4870 = vld [vmem:[#allocation6 + $0x3d8] sm:$0xff]
    %v4871 = vld [vmem:[#allocation6 + $0x3e0] sm:$0xff]
    %v4872 = vld [vmem:[#allocation6 + $0x3e8] sm:$0xff]
    %v4873 = vld [vmem:[#allocation6 + $0x3f0] sm:$0xff]
    %v4874 = vld [vmem:[#allocation6 + $0x3f8] sm:$0xff]
    %v4875 = vld [vmem:[#allocation15 + $0x4] sm:$0xf]
    %v4877 = vlaneseq
    %v4878 = vshrl.u32 %v4877, 7
    %v4879 = vsub.s32 0, %v4878
    %v4880 = vrot.slane %v4875, %v4879
    %v4881 = vlaneseq
    %v4882 = vshrl.u32 %v4881, 7
    %v4883 = vsub.s32 1, %v4882
    %v4884 = vrot.slane %v4875, %v4883
    %v4885 = vlaneseq
    %v4886 = vshrl.u32 %v4885, 7
    %v4887 = vsub.s32 2, %v4886
    %v4888 = vrot.slane %v4875, %v4887
    %v4889 = vlaneseq
    %v4890 = vshrl.u32 %v4889, 7
    %v4891 = vsub.s32 3, %v4890
    %v4892 = vrot.slane %v4875, %v4891
    %v5025 = vunpack.c.l.b16 %v4747
    %v5026 = vunpack.c.h.b16 %v4747
    %v5027 = vunpack.c.l.b16 %v4748
    %v5028 = vunpack.c.h.b16 %v4748
    %v5029 = vunpack.c.l.b16 %v4749
    %v5030 = vunpack.c.h.b16 %v4749
    %v5031 = vunpack.c.l.b16 %v4750
    %v5032 = vunpack.c.h.b16 %v4750
    %v5033 = vunpack.c.l.b16 %v4751
    %v5034 = vunpack.c.h.b16 %v4751
    %v5035 = vunpack.c.l.b16 %v4752
    %v5036 = vunpack.c.h.b16 %v4752
    %v5037 = vunpack.c.l.b16 %v4753
    %v5038 = vunpack.c.h.b16 %v4753
    %v5039 = vunpack.c.l.b16 %v4754
    %v5040 = vunpack.c.h.b16 %v4754
    %v5041 = vunpack.c.l.b16 %v4755
    %v5042 = vunpack.c.h.b16 %v4755
    %v5043 = vunpack.c.l.b16 %v4756
    %v5044 = vunpack.c.h.b16 %v4756
    %v5045 = vunpack.c.l.b16 %v4757
    %v5046 = vunpack.c.h.b16 %v4757
    %v5047 = vunpack.c.l.b16 %v4758
    %v5048 = vunpack.c.h.b16 %v4758
    %v5049 = vunpack.c.l.b16 %v4759
    %v5050 = vunpack.c.h.b16 %v4759
    %v5051 = vunpack.c.l.b16 %v4760
    %v5052 = vunpack.c.h.b16 %v4760
    %v5053 = vunpack.c.l.b16 %v4761
    %v5054 = vunpack.c.h.b16 %v4761
    %v5055 = vunpack.c.l.b16 %v4762
    %v5056 = vunpack.c.h.b16 %v4762
    %v5057 = vunpack.c.l.b16 %v4763
    %v5058 = vunpack.c.h.b16 %v4763
    %v5059 = vunpack.c.l.b16 %v4764
    %v5060 = vunpack.c.h.b16 %v4764
    %v5061 = vunpack.c.l.b16 %v4765
    %v5062 = vunpack.c.h.b16 %v4765
    %v5063 = vunpack.c.l.b16 %v4766
    %v5064 = vunpack.c.h.b16 %v4766
    %v5065 = vunpack.c.l.b16 %v4767
    %v5066 = vunpack.c.h.b16 %v4767
    %v5067 = vunpack.c.l.b16 %v4768
    %v5068 = vunpack.c.h.b16 %v4768
    %v5069 = vunpack.c.l.b16 %v4769
    %v5070 = vunpack.c.h.b16 %v4769
    %v5071 = vunpack.c.l.b16 %v4770
    %v5072 = vunpack.c.h.b16 %v4770
    %v5073 = vunpack.c.l.b16 %v4771
    %v5074 = vunpack.c.h.b16 %v4771
    %v5075 = vunpack.c.l.b16 %v4772
    %v5076 = vunpack.c.h.b16 %v4772
    %v5077 = vunpack.c.l.b16 %v4773
    %v5078 = vunpack.c.h.b16 %v4773
    %v5079 = vunpack.c.l.b16 %v4774
    %v5080 = vunpack.c.h.b16 %v4774
    %v5081 = vunpack.c.l.b16 %v4775
    %v5082 = vunpack.c.h.b16 %v4775
    %v5083 = vunpack.c.l.b16 %v4776
    %v5084 = vunpack.c.h.b16 %v4776
    %v5085 = vunpack.c.l.b16 %v4777
    %v5086 = vunpack.c.h.b16 %v4777
    %v5087 = vunpack.c.l.b16 %v4778
    %v5088 = vunpack.c.h.b16 %v4778
    %v5089 = vunpack.c.l.b16 %v4779
    %v5090 = vunpack.c.h.b16 %v4779
    %v5091 = vunpack.c.l.b16 %v4780
    %v5092 = vunpack.c.h.b16 %v4780
    %v5093 = vunpack.c.l.b16 %v4781
    %v5094 = vunpack.c.h.b16 %v4781
    %v5095 = vunpack.c.l.b16 %v4782
    %v5096 = vunpack.c.h.b16 %v4782
    %v5097 = vunpack.c.l.b16 %v4783
    %v5098 = vunpack.c.h.b16 %v4783
    %v5099 = vunpack.c.l.b16 %v4784
    %v5100 = vunpack.c.h.b16 %v4784
    %v5101 = vunpack.c.l.b16 %v4785
    %v5102 = vunpack.c.h.b16 %v4785
    %v5103 = vunpack.c.l.b16 %v4786
    %v5104 = vunpack.c.h.b16 %v4786
    %v5105 = vunpack.c.l.b16 %v4787
    %v5106 = vunpack.c.h.b16 %v4787
    %v5107 = vunpack.c.l.b16 %v4788
    %v5108 = vunpack.c.h.b16 %v4788
    %v5109 = vunpack.c.l.b16 %v4789
    %v5110 = vunpack.c.h.b16 %v4789
    %v5111 = vunpack.c.l.b16 %v4790
    %v5112 = vunpack.c.h.b16 %v4790
    %v5113 = vunpack.c.l.b16 %v4791
    %v5114 = vunpack.c.h.b16 %v4791
    %v5115 = vunpack.c.l.b16 %v4792
    %v5116 = vunpack.c.h.b16 %v4792
    %v5117 = vunpack.c.l.b16 %v4793
    %v5118 = vunpack.c.h.b16 %v4793
    %v5119 = vunpack.c.l.b16 %v4794
    %v5120 = vunpack.c.h.b16 %v4794
    %v5121 = vunpack.c.l.b16 %v4795
    %v5122 = vunpack.c.h.b16 %v4795
    %v5123 = vunpack.c.l.b16 %v4796
    %v5124 = vunpack.c.h.b16 %v4796
    %v5125 = vunpack.c.l.b16 %v4797
    %v5126 = vunpack.c.h.b16 %v4797
    %v5127 = vunpack.c.l.b16 %v4798
    %v5128 = vunpack.c.h.b16 %v4798
    %v5129 = vunpack.c.l.b16 %v4799
    %v5130 = vunpack.c.h.b16 %v4799
    %v5131 = vunpack.c.l.b16 %v4800
    %v5132 = vunpack.c.h.b16 %v4800
    %v5133 = vunpack.c.l.b16 %v4801
    %v5134 = vunpack.c.h.b16 %v4801
    %v5135 = vunpack.c.l.b16 %v4802
    %v5136 = vunpack.c.h.b16 %v4802
    %v5137 = vunpack.c.l.b16 %v4803
    %v5138 = vunpack.c.h.b16 %v4803
    %v5139 = vunpack.c.l.b16 %v4804
    %v5140 = vunpack.c.h.b16 %v4804
    %v5141 = vunpack.c.l.b16 %v4805
    %v5142 = vunpack.c.h.b16 %v4805
    %v5143 = vunpack.c.l.b16 %v4806
    %v5144 = vunpack.c.h.b16 %v4806
    %v5145 = vunpack.c.l.b16 %v4807
    %v5146 = vunpack.c.h.b16 %v4807
    %v5147 = vunpack.c.l.b16 %v4808
    %v5148 = vunpack.c.h.b16 %v4808
    %v5149 = vunpack.c.l.b16 %v4809
    %v5150 = vunpack.c.h.b16 %v4809
    %v5151 = vunpack.c.l.b16 %v4810
    %v5152 = vunpack.c.h.b16 %v4810
    %v5153 = vunpack.c.l.b16 %v4811
    %v5154 = vunpack.c.h.b16 %v4811
    %v5155 = vunpack.c.l.b16 %v4812
    %v5156 = vunpack.c.h.b16 %v4812
    %v5157 = vunpack.c.l.b16 %v4813
    %v5158 = vunpack.c.h.b16 %v4813
    %v5159 = vunpack.c.l.b16 %v4814
    %v5160 = vunpack.c.h.b16 %v4814
    %v5161 = vunpack.c.l.b16 %v4815
    %v5162 = vunpack.c.h.b16 %v4815
    %v5163 = vunpack.c.l.b16 %v4816
    %v5164 = vunpack.c.h.b16 %v4816
    %v5165 = vunpack.c.l.b16 %v4817
    %v5166 = vunpack.c.h.b16 %v4817
    %v5167 = vunpack.c.l.b16 %v4818
    %v5168 = vunpack.c.h.b16 %v4818
    %v5169 = vunpack.c.l.b16 %v4819
    %v5170 = vunpack.c.h.b16 %v4819
    %v5171 = vunpack.c.l.b16 %v4820
    %v5172 = vunpack.c.h.b16 %v4820
    %v5173 = vunpack.c.l.b16 %v4821
    %v5174 = vunpack.c.h.b16 %v4821
    %v5175 = vunpack.c.l.b16 %v4822
    %v5176 = vunpack.c.h.b16 %v4822
    %v5177 = vunpack.c.l.b16 %v4823
    %v5178 = vunpack.c.h.b16 %v4823
    %v5179 = vunpack.c.l.b16 %v4824
    %v5180 = vunpack.c.h.b16 %v4824
    %v5181 = vunpack.c.l.b16 %v4825
    %v5182 = vunpack.c.h.b16 %v4825
    %v5183 = vunpack.c.l.b16 %v4826
    %v5184 = vunpack.c.h.b16 %v4826
    %v5185 = vunpack.c.l.b16 %v4827
    %v5186 = vunpack.c.h.b16 %v4827
    %v5187 = vunpack.c.l.b16 %v4828
    %v5188 = vunpack.c.h.b16 %v4828
    %v5189 = vunpack.c.l.b16 %v4829
    %v5190 = vunpack.c.h.b16 %v4829
    %v5191 = vunpack.c.l.b16 %v4830
    %v5192 = vunpack.c.h.b16 %v4830
    %v5193 = vunpack.c.l.b16 %v4831
    %v5194 = vunpack.c.h.b16 %v4831
    %v5195 = vunpack.c.l.b16 %v4832
    %v5196 = vunpack.c.h.b16 %v4832
    %v5197 = vunpack.c.l.b16 %v4833
    %v5198 = vunpack.c.h.b16 %v4833
    %v5199 = vunpack.c.l.b16 %v4834
    %v5200 = vunpack.c.h.b16 %v4834
    %v5201 = vunpack.c.l.b16 %v4835
    %v5202 = vunpack.c.h.b16 %v4835
    %v5203 = vunpack.c.l.b16 %v4836
    %v5204 = vunpack.c.h.b16 %v4836
    %v5205 = vunpack.c.l.b16 %v4837
    %v5206 = vunpack.c.h.b16 %v4837
    %v5207 = vunpack.c.l.b16 %v4838
    %v5208 = vunpack.c.h.b16 %v4838
    %v5209 = vunpack.c.l.b16 %v4839
    %v5210 = vunpack.c.h.b16 %v4839
    %v5211 = vunpack.c.l.b16 %v4840
    %v5212 = vunpack.c.h.b16 %v4840
    %v5213 = vunpack.c.l.b16 %v4841
    %v5214 = vunpack.c.h.b16 %v4841
    %v5215 = vunpack.c.l.b16 %v4842
    %v5216 = vunpack.c.h.b16 %v4842
    %v5217 = vunpack.c.l.b16 %v4843
    %v5218 = vunpack.c.h.b16 %v4843
    %v5219 = vunpack.c.l.b16 %v4844
    %v5220 = vunpack.c.h.b16 %v4844
    %v5221 = vunpack.c.l.b16 %v4845
    %v5222 = vunpack.c.h.b16 %v4845
    %v5223 = vunpack.c.l.b16 %v4846
    %v5224 = vunpack.c.h.b16 %v4846
    %v5225 = vunpack.c.l.b16 %v4847
    %v5226 = vunpack.c.h.b16 %v4847
    %v5227 = vunpack.c.l.b16 %v4848
    %v5228 = vunpack.c.h.b16 %v4848
    %v5229 = vunpack.c.l.b16 %v4849
    %v5230 = vunpack.c.h.b16 %v4849
    %v5231 = vunpack.c.l.b16 %v4850
    %v5232 = vunpack.c.h.b16 %v4850
    %v5233 = vunpack.c.l.b16 %v4851
    %v5234 = vunpack.c.h.b16 %v4851
    %v5235 = vunpack.c.l.b16 %v4852
    %v5236 = vunpack.c.h.b16 %v4852
    %v5237 = vunpack.c.l.b16 %v4853
    %v5238 = vunpack.c.h.b16 %v4853
    %v5239 = vunpack.c.l.b16 %v4854
    %v5240 = vunpack.c.h.b16 %v4854
    %v5241 = vunpack.c.l.b16 %v4855
    %v5242 = vunpack.c.h.b16 %v4855
    %v5243 = vunpack.c.l.b16 %v4856
    %v5244 = vunpack.c.h.b16 %v4856
    %v5245 = vunpack.c.l.b16 %v4857
    %v5246 = vunpack.c.h.b16 %v4857
    %v5247 = vunpack.c.l.b16 %v4858
    %v5248 = vunpack.c.h.b16 %v4858
    %v5249 = vunpack.c.l.b16 %v4859
    %v5250 = vunpack.c.h.b16 %v4859
    %v5251 = vunpack.c.l.b16 %v4860
    %v5252 = vunpack.c.h.b16 %v4860
    %v5253 = vunpack.c.l.b16 %v4861
    %v5254 = vunpack.c.h.b16 %v4861
    %v5255 = vunpack.c.l.b16 %v4862
    %v5256 = vunpack.c.h.b16 %v4862
    %v5257 = vunpack.c.l.b16 %v4863
    %v5258 = vunpack.c.h.b16 %v4863
    %v5259 = vunpack.c.l.b16 %v4864
    %v5260 = vunpack.c.h.b16 %v4864
    %v5261 = vunpack.c.l.b16 %v4865
    %v5262 = vunpack.c.h.b16 %v4865
    %v5263 = vunpack.c.l.b16 %v4866
    %v5264 = vunpack.c.h.b16 %v4866
    %v5265 = vunpack.c.l.b16 %v4867
    %v5266 = vunpack.c.h.b16 %v4867
    %v5267 = vunpack.c.l.b16 %v4868
    %v5268 = vunpack.c.h.b16 %v4868
    %v5269 = vunpack.c.l.b16 %v4869
    %v5270 = vunpack.c.h.b16 %v4869
    %v5271 = vunpack.c.l.b16 %v4870
    %v5272 = vunpack.c.h.b16 %v4870
    %v5273 = vunpack.c.l.b16 %v4871
    %v5274 = vunpack.c.h.b16 %v4871
    %v5275 = vunpack.c.l.b16 %v4872
    %v5276 = vunpack.c.h.b16 %v4872
    %v5277 = vunpack.c.l.b16 %v4873
    %v5278 = vunpack.c.h.b16 %v4873
    %v5279 = vunpack.c.l.b16 %v4874
    %v5280 = vunpack.c.h.b16 %v4874
    %v5281 = vpack.c.b16 %v5029, %v5025
    %v5282 = vpack.c.b16 %v5030, %v5026
    %v5283 = vpack.c.b16 %v5031, %v5027
    %v5284 = vpack.c.b16 %v5032, %v5028
    %v5285 = vpack.c.b16 %v5037, %v5033
    %v5286 = vpack.c.b16 %v5038, %v5034
    %v5287 = vpack.c.b16 %v5039, %v5035
    %v5288 = vpack.c.b16 %v5040, %v5036
    %v5289 = vpack.c.b16 %v5045, %v5041
    %v5290 = vpack.c.b16 %v5046, %v5042
    %v5291 = vpack.c.b16 %v5047, %v5043
    %v5292 = vpack.c.b16 %v5048, %v5044
    %v5293 = vpack.c.b16 %v5053, %v5049
    %v5294 = vpack.c.b16 %v5054, %v5050
    %v5295 = vpack.c.b16 %v5055, %v5051
    %v5296 = vpack.c.b16 %v5056, %v5052
    %v5297 = vpack.c.b16 %v5061, %v5057
    %v5298 = vpack.c.b16 %v5062, %v5058
    %v5299 = vpack.c.b16 %v5063, %v5059
    %v5300 = vpack.c.b16 %v5064, %v5060
    %v5301 = vpack.c.b16 %v5069, %v5065
    %v5302 = vpack.c.b16 %v5070, %v5066
    %v5303 = vpack.c.b16 %v5071, %v5067
    %v5304 = vpack.c.b16 %v5072, %v5068
    %v5305 = vpack.c.b16 %v5077, %v5073
    %v5306 = vpack.c.b16 %v5078, %v5074
    %v5307 = vpack.c.b16 %v5079, %v5075
    %v5308 = vpack.c.b16 %v5080, %v5076
    %v5309 = vpack.c.b16 %v5085, %v5081
    %v5310 = vpack.c.b16 %v5086, %v5082
    %v5311 = vpack.c.b16 %v5087, %v5083
    %v5312 = vpack.c.b16 %v5088, %v5084
    %v5313 = vpack.c.b16 %v5093, %v5089
    %v5314 = vpack.c.b16 %v5094, %v5090
    %v5315 = vpack.c.b16 %v5095, %v5091
    %v5316 = vpack.c.b16 %v5096, %v5092
    %v5317 = vpack.c.b16 %v5101, %v5097
    %v5318 = vpack.c.b16 %v5102, %v5098
    %v5319 = vpack.c.b16 %v5103, %v5099
    %v5320 = vpack.c.b16 %v5104, %v5100
    %v5321 = vpack.c.b16 %v5109, %v5105
    %v5322 = vpack.c.b16 %v5110, %v5106
    %v5323 = vpack.c.b16 %v5111, %v5107
    %v5324 = vpack.c.b16 %v5112, %v5108
    %v5325 = vpack.c.b16 %v5117, %v5113
    %v5326 = vpack.c.b16 %v5118, %v5114
    %v5327 = vpack.c.b16 %v5119, %v5115
    %v5328 = vpack.c.b16 %v5120, %v5116
    %v5329 = vpack.c.b16 %v5125, %v5121
    %v5330 = vpack.c.b16 %v5126, %v5122
    %v5331 = vpack.c.b16 %v5127, %v5123
    %v5332 = vpack.c.b16 %v5128, %v5124
    %v5333 = vpack.c.b16 %v5133, %v5129
    %v5334 = vpack.c.b16 %v5134, %v5130
    %v5335 = vpack.c.b16 %v5135, %v5131
    %v5336 = vpack.c.b16 %v5136, %v5132
    %v5337 = vpack.c.b16 %v5141, %v5137
    %v5338 = vpack.c.b16 %v5142, %v5138
    %v5339 = vpack.c.b16 %v5143, %v5139
    %v5340 = vpack.c.b16 %v5144, %v5140
    %v5341 = vpack.c.b16 %v5149, %v5145
    %v5342 = vpack.c.b16 %v5150, %v5146
    %v5343 = vpack.c.b16 %v5151, %v5147
    %v5344 = vpack.c.b16 %v5152, %v5148
    %v5345 = vpack.c.b16 %v5157, %v5153
    %v5346 = vpack.c.b16 %v5158, %v5154
    %v5347 = vpack.c.b16 %v5159, %v5155
    %v5348 = vpack.c.b16 %v5160, %v5156
    %v5349 = vpack.c.b16 %v5165, %v5161
    %v5350 = vpack.c.b16 %v5166, %v5162
    %v5351 = vpack.c.b16 %v5167, %v5163
    %v5352 = vpack.c.b16 %v5168, %v5164
    %v5353 = vpack.c.b16 %v5173, %v5169
    %v5354 = vpack.c.b16 %v5174, %v5170
    %v5355 = vpack.c.b16 %v5175, %v5171
    %v5356 = vpack.c.b16 %v5176, %v5172
    %v5357 = vpack.c.b16 %v5181, %v5177
    %v5358 = vpack.c.b16 %v5182, %v5178
    %v5359 = vpack.c.b16 %v5183, %v5179
    %v5360 = vpack.c.b16 %v5184, %v5180
    %v5361 = vpack.c.b16 %v5189, %v5185
    %v5362 = vpack.c.b16 %v5190, %v5186
    %v5363 = vpack.c.b16 %v5191, %v5187
    %v5364 = vpack.c.b16 %v5192, %v5188
    %v5365 = vpack.c.b16 %v5197, %v5193
    %v5366 = vpack.c.b16 %v5198, %v5194
    %v5367 = vpack.c.b16 %v5199, %v5195
    %v5368 = vpack.c.b16 %v5200, %v5196
    %v5369 = vpack.c.b16 %v5205, %v5201
    %v5370 = vpack.c.b16 %v5206, %v5202
    %v5371 = vpack.c.b16 %v5207, %v5203
    %v5372 = vpack.c.b16 %v5208, %v5204
    %v5373 = vpack.c.b16 %v5213, %v5209
    %v5374 = vpack.c.b16 %v5214, %v5210
    %v5375 = vpack.c.b16 %v5215, %v5211
    %v5376 = vpack.c.b16 %v5216, %v5212
    %v5377 = vpack.c.b16 %v5221, %v5217
    %v5378 = vpack.c.b16 %v5222, %v5218
    %v5379 = vpack.c.b16 %v5223, %v5219
    %v5380 = vpack.c.b16 %v5224, %v5220
    %v5381 = vpack.c.b16 %v5229, %v5225
    %v5382 = vpack.c.b16 %v5230, %v5226
    %v5383 = vpack.c.b16 %v5231, %v5227
    %v5384 = vpack.c.b16 %v5232, %v5228
    %v5385 = vpack.c.b16 %v5237, %v5233
    %v5386 = vpack.c.b16 %v5238, %v5234
    %v5387 = vpack.c.b16 %v5239, %v5235
    %v5388 = vpack.c.b16 %v5240, %v5236
    %v5389 = vpack.c.b16 %v5245, %v5241
    %v5390 = vpack.c.b16 %v5246, %v5242
    %v5391 = vpack.c.b16 %v5247, %v5243
    %v5392 = vpack.c.b16 %v5248, %v5244
    %v5393 = vpack.c.b16 %v5253, %v5249
    %v5394 = vpack.c.b16 %v5254, %v5250
    %v5395 = vpack.c.b16 %v5255, %v5251
    %v5396 = vpack.c.b16 %v5256, %v5252
    %v5397 = vpack.c.b16 %v5261, %v5257
    %v5398 = vpack.c.b16 %v5262, %v5258
    %v5399 = vpack.c.b16 %v5263, %v5259
    %v5400 = vpack.c.b16 %v5264, %v5260
    %v5401 = vpack.c.b16 %v5269, %v5265
    %v5402 = vpack.c.b16 %v5270, %v5266
    %v5403 = vpack.c.b16 %v5271, %v5267
    %v5404 = vpack.c.b16 %v5272, %v5268
    %v5405 = vpack.c.b16 %v5277, %v5273
    %v5406 = vpack.c.b16 %v5278, %v5274
    %v5407 = vpack.c.b16 %v5279, %v5275
    %v5408 = vpack.c.b16 %v5280, %v5276
    %5537 = vmatprep.subr.bf16.mxu0 %v5282
    %5538 = vmatpush1.bf16.msra.mxu0 %v5281
    %5539 = vmatprep.subr.bf16.mxu0 %v5286
    %5540 = vmatpush1.bf16.msra.mxu0 %v5285
    %5541 = vmatprep.subr.bf16.mxu0 %v5290
    %5542 = vmatpush1.bf16.msra.mxu0 %v5289
    %5543 = vmatprep.subr.bf16.mxu0 %v5294
    %5544 = vmatpush1.bf16.msra.mxu0 %v5293
    %5545 = vmatprep.subr.bf16.mxu0 %v5298
    %5546 = vmatpush1.bf16.msra.mxu0 %v5297
    %5547 = vmatprep.subr.bf16.mxu0 %v5302
    %5548 = vmatpush1.bf16.msra.mxu0 %v5301
    %5549 = vmatprep.subr.bf16.mxu0 %v5306
    %5550 = vmatpush1.bf16.msra.mxu0 %v5305
    %5551 = vmatprep.subr.bf16.mxu0 %v5310
    %5552 = vmatpush1.bf16.msra.mxu0 %v5309
    %5553 = vmatprep.subr.bf16.mxu0 %v5314
    %5554 = vmatpush1.bf16.msra.mxu0 %v5313
    %5555 = vmatprep.subr.bf16.mxu0 %v5318
    %5556 = vmatpush1.bf16.msra.mxu0 %v5317
    %5557 = vmatprep.subr.bf16.mxu0 %v5322
    %5558 = vmatpush1.bf16.msra.mxu0 %v5321
    %5559 = vmatprep.subr.bf16.mxu0 %v5326
    %5560 = vmatpush1.bf16.msra.mxu0 %v5325
    %5561 = vmatprep.subr.bf16.mxu0 %v5330
    %5562 = vmatpush1.bf16.msra.mxu0 %v5329
    %5563 = vmatprep.subr.bf16.mxu0 %v5334
    %5564 = vmatpush1.bf16.msra.mxu0 %v5333
    %5565 = vmatprep.subr.bf16.mxu0 %v5338
    %5566 = vmatpush1.bf16.msra.mxu0 %v5337
    %5567 = vmatprep.subr.bf16.mxu0 %v5342
    %5568 = vmatpush1.bf16.msra.mxu0 %v5341
    %5569 = vmatprep.mubr.bf16.mxu0 %v4744
    %5570 = vmatmul.mubr.bf16.gmra.mrb[0].mxu0 %v4743
    %v5571 = vpop.f32.mrb[0].mxu0
    %v5572 = vadd.f32 %v4880, %v5571
    %v5573 = vpop.f32.mrb[0].mxu0
    %v5574 = vadd.f32 %v4884, %v5573
    %v5575 = vpop.f32.mrb[0].mxu0
    %v5576 = vpop.f32.mrb[0].mxu0
    %5577 = vdwg.mxu0
    %5578 = vmatprep.subr.bf16.mxu0 %v5346
    %5579 = vmatpush1.bf16.msra.mxu0 %v5345
    %5580 = vmatprep.subr.bf16.mxu0 %v5350
    %5581 = vmatpush1.bf16.msra.mxu0 %v5349
    %5582 = vmatprep.subr.bf16.mxu0 %v5354
    %5583 = vmatpush1.bf16.msra.mxu0 %v5353
    %5584 = vmatprep.subr.bf16.mxu0 %v5358
    %5585 = vmatpush1.bf16.msra.mxu0 %v5357
    %5586 = vmatprep.subr.bf16.mxu0 %v5362
    %5587 = vmatpush1.bf16.msra.mxu0 %v5361
    %5588 = vmatprep.subr.bf16.mxu0 %v5366
    %5589 = vmatpush1.bf16.msra.mxu0 %v5365
    %5590 = vmatprep.subr.bf16.mxu0 %v5370
    %5591 = vmatpush1.bf16.msra.mxu0 %v5369
    %5592 = vmatprep.subr.bf16.mxu0 %v5374
    %5593 = vmatpush1.bf16.msra.mxu0 %v5373
    %5594 = vmatprep.subr.bf16.mxu0 %v5378
    %5595 = vmatpush1.bf16.msra.mxu0 %v5377
    %5596 = vmatprep.subr.bf16.mxu0 %v5382
    %5597 = vmatpush1.bf16.msra.mxu0 %v5381
    %5598 = vmatprep.subr.bf16.mxu0 %v5386
    %5599 = vmatpush1.bf16.msra.mxu0 %v5385
    %5600 = vmatprep.subr.bf16.mxu0 %v5390
    %5601 = vmatpush1.bf16.msra.mxu0 %v5389
    %5602 = vmatprep.subr.bf16.mxu0 %v5394
    %5603 = vmatpush1.bf16.msra.mxu0 %v5393
    %5604 = vmatprep.subr.bf16.mxu0 %v5398
    %5605 = vmatpush1.bf16.msra.mxu0 %v5397
    %5606 = vmatprep.subr.bf16.mxu0 %v5402
    %5607 = vmatpush1.bf16.msra.mxu0 %v5401
    %5608 = vmatprep.subr.bf16.mxu0 %v5406
    %5609 = vmatpush1.bf16.msra.mxu0 %v5405
    %5610 = vmatprep.mubr.bf16.mxu0 %v4746
    %5611 = vmatmul.mubr.bf16.gmra.mrb[0].mxu0 %v4745
    %v5612 = vpop.f32.mrb[0].mxu0
    %v5613 = vadd.f32 %v5572, %v5612
    %v5614 = vpop.f32.mrb[0].mxu0
    %v5615 = vadd.f32 %v5574, %v5614
    %v5616 = vpop.f32.mrb[0].mxu0
    %v5617 = vpop.f32.mrb[0].mxu0
    %5618 = vdwg.mxu0
    %5619 = vmatprep.subr.bf16.mxu0 %v5284
    %5620 = vmatpush1.bf16.msra.mxu0 %v5283
    %5621 = vmatprep.subr.bf16.mxu0 %v5288
    %5622 = vmatpush1.bf16.msra.mxu0 %v5287
    %5623 = vmatprep.subr.bf16.mxu0 %v5292
    %5624 = vmatpush1.bf16.msra.mxu0 %v5291
    %5625 = vmatprep.subr.bf16.mxu0 %v5296
    %5626 = vmatpush1.bf16.msra.mxu0 %v5295
    %5627 = vmatprep.subr.bf16.mxu0 %v5300
    %5628 = vmatpush1.bf16.msra.mxu0 %v5299
    %5629 = vmatprep.subr.bf16.mxu0 %v5304
    %5630 = vmatpush1.bf16.msra.mxu0 %v5303
    %5631 = vmatprep.subr.bf16.mxu0 %v5308
    %5632 = vmatpush1.bf16.msra.mxu0 %v5307
    %5633 = vmatprep.subr.bf16.mxu0 %v5312
    %5634 = vmatpush1.bf16.msra.mxu0 %v5311
    %5635 = vmatprep.subr.bf16.mxu0 %v5316
    %5636 = vmatpush1.bf16.msra.mxu0 %v5315
    %5637 = vmatprep.subr.bf16.mxu0 %v5320
    %5638 = vmatpush1.bf16.msra.mxu0 %v5319
    %5639 = vmatprep.subr.bf16.mxu0 %v5324
    %5640 = vmatpush1.bf16.msra.mxu0 %v5323
    %5641 = vmatprep.subr.bf16.mxu0 %v5328
    %5642 = vmatpush1.bf16.msra.mxu0 %v5327
    %5643 = vmatprep.subr.bf16.mxu0 %v5332
    %5644 = vmatpush1.bf16.msra.mxu0 %v5331
    %5645 = vmatprep.subr.bf16.mxu0 %v5336
    %5646 = vmatpush1.bf16.msra.mxu0 %v5335
    %5647 = vmatprep.subr.bf16.mxu0 %v5340
    %5648 = vmatpush1.bf16.msra.mxu0 %v5339
    %5649 = vmatprep.subr.bf16.mxu0 %v5344
    %5650 = vmatpush1.bf16.msra.mxu0 %v5343
    %5651 = vmatprep.mubr.bf16.mxu0 %v4744
    %5652 = vmatmul.mubr.bf16.gmra.mrb[0].mxu0 %v4743
    %v5653 = vpop.f32.mrb[0].mxu0
    %v5654 = vadd.f32 %v4888, %v5653
    %v5655 = vpop.f32.mrb[0].mxu0
    %v5656 = vadd.f32 %v4892, %v5655
    %v5657 = vpop.f32.mrb[0].mxu0
    %v5658 = vpop.f32.mrb[0].mxu0
    %5659 = vdwg.mxu0
    %5660 = vmatprep.subr.bf16.mxu0 %v5348
    %5661 = vmatpush1.bf16.msra.mxu0 %v5347
    %5662 = vmatprep.subr.bf16.mxu0 %v5352
    %5663 = vmatpush1.bf16.msra.mxu0 %v5351
    %5664 = vmatprep.subr.bf16.mxu0 %v5356
    %5665 = vmatpush1.bf16.msra.mxu0 %v5355
    %5666 = vmatprep.subr.bf16.mxu0 %v5360
    %5667 = vmatpush1.bf16.msra.mxu0 %v5359
    %5668 = vmatprep.subr.bf16.mxu0 %v5364
    %5669 = vmatpush1.bf16.msra.mxu0 %v5363
    %5670 = vmatprep.subr.bf16.mxu0 %v5368
    %5671 = vmatpush1.bf16.msra.mxu0 %v5367
    %5672 = vmatprep.subr.bf16.mxu0 %v5372
    %5673 = vmatpush1.bf16.msra.mxu0 %v5371
    %5674 = vmatprep.subr.bf16.mxu0 %v5376
    %5675 = vmatpush1.bf16.msra.mxu0 %v5375
    %5676 = vmatprep.subr.bf16.mxu0 %v5380
    %5677 = vmatpush1.bf16.msra.mxu0 %v5379
    %5678 = vmatprep.subr.bf16.mxu0 %v5384
    %5679 = vmatpush1.bf16.msra.mxu0 %v5383
    %5680 = vmatprep.subr.bf16.mxu0 %v5388
    %5681 = vmatpush1.bf16.msra.mxu0 %v5387
    %5682 = vmatprep.subr.bf16.mxu0 %v5392
    %5683 = vmatpush1.bf16.msra.mxu0 %v5391
    %5684 = vmatprep.subr.bf16.mxu0 %v5396
    %5685 = vmatpush1.bf16.msra.mxu0 %v5395
    %5686 = vmatprep.subr.bf16.mxu0 %v5400
    %5687 = vmatpush1.bf16.msra.mxu0 %v5399
    %5688 = vmatprep.subr.bf16.mxu0 %v5404
    %5689 = vmatpush1.bf16.msra.mxu0 %v5403
    %5690 = vmatprep.subr.bf16.mxu0 %v5408
    %5691 = vmatpush1.bf16.msra.mxu0 %v5407
    %5692 = vmatprep.mubr.bf16.mxu0 %v4746
    %5693 = vmatmul.mubr.bf16.gmra.mrb[0].mxu0 %v4745
    %v5694 = vpop.f32.mrb[0].mxu0
    %v5695 = vadd.f32 %v5654, %v5694
    %v5696 = vpop.f32.mrb[0].mxu0
    %v5697 = vadd.f32 %v5656, %v5696
    %v5698 = vpop.f32.mrb[0].mxu0
    %v5699 = vpop.f32.mrb[0].mxu0
    %5700 = vdwg.mxu0
    %v5701 = vmul.f32 %v5613, 0.5
    %v5702 = vmul.f32 %v5615, 0.5
    %v5703 = vmul.f32 %v5695, 0.5
    %v5704 = vmul.f32 %v5697, 0.5
    %v5705 = vtanh.pop %v5701
    %v5706 = vtanh.pop %v5702
    %v5707 = vtanh.pop %v5703
    %v5708 = vtanh.pop %v5704
    %v5709 = vmul.f32 %v5705, 0.5
    %v5710 = vmul.f32 %v5706, 0.5
    %v5711 = vmul.f32 %v5707, 0.5
    %v5712 = vmul.f32 %v5708, 0.5
    %v5713 = vadd.f32 %v5709, 0.5
    %v5714 = vadd.f32 %v5710, 0.5
    %v5715 = vadd.f32 %v5711, 0.5
    %v5716 = vadd.f32 %v5712, 0.5
    %v5717 = vmul.f32 %v5613, %v5713
    %v5718 = vmul.f32 %v5615, %v5714
    %v5719 = vmul.f32 %v5695, %v5715
    %v5720 = vmul.f32 %v5697, %v5716
    %v5721 = vpack.c.bf16 %v5717, %v5717
    %v5722 = vpack.c.bf16 %v5718, %v5718
    %v5723 = vpack.c.bf16 %v5719, %v5719
    %v5724 = vpack.c.bf16 %v5720, %v5720
    %v5725 = vld [vmem:[#allocation7] sm:$0xf]
    %v5726 = vld [vmem:[#allocation7 + $0x4] sm:$0xf]
    %v5727 = vld [vmem:[#allocation7 + $0x8] sm:$0xf]
    %v5728 = vld [vmem:[#allocation7 + $0xc] sm:$0xf]
    %v5729 = vld [vmem:[#allocation7 + $0x10] sm:$0xf]
    %v5730 = vld [vmem:[#allocation7 + $0x14] sm:$0xf]
    %v5731 = vld [vmem:[#allocation7 + $0x18] sm:$0xf]
    %v5732 = vld [vmem:[#allocation7 + $0x1c] sm:$0xf]
    %v5733 = vld [vmem:[#allocation7 + $0x20] sm:$0xf]
    %v5734 = vld [vmem:[#allocation7 + $0x24] sm:$0xf]
    %v5735 = vld [vmem:[#allocation7 + $0x28] sm:$0xf]
    %v5736 = vld [vmem:[#allocation7 + $0x2c] sm:$0xf]
    %v5737 = vld [vmem:[#allocation7 + $0x30] sm:$0xf]
    %v5738 = vld [vmem:[#allocation7 + $0x34] sm:$0xf]
    %v5739 = vld [vmem:[#allocation7 + $0x38] sm:$0xf]
    %v5740 = vld [vmem:[#allocation7 + $0x3c] sm:$0xf]
    %v5741 = vld [vmem:[#allocation7 + $0x40] sm:$0xf]
    %v5742 = vld [vmem:[#allocation7 + $0x44] sm:$0xf]
    %v5743 = vld [vmem:[#allocation7 + $0x48] sm:$0xf]
    %v5744 = vld [vmem:[#allocation7 + $0x4c] sm:$0xf]
    %v5745 = vld [vmem:[#allocation7 + $0x50] sm:$0xf]
    %v5746 = vld [vmem:[#allocation7 + $0x54] sm:$0xf]
    %v5747 = vld [vmem:[#allocation7 + $0x58] sm:$0xf]
    %v5748 = vld [vmem:[#allocation7 + $0x5c] sm:$0xf]
    %v5749 = vld [vmem:[#allocation7 + $0x60] sm:$0xf]
    %v5750 = vld [vmem:[#allocation7 + $0x64] sm:$0xf]
    %v5751 = vld [vmem:[#allocation7 + $0x68] sm:$0xf]
    %v5752 = vld [vmem:[#allocation7 + $0x6c] sm:$0xf]
    %v5753 = vld [vmem:[#allocation7 + $0x70] sm:$0xf]
    %v5754 = vld [vmem:[#allocation7 + $0x74] sm:$0xf]
    %v5755 = vld [vmem:[#allocation7 + $0x78] sm:$0xf]
    %v5756 = vld [vmem:[#allocation7 + $0x7c] sm:$0xf]
    %v5757 = vld [vmem:[#allocation7 + $0x80] sm:$0xf]
    %v5758 = vld [vmem:[#allocation7 + $0x84] sm:$0xf]
    %v5759 = vld [vmem:[#allocation7 + $0x88] sm:$0xf]
    %v5760 = vld [vmem:[#allocation7 + $0x8c] sm:$0xf]
    %v5761 = vld [vmem:[#allocation7 + $0x90] sm:$0xf]
    %v5762 = vld [vmem:[#allocation7 + $0x94] sm:$0xf]
    %v5763 = vld [vmem:[#allocation7 + $0x98] sm:$0xf]
    %v5764 = vld [vmem:[#allocation7 + $0x9c] sm:$0xf]
    %v5765 = vld [vmem:[#allocation7 + $0xa0] sm:$0xf]
    %v5766 = vld [vmem:[#allocation7 + $0xa4] sm:$0xf]
    %v5767 = vld [vmem:[#allocation7 + $0xa8] sm:$0xf]
    %v5768 = vld [vmem:[#allocation7 + $0xac] sm:$0xf]
    %v5769 = vld [vmem:[#allocation7 + $0xb0] sm:$0xf]
    %v5770 = vld [vmem:[#allocation7 + $0xb4] sm:$0xf]
    %v5771 = vld [vmem:[#allocation7 + $0xb8] sm:$0xf]
    %v5772 = vld [vmem:[#allocation7 + $0xbc] sm:$0xf]
    %v5773 = vld [vmem:[#allocation7 + $0xc0] sm:$0xf]
    %v5774 = vld [vmem:[#allocation7 + $0xc4] sm:$0xf]
    %v5775 = vld [vmem:[#allocation7 + $0xc8] sm:$0xf]
    %v5776 = vld [vmem:[#allocation7 + $0xcc] sm:$0xf]
    %v5777 = vld [vmem:[#allocation7 + $0xd0] sm:$0xf]
    %v5778 = vld [vmem:[#allocation7 + $0xd4] sm:$0xf]
    %v5779 = vld [vmem:[#allocation7 + $0xd8] sm:$0xf]
    %v5780 = vld [vmem:[#allocation7 + $0xdc] sm:$0xf]
    %v5781 = vld [vmem:[#allocation7 + $0xe0] sm:$0xf]
    %v5782 = vld [vmem:[#allocation7 + $0xe4] sm:$0xf]
    %v5783 = vld [vmem:[#allocation7 + $0xe8] sm:$0xf]
    %v5784 = vld [vmem:[#allocation7 + $0xec] sm:$0xf]
    %v5785 = vld [vmem:[#allocation7 + $0xf0] sm:$0xf]
    %v5786 = vld [vmem:[#allocation7 + $0xf4] sm:$0xf]
    %v5787 = vld [vmem:[#allocation7 + $0xf8] sm:$0xf]
    %v5788 = vld [vmem:[#allocation7 + $0xfc] sm:$0xf]
    %v5789 = vld [vmem:[#allocation15 + $0x8] sm:$0x1]
    %v5791 = vlaneseq
    %v5792 = vshrl.u32 %v5791, 7
    %v5793 = vsub.s32 0, %v5792
    %v5794 = vrot.slane %v5789, %v5793
    %v5860 = vunpack.c.l.b16 %v5725
    %v5861 = vunpack.c.l.b16 %v5726
    %v5862 = vunpack.c.l.b16 %v5727
    %v5863 = vunpack.c.l.b16 %v5728
    %v5864 = vunpack.c.l.b16 %v5729
    %v5865 = vunpack.c.l.b16 %v5730
    %v5866 = vunpack.c.l.b16 %v5731
    %v5867 = vunpack.c.l.b16 %v5732
    %v5868 = vunpack.c.l.b16 %v5733
    %v5869 = vunpack.c.l.b16 %v5734
    %v5870 = vunpack.c.l.b16 %v5735
    %v5871 = vunpack.c.l.b16 %v5736
    %v5872 = vunpack.c.l.b16 %v5737
    %v5873 = vunpack.c.l.b16 %v5738
    %v5874 = vunpack.c.l.b16 %v5739
    %v5875 = vunpack.c.l.b16 %v5740
    %v5876 = vunpack.c.l.b16 %v5741
    %v5877 = vunpack.c.l.b16 %v5742
    %v5878 = vunpack.c.l.b16 %v5743
    %v5879 = vunpack.c.l.b16 %v5744
    %v5880 = vunpack.c.l.b16 %v5745
    %v5881 = vunpack.c.l.b16 %v5746
    %v5882 = vunpack.c.l.b16 %v5747
    %v5883 = vunpack.c.l.b16 %v5748
    %v5884 = vunpack.c.l.b16 %v5749
    %v5885 = vunpack.c.l.b16 %v5750
    %v5886 = vunpack.c.l.b16 %v5751
    %v5887 = vunpack.c.l.b16 %v5752
    %v5888 = vunpack.c.l.b16 %v5753
    %v5889 = vunpack.c.l.b16 %v5754
    %v5890 = vunpack.c.l.b16 %v5755
    %v5891 = vunpack.c.l.b16 %v5756
    %v5892 = vunpack.c.l.b16 %v5757
    %v5893 = vunpack.c.l.b16 %v5758
    %v5894 = vunpack.c.l.b16 %v5759
    %v5895 = vunpack.c.l.b16 %v5760
    %v5896 = vunpack.c.l.b16 %v5761
    %v5897 = vunpack.c.l.b16 %v5762
    %v5898 = vunpack.c.l.b16 %v5763
    %v5899 = vunpack.c.l.b16 %v5764
    %v5900 = vunpack.c.l.b16 %v5765
    %v5901 = vunpack.c.l.b16 %v5766
    %v5902 = vunpack.c.l.b16 %v5767
    %v5903 = vunpack.c.l.b16 %v5768
    %v5904 = vunpack.c.l.b16 %v5769
    %v5905 = vunpack.c.l.b16 %v5770
    %v5906 = vunpack.c.l.b16 %v5771
    %v5907 = vunpack.c.l.b16 %v5772
    %v5908 = vunpack.c.l.b16 %v5773
    %v5909 = vunpack.c.l.b16 %v5774
    %v5910 = vunpack.c.l.b16 %v5775
    %v5911 = vunpack.c.l.b16 %v5776
    %v5912 = vunpack.c.l.b16 %v5777
    %v5913 = vunpack.c.l.b16 %v5778
    %v5914 = vunpack.c.l.b16 %v5779
    %v5915 = vunpack.c.l.b16 %v5780
    %v5916 = vunpack.c.l.b16 %v5781
    %v5917 = vunpack.c.l.b16 %v5782
    %v5918 = vunpack.c.l.b16 %v5783
    %v5919 = vunpack.c.l.b16 %v5784
    %v5920 = vunpack.c.l.b16 %v5785
    %v5921 = vunpack.c.l.b16 %v5786
    %v5922 = vunpack.c.l.b16 %v5787
    %v5923 = vunpack.c.l.b16 %v5788
    %v5924 = vpack.c.b16 %v5861, %v5860
    %v5925 = vpack.c.b16 %v5863, %v5862
    %v5926 = vpack.c.b16 %v5865, %v5864
    %v5927 = vpack.c.b16 %v5867, %v5866
    %v5928 = vpack.c.b16 %v5869, %v5868
    %v5929 = vpack.c.b16 %v5871, %v5870
    %v5930 = vpack.c.b16 %v5873, %v5872
    %v5931 = vpack.c.b16 %v5875, %v5874
    %v5932 = vpack.c.b16 %v5877, %v5876
    %v5933 = vpack.c.b16 %v5879, %v5878
    %v5934 = vpack.c.b16 %v5881, %v5880
    %v5935 = vpack.c.b16 %v5883, %v5882
    %v5936 = vpack.c.b16 %v5885, %v5884
    %v5937 = vpack.c.b16 %v5887, %v5886
    %v5938 = vpack.c.b16 %v5889, %v5888
    %v5939 = vpack.c.b16 %v5891, %v5890
    %v5940 = vpack.c.b16 %v5893, %v5892
    %v5941 = vpack.c.b16 %v5895, %v5894
    %v5942 = vpack.c.b16 %v5897, %v5896
    %v5943 = vpack.c.b16 %v5899, %v5898
    %v5944 = vpack.c.b16 %v5901, %v5900
    %v5945 = vpack.c.b16 %v5903, %v5902
    %v5946 = vpack.c.b16 %v5905, %v5904
    %v5947 = vpack.c.b16 %v5907, %v5906
    %v5948 = vpack.c.b16 %v5909, %v5908
    %v5949 = vpack.c.b16 %v5911, %v5910
    %v5950 = vpack.c.b16 %v5913, %v5912
    %v5951 = vpack.c.b16 %v5915, %v5914
    %v5952 = vpack.c.b16 %v5917, %v5916
    %v5953 = vpack.c.b16 %v5919, %v5918
    %v5954 = vpack.c.b16 %v5921, %v5920
    %v5955 = vpack.c.b16 %v5923, %v5922
    %5988 = vmatprep.subr.bf16.mxu0 0
    %5989 = vmatpush1.bf16.msra.mxu0 %v5924
    %5990 = vmatprep.subr.bf16.mxu0 0
    %5991 = vmatpush1.bf16.msra.mxu0 %v5925
    %5992 = vmatprep.subr.bf16.mxu0 0
    %5993 = vmatpush1.bf16.msra.mxu0 %v5926
    %5994 = vmatprep.subr.bf16.mxu0 0
    %5995 = vmatpush1.bf16.msra.mxu0 %v5927
    %5996 = vmatprep.subr.bf16.mxu0 0
    %5997 = vmatpush1.bf16.msra.mxu0 %v5928
    %5998 = vmatprep.subr.bf16.mxu0 0
    %5999 = vmatpush1.bf16.msra.mxu0 %v5929
    %6000 = vmatprep.subr.bf16.mxu0 0
    %6001 = vmatpush1.bf16.msra.mxu0 %v5930
    %6002 = vmatprep.subr.bf16.mxu0 0
    %6003 = vmatpush1.bf16.msra.mxu0 %v5931
    %6004 = vmatprep.subr.bf16.mxu0 0
    %6005 = vmatpush1.bf16.msra.mxu0 %v5932
    %6006 = vmatprep.subr.bf16.mxu0 0
    %6007 = vmatpush1.bf16.msra.mxu0 %v5933
    %6008 = vmatprep.subr.bf16.mxu0 0
    %6009 = vmatpush1.bf16.msra.mxu0 %v5934
    %6010 = vmatprep.subr.bf16.mxu0 0
    %6011 = vmatpush1.bf16.msra.mxu0 %v5935
    %6012 = vmatprep.subr.bf16.mxu0 0
    %6013 = vmatpush1.bf16.msra.mxu0 %v5936
    %6014 = vmatprep.subr.bf16.mxu0 0
    %6015 = vmatpush1.bf16.msra.mxu0 %v5937
    %6016 = vmatprep.subr.bf16.mxu0 0
    %6017 = vmatpush1.bf16.msra.mxu0 %v5938
    %6018 = vmatprep.subr.bf16.mxu0 0
    %6019 = vmatpush1.bf16.msra.mxu0 %v5939
    %6020 = vmatprep.mubr.bf16.mxu0 %v5722
    %6021 = vmatmul.mubr.bf16.gmra.mrb[0].mxu0 %v5721
    %v6022 = vpop.f32.mrb[0].mxu0
    %v6023 = vadd.f32 %v5794, %v6022
    %v6024 = vpop.f32.mrb[0].mxu0
    %v6025 = vpop.f32.mrb[0].mxu0
    %v6026 = vpop.f32.mrb[0].mxu0
    %6027 = vdwg.mxu0
    %6028 = vmatprep.subr.bf16.mxu0 0
    %6029 = vmatpush1.bf16.msra.mxu0 %v5940
    %6030 = vmatprep.subr.bf16.mxu0 0
    %6031 = vmatpush1.bf16.msra.mxu0 %v5941
    %6032 = vmatprep.subr.bf16.mxu0 0
    %6033 = vmatpush1.bf16.msra.mxu0 %v5942
    %6034 = vmatprep.subr.bf16.mxu0 0
    %6035 = vmatpush1.bf16.msra.mxu0 %v5943
    %6036 = vmatprep.subr.bf16.mxu0 0
    %6037 = vmatpush1.bf16.msra.mxu0 %v5944
    %6038 = vmatprep.subr.bf16.mxu0 0
    %6039 = vmatpush1.bf16.msra.mxu0 %v5945
    %6040 = vmatprep.subr.bf16.mxu0 0
    %6041 = vmatpush1.bf16.msra.mxu0 %v5946
    %6042 = vmatprep.subr.bf16.mxu0 0
    %6043 = vmatpush1.bf16.msra.mxu0 %v5947
    %6044 = vmatprep.subr.bf16.mxu0 0
    %6045 = vmatpush1.bf16.msra.mxu0 %v5948
    %6046 = vmatprep.subr.bf16.mxu0 0
    %6047 = vmatpush1.bf16.msra.mxu0 %v5949
    %6048 = vmatprep.subr.bf16.mxu0 0
    %6049 = vmatpush1.bf16.msra.mxu0 %v5950
    %6050 = vmatprep.subr.bf16.mxu0 0
    %6051 = vmatpush1.bf16.msra.mxu0 %v5951
    %6052 = vmatprep.subr.bf16.mxu0 0
    %6053 = vmatpush1.bf16.msra.mxu0 %v5952
    %6054 = vmatprep.subr.bf16.mxu0 0
    %6055 = vmatpush1.bf16.msra.mxu0 %v5953
    %6056 = vmatprep.subr.bf16.mxu0 0
    %6057 = vmatpush1.bf16.msra.mxu0 %v5954
    %6058 = vmatprep.subr.bf16.mxu0 0
    %6059 = vmatpush1.bf16.msra.mxu0 %v5955
    %6060 = vmatprep.mubr.bf16.mxu0 %v5724
    %6061 = vmatmul.mubr.bf16.gmra.mrb[0].mxu0 %v5723
    %v6062 = vpop.f32.mrb[0].mxu0
    %v6063 = vadd.f32 %v6023, %v6062
    %v6064 = vpop.f32.mrb[0].mxu0
    %v6065 = vpop.f32.mrb[0].mxu0
    %v6066 = vpop.f32.mrb[0].mxu0
    %6067 = vdwg.mxu0
    %v6068 = vld [vmem:[#allocation2] sm:$0xff]
    %v6069 = vmul.f32 %v6063, 0.5
    %v6070 = vmul.f32 %v6069, 1.442695
    %v6071 = vpow.pop %v6070
    %6073 = vrot.lane.b32.xlu0 %v6071, 96
    %v6074 = vpop.permute.xlu0 %6073
    %v6076 = vmul.f32 %v6068, %v6074
    %v6077 = vadd.f32 %v6063, %v6076
    %v6078 = vpack.c.bf16 %v6077, %v6077
    %v6079 = vld [vmem:[#allocation9] sm:$0xff]
    %v6080 = vld [vmem:[#allocation9 + $0x8] sm:$0xff]
    %v6081 = vld [vmem:[#allocation9 + $0x10] sm:$0xff]
    %v6082 = vld [vmem:[#allocation9 + $0x18] sm:$0xff]
    %v6083 = vld [vmem:[#allocation9 + $0x20] sm:$0xff]
    %v6084 = vld [vmem:[#allocation9 + $0x28] sm:$0xff]
    %v6085 = vld [vmem:[#allocation9 + $0x30] sm:$0xff]
    %v6086 = vld [vmem:[#allocation9 + $0x38] sm:$0xff]
    %v6087 = vld [vmem:[#allocation15 + $0x9] sm:$0xf]
    %v6089 = vlaneseq
    %v6090 = vshrl.u32 %v6089, 7
    %v6091 = vsub.s32 0, %v6090
    %v6092 = vrot.slane %v6087, %v6091
    %v6093 = vlaneseq
    %v6094 = vshrl.u32 %v6093, 7
    %v6095 = vsub.s32 1, %v6094
    %v6096 = vrot.slane %v6087, %v6095
    %v6097 = vlaneseq
    %v6098 = vshrl.u32 %v6097, 7
    %v6099 = vsub.s32 2, %v6098
    %v6100 = vrot.slane %v6087, %v6099
    %v6101 = vlaneseq
    %v6102 = vshrl.u32 %v6101, 7
    %v6103 = vsub.s32 3, %v6102
    %v6104 = vrot.slane %v6087, %v6103
    %v6117 = vunpack.c.l.b16 %v6079
    %v6118 = vunpack.c.h.b16 %v6079
    %v6119 = vunpack.c.l.b16 %v6080
    %v6120 = vunpack.c.h.b16 %v6080
    %v6121 = vunpack.c.l.b16 %v6081
    %v6122 = vunpack.c.h.b16 %v6081
    %v6123 = vunpack.c.l.b16 %v6082
    %v6124 = vunpack.c.h.b16 %v6082
    %v6125 = vunpack.c.l.b16 %v6083
    %v6126 = vunpack.c.h.b16 %v6083
    %v6127 = vunpack.c.l.b16 %v6084
    %v6128 = vunpack.c.h.b16 %v6084
    %v6129 = vunpack.c.l.b16 %v6085
    %v6130 = vunpack.c.h.b16 %v6085
    %v6131 = vunpack.c.l.b16 %v6086
    %v6132 = vunpack.c.h.b16 %v6086
    %v6133 = vpack.c.b16 %v6121, %v6117
    %v6134 = vpack.c.b16 %v6122, %v6118
    %v6135 = vpack.c.b16 %v6123, %v6119
    %v6136 = vpack.c.b16 %v6124, %v6120
    %v6137 = vpack.c.b16 %v6129, %v6125
    %v6138 = vpack.c.b16 %v6130, %v6126
    %v6139 = vpack.c.b16 %v6131, %v6127
    %v6140 = vpack.c.b16 %v6132, %v6128
    %vm6149 = vcmask 261120
    %v6151 = vsel %vm6149, %v6078, 0
    %6153 = vmatprep.subr.bf16.mxu0 %v6134
    %6154 = vmatpush1.bf16.msra.mxu0 %v6133
    %6155 = vmatprep.subr.bf16.mxu0 %v6138
    %6156 = vmatpush1.bf16.msra.mxu0 %v6137
    %6157 = vmatprep.subr.bf16.mxu0 0
    %6158 = vmatpush1.bf16.msra.mxu0 0
    %6159 = vmatprep.subr.bf16.mxu0 0
    %6160 = vmatpush1.bf16.msra.mxu0 0
    %6161 = vmatprep.subr.bf16.mxu0 0
    %6162 = vmatpush1.bf16.msra.mxu0 0
    %6163 = vmatprep.subr.bf16.mxu0 0
    %6164 = vmatpush1.bf16.msra.mxu0 0
    %6165 = vmatprep.subr.bf16.mxu0 0
    %6166 = vmatpush1.bf16.msra.mxu0 0
    %6167 = vmatprep.subr.bf16.mxu0 0
    %6168 = vmatpush1.bf16.msra.mxu0 0
    %6169 = vmatprep.subr.bf16.mxu0 0
    %6170 = vmatpush1.bf16.msra.mxu0 0
    %6171 = vmatprep.subr.bf16.mxu0 0
    %6172 = vmatpush1.bf16.msra.mxu0 0
    %6173 = vmatprep.subr.bf16.mxu0 0
    %6174 = vmatpush1.bf16.msra.mxu0 0
    %6175 = vmatprep.subr.bf16.mxu0 0
    %6176 = vmatpush1.bf16.msra.mxu0 0
    %6177 = vmatprep.subr.bf16.mxu0 0
    %6178 = vmatpush1.bf16.msra.mxu0 0
    %6179 = vmatprep.subr.bf16.mxu0 0
    %6180 = vmatpush1.bf16.msra.mxu0 0
    %6181 = vmatprep.subr.bf16.mxu0 0
    %6182 = vmatpush1.bf16.msra.mxu0 0
    %6183 = vmatprep.subr.bf16.mxu0 0
    %6184 = vmatpush1.bf16.msra.mxu0 0
    %6185 = vmatprep.mubr.bf16.mxu0 0
    %6186 = vmatmul.mubr.bf16.gmra.mrb[0].mxu0 %v6151
    %v6187 = vpop.f32.mrb[0].mxu0
    %v6188 = vadd.f32 %v6092, %v6187
    %v6189 = vpop.f32.mrb[0].mxu0
    %v6190 = vadd.f32 %v6096, %v6189
    %v6191 = vpop.f32.mrb[0].mxu0
    %v6192 = vpop.f32.mrb[0].mxu0
    %6193 = vdwg.mxu0
    %6194 = vmatprep.subr.bf16.mxu0 %v6136
    %6195 = vmatpush1.bf16.msra.mxu0 %v6135
    %6196 = vmatprep.subr.bf16.mxu0 %v6140
    %6197 = vmatpush1.bf16.msra.mxu0 %v6139
    %6198 = vmatprep.subr.bf16.mxu0 0
    %6199 = vmatpush1.bf16.msra.mxu0 0
    %6200 = vmatprep.subr.bf16.mxu0 0
    %6201 = vmatpush1.bf16.msra.mxu0 0
    %6202 = vmatprep.subr.bf16.mxu0 0
    %6203 = vmatpush1.bf16.msra.mxu0 0
    %6204 = vmatprep.subr.bf16.mxu0 0
    %6205 = vmatpush1.bf16.msra.mxu0 0
    %6206 = vmatprep.subr.bf16.mxu0 0
    %6207 = vmatpush1.bf16.msra.mxu0 0
    %6208 = vmatprep.subr.bf16.mxu0 0
    %6209 = vmatpush1.bf16.msra.mxu0 0
    %6210 = vmatprep.subr.bf16.mxu0 0
    %6211 = vmatpush1.bf16.msra.mxu0 0
    %6212 = vmatprep.subr.bf16.mxu0 0
    %6213 = vmatpush1.bf16.msra.mxu0 0
    %6214 = vmatprep.subr.bf16.mxu0 0
    %6215 = vmatpush1.bf16.msra.mxu0 0
    %6216 = vmatprep.subr.bf16.mxu0 0
    %6217 = vmatpush1.bf16.msra.mxu0 0
    %6218 = vmatprep.subr.bf16.mxu0 0
    %6219 = vmatpush1.bf16.msra.mxu0 0
    %6220 = vmatprep.subr.bf16.mxu0 0
    %6221 = vmatpush1.bf16.msra.mxu0 0
    %6222 = vmatprep.subr.bf16.mxu0 0
    %6223 = vmatpush1.bf16.msra.mxu0 0
    %6224 = vmatprep.subr.bf16.mxu0 0
    %6225 = vmatpush1.bf16.msra.mxu0 0
    %6226 = vmatprep.mubr.bf16.mxu0 0
    %6227 = vmatmul.mubr.bf16.gmra.mrb[0].mxu0 %v6151
    %v6228 = vpop.f32.mrb[0].mxu0
    %v6229 = vadd.f32 %v6100, %v6228
    %v6230 = vpop.f32.mrb[0].mxu0
    %v6231 = vadd.f32 %v6104, %v6230
    %v6232 = vpop.f32.mrb[0].mxu0
    %v6233 = vpop.f32.mrb[0].mxu0
    %6234 = vdwg.mxu0
    %v6235 = vmul.f32 %v6188, 0.5
    %v6236 = vmul.f32 %v6190, 0.5
    %v6237 = vmul.f32 %v6229, 0.5
    %v6238 = vmul.f32 %v6231, 0.5
    %v6239 = vtanh.pop %v6235
    %v6240 = vtanh.pop %v6236
    %v6241 = vtanh.pop %v6237
    %v6242 = vtanh.pop %v6238
    %v6243 = vmul.f32 %v6239, 0.5
    %v6244 = vmul.f32 %v6240, 0.5
    %v6245 = vmul.f32 %v6241, 0.5
    %v6246 = vmul.f32 %v6242, 0.5
    %v6247 = vadd.f32 %v6243, 0.5
    %v6248 = vadd.f32 %v6244, 0.5
    %v6249 = vadd.f32 %v6245, 0.5
    %v6250 = vadd.f32 %v6246, 0.5
    %v6251 = vmul.f32 %v6188, %v6247
    %v6252 = vmul.f32 %v6190, %v6248
    %v6253 = vmul.f32 %v6229, %v6249
    %v6254 = vmul.f32 %v6231, %v6250
    %v6255 = vpack.c.bf16 %v6251, %v6251
    %v6256 = vpack.c.bf16 %v6252, %v6252
    %v6257 = vpack.c.bf16 %v6253, %v6253
    %v6258 = vpack.c.bf16 %v6254, %v6254
    %v6259 = vld [vmem:[#allocation10] sm:$0xff]
    %v6260 = vld [vmem:[#allocation10 + $0x8] sm:$0xff]
    %v6261 = vld [vmem:[#allocation10 + $0x10] sm:$0xff]
    %v6262 = vld [vmem:[#allocation10 + $0x18] sm:$0xff]
    %v6263 = vld [vmem:[#allocation10 + $0x20] sm:$0xff]
    %v6264 = vld [vmem:[#allocation10 + $0x28] sm:$0xff]
    %v6265 = vld [vmem:[#allocation10 + $0x30] sm:$0xff]
    %v6266 = vld [vmem:[#allocation10 + $0x38] sm:$0xff]
    %v6267 = vld [vmem:[#allocation10 + $0x40] sm:$0xff]
    %v6268 = vld [vmem:[#allocation10 + $0x48] sm:$0xff]
    %v6269 = vld [vmem:[#allocation10 + $0x50] sm:$0xff]
    %v6270 = vld [vmem:[#allocation10 + $0x58] sm:$0xff]
    %v6271 = vld [vmem:[#allocation10 + $0x60] sm:$0xff]
    %v6272 = vld [vmem:[#allocation10 + $0x68] sm:$0xff]
    %v6273 = vld [vmem:[#allocation10 + $0x70] sm:$0xff]
    %v6274 = vld [vmem:[#allocation10 + $0x78] sm:$0xff]
    %v6275 = vld [vmem:[#allocation10 + $0x80] sm:$0xff]
    %v6276 = vld [vmem:[#allocation10 + $0x88] sm:$0xff]
    %v6277 = vld [vmem:[#allocation10 + $0x90] sm:$0xff]
    %v6278 = vld [vmem:[#allocation10 + $0x98] sm:$0xff]
    %v6279 = vld [vmem:[#allocation10 + $0xa0] sm:$0xff]
    %v6280 = vld [vmem:[#allocation10 + $0xa8] sm:$0xff]
    %v6281 = vld [vmem:[#allocation10 + $0xb0] sm:$0xff]
    %v6282 = vld [vmem:[#allocation10 + $0xb8] sm:$0xff]
    %v6283 = vld [vmem:[#allocation10 + $0xc0] sm:$0xff]
    %v6284 = vld [vmem:[#allocation10 + $0xc8] sm:$0xff]
    %v6285 = vld [vmem:[#allocation10 + $0xd0] sm:$0xff]
    %v6286 = vld [vmem:[#allocation10 + $0xd8] sm:$0xff]
    %v6287 = vld [vmem:[#allocation10 + $0xe0] sm:$0xff]
    %v6288 = vld [vmem:[#allocation10 + $0xe8] sm:$0xff]
    %v6289 = vld [vmem:[#allocation10 + $0xf0] sm:$0xff]
    %v6290 = vld [vmem:[#allocation10 + $0xf8] sm:$0xff]
    %v6291 = vld [vmem:[#allocation10 + $0x100] sm:$0xff]
    %v6292 = vld [vmem:[#allocation10 + $0x108] sm:$0xff]
    %v6293 = vld [vmem:[#allocation10 + $0x110] sm:$0xff]
    %v6294 = vld [vmem:[#allocation10 + $0x118] sm:$0xff]
    %v6295 = vld [vmem:[#allocation10 + $0x120] sm:$0xff]
    %v6296 = vld [vmem:[#allocation10 + $0x128] sm:$0xff]
    %v6297 = vld [vmem:[#allocation10 + $0x130] sm:$0xff]
    %v6298 = vld [vmem:[#allocation10 + $0x138] sm:$0xff]
    %v6299 = vld [vmem:[#allocation10 + $0x140] sm:$0xff]
    %v6300 = vld [vmem:[#allocation10 + $0x148] sm:$0xff]
    %v6301 = vld [vmem:[#allocation10 + $0x150] sm:$0xff]
    %v6302 = vld [vmem:[#allocation10 + $0x158] sm:$0xff]
    %v6303 = vld [vmem:[#allocation10 + $0x160] sm:$0xff]
    %v6304 = vld [vmem:[#allocation10 + $0x168] sm:$0xff]
    %v6305 = vld [vmem:[#allocation10 + $0x170] sm:$0xff]
    %v6306 = vld [vmem:[#allocation10 + $0x178] sm:$0xff]
    %v6307 = vld [vmem:[#allocation10 + $0x180] sm:$0xff]
    %v6308 = vld [vmem:[#allocation10 + $0x188] sm:$0xff]
    %v6309 = vld [vmem:[#allocation10 + $0x190] sm:$0xff]
    %v6310 = vld [vmem:[#allocation10 + $0x198] sm:$0xff]
    %v6311 = vld [vmem:[#allocation10 + $0x1a0] sm:$0xff]
    %v6312 = vld [vmem:[#allocation10 + $0x1a8] sm:$0xff]
    %v6313 = vld [vmem:[#allocation10 + $0x1b0] sm:$0xff]
    %v6314 = vld [vmem:[#allocation10 + $0x1b8] sm:$0xff]
    %v6315 = vld [vmem:[#allocation10 + $0x1c0] sm:$0xff]
    %v6316 = vld [vmem:[#allocation10 + $0x1c8] sm:$0xff]
    %v6317 = vld [vmem:[#allocation10 + $0x1d0] sm:$0xff]
    %v6318 = vld [vmem:[#allocation10 + $0x1d8] sm:$0xff]
    %v6319 = vld [vmem:[#allocation10 + $0x1e0] sm:$0xff]
    %v6320 = vld [vmem:[#allocation10 + $0x1e8] sm:$0xff]
    %v6321 = vld [vmem:[#allocation10 + $0x1f0] sm:$0xff]
    %v6322 = vld [vmem:[#allocation10 + $0x1f8] sm:$0xff]
    %v6323 = vld [vmem:[#allocation10 + $0x200] sm:$0xff]
    %v6324 = vld [vmem:[#allocation10 + $0x208] sm:$0xff]
    %v6325 = vld [vmem:[#allocation10 + $0x210] sm:$0xff]
    %v6326 = vld [vmem:[#allocation10 + $0x218] sm:$0xff]
    %v6327 = vld [vmem:[#allocation10 + $0x220] sm:$0xff]
    %v6328 = vld [vmem:[#allocation10 + $0x228] sm:$0xff]
    %v6329 = vld [vmem:[#allocation10 + $0x230] sm:$0xff]
    %v6330 = vld [vmem:[#allocation10 + $0x238] sm:$0xff]
    %v6331 = vld [vmem:[#allocation10 + $0x240] sm:$0xff]
    %v6332 = vld [vmem:[#allocation10 + $0x248] sm:$0xff]
    %v6333 = vld [vmem:[#allocation10 + $0x250] sm:$0xff]
    %v6334 = vld [vmem:[#allocation10 + $0x258] sm:$0xff]
    %v6335 = vld [vmem:[#allocation10 + $0x260] sm:$0xff]
    %v6336 = vld [vmem:[#allocation10 + $0x268] sm:$0xff]
    %v6337 = vld [vmem:[#allocation10 + $0x270] sm:$0xff]
    %v6338 = vld [vmem:[#allocation10 + $0x278] sm:$0xff]
    %v6339 = vld [vmem:[#allocation10 + $0x280] sm:$0xff]
    %v6340 = vld [vmem:[#allocation10 + $0x288] sm:$0xff]
    %v6341 = vld [vmem:[#allocation10 + $0x290] sm:$0xff]
    %v6342 = vld [vmem:[#allocation10 + $0x298] sm:$0xff]
    %v6343 = vld [vmem:[#allocation10 + $0x2a0] sm:$0xff]
    %v6344 = vld [vmem:[#allocation10 + $0x2a8] sm:$0xff]
    %v6345 = vld [vmem:[#allocation10 + $0x2b0] sm:$0xff]
    %v6346 = vld [vmem:[#allocation10 + $0x2b8] sm:$0xff]
    %v6347 = vld [vmem:[#allocation10 + $0x2c0] sm:$0xff]
    %v6348 = vld [vmem:[#allocation10 + $0x2c8] sm:$0xff]
    %v6349 = vld [vmem:[#allocation10 + $0x2d0] sm:$0xff]
    %v6350 = vld [vmem:[#allocation10 + $0x2d8] sm:$0xff]
    %v6351 = vld [vmem:[#allocation10 + $0x2e0] sm:$0xff]
    %v6352 = vld [vmem:[#allocation10 + $0x2e8] sm:$0xff]
    %v6353 = vld [vmem:[#allocation10 + $0x2f0] sm:$0xff]
    %v6354 = vld [vmem:[#allocation10 + $0x2f8] sm:$0xff]
    %v6355 = vld [vmem:[#allocation10 + $0x300] sm:$0xff]
    %v6356 = vld [vmem:[#allocation10 + $0x308] sm:$0xff]
    %v6357 = vld [vmem:[#allocation10 + $0x310] sm:$0xff]
    %v6358 = vld [vmem:[#allocation10 + $0x318] sm:$0xff]
    %v6359 = vld [vmem:[#allocation10 + $0x320] sm:$0xff]
    %v6360 = vld [vmem:[#allocation10 + $0x328] sm:$0xff]
    %v6361 = vld [vmem:[#allocation10 + $0x330] sm:$0xff]
    %v6362 = vld [vmem:[#allocation10 + $0x338] sm:$0xff]
    %v6363 = vld [vmem:[#allocation10 + $0x340] sm:$0xff]
    %v6364 = vld [vmem:[#allocation10 + $0x348] sm:$0xff]
    %v6365 = vld [vmem:[#allocation10 + $0x350] sm:$0xff]
    %v6366 = vld [vmem:[#allocation10 + $0x358] sm:$0xff]
    %v6367 = vld [vmem:[#allocation10 + $0x360] sm:$0xff]
    %v6368 = vld [vmem:[#allocation10 + $0x368] sm:$0xff]
    %v6369 = vld [vmem:[#allocation10 + $0x370] sm:$0xff]
    %v6370 = vld [vmem:[#allocation10 + $0x378] sm:$0xff]
    %v6371 = vld [vmem:[#allocation10 + $0x380] sm:$0xff]
    %v6372 = vld [vmem:[#allocation10 + $0x388] sm:$0xff]
    %v6373 = vld [vmem:[#allocation10 + $0x390] sm:$0xff]
    %v6374 = vld [vmem:[#allocation10 + $0x398] sm:$0xff]
    %v6375 = vld [vmem:[#allocation10 + $0x3a0] sm:$0xff]
    %v6376 = vld [vmem:[#allocation10 + $0x3a8] sm:$0xff]
    %v6377 = vld [vmem:[#allocation10 + $0x3b0] sm:$0xff]
    %v6378 = vld [vmem:[#allocation10 + $0x3b8] sm:$0xff]
    %v6379 = vld [vmem:[#allocation10 + $0x3c0] sm:$0xff]
    %v6380 = vld [vmem:[#allocation10 + $0x3c8] sm:$0xff]
    %v6381 = vld [vmem:[#allocation10 + $0x3d0] sm:$0xff]
    %v6382 = vld [vmem:[#allocation10 + $0x3d8] sm:$0xff]
    %v6383 = vld [vmem:[#allocation10 + $0x3e0] sm:$0xff]
    %v6384 = vld [vmem:[#allocation10 + $0x3e8] sm:$0xff]
    %v6385 = vld [vmem:[#allocation10 + $0x3f0] sm:$0xff]
    %v6386 = vld [vmem:[#allocation10 + $0x3f8] sm:$0xff]
    %v6387 = vld [vmem:[#allocation15 + $0xd] sm:$0xf]
    %v6389 = vlaneseq
    %v6390 = vshrl.u32 %v6389, 7
    %v6391 = vsub.s32 0, %v6390
    %v6392 = vrot.slane %v6387, %v6391
    %v6393 = vlaneseq
    %v6394 = vshrl.u32 %v6393, 7
    %v6395 = vsub.s32 1, %v6394
    %v6396 = vrot.slane %v6387, %v6395
    %v6397 = vlaneseq
    %v6398 = vshrl.u32 %v6397, 7
    %v6399 = vsub.s32 2, %v6398
    %v6400 = vrot.slane %v6387, %v6399
    %v6401 = vlaneseq
    %v6402 = vshrl.u32 %v6401, 7
    %v6403 = vsub.s32 3, %v6402
    %v6404 = vrot.slane %v6387, %v6403
    %v6537 = vunpack.c.l.b16 %v6259
    %v6538 = vunpack.c.h.b16 %v6259
    %v6539 = vunpack.c.l.b16 %v6260
    %v6540 = vunpack.c.h.b16 %v6260
    %v6541 = vunpack.c.l.b16 %v6261
    %v6542 = vunpack.c.h.b16 %v6261
    %v6543 = vunpack.c.l.b16 %v6262
    %v6544 = vunpack.c.h.b16 %v6262
    %v6545 = vunpack.c.l.b16 %v6263
    %v6546 = vunpack.c.h.b16 %v6263
    %v6547 = vunpack.c.l.b16 %v6264
    %v6548 = vunpack.c.h.b16 %v6264
    %v6549 = vunpack.c.l.b16 %v6265
    %v6550 = vunpack.c.h.b16 %v6265
    %v6551 = vunpack.c.l.b16 %v6266
    %v6552 = vunpack.c.h.b16 %v6266
    %v6553 = vunpack.c.l.b16 %v6267
    %v6554 = vunpack.c.h.b16 %v6267
    %v6555 = vunpack.c.l.b16 %v6268
    %v6556 = vunpack.c.h.b16 %v6268
    %v6557 = vunpack.c.l.b16 %v6269
    %v6558 = vunpack.c.h.b16 %v6269
    %v6559 = vunpack.c.l.b16 %v6270
    %v6560 = vunpack.c.h.b16 %v6270
    %v6561 = vunpack.c.l.b16 %v6271
    %v6562 = vunpack.c.h.b16 %v6271
    %v6563 = vunpack.c.l.b16 %v6272
    %v6564 = vunpack.c.h.b16 %v6272
    %v6565 = vunpack.c.l.b16 %v6273
    %v6566 = vunpack.c.h.b16 %v6273
    %v6567 = vunpack.c.l.b16 %v6274
    %v6568 = vunpack.c.h.b16 %v6274
    %v6569 = vunpack.c.l.b16 %v6275
    %v6570 = vunpack.c.h.b16 %v6275
    %v6571 = vunpack.c.l.b16 %v6276
    %v6572 = vunpack.c.h.b16 %v6276
    %v6573 = vunpack.c.l.b16 %v6277
    %v6574 = vunpack.c.h.b16 %v6277
    %v6575 = vunpack.c.l.b16 %v6278
    %v6576 = vunpack.c.h.b16 %v6278
    %v6577 = vunpack.c.l.b16 %v6279
    %v6578 = vunpack.c.h.b16 %v6279
    %v6579 = vunpack.c.l.b16 %v6280
    %v6580 = vunpack.c.h.b16 %v6280
    %v6581 = vunpack.c.l.b16 %v6281
    %v6582 = vunpack.c.h.b16 %v6281
    %v6583 = vunpack.c.l.b16 %v6282
    %v6584 = vunpack.c.h.b16 %v6282
    %v6585 = vunpack.c.l.b16 %v6283
    %v6586 = vunpack.c.h.b16 %v6283
    %v6587 = vunpack.c.l.b16 %v6284
    %v6588 = vunpack.c.h.b16 %v6284
    %v6589 = vunpack.c.l.b16 %v6285
    %v6590 = vunpack.c.h.b16 %v6285
    %v6591 = vunpack.c.l.b16 %v6286
    %v6592 = vunpack.c.h.b16 %v6286
    %v6593 = vunpack.c.l.b16 %v6287
    %v6594 = vunpack.c.h.b16 %v6287
    %v6595 = vunpack.c.l.b16 %v6288
    %v6596 = vunpack.c.h.b16 %v6288
    %v6597 = vunpack.c.l.b16 %v6289
    %v6598 = vunpack.c.h.b16 %v6289
    %v6599 = vunpack.c.l.b16 %v6290
    %v6600 = vunpack.c.h.b16 %v6290
    %v6601 = vunpack.c.l.b16 %v6291
    %v6602 = vunpack.c.h.b16 %v6291
    %v6603 = vunpack.c.l.b16 %v6292
    %v6604 = vunpack.c.h.b16 %v6292
    %v6605 = vunpack.c.l.b16 %v6293
    %v6606 = vunpack.c.h.b16 %v6293
    %v6607 = vunpack.c.l.b16 %v6294
    %v6608 = vunpack.c.h.b16 %v6294
    %v6609 = vunpack.c.l.b16 %v6295
    %v6610 = vunpack.c.h.b16 %v6295
    %v6611 = vunpack.c.l.b16 %v6296
    %v6612 = vunpack.c.h.b16 %v6296
    %v6613 = vunpack.c.l.b16 %v6297
    %v6614 = vunpack.c.h.b16 %v6297
    %v6615 = vunpack.c.l.b16 %v6298
    %v6616 = vunpack.c.h.b16 %v6298
    %v6617 = vunpack.c.l.b16 %v6299
    %v6618 = vunpack.c.h.b16 %v6299
    %v6619 = vunpack.c.l.b16 %v6300
    %v6620 = vunpack.c.h.b16 %v6300
    %v6621 = vunpack.c.l.b16 %v6301
    %v6622 = vunpack.c.h.b16 %v6301
    %v6623 = vunpack.c.l.b16 %v6302
    %v6624 = vunpack.c.h.b16 %v6302
    %v6625 = vunpack.c.l.b16 %v6303
    %v6626 = vunpack.c.h.b16 %v6303
    %v6627 = vunpack.c.l.b16 %v6304
    %v6628 = vunpack.c.h.b16 %v6304
    %v6629 = vunpack.c.l.b16 %v6305
    %v6630 = vunpack.c.h.b16 %v6305
    %v6631 = vunpack.c.l.b16 %v6306
    %v6632 = vunpack.c.h.b16 %v6306
    %v6633 = vunpack.c.l.b16 %v6307
    %v6634 = vunpack.c.h.b16 %v6307
    %v6635 = vunpack.c.l.b16 %v6308
    %v6636 = vunpack.c.h.b16 %v6308
    %v6637 = vunpack.c.l.b16 %v6309
    %v6638 = vunpack.c.h.b16 %v6309
    %v6639 = vunpack.c.l.b16 %v6310
    %v6640 = vunpack.c.h.b16 %v6310
    %v6641 = vunpack.c.l.b16 %v6311
    %v6642 = vunpack.c.h.b16 %v6311
    %v6643 = vunpack.c.l.b16 %v6312
    %v6644 = vunpack.c.h.b16 %v6312
    %v6645 = vunpack.c.l.b16 %v6313
    %v6646 = vunpack.c.h.b16 %v6313
    %v6647 = vunpack.c.l.b16 %v6314
    %v6648 = vunpack.c.h.b16 %v6314
    %v6649 = vunpack.c.l.b16 %v6315
    %v6650 = vunpack.c.h.b16 %v6315
    %v6651 = vunpack.c.l.b16 %v6316
    %v6652 = vunpack.c.h.b16 %v6316
    %v6653 = vunpack.c.l.b16 %v6317
    %v6654 = vunpack.c.h.b16 %v6317
    %v6655 = vunpack.c.l.b16 %v6318
    %v6656 = vunpack.c.h.b16 %v6318
    %v6657 = vunpack.c.l.b16 %v6319
    %v6658 = vunpack.c.h.b16 %v6319
    %v6659 = vunpack.c.l.b16 %v6320
    %v6660 = vunpack.c.h.b16 %v6320
    %v6661 = vunpack.c.l.b16 %v6321
    %v6662 = vunpack.c.h.b16 %v6321
    %v6663 = vunpack.c.l.b16 %v6322
    %v6664 = vunpack.c.h.b16 %v6322
    %v6665 = vunpack.c.l.b16 %v6323
    %v6666 = vunpack.c.h.b16 %v6323
    %v6667 = vunpack.c.l.b16 %v6324
    %v6668 = vunpack.c.h.b16 %v6324
    %v6669 = vunpack.c.l.b16 %v6325
    %v6670 = vunpack.c.h.b16 %v6325
    %v6671 = vunpack.c.l.b16 %v6326
    %v6672 = vunpack.c.h.b16 %v6326
    %v6673 = vunpack.c.l.b16 %v6327
    %v6674 = vunpack.c.h.b16 %v6327
    %v6675 = vunpack.c.l.b16 %v6328
    %v6676 = vunpack.c.h.b16 %v6328
    %v6677 = vunpack.c.l.b16 %v6329
    %v6678 = vunpack.c.h.b16 %v6329
    %v6679 = vunpack.c.l.b16 %v6330
    %v6680 = vunpack.c.h.b16 %v6330
    %v6681 = vunpack.c.l.b16 %v6331
    %v6682 = vunpack.c.h.b16 %v6331
    %v6683 = vunpack.c.l.b16 %v6332
    %v6684 = vunpack.c.h.b16 %v6332
    %v6685 = vunpack.c.l.b16 %v6333
    %v6686 = vunpack.c.h.b16 %v6333
    %v6687 = vunpack.c.l.b16 %v6334
    %v6688 = vunpack.c.h.b16 %v6334
    %v6689 = vunpack.c.l.b16 %v6335
    %v6690 = vunpack.c.h.b16 %v6335
    %v6691 = vunpack.c.l.b16 %v6336
    %v6692 = vunpack.c.h.b16 %v6336
    %v6693 = vunpack.c.l.b16 %v6337
    %v6694 = vunpack.c.h.b16 %v6337
    %v6695 = vunpack.c.l.b16 %v6338
    %v6696 = vunpack.c.h.b16 %v6338
    %v6697 = vunpack.c.l.b16 %v6339
    %v6698 = vunpack.c.h.b16 %v6339
    %v6699 = vunpack.c.l.b16 %v6340
    %v6700 = vunpack.c.h.b16 %v6340
    %v6701 = vunpack.c.l.b16 %v6341
    %v6702 = vunpack.c.h.b16 %v6341
    %v6703 = vunpack.c.l.b16 %v6342
    %v6704 = vunpack.c.h.b16 %v6342
    %v6705 = vunpack.c.l.b16 %v6343
    %v6706 = vunpack.c.h.b16 %v6343
    %v6707 = vunpack.c.l.b16 %v6344
    %v6708 = vunpack.c.h.b16 %v6344
    %v6709 = vunpack.c.l.b16 %v6345
    %v6710 = vunpack.c.h.b16 %v6345
    %v6711 = vunpack.c.l.b16 %v6346
    %v6712 = vunpack.c.h.b16 %v6346
    %v6713 = vunpack.c.l.b16 %v6347
    %v6714 = vunpack.c.h.b16 %v6347
    %v6715 = vunpack.c.l.b16 %v6348
    %v6716 = vunpack.c.h.b16 %v6348
    %v6717 = vunpack.c.l.b16 %v6349
    %v6718 = vunpack.c.h.b16 %v6349
    %v6719 = vunpack.c.l.b16 %v6350
    %v6720 = vunpack.c.h.b16 %v6350
    %v6721 = vunpack.c.l.b16 %v6351
    %v6722 = vunpack.c.h.b16 %v6351
    %v6723 = vunpack.c.l.b16 %v6352
    %v6724 = vunpack.c.h.b16 %v6352
    %v6725 = vunpack.c.l.b16 %v6353
    %v6726 = vunpack.c.h.b16 %v6353
    %v6727 = vunpack.c.l.b16 %v6354
    %v6728 = vunpack.c.h.b16 %v6354
    %v6729 = vunpack.c.l.b16 %v6355
    %v6730 = vunpack.c.h.b16 %v6355
    %v6731 = vunpack.c.l.b16 %v6356
    %v6732 = vunpack.c.h.b16 %v6356
    %v6733 = vunpack.c.l.b16 %v6357
    %v6734 = vunpack.c.h.b16 %v6357
    %v6735 = vunpack.c.l.b16 %v6358
    %v6736 = vunpack.c.h.b16 %v6358
    %v6737 = vunpack.c.l.b16 %v6359
    %v6738 = vunpack.c.h.b16 %v6359
    %v6739 = vunpack.c.l.b16 %v6360
    %v6740 = vunpack.c.h.b16 %v6360
    %v6741 = vunpack.c.l.b16 %v6361
    %v6742 = vunpack.c.h.b16 %v6361
    %v6743 = vunpack.c.l.b16 %v6362
    %v6744 = vunpack.c.h.b16 %v6362
    %v6745 = vunpack.c.l.b16 %v6363
    %v6746 = vunpack.c.h.b16 %v6363
    %v6747 = vunpack.c.l.b16 %v6364
    %v6748 = vunpack.c.h.b16 %v6364
    %v6749 = vunpack.c.l.b16 %v6365
    %v6750 = vunpack.c.h.b16 %v6365
    %v6751 = vunpack.c.l.b16 %v6366
    %v6752 = vunpack.c.h.b16 %v6366
    %v6753 = vunpack.c.l.b16 %v6367
    %v6754 = vunpack.c.h.b16 %v6367
    %v6755 = vunpack.c.l.b16 %v6368
    %v6756 = vunpack.c.h.b16 %v6368
    %v6757 = vunpack.c.l.b16 %v6369
    %v6758 = vunpack.c.h.b16 %v6369
    %v6759 = vunpack.c.l.b16 %v6370
    %v6760 = vunpack.c.h.b16 %v6370
    %v6761 = vunpack.c.l.b16 %v6371
    %v6762 = vunpack.c.h.b16 %v6371
    %v6763 = vunpack.c.l.b16 %v6372
    %v6764 = vunpack.c.h.b16 %v6372
    %v6765 = vunpack.c.l.b16 %v6373
    %v6766 = vunpack.c.h.b16 %v6373
    %v6767 = vunpack.c.l.b16 %v6374
    %v6768 = vunpack.c.h.b16 %v6374
    %v6769 = vunpack.c.l.b16 %v6375
    %v6770 = vunpack.c.h.b16 %v6375
    %v6771 = vunpack.c.l.b16 %v6376
    %v6772 = vunpack.c.h.b16 %v6376
    %v6773 = vunpack.c.l.b16 %v6377
    %v6774 = vunpack.c.h.b16 %v6377
    %v6775 = vunpack.c.l.b16 %v6378
    %v6776 = vunpack.c.h.b16 %v6378
    %v6777 = vunpack.c.l.b16 %v6379
    %v6778 = vunpack.c.h.b16 %v6379
    %v6779 = vunpack.c.l.b16 %v6380
    %v6780 = vunpack.c.h.b16 %v6380
    %v6781 = vunpack.c.l.b16 %v6381
    %v6782 = vunpack.c.h.b16 %v6381
    %v6783 = vunpack.c.l.b16 %v6382
    %v6784 = vunpack.c.h.b16 %v6382
    %v6785 = vunpack.c.l.b16 %v6383
    %v6786 = vunpack.c.h.b16 %v6383
    %v6787 = vunpack.c.l.b16 %v6384
    %v6788 = vunpack.c.h.b16 %v6384
    %v6789 = vunpack.c.l.b16 %v6385
    %v6790 = vunpack.c.h.b16 %v6385
    %v6791 = vunpack.c.l.b16 %v6386
    %v6792 = vunpack.c.h.b16 %v6386
    %v6793 = vpack.c.b16 %v6541, %v6537
    %v6794 = vpack.c.b16 %v6542, %v6538
    %v6795 = vpack.c.b16 %v6543, %v6539
    %v6796 = vpack.c.b16 %v6544, %v6540
    %v6797 = vpack.c.b16 %v6549, %v6545
    %v6798 = vpack.c.b16 %v6550, %v6546
    %v6799 = vpack.c.b16 %v6551, %v6547
    %v6800 = vpack.c.b16 %v6552, %v6548
    %v6801 = vpack.c.b16 %v6557, %v6553
    %v6802 = vpack.c.b16 %v6558, %v6554
    %v6803 = vpack.c.b16 %v6559, %v6555
    %v6804 = vpack.c.b16 %v6560, %v6556
    %v6805 = vpack.c.b16 %v6565, %v6561
    %v6806 = vpack.c.b16 %v6566, %v6562
    %v6807 = vpack.c.b16 %v6567, %v6563
    %v6808 = vpack.c.b16 %v6568, %v6564
    %v6809 = vpack.c.b16 %v6573, %v6569
    %v6810 = vpack.c.b16 %v6574, %v6570
    %v6811 = vpack.c.b16 %v6575, %v6571
    %v6812 = vpack.c.b16 %v6576, %v6572
    %v6813 = vpack.c.b16 %v6581, %v6577
    %v6814 = vpack.c.b16 %v6582, %v6578
    %v6815 = vpack.c.b16 %v6583, %v6579
    %v6816 = vpack.c.b16 %v6584, %v6580
    %v6817 = vpack.c.b16 %v6589, %v6585
    %v6818 = vpack.c.b16 %v6590, %v6586
    %v6819 = vpack.c.b16 %v6591, %v6587
    %v6820 = vpack.c.b16 %v6592, %v6588
    %v6821 = vpack.c.b16 %v6597, %v6593
    %v6822 = vpack.c.b16 %v6598, %v6594
    %v6823 = vpack.c.b16 %v6599, %v6595
    %v6824 = vpack.c.b16 %v6600, %v6596
    %v6825 = vpack.c.b16 %v6605, %v6601
    %v6826 = vpack.c.b16 %v6606, %v6602
    %v6827 = vpack.c.b16 %v6607, %v6603
    %v6828 = vpack.c.b16 %v6608, %v6604
    %v6829 = vpack.c.b16 %v6613, %v6609
    %v6830 = vpack.c.b16 %v6614, %v6610
    %v6831 = vpack.c.b16 %v6615, %v6611
    %v6832 = vpack.c.b16 %v6616, %v6612
    %v6833 = vpack.c.b16 %v6621, %v6617
    %v6834 = vpack.c.b16 %v6622, %v6618
    %v6835 = vpack.c.b16 %v6623, %v6619
    %v6836 = vpack.c.b16 %v6624, %v6620
    %v6837 = vpack.c.b16 %v6629, %v6625
    %v6838 = vpack.c.b16 %v6630, %v6626
    %v6839 = vpack.c.b16 %v6631, %v6627
    %v6840 = vpack.c.b16 %v6632, %v6628
    %v6841 = vpack.c.b16 %v6637, %v6633
    %v6842 = vpack.c.b16 %v6638, %v6634
    %v6843 = vpack.c.b16 %v6639, %v6635
    %v6844 = vpack.c.b16 %v6640, %v6636
    %v6845 = vpack.c.b16 %v6645, %v6641
    %v6846 = vpack.c.b16 %v6646, %v6642
    %v6847 = vpack.c.b16 %v6647, %v6643
    %v6848 = vpack.c.b16 %v6648, %v6644
    %v6849 = vpack.c.b16 %v6653, %v6649
    %v6850 = vpack.c.b16 %v6654, %v6650
    %v6851 = vpack.c.b16 %v6655, %v6651
    %v6852 = vpack.c.b16 %v6656, %v6652
    %v6853 = vpack.c.b16 %v6661, %v6657
    %v6854 = vpack.c.b16 %v6662, %v6658
    %v6855 = vpack.c.b16 %v6663, %v6659
    %v6856 = vpack.c.b16 %v6664, %v6660
    %v6857 = vpack.c.b16 %v6669, %v6665
    %v6858 = vpack.c.b16 %v6670, %v6666
    %v6859 = vpack.c.b16 %v6671, %v6667
    %v6860 = vpack.c.b16 %v6672, %v6668
    %v6861 = vpack.c.b16 %v6677, %v6673
    %v6862 = vpack.c.b16 %v6678, %v6674
    %v6863 = vpack.c.b16 %v6679, %v6675
    %v6864 = vpack.c.b16 %v6680, %v6676
    %v6865 = vpack.c.b16 %v6685, %v6681
    %v6866 = vpack.c.b16 %v6686, %v6682
    %v6867 = vpack.c.b16 %v6687, %v6683
    %v6868 = vpack.c.b16 %v6688, %v6684
    %v6869 = vpack.c.b16 %v6693, %v6689
    %v6870 = vpack.c.b16 %v6694, %v6690
    %v6871 = vpack.c.b16 %v6695, %v6691
    %v6872 = vpack.c.b16 %v6696, %v6692
    %v6873 = vpack.c.b16 %v6701, %v6697
    %v6874 = vpack.c.b16 %v6702, %v6698
    %v6875 = vpack.c.b16 %v6703, %v6699
    %v6876 = vpack.c.b16 %v6704, %v6700
    %v6877 = vpack.c.b16 %v6709, %v6705
    %v6878 = vpack.c.b16 %v6710, %v6706
    %v6879 = vpack.c.b16 %v6711, %v6707
    %v6880 = vpack.c.b16 %v6712, %v6708
    %v6881 = vpack.c.b16 %v6717, %v6713
    %v6882 = vpack.c.b16 %v6718, %v6714
    %v6883 = vpack.c.b16 %v6719, %v6715
    %v6884 = vpack.c.b16 %v6720, %v6716
    %v6885 = vpack.c.b16 %v6725, %v6721
    %v6886 = vpack.c.b16 %v6726, %v6722
    %v6887 = vpack.c.b16 %v6727, %v6723
    %v6888 = vpack.c.b16 %v6728, %v6724
    %v6889 = vpack.c.b16 %v6733, %v6729
    %v6890 = vpack.c.b16 %v6734, %v6730
    %v6891 = vpack.c.b16 %v6735, %v6731
    %v6892 = vpack.c.b16 %v6736, %v6732
    %v6893 = vpack.c.b16 %v6741, %v6737
    %v6894 = vpack.c.b16 %v6742, %v6738
    %v6895 = vpack.c.b16 %v6743, %v6739
    %v6896 = vpack.c.b16 %v6744, %v6740
    %v6897 = vpack.c.b16 %v6749, %v6745
    %v6898 = vpack.c.b16 %v6750, %v6746
    %v6899 = vpack.c.b16 %v6751, %v6747
    %v6900 = vpack.c.b16 %v6752, %v6748
    %v6901 = vpack.c.b16 %v6757, %v6753
    %v6902 = vpack.c.b16 %v6758, %v6754
    %v6903 = vpack.c.b16 %v6759, %v6755
    %v6904 = vpack.c.b16 %v6760, %v6756
    %v6905 = vpack.c.b16 %v6765, %v6761
    %v6906 = vpack.c.b16 %v6766, %v6762
    %v6907 = vpack.c.b16 %v6767, %v6763
    %v6908 = vpack.c.b16 %v6768, %v6764
    %v6909 = vpack.c.b16 %v6773, %v6769
    %v6910 = vpack.c.b16 %v6774, %v6770
    %v6911 = vpack.c.b16 %v6775, %v6771
    %v6912 = vpack.c.b16 %v6776, %v6772
    %v6913 = vpack.c.b16 %v6781, %v6777
    %v6914 = vpack.c.b16 %v6782, %v6778
    %v6915 = vpack.c.b16 %v6783, %v6779
    %v6916 = vpack.c.b16 %v6784, %v6780
    %v6917 = vpack.c.b16 %v6789, %v6785
    %v6918 = vpack.c.b16 %v6790, %v6786
    %v6919 = vpack.c.b16 %v6791, %v6787
    %v6920 = vpack.c.b16 %v6792, %v6788
    %7049 = vmatprep.subr.bf16.mxu0 %v6794
    %7050 = vmatpush1.bf16.msra.mxu0 %v6793
    %7051 = vmatprep.subr.bf16.mxu0 %v6798
    %7052 = vmatpush1.bf16.msra.mxu0 %v6797
    %7053 = vmatprep.subr.bf16.mxu0 %v6802
    %7054 = vmatpush1.bf16.msra.mxu0 %v6801
    %7055 = vmatprep.subr.bf16.mxu0 %v6806
    %7056 = vmatpush1.bf16.msra.mxu0 %v6805
    %7057 = vmatprep.subr.bf16.mxu0 %v6810
    %7058 = vmatpush1.bf16.msra.mxu0 %v6809
    %7059 = vmatprep.subr.bf16.mxu0 %v6814
    %7060 = vmatpush1.bf16.msra.mxu0 %v6813
    %7061 = vmatprep.subr.bf16.mxu0 %v6818
    %7062 = vmatpush1.bf16.msra.mxu0 %v6817
    %7063 = vmatprep.subr.bf16.mxu0 %v6822
    %7064 = vmatpush1.bf16.msra.mxu0 %v6821
    %7065 = vmatprep.subr.bf16.mxu0 %v6826
    %7066 = vmatpush1.bf16.msra.mxu0 %v6825
    %7067 = vmatprep.subr.bf16.mxu0 %v6830
    %7068 = vmatpush1.bf16.msra.mxu0 %v6829
    %7069 = vmatprep.subr.bf16.mxu0 %v6834
    %7070 = vmatpush1.bf16.msra.mxu0 %v6833
    %7071 = vmatprep.subr.bf16.mxu0 %v6838
    %7072 = vmatpush1.bf16.msra.mxu0 %v6837
    %7073 = vmatprep.subr.bf16.mxu0 %v6842
    %7074 = vmatpush1.bf16.msra.mxu0 %v6841
    %7075 = vmatprep.subr.bf16.mxu0 %v6846
    %7076 = vmatpush1.bf16.msra.mxu0 %v6845
    %7077 = vmatprep.subr.bf16.mxu0 %v6850
    %7078 = vmatpush1.bf16.msra.mxu0 %v6849
    %7079 = vmatprep.subr.bf16.mxu0 %v6854
    %7080 = vmatpush1.bf16.msra.mxu0 %v6853
    %7081 = vmatprep.mubr.bf16.mxu0 %v6256
    %7082 = vmatmul.mubr.bf16.gmra.mrb[0].mxu0 %v6255
    %v7083 = vpop.f32.mrb[0].mxu0
    %v7084 = vadd.f32 %v6392, %v7083
    %v7085 = vpop.f32.mrb[0].mxu0
    %v7086 = vadd.f32 %v6396, %v7085
    %v7087 = vpop.f32.mrb[0].mxu0
    %v7088 = vpop.f32.mrb[0].mxu0
    %7089 = vdwg.mxu0
    %7090 = vmatprep.subr.bf16.mxu0 %v6858
    %7091 = vmatpush1.bf16.msra.mxu0 %v6857
    %7092 = vmatprep.subr.bf16.mxu0 %v6862
    %7093 = vmatpush1.bf16.msra.mxu0 %v6861
    %7094 = vmatprep.subr.bf16.mxu0 %v6866
    %7095 = vmatpush1.bf16.msra.mxu0 %v6865
    %7096 = vmatprep.subr.bf16.mxu0 %v6870
    %7097 = vmatpush1.bf16.msra.mxu0 %v6869
    %7098 = vmatprep.subr.bf16.mxu0 %v6874
    %7099 = vmatpush1.bf16.msra.mxu0 %v6873
    %7100 = vmatprep.subr.bf16.mxu0 %v6878
    %7101 = vmatpush1.bf16.msra.mxu0 %v6877
    %7102 = vmatprep.subr.bf16.mxu0 %v6882
    %7103 = vmatpush1.bf16.msra.mxu0 %v6881
    %7104 = vmatprep.subr.bf16.mxu0 %v6886
    %7105 = vmatpush1.bf16.msra.mxu0 %v6885
    %7106 = vmatprep.subr.bf16.mxu0 %v6890
    %7107 = vmatpush1.bf16.msra.mxu0 %v6889
    %7108 = vmatprep.subr.bf16.mxu0 %v6894
    %7109 = vmatpush1.bf16.msra.mxu0 %v6893
    %7110 = vmatprep.subr.bf16.mxu0 %v6898
    %7111 = vmatpush1.bf16.msra.mxu0 %v6897
    %7112 = vmatprep.subr.bf16.mxu0 %v6902
    %7113 = vmatpush1.bf16.msra.mxu0 %v6901
    %7114 = vmatprep.subr.bf16.mxu0 %v6906
    %7115 = vmatpush1.bf16.msra.mxu0 %v6905
    %7116 = vmatprep.subr.bf16.mxu0 %v6910
    %7117 = vmatpush1.bf16.msra.mxu0 %v6909
    %7118 = vmatprep.subr.bf16.mxu0 %v6914
    %7119 = vmatpush1.bf16.msra.mxu0 %v6913
    %7120 = vmatprep.subr.bf16.mxu0 %v6918
    %7121 = vmatpush1.bf16.msra.mxu0 %v6917
    %7122 = vmatprep.mubr.bf16.mxu0 %v6258
    %7123 = vmatmul.mubr.bf16.gmra.mrb[0].mxu0 %v6257
    %v7124 = vpop.f32.mrb[0].mxu0
    %v7125 = vadd.f32 %v7084, %v7124
    %v7126 = vpop.f32.mrb[0].mxu0
    %v7127 = vadd.f32 %v7086, %v7126
    %v7128 = vpop.f32.mrb[0].mxu0
    %v7129 = vpop.f32.mrb[0].mxu0
    %7130 = vdwg.mxu0
    %7131 = vmatprep.subr.bf16.mxu0 %v6796
    %7132 = vmatpush1.bf16.msra.mxu0 %v6795
    %7133 = vmatprep.subr.bf16.mxu0 %v6800
    %7134 = vmatpush1.bf16.msra.mxu0 %v6799
    %7135 = vmatprep.subr.bf16.mxu0 %v6804
    %7136 = vmatpush1.bf16.msra.mxu0 %v6803
    %7137 = vmatprep.subr.bf16.mxu0 %v6808
    %7138 = vmatpush1.bf16.msra.mxu0 %v6807
    %7139 = vmatprep.subr.bf16.mxu0 %v6812
    %7140 = vmatpush1.bf16.msra.mxu0 %v6811
    %7141 = vmatprep.subr.bf16.mxu0 %v6816
    %7142 = vmatpush1.bf16.msra.mxu0 %v6815
    %7143 = vmatprep.subr.bf16.mxu0 %v6820
    %7144 = vmatpush1.bf16.msra.mxu0 %v6819
    %7145 = vmatprep.subr.bf16.mxu0 %v6824
    %7146 = vmatpush1.bf16.msra.mxu0 %v6823
    %7147 = vmatprep.subr.bf16.mxu0 %v6828
    %7148 = vmatpush1.bf16.msra.mxu0 %v6827
    %7149 = vmatprep.subr.bf16.mxu0 %v6832
    %7150 = vmatpush1.bf16.msra.mxu0 %v6831
    %7151 = vmatprep.subr.bf16.mxu0 %v6836
    %7152 = vmatpush1.bf16.msra.mxu0 %v6835
    %7153 = vmatprep.subr.bf16.mxu0 %v6840
    %7154 = vmatpush1.bf16.msra.mxu0 %v6839
    %7155 = vmatprep.subr.bf16.mxu0 %v6844
    %7156 = vmatpush1.bf16.msra.mxu0 %v6843
    %7157 = vmatprep.subr.bf16.mxu0 %v6848
    %7158 = vmatpush1.bf16.msra.mxu0 %v6847
    %7159 = vmatprep.subr.bf16.mxu0 %v6852
    %7160 = vmatpush1.bf16.msra.mxu0 %v6851
    %7161 = vmatprep.subr.bf16.mxu0 %v6856
    %7162 = vmatpush1.bf16.msra.mxu0 %v6855
    %7163 = vmatprep.mubr.bf16.mxu0 %v6256
    %7164 = vmatmul.mubr.bf16.gmra.mrb[0].mxu0 %v6255
    %v7165 = vpop.f32.mrb[0].mxu0
    %v7166 = vadd.f32 %v6400, %v7165
    %v7167 = vpop.f32.mrb[0].mxu0
    %v7168 = vadd.f32 %v6404, %v7167
    %v7169 = vpop.f32.mrb[0].mxu0
    %v7170 = vpop.f32.mrb[0].mxu0
    %7171 = vdwg.mxu0
    %7172 = vmatprep.subr.bf16.mxu0 %v6860
    %7173 = vmatpush1.bf16.msra.mxu0 %v6859
    %7174 = vmatprep.subr.bf16.mxu0 %v6864
    %7175 = vmatpush1.bf16.msra.mxu0 %v6863
    %7176 = vmatprep.subr.bf16.mxu0 %v6868
    %7177 = vmatpush1.bf16.msra.mxu0 %v6867
    %7178 = vmatprep.subr.bf16.mxu0 %v6872
    %7179 = vmatpush1.bf16.msra.mxu0 %v6871
    %7180 = vmatprep.subr.bf16.mxu0 %v6876
    %7181 = vmatpush1.bf16.msra.mxu0 %v6875
    %7182 = vmatprep.subr.bf16.mxu0 %v6880
    %7183 = vmatpush1.bf16.msra.mxu0 %v6879
    %7184 = vmatprep.subr.bf16.mxu0 %v6884
    %7185 = vmatpush1.bf16.msra.mxu0 %v6883
    %7186 = vmatprep.subr.bf16.mxu0 %v6888
    %7187 = vmatpush1.bf16.msra.mxu0 %v6887
    %7188 = vmatprep.subr.bf16.mxu0 %v6892
    %7189 = vmatpush1.bf16.msra.mxu0 %v6891
    %7190 = vmatprep.subr.bf16.mxu0 %v6896
    %7191 = vmatpush1.bf16.msra.mxu0 %v6895
    %7192 = vmatprep.subr.bf16.mxu0 %v6900
    %7193 = vmatpush1.bf16.msra.mxu0 %v6899
    %7194 = vmatprep.subr.bf16.mxu0 %v6904
    %7195 = vmatpush1.bf16.msra.mxu0 %v6903
    %7196 = vmatprep.subr.bf16.mxu0 %v6908
    %7197 = vmatpush1.bf16.msra.mxu0 %v6907
    %7198 = vmatprep.subr.bf16.mxu0 %v6912
    %7199 = vmatpush1.bf16.msra.mxu0 %v6911
    %7200 = vmatprep.subr.bf16.mxu0 %v6916
    %7201 = vmatpush1.bf16.msra.mxu0 %v6915
    %7202 = vmatprep.subr.bf16.mxu0 %v6920
    %7203 = vmatpush1.bf16.msra.mxu0 %v6919
    %7204 = vmatprep.mubr.bf16.mxu0 %v6258
    %7205 = vmatmul.mubr.bf16.gmra.mrb[0].mxu0 %v6257
    %v7206 = vpop.f32.mrb[0].mxu0
    %v7207 = vadd.f32 %v7166, %v7206
    %v7208 = vpop.f32.mrb[0].mxu0
    %v7209 = vadd.f32 %v7168, %v7208
    %v7210 = vpop.f32.mrb[0].mxu0
    %v7211 = vpop.f32.mrb[0].mxu0
    %7212 = vdwg.mxu0
    %v7213 = vmul.f32 %v7125, 0.5
    %v7214 = vmul.f32 %v7127, 0.5
    %v7215 = vmul.f32 %v7207, 0.5
    %v7216 = vmul.f32 %v7209, 0.5
    %v7217 = vtanh.pop %v7213
    %v7218 = vtanh.pop %v7214
    %v7219 = vtanh.pop %v7215
    %v7220 = vtanh.pop %v7216
    %v7221 = vmul.f32 %v7217, 0.5
    %v7222 = vmul.f32 %v7218, 0.5
    %v7223 = vmul.f32 %v7219, 0.5
    %v7224 = vmul.f32 %v7220, 0.5
    %v7225 = vadd.f32 %v7221, 0.5
    %v7226 = vadd.f32 %v7222, 0.5
    %v7227 = vadd.f32 %v7223, 0.5
    %v7228 = vadd.f32 %v7224, 0.5
    %v7229 = vmul.f32 %v7125, %v7225
    %v7230 = vmul.f32 %v7127, %v7226
    %v7231 = vmul.f32 %v7207, %v7227
    %v7232 = vmul.f32 %v7209, %v7228
    %v7233 = vpack.c.bf16 %v7229, %v7229
    %v7234 = vpack.c.bf16 %v7230, %v7230
    %v7235 = vpack.c.bf16 %v7231, %v7231
    %v7236 = vpack.c.bf16 %v7232, %v7232
    %v7237 = vld [vmem:[#allocation12] sm:$0xff]
    %v7238 = vld [vmem:[#allocation12 + $0x8] sm:$0xff]
    %v7239 = vld [vmem:[#allocation12 + $0x10] sm:$0xff]
    %v7240 = vld [vmem:[#allocation12 + $0x18] sm:$0xff]
    %v7241 = vld [vmem:[#allocation12 + $0x20] sm:$0xff]
    %v7242 = vld [vmem:[#allocation12 + $0x28] sm:$0xff]
    %v7243 = vld [vmem:[#allocation12 + $0x30] sm:$0xff]
    %v7244 = vld [vmem:[#allocation12 + $0x38] sm:$0xff]
    %v7245 = vld [vmem:[#allocation12 + $0x40] sm:$0xff]
    %v7246 = vld [vmem:[#allocation12 + $0x48] sm:$0xff]
    %v7247 = vld [vmem:[#allocation12 + $0x50] sm:$0xff]
    %v7248 = vld [vmem:[#allocation12 + $0x58] sm:$0xff]
    %v7249 = vld [vmem:[#allocation12 + $0x60] sm:$0xff]
    %v7250 = vld [vmem:[#allocation12 + $0x68] sm:$0xff]
    %v7251 = vld [vmem:[#allocation12 + $0x70] sm:$0xff]
    %v7252 = vld [vmem:[#allocation12 + $0x78] sm:$0xff]
    %v7253 = vld [vmem:[#allocation12 + $0x80] sm:$0xff]
    %v7254 = vld [vmem:[#allocation12 + $0x88] sm:$0xff]
    %v7255 = vld [vmem:[#allocation12 + $0x90] sm:$0xff]
    %v7256 = vld [vmem:[#allocation12 + $0x98] sm:$0xff]
    %v7257 = vld [vmem:[#allocation12 + $0xa0] sm:$0xff]
    %v7258 = vld [vmem:[#allocation12 + $0xa8] sm:$0xff]
    %v7259 = vld [vmem:[#allocation12 + $0xb0] sm:$0xff]
    %v7260 = vld [vmem:[#allocation12 + $0xb8] sm:$0xff]
    %v7261 = vld [vmem:[#allocation12 + $0xc0] sm:$0xff]
    %v7262 = vld [vmem:[#allocation12 + $0xc8] sm:$0xff]
    %v7263 = vld [vmem:[#allocation12 + $0xd0] sm:$0xff]
    %v7264 = vld [vmem:[#allocation12 + $0xd8] sm:$0xff]
    %v7265 = vld [vmem:[#allocation12 + $0xe0] sm:$0xff]
    %v7266 = vld [vmem:[#allocation12 + $0xe8] sm:$0xff]
    %v7267 = vld [vmem:[#allocation12 + $0xf0] sm:$0xff]
    %v7268 = vld [vmem:[#allocation12 + $0xf8] sm:$0xff]
    %v7269 = vld [vmem:[#allocation12 + $0x100] sm:$0xff]
    %v7270 = vld [vmem:[#allocation12 + $0x108] sm:$0xff]
    %v7271 = vld [vmem:[#allocation12 + $0x110] sm:$0xff]
    %v7272 = vld [vmem:[#allocation12 + $0x118] sm:$0xff]
    %v7273 = vld [vmem:[#allocation12 + $0x120] sm:$0xff]
    %v7274 = vld [vmem:[#allocation12 + $0x128] sm:$0xff]
    %v7275 = vld [vmem:[#allocation12 + $0x130] sm:$0xff]
    %v7276 = vld [vmem:[#allocation12 + $0x138] sm:$0xff]
    %v7277 = vld [vmem:[#allocation12 + $0x140] sm:$0xff]
    %v7278 = vld [vmem:[#allocation12 + $0x148] sm:$0xff]
    %v7279 = vld [vmem:[#allocation12 + $0x150] sm:$0xff]
    %v7280 = vld [vmem:[#allocation12 + $0x158] sm:$0xff]
    %v7281 = vld [vmem:[#allocation12 + $0x160] sm:$0xff]
    %v7282 = vld [vmem:[#allocation12 + $0x168] sm:$0xff]
    %v7283 = vld [vmem:[#allocation12 + $0x170] sm:$0xff]
    %v7284 = vld [vmem:[#allocation12 + $0x178] sm:$0xff]
    %v7285 = vld [vmem:[#allocation12 + $0x180] sm:$0xff]
    %v7286 = vld [vmem:[#allocation12 + $0x188] sm:$0xff]
    %v7287 = vld [vmem:[#allocation12 + $0x190] sm:$0xff]
    %v7288 = vld [vmem:[#allocation12 + $0x198] sm:$0xff]
    %v7289 = vld [vmem:[#allocation12 + $0x1a0] sm:$0xff]
    %v7290 = vld [vmem:[#allocation12 + $0x1a8] sm:$0xff]
    %v7291 = vld [vmem:[#allocation12 + $0x1b0] sm:$0xff]
    %v7292 = vld [vmem:[#allocation12 + $0x1b8] sm:$0xff]
    %v7293 = vld [vmem:[#allocation12 + $0x1c0] sm:$0xff]
    %v7294 = vld [vmem:[#allocation12 + $0x1c8] sm:$0xff]
    %v7295 = vld [vmem:[#allocation12 + $0x1d0] sm:$0xff]
    %v7296 = vld [vmem:[#allocation12 + $0x1d8] sm:$0xff]
    %v7297 = vld [vmem:[#allocation12 + $0x1e0] sm:$0xff]
    %v7298 = vld [vmem:[#allocation12 + $0x1e8] sm:$0xff]
    %v7299 = vld [vmem:[#allocation12 + $0x1f0] sm:$0xff]
    %v7300 = vld [vmem:[#allocation12 + $0x1f8] sm:$0xff]
    %v7301 = vld [vmem:[#allocation12 + $0x200] sm:$0xff]
    %v7302 = vld [vmem:[#allocation12 + $0x208] sm:$0xff]
    %v7303 = vld [vmem:[#allocation12 + $0x210] sm:$0xff]
    %v7304 = vld [vmem:[#allocation12 + $0x218] sm:$0xff]
    %v7305 = vld [vmem:[#allocation12 + $0x220] sm:$0xff]
    %v7306 = vld [vmem:[#allocation12 + $0x228] sm:$0xff]
    %v7307 = vld [vmem:[#allocation12 + $0x230] sm:$0xff]
    %v7308 = vld [vmem:[#allocation12 + $0x238] sm:$0xff]
    %v7309 = vld [vmem:[#allocation12 + $0x240] sm:$0xff]
    %v7310 = vld [vmem:[#allocation12 + $0x248] sm:$0xff]
    %v7311 = vld [vmem:[#allocation12 + $0x250] sm:$0xff]
    %v7312 = vld [vmem:[#allocation12 + $0x258] sm:$0xff]
    %v7313 = vld [vmem:[#allocation12 + $0x260] sm:$0xff]
    %v7314 = vld [vmem:[#allocation12 + $0x268] sm:$0xff]
    %v7315 = vld [vmem:[#allocation12 + $0x270] sm:$0xff]
    %v7316 = vld [vmem:[#allocation12 + $0x278] sm:$0xff]
    %v7317 = vld [vmem:[#allocation12 + $0x280] sm:$0xff]
    %v7318 = vld [vmem:[#allocation12 + $0x288] sm:$0xff]
    %v7319 = vld [vmem:[#allocation12 + $0x290] sm:$0xff]
    %v7320 = vld [vmem:[#allocation12 + $0x298] sm:$0xff]
    %v7321 = vld [vmem:[#allocation12 + $0x2a0] sm:$0xff]
    %v7322 = vld [vmem:[#allocation12 + $0x2a8] sm:$0xff]
    %v7323 = vld [vmem:[#allocation12 + $0x2b0] sm:$0xff]
    %v7324 = vld [vmem:[#allocation12 + $0x2b8] sm:$0xff]
    %v7325 = vld [vmem:[#allocation12 + $0x2c0] sm:$0xff]
    %v7326 = vld [vmem:[#allocation12 + $0x2c8] sm:$0xff]
    %v7327 = vld [vmem:[#allocation12 + $0x2d0] sm:$0xff]
    %v7328 = vld [vmem:[#allocation12 + $0x2d8] sm:$0xff]
    %v7329 = vld [vmem:[#allocation12 + $0x2e0] sm:$0xff]
    %v7330 = vld [vmem:[#allocation12 + $0x2e8] sm:$0xff]
    %v7331 = vld [vmem:[#allocation12 + $0x2f0] sm:$0xff]
    %v7332 = vld [vmem:[#allocation12 + $0x2f8] sm:$0xff]
    %v7333 = vld [vmem:[#allocation12 + $0x300] sm:$0xff]
    %v7334 = vld [vmem:[#allocation12 + $0x308] sm:$0xff]
    %v7335 = vld [vmem:[#allocation12 + $0x310] sm:$0xff]
    %v7336 = vld [vmem:[#allocation12 + $0x318] sm:$0xff]
    %v7337 = vld [vmem:[#allocation12 + $0x320] sm:$0xff]
    %v7338 = vld [vmem:[#allocation12 + $0x328] sm:$0xff]
    %v7339 = vld [vmem:[#allocation12 + $0x330] sm:$0xff]
    %v7340 = vld [vmem:[#allocation12 + $0x338] sm:$0xff]
    %v7341 = vld [vmem:[#allocation12 + $0x340] sm:$0xff]
    %v7342 = vld [vmem:[#allocation12 + $0x348] sm:$0xff]
    %v7343 = vld [vmem:[#allocation12 + $0x350] sm:$0xff]
    %v7344 = vld [vmem:[#allocation12 + $0x358] sm:$0xff]
    %v7345 = vld [vmem:[#allocation12 + $0x360] sm:$0xff]
    %v7346 = vld [vmem:[#allocation12 + $0x368] sm:$0xff]
    %v7347 = vld [vmem:[#allocation12 + $0x370] sm:$0xff]
    %v7348 = vld [vmem:[#allocation12 + $0x378] sm:$0xff]
    %v7349 = vld [vmem:[#allocation12 + $0x380] sm:$0xff]
    %v7350 = vld [vmem:[#allocation12 + $0x388] sm:$0xff]
    %v7351 = vld [vmem:[#allocation12 + $0x390] sm:$0xff]
    %v7352 = vld [vmem:[#allocation12 + $0x398] sm:$0xff]
    %v7353 = vld [vmem:[#allocation12 + $0x3a0] sm:$0xff]
    %v7354 = vld [vmem:[#allocation12 + $0x3a8] sm:$0xff]
    %v7355 = vld [vmem:[#allocation12 + $0x3b0] sm:$0xff]
    %v7356 = vld [vmem:[#allocation12 + $0x3b8] sm:$0xff]
    %v7357 = vld [vmem:[#allocation12 + $0x3c0] sm:$0xff]
    %v7358 = vld [vmem:[#allocation12 + $0x3c8] sm:$0xff]
    %v7359 = vld [vmem:[#allocation12 + $0x3d0] sm:$0xff]
    %v7360 = vld [vmem:[#allocation12 + $0x3d8] sm:$0xff]
    %v7361 = vld [vmem:[#allocation12 + $0x3e0] sm:$0xff]
    %v7362 = vld [vmem:[#allocation12 + $0x3e8] sm:$0xff]
    %v7363 = vld [vmem:[#allocation12 + $0x3f0] sm:$0xff]
    %v7364 = vld [vmem:[#allocation12 + $0x3f8] sm:$0xff]
    %v7365 = vld [vmem:[#allocation15 + $0x11] sm:$0xf]
    %v7367 = vlaneseq
    %v7368 = vshrl.u32 %v7367, 7
    %v7369 = vsub.s32 0, %v7368
    %v7370 = vrot.slane %v7365, %v7369
    %v7371 = vlaneseq
    %v7372 = vshrl.u32 %v7371, 7
    %v7373 = vsub.s32 1, %v7372
    %v7374 = vrot.slane %v7365, %v7373
    %v7375 = vlaneseq
    %v7376 = vshrl.u32 %v7375, 7
    %v7377 = vsub.s32 2, %v7376
    %v7378 = vrot.slane %v7365, %v7377
    %v7379 = vlaneseq
    %v7380 = vshrl.u32 %v7379, 7
    %v7381 = vsub.s32 3, %v7380
    %v7382 = vrot.slane %v7365, %v7381
    %v7515 = vunpack.c.l.b16 %v7237
    %v7516 = vunpack.c.h.b16 %v7237
    %v7517 = vunpack.c.l.b16 %v7238
    %v7518 = vunpack.c.h.b16 %v7238
    %v7519 = vunpack.c.l.b16 %v7239
    %v7520 = vunpack.c.h.b16 %v7239
    %v7521 = vunpack.c.l.b16 %v7240
    %v7522 = vunpack.c.h.b16 %v7240
    %v7523 = vunpack.c.l.b16 %v7241
    %v7524 = vunpack.c.h.b16 %v7241
    %v7525 = vunpack.c.l.b16 %v7242
    %v7526 = vunpack.c.h.b16 %v7242
    %v7527 = vunpack.c.l.b16 %v7243
    %v7528 = vunpack.c.h.b16 %v7243
    %v7529 = vunpack.c.l.b16 %v7244
    %v7530 = vunpack.c.h.b16 %v7244
    %v7531 = vunpack.c.l.b16 %v7245
    %v7532 = vunpack.c.h.b16 %v7245
    %v7533 = vunpack.c.l.b16 %v7246
    %v7534 = vunpack.c.h.b16 %v7246
    %v7535 = vunpack.c.l.b16 %v7247
    %v7536 = vunpack.c.h.b16 %v7247
    %v7537 = vunpack.c.l.b16 %v7248
    %v7538 = vunpack.c.h.b16 %v7248
    %v7539 = vunpack.c.l.b16 %v7249
    %v7540 = vunpack.c.h.b16 %v7249
    %v7541 = vunpack.c.l.b16 %v7250
    %v7542 = vunpack.c.h.b16 %v7250
    %v7543 = vunpack.c.l.b16 %v7251
    %v7544 = vunpack.c.h.b16 %v7251
    %v7545 = vunpack.c.l.b16 %v7252
    %v7546 = vunpack.c.h.b16 %v7252
    %v7547 = vunpack.c.l.b16 %v7253
    %v7548 = vunpack.c.h.b16 %v7253
    %v7549 = vunpack.c.l.b16 %v7254
    %v7550 = vunpack.c.h.b16 %v7254
    %v7551 = vunpack.c.l.b16 %v7255
    %v7552 = vunpack.c.h.b16 %v7255
    %v7553 = vunpack.c.l.b16 %v7256
    %v7554 = vunpack.c.h.b16 %v7256
    %v7555 = vunpack.c.l.b16 %v7257
    %v7556 = vunpack.c.h.b16 %v7257
    %v7557 = vunpack.c.l.b16 %v7258
    %v7558 = vunpack.c.h.b16 %v7258
    %v7559 = vunpack.c.l.b16 %v7259
    %v7560 = vunpack.c.h.b16 %v7259
    %v7561 = vunpack.c.l.b16 %v7260
    %v7562 = vunpack.c.h.b16 %v7260
    %v7563 = vunpack.c.l.b16 %v7261
    %v7564 = vunpack.c.h.b16 %v7261
    %v7565 = vunpack.c.l.b16 %v7262
    %v7566 = vunpack.c.h.b16 %v7262
    %v7567 = vunpack.c.l.b16 %v7263
    %v7568 = vunpack.c.h.b16 %v7263
    %v7569 = vunpack.c.l.b16 %v7264
    %v7570 = vunpack.c.h.b16 %v7264
    %v7571 = vunpack.c.l.b16 %v7265
    %v7572 = vunpack.c.h.b16 %v7265
    %v7573 = vunpack.c.l.b16 %v7266
    %v7574 = vunpack.c.h.b16 %v7266
    %v7575 = vunpack.c.l.b16 %v7267
    %v7576 = vunpack.c.h.b16 %v7267
    %v7577 = vunpack.c.l.b16 %v7268
    %v7578 = vunpack.c.h.b16 %v7268
    %v7579 = vunpack.c.l.b16 %v7269
    %v7580 = vunpack.c.h.b16 %v7269
    %v7581 = vunpack.c.l.b16 %v7270
    %v7582 = vunpack.c.h.b16 %v7270
    %v7583 = vunpack.c.l.b16 %v7271
    %v7584 = vunpack.c.h.b16 %v7271
    %v7585 = vunpack.c.l.b16 %v7272
    %v7586 = vunpack.c.h.b16 %v7272
    %v7587 = vunpack.c.l.b16 %v7273
    %v7588 = vunpack.c.h.b16 %v7273
    %v7589 = vunpack.c.l.b16 %v7274
    %v7590 = vunpack.c.h.b16 %v7274
    %v7591 = vunpack.c.l.b16 %v7275
    %v7592 = vunpack.c.h.b16 %v7275
    %v7593 = vunpack.c.l.b16 %v7276
    %v7594 = vunpack.c.h.b16 %v7276
    %v7595 = vunpack.c.l.b16 %v7277
    %v7596 = vunpack.c.h.b16 %v7277
    %v7597 = vunpack.c.l.b16 %v7278
    %v7598 = vunpack.c.h.b16 %v7278
    %v7599 = vunpack.c.l.b16 %v7279
    %v7600 = vunpack.c.h.b16 %v7279
    %v7601 = vunpack.c.l.b16 %v7280
    %v7602 = vunpack.c.h.b16 %v7280
    %v7603 = vunpack.c.l.b16 %v7281
    %v7604 = vunpack.c.h.b16 %v7281
    %v7605 = vunpack.c.l.b16 %v7282
    %v7606 = vunpack.c.h.b16 %v7282
    %v7607 = vunpack.c.l.b16 %v7283
    %v7608 = vunpack.c.h.b16 %v7283
    %v7609 = vunpack.c.l.b16 %v7284
    %v7610 = vunpack.c.h.b16 %v7284
    %v7611 = vunpack.c.l.b16 %v7285
    %v7612 = vunpack.c.h.b16 %v7285
    %v7613 = vunpack.c.l.b16 %v7286
    %v7614 = vunpack.c.h.b16 %v7286
    %v7615 = vunpack.c.l.b16 %v7287
    %v7616 = vunpack.c.h.b16 %v7287
    %v7617 = vunpack.c.l.b16 %v7288
    %v7618 = vunpack.c.h.b16 %v7288
    %v7619 = vunpack.c.l.b16 %v7289
    %v7620 = vunpack.c.h.b16 %v7289
    %v7621 = vunpack.c.l.b16 %v7290
    %v7622 = vunpack.c.h.b16 %v7290
    %v7623 = vunpack.c.l.b16 %v7291
    %v7624 = vunpack.c.h.b16 %v7291
    %v7625 = vunpack.c.l.b16 %v7292
    %v7626 = vunpack.c.h.b16 %v7292
    %v7627 = vunpack.c.l.b16 %v7293
    %v7628 = vunpack.c.h.b16 %v7293
    %v7629 = vunpack.c.l.b16 %v7294
    %v7630 = vunpack.c.h.b16 %v7294
    %v7631 = vunpack.c.l.b16 %v7295
    %v7632 = vunpack.c.h.b16 %v7295
    %v7633 = vunpack.c.l.b16 %v7296
    %v7634 = vunpack.c.h.b16 %v7296
    %v7635 = vunpack.c.l.b16 %v7297
    %v7636 = vunpack.c.h.b16 %v7297
    %v7637 = vunpack.c.l.b16 %v7298
    %v7638 = vunpack.c.h.b16 %v7298
    %v7639 = vunpack.c.l.b16 %v7299
    %v7640 = vunpack.c.h.b16 %v7299
    %v7641 = vunpack.c.l.b16 %v7300
    %v7642 = vunpack.c.h.b16 %v7300
    %v7643 = vunpack.c.l.b16 %v7301
    %v7644 = vunpack.c.h.b16 %v7301
    %v7645 = vunpack.c.l.b16 %v7302
    %v7646 = vunpack.c.h.b16 %v7302
    %v7647 = vunpack.c.l.b16 %v7303
    %v7648 = vunpack.c.h.b16 %v7303
    %v7649 = vunpack.c.l.b16 %v7304
    %v7650 = vunpack.c.h.b16 %v7304
    %v7651 = vunpack.c.l.b16 %v7305
    %v7652 = vunpack.c.h.b16 %v7305
    %v7653 = vunpack.c.l.b16 %v7306
    %v7654 = vunpack.c.h.b16 %v7306
    %v7655 = vunpack.c.l.b16 %v7307
    %v7656 = vunpack.c.h.b16 %v7307
    %v7657 = vunpack.c.l.b16 %v7308
    %v7658 = vunpack.c.h.b16 %v7308
    %v7659 = vunpack.c.l.b16 %v7309
    %v7660 = vunpack.c.h.b16 %v7309
    %v7661 = vunpack.c.l.b16 %v7310
    %v7662 = vunpack.c.h.b16 %v7310
    %v7663 = vunpack.c.l.b16 %v7311
    %v7664 = vunpack.c.h.b16 %v7311
    %v7665 = vunpack.c.l.b16 %v7312
    %v7666 = vunpack.c.h.b16 %v7312
    %v7667 = vunpack.c.l.b16 %v7313
    %v7668 = vunpack.c.h.b16 %v7313
    %v7669 = vunpack.c.l.b16 %v7314
    %v7670 = vunpack.c.h.b16 %v7314
    %v7671 = vunpack.c.l.b16 %v7315
    %v7672 = vunpack.c.h.b16 %v7315
    %v7673 = vunpack.c.l.b16 %v7316
    %v7674 = vunpack.c.h.b16 %v7316
    %v7675 = vunpack.c.l.b16 %v7317
    %v7676 = vunpack.c.h.b16 %v7317
    %v7677 = vunpack.c.l.b16 %v7318
    %v7678 = vunpack.c.h.b16 %v7318
    %v7679 = vunpack.c.l.b16 %v7319
    %v7680 = vunpack.c.h.b16 %v7319
    %v7681 = vunpack.c.l.b16 %v7320
    %v7682 = vunpack.c.h.b16 %v7320
    %v7683 = vunpack.c.l.b16 %v7321
    %v7684 = vunpack.c.h.b16 %v7321
    %v7685 = vunpack.c.l.b16 %v7322
    %v7686 = vunpack.c.h.b16 %v7322
    %v7687 = vunpack.c.l.b16 %v7323
    %v7688 = vunpack.c.h.b16 %v7323
    %v7689 = vunpack.c.l.b16 %v7324
    %v7690 = vunpack.c.h.b16 %v7324
    %v7691 = vunpack.c.l.b16 %v7325
    %v7692 = vunpack.c.h.b16 %v7325
    %v7693 = vunpack.c.l.b16 %v7326
    %v7694 = vunpack.c.h.b16 %v7326
    %v7695 = vunpack.c.l.b16 %v7327
    %v7696 = vunpack.c.h.b16 %v7327
    %v7697 = vunpack.c.l.b16 %v7328
    %v7698 = vunpack.c.h.b16 %v7328
    %v7699 = vunpack.c.l.b16 %v7329
    %v7700 = vunpack.c.h.b16 %v7329
    %v7701 = vunpack.c.l.b16 %v7330
    %v7702 = vunpack.c.h.b16 %v7330
    %v7703 = vunpack.c.l.b16 %v7331
    %v7704 = vunpack.c.h.b16 %v7331
    %v7705 = vunpack.c.l.b16 %v7332
    %v7706 = vunpack.c.h.b16 %v7332
    %v7707 = vunpack.c.l.b16 %v7333
    %v7708 = vunpack.c.h.b16 %v7333
    %v7709 = vunpack.c.l.b16 %v7334
    %v7710 = vunpack.c.h.b16 %v7334
    %v7711 = vunpack.c.l.b16 %v7335
    %v7712 = vunpack.c.h.b16 %v7335
    %v7713 = vunpack.c.l.b16 %v7336
    %v7714 = vunpack.c.h.b16 %v7336
    %v7715 = vunpack.c.l.b16 %v7337
    %v7716 = vunpack.c.h.b16 %v7337
    %v7717 = vunpack.c.l.b16 %v7338
    %v7718 = vunpack.c.h.b16 %v7338
    %v7719 = vunpack.c.l.b16 %v7339
    %v7720 = vunpack.c.h.b16 %v7339
    %v7721 = vunpack.c.l.b16 %v7340
    %v7722 = vunpack.c.h.b16 %v7340
    %v7723 = vunpack.c.l.b16 %v7341
    %v7724 = vunpack.c.h.b16 %v7341
    %v7725 = vunpack.c.l.b16 %v7342
    %v7726 = vunpack.c.h.b16 %v7342
    %v7727 = vunpack.c.l.b16 %v7343
    %v7728 = vunpack.c.h.b16 %v7343
    %v7729 = vunpack.c.l.b16 %v7344
    %v7730 = vunpack.c.h.b16 %v7344
    %v7731 = vunpack.c.l.b16 %v7345
    %v7732 = vunpack.c.h.b16 %v7345
    %v7733 = vunpack.c.l.b16 %v7346
    %v7734 = vunpack.c.h.b16 %v7346
    %v7735 = vunpack.c.l.b16 %v7347
    %v7736 = vunpack.c.h.b16 %v7347
    %v7737 = vunpack.c.l.b16 %v7348
    %v7738 = vunpack.c.h.b16 %v7348
    %v7739 = vunpack.c.l.b16 %v7349
    %v7740 = vunpack.c.h.b16 %v7349
    %v7741 = vunpack.c.l.b16 %v7350
    %v7742 = vunpack.c.h.b16 %v7350
    %v7743 = vunpack.c.l.b16 %v7351
    %v7744 = vunpack.c.h.b16 %v7351
    %v7745 = vunpack.c.l.b16 %v7352
    %v7746 = vunpack.c.h.b16 %v7352
    %v7747 = vunpack.c.l.b16 %v7353
    %v7748 = vunpack.c.h.b16 %v7353
    %v7749 = vunpack.c.l.b16 %v7354
    %v7750 = vunpack.c.h.b16 %v7354
    %v7751 = vunpack.c.l.b16 %v7355
    %v7752 = vunpack.c.h.b16 %v7355
    %v7753 = vunpack.c.l.b16 %v7356
    %v7754 = vunpack.c.h.b16 %v7356
    %v7755 = vunpack.c.l.b16 %v7357
    %v7756 = vunpack.c.h.b16 %v7357
    %v7757 = vunpack.c.l.b16 %v7358
    %v7758 = vunpack.c.h.b16 %v7358
    %v7759 = vunpack.c.l.b16 %v7359
    %v7760 = vunpack.c.h.b16 %v7359
    %v7761 = vunpack.c.l.b16 %v7360
    %v7762 = vunpack.c.h.b16 %v7360
    %v7763 = vunpack.c.l.b16 %v7361
    %v7764 = vunpack.c.h.b16 %v7361
    %v7765 = vunpack.c.l.b16 %v7362
    %v7766 = vunpack.c.h.b16 %v7362
    %v7767 = vunpack.c.l.b16 %v7363
    %v7768 = vunpack.c.h.b16 %v7363
    %v7769 = vunpack.c.l.b16 %v7364
    %v7770 = vunpack.c.h.b16 %v7364
    %v7771 = vpack.c.b16 %v7519, %v7515
    %v7772 = vpack.c.b16 %v7520, %v7516
    %v7773 = vpack.c.b16 %v7521, %v7517
    %v7774 = vpack.c.b16 %v7522, %v7518
    %v7775 = vpack.c.b16 %v7527, %v7523
    %v7776 = vpack.c.b16 %v7528, %v7524
    %v7777 = vpack.c.b16 %v7529, %v7525
    %v7778 = vpack.c.b16 %v7530, %v7526
    %v7779 = vpack.c.b16 %v7535, %v7531
    %v7780 = vpack.c.b16 %v7536, %v7532
    %v7781 = vpack.c.b16 %v7537, %v7533
    %v7782 = vpack.c.b16 %v7538, %v7534
    %v7783 = vpack.c.b16 %v7543, %v7539
    %v7784 = vpack.c.b16 %v7544, %v7540
    %v7785 = vpack.c.b16 %v7545, %v7541
    %v7786 = vpack.c.b16 %v7546, %v7542
    %v7787 = vpack.c.b16 %v7551, %v7547
    %v7788 = vpack.c.b16 %v7552, %v7548
    %v7789 = vpack.c.b16 %v7553, %v7549
    %v7790 = vpack.c.b16 %v7554, %v7550
    %v7791 = vpack.c.b16 %v7559, %v7555
    %v7792 = vpack.c.b16 %v7560, %v7556
    %v7793 = vpack.c.b16 %v7561, %v7557
    %v7794 = vpack.c.b16 %v7562, %v7558
    %v7795 = vpack.c.b16 %v7567, %v7563
    %v7796 = vpack.c.b16 %v7568, %v7564
    %v7797 = vpack.c.b16 %v7569, %v7565
    %v7798 = vpack.c.b16 %v7570, %v7566
    %v7799 = vpack.c.b16 %v7575, %v7571
    %v7800 = vpack.c.b16 %v7576, %v7572
    %v7801 = vpack.c.b16 %v7577, %v7573
    %v7802 = vpack.c.b16 %v7578, %v7574
    %v7803 = vpack.c.b16 %v7583, %v7579
    %v7804 = vpack.c.b16 %v7584, %v7580
    %v7805 = vpack.c.b16 %v7585, %v7581
    %v7806 = vpack.c.b16 %v7586, %v7582
    %v7807 = vpack.c.b16 %v7591, %v7587
    %v7808 = vpack.c.b16 %v7592, %v7588
    %v7809 = vpack.c.b16 %v7593, %v7589
    %v7810 = vpack.c.b16 %v7594, %v7590
    %v7811 = vpack.c.b16 %v7599, %v7595
    %v7812 = vpack.c.b16 %v7600, %v7596
    %v7813 = vpack.c.b16 %v7601, %v7597
    %v7814 = vpack.c.b16 %v7602, %v7598
    %v7815 = vpack.c.b16 %v7607, %v7603
    %v7816 = vpack.c.b16 %v7608, %v7604
    %v7817 = vpack.c.b16 %v7609, %v7605
    %v7818 = vpack.c.b16 %v7610, %v7606
    %v7819 = vpack.c.b16 %v7615, %v7611
    %v7820 = vpack.c.b16 %v7616, %v7612
    %v7821 = vpack.c.b16 %v7617, %v7613
    %v7822 = vpack.c.b16 %v7618, %v7614
    %v7823 = vpack.c.b16 %v7623, %v7619
    %v7824 = vpack.c.b16 %v7624, %v7620
    %v7825 = vpack.c.b16 %v7625, %v7621
    %v7826 = vpack.c.b16 %v7626, %v7622
    %v7827 = vpack.c.b16 %v7631, %v7627
    %v7828 = vpack.c.b16 %v7632, %v7628
    %v7829 = vpack.c.b16 %v7633, %v7629
    %v7830 = vpack.c.b16 %v7634, %v7630
    %v7831 = vpack.c.b16 %v7639, %v7635
    %v7832 = vpack.c.b16 %v7640, %v7636
    %v7833 = vpack.c.b16 %v7641, %v7637
    %v7834 = vpack.c.b16 %v7642, %v7638
    %v7835 = vpack.c.b16 %v7647, %v7643
    %v7836 = vpack.c.b16 %v7648, %v7644
    %v7837 = vpack.c.b16 %v7649, %v7645
    %v7838 = vpack.c.b16 %v7650, %v7646
    %v7839 = vpack.c.b16 %v7655, %v7651
    %v7840 = vpack.c.b16 %v7656, %v7652
    %v7841 = vpack.c.b16 %v7657, %v7653
    %v7842 = vpack.c.b16 %v7658, %v7654
    %v7843 = vpack.c.b16 %v7663, %v7659
    %v7844 = vpack.c.b16 %v7664, %v7660
    %v7845 = vpack.c.b16 %v7665, %v7661
    %v7846 = vpack.c.b16 %v7666, %v7662
    %v7847 = vpack.c.b16 %v7671, %v7667
    %v7848 = vpack.c.b16 %v7672, %v7668
    %v7849 = vpack.c.b16 %v7673, %v7669
    %v7850 = vpack.c.b16 %v7674, %v7670
    %v7851 = vpack.c.b16 %v7679, %v7675
    %v7852 = vpack.c.b16 %v7680, %v7676
    %v7853 = vpack.c.b16 %v7681, %v7677
    %v7854 = vpack.c.b16 %v7682, %v7678
    %v7855 = vpack.c.b16 %v7687, %v7683
    %v7856 = vpack.c.b16 %v7688, %v7684
    %v7857 = vpack.c.b16 %v7689, %v7685
    %v7858 = vpack.c.b16 %v7690, %v7686
    %v7859 = vpack.c.b16 %v7695, %v7691
    %v7860 = vpack.c.b16 %v7696, %v7692
    %v7861 = vpack.c.b16 %v7697, %v7693
    %v7862 = vpack.c.b16 %v7698, %v7694
    %v7863 = vpack.c.b16 %v7703, %v7699
    %v7864 = vpack.c.b16 %v7704, %v7700
    %v7865 = vpack.c.b16 %v7705, %v7701
    %v7866 = vpack.c.b16 %v7706, %v7702
    %v7867 = vpack.c.b16 %v7711, %v7707
    %v7868 = vpack.c.b16 %v7712, %v7708
    %v7869 = vpack.c.b16 %v7713, %v7709
    %v7870 = vpack.c.b16 %v7714, %v7710
    %v7871 = vpack.c.b16 %v7719, %v7715
    %v7872 = vpack.c.b16 %v7720, %v7716
    %v7873 = vpack.c.b16 %v7721, %v7717
    %v7874 = vpack.c.b16 %v7722, %v7718
    %v7875 = vpack.c.b16 %v7727, %v7723
    %v7876 = vpack.c.b16 %v7728, %v7724
    %v7877 = vpack.c.b16 %v7729, %v7725
    %v7878 = vpack.c.b16 %v7730, %v7726
    %v7879 = vpack.c.b16 %v7735, %v7731
    %v7880 = vpack.c.b16 %v7736, %v7732
    %v7881 = vpack.c.b16 %v7737, %v7733
    %v7882 = vpack.c.b16 %v7738, %v7734
    %v7883 = vpack.c.b16 %v7743, %v7739
    %v7884 = vpack.c.b16 %v7744, %v7740
    %v7885 = vpack.c.b16 %v7745, %v7741
    %v7886 = vpack.c.b16 %v7746, %v7742
    %v7887 = vpack.c.b16 %v7751, %v7747
    %v7888 = vpack.c.b16 %v7752, %v7748
    %v7889 = vpack.c.b16 %v7753, %v7749
    %v7890 = vpack.c.b16 %v7754, %v7750
    %v7891 = vpack.c.b16 %v7759, %v7755
    %v7892 = vpack.c.b16 %v7760, %v7756
    %v7893 = vpack.c.b16 %v7761, %v7757
    %v7894 = vpack.c.b16 %v7762, %v7758
    %v7895 = vpack.c.b16 %v7767, %v7763
    %v7896 = vpack.c.b16 %v7768, %v7764
    %v7897 = vpack.c.b16 %v7769, %v7765
    %v7898 = vpack.c.b16 %v7770, %v7766
    %8027 = vmatprep.subr.bf16.mxu0 %v7772
    %8028 = vmatpush1.bf16.msra.mxu0 %v7771
    %8029 = vmatprep.subr.bf16.mxu0 %v7776
    %8030 = vmatpush1.bf16.msra.mxu0 %v7775
    %8031 = vmatprep.subr.bf16.mxu0 %v7780
    %8032 = vmatpush1.bf16.msra.mxu0 %v7779
    %8033 = vmatprep.subr.bf16.mxu0 %v7784
    %8034 = vmatpush1.bf16.msra.mxu0 %v7783
    %8035 = vmatprep.subr.bf16.mxu0 %v7788
    %8036 = vmatpush1.bf16.msra.mxu0 %v7787
    %8037 = vmatprep.subr.bf16.mxu0 %v7792
    %8038 = vmatpush1.bf16.msra.mxu0 %v7791
    %8039 = vmatprep.subr.bf16.mxu0 %v7796
    %8040 = vmatpush1.bf16.msra.mxu0 %v7795
    %8041 = vmatprep.subr.bf16.mxu0 %v7800
    %8042 = vmatpush1.bf16.msra.mxu0 %v7799
    %8043 = vmatprep.subr.bf16.mxu0 %v7804
    %8044 = vmatpush1.bf16.msra.mxu0 %v7803
    %8045 = vmatprep.subr.bf16.mxu0 %v7808
    %8046 = vmatpush1.bf16.msra.mxu0 %v7807
    %8047 = vmatprep.subr.bf16.mxu0 %v7812
    %8048 = vmatpush1.bf16.msra.mxu0 %v7811
    %8049 = vmatprep.subr.bf16.mxu0 %v7816
    %8050 = vmatpush1.bf16.msra.mxu0 %v7815
    %8051 = vmatprep.subr.bf16.mxu0 %v7820
    %8052 = vmatpush1.bf16.msra.mxu0 %v7819
    %8053 = vmatprep.subr.bf16.mxu0 %v7824
    %8054 = vmatpush1.bf16.msra.mxu0 %v7823
    %8055 = vmatprep.subr.bf16.mxu0 %v7828
    %8056 = vmatpush1.bf16.msra.mxu0 %v7827
    %8057 = vmatprep.subr.bf16.mxu0 %v7832
    %8058 = vmatpush1.bf16.msra.mxu0 %v7831
    %8059 = vmatprep.mubr.bf16.mxu0 %v7234
    %8060 = vmatmul.mubr.bf16.gmra.mrb[0].mxu0 %v7233
    %v8061 = vpop.f32.mrb[0].mxu0
    %v8062 = vadd.f32 %v7370, %v8061
    %v8063 = vpop.f32.mrb[0].mxu0
    %v8064 = vadd.f32 %v7374, %v8063
    %v8065 = vpop.f32.mrb[0].mxu0
    %v8066 = vpop.f32.mrb[0].mxu0
    %8067 = vdwg.mxu0
    %8068 = vmatprep.subr.bf16.mxu0 %v7836
    %8069 = vmatpush1.bf16.msra.mxu0 %v7835
    %8070 = vmatprep.subr.bf16.mxu0 %v7840
    %8071 = vmatpush1.bf16.msra.mxu0 %v7839
    %8072 = vmatprep.subr.bf16.mxu0 %v7844
    %8073 = vmatpush1.bf16.msra.mxu0 %v7843
    %8074 = vmatprep.subr.bf16.mxu0 %v7848
    %8075 = vmatpush1.bf16.msra.mxu0 %v7847
    %8076 = vmatprep.subr.bf16.mxu0 %v7852
    %8077 = vmatpush1.bf16.msra.mxu0 %v7851
    %8078 = vmatprep.subr.bf16.mxu0 %v7856
    %8079 = vmatpush1.bf16.msra.mxu0 %v7855
    %8080 = vmatprep.subr.bf16.mxu0 %v7860
    %8081 = vmatpush1.bf16.msra.mxu0 %v7859
    %8082 = vmatprep.subr.bf16.mxu0 %v7864
    %8083 = vmatpush1.bf16.msra.mxu0 %v7863
    %8084 = vmatprep.subr.bf16.mxu0 %v7868
    %8085 = vmatpush1.bf16.msra.mxu0 %v7867
    %8086 = vmatprep.subr.bf16.mxu0 %v7872
    %8087 = vmatpush1.bf16.msra.mxu0 %v7871
    %8088 = vmatprep.subr.bf16.mxu0 %v7876
    %8089 = vmatpush1.bf16.msra.mxu0 %v7875
    %8090 = vmatprep.subr.bf16.mxu0 %v7880
    %8091 = vmatpush1.bf16.msra.mxu0 %v7879
    %8092 = vmatprep.subr.bf16.mxu0 %v7884
    %8093 = vmatpush1.bf16.msra.mxu0 %v7883
    %8094 = vmatprep.subr.bf16.mxu0 %v7888
    %8095 = vmatpush1.bf16.msra.mxu0 %v7887
    %8096 = vmatprep.subr.bf16.mxu0 %v7892
    %8097 = vmatpush1.bf16.msra.mxu0 %v7891
    %8098 = vmatprep.subr.bf16.mxu0 %v7896
    %8099 = vmatpush1.bf16.msra.mxu0 %v7895
    %8100 = vmatprep.mubr.bf16.mxu0 %v7236
    %8101 = vmatmul.mubr.bf16.gmra.mrb[0].mxu0 %v7235
    %v8102 = vpop.f32.mrb[0].mxu0
    %v8103 = vadd.f32 %v8062, %v8102
    %v8104 = vpop.f32.mrb[0].mxu0
    %v8105 = vadd.f32 %v8064, %v8104
    %v8106 = vpop.f32.mrb[0].mxu0
    %v8107 = vpop.f32.mrb[0].mxu0
    %8108 = vdwg.mxu0
    %8109 = vmatprep.subr.bf16.mxu0 %v7774
    %8110 = vmatpush1.bf16.msra.mxu0 %v7773
    %8111 = vmatprep.subr.bf16.mxu0 %v7778
    %8112 = vmatpush1.bf16.msra.mxu0 %v7777
    %8113 = vmatprep.subr.bf16.mxu0 %v7782
    %8114 = vmatpush1.bf16.msra.mxu0 %v7781
    %8115 = vmatprep.subr.bf16.mxu0 %v7786
    %8116 = vmatpush1.bf16.msra.mxu0 %v7785
    %8117 = vmatprep.subr.bf16.mxu0 %v7790
    %8118 = vmatpush1.bf16.msra.mxu0 %v7789
    %8119 = vmatprep.subr.bf16.mxu0 %v7794
    %8120 = vmatpush1.bf16.msra.mxu0 %v7793
    %8121 = vmatprep.subr.bf16.mxu0 %v7798
    %8122 = vmatpush1.bf16.msra.mxu0 %v7797
    %8123 = vmatprep.subr.bf16.mxu0 %v7802
    %8124 = vmatpush1.bf16.msra.mxu0 %v7801
    %8125 = vmatprep.subr.bf16.mxu0 %v7806
    %8126 = vmatpush1.bf16.msra.mxu0 %v7805
    %8127 = vmatprep.subr.bf16.mxu0 %v7810
    %8128 = vmatpush1.bf16.msra.mxu0 %v7809
    %8129 = vmatprep.subr.bf16.mxu0 %v7814
    %8130 = vmatpush1.bf16.msra.mxu0 %v7813
    %8131 = vmatprep.subr.bf16.mxu0 %v7818
    %8132 = vmatpush1.bf16.msra.mxu0 %v7817
    %8133 = vmatprep.subr.bf16.mxu0 %v7822
    %8134 = vmatpush1.bf16.msra.mxu0 %v7821
    %8135 = vmatprep.subr.bf16.mxu0 %v7826
    %8136 = vmatpush1.bf16.msra.mxu0 %v7825
    %8137 = vmatprep.subr.bf16.mxu0 %v7830
    %8138 = vmatpush1.bf16.msra.mxu0 %v7829
    %8139 = vmatprep.subr.bf16.mxu0 %v7834
    %8140 = vmatpush1.bf16.msra.mxu0 %v7833
    %8141 = vmatprep.mubr.bf16.mxu0 %v7234
    %8142 = vmatmul.mubr.bf16.gmra.mrb[0].mxu0 %v7233
    %v8143 = vpop.f32.mrb[0].mxu0
    %v8144 = vadd.f32 %v7378, %v8143
    %v8145 = vpop.f32.mrb[0].mxu0
    %v8146 = vadd.f32 %v7382, %v8145
    %v8147 = vpop.f32.mrb[0].mxu0
    %v8148 = vpop.f32.mrb[0].mxu0
    %8149 = vdwg.mxu0
    %8150 = vmatprep.subr.bf16.mxu0 %v7838
    %8151 = vmatpush1.bf16.msra.mxu0 %v7837
    %8152 = vmatprep.subr.bf16.mxu0 %v7842
    %8153 = vmatpush1.bf16.msra.mxu0 %v7841
    %8154 = vmatprep.subr.bf16.mxu0 %v7846
    %8155 = vmatpush1.bf16.msra.mxu0 %v7845
    %8156 = vmatprep.subr.bf16.mxu0 %v7850
    %8157 = vmatpush1.bf16.msra.mxu0 %v7849
    %8158 = vmatprep.subr.bf16.mxu0 %v7854
    %8159 = vmatpush1.bf16.msra.mxu0 %v7853
    %8160 = vmatprep.subr.bf16.mxu0 %v7858
    %8161 = vmatpush1.bf16.msra.mxu0 %v7857
    %8162 = vmatprep.subr.bf16.mxu0 %v7862
    %8163 = vmatpush1.bf16.msra.mxu0 %v7861
    %8164 = vmatprep.subr.bf16.mxu0 %v7866
    %8165 = vmatpush1.bf16.msra.mxu0 %v7865
    %8166 = vmatprep.subr.bf16.mxu0 %v7870
    %8167 = vmatpush1.bf16.msra.mxu0 %v7869
    %8168 = vmatprep.subr.bf16.mxu0 %v7874
    %8169 = vmatpush1.bf16.msra.mxu0 %v7873
    %8170 = vmatprep.subr.bf16.mxu0 %v7878
    %8171 = vmatpush1.bf16.msra.mxu0 %v7877
    %8172 = vmatprep.subr.bf16.mxu0 %v7882
    %8173 = vmatpush1.bf16.msra.mxu0 %v7881
    %8174 = vmatprep.subr.bf16.mxu0 %v7886
    %8175 = vmatpush1.bf16.msra.mxu0 %v7885
    %8176 = vmatprep.subr.bf16.mxu0 %v7890
    %8177 = vmatpush1.bf16.msra.mxu0 %v7889
    %8178 = vmatprep.subr.bf16.mxu0 %v7894
    %8179 = vmatpush1.bf16.msra.mxu0 %v7893
    %8180 = vmatprep.subr.bf16.mxu0 %v7898
    %8181 = vmatpush1.bf16.msra.mxu0 %v7897
    %8182 = vmatprep.mubr.bf16.mxu0 %v7236
    %8183 = vmatmul.mubr.bf16.gmra.mrb[0].mxu0 %v7235
    %v8184 = vpop.f32.mrb[0].mxu0
    %v8185 = vadd.f32 %v8144, %v8184
    %v8186 = vpop.f32.mrb[0].mxu0
    %v8187 = vadd.f32 %v8146, %v8186
    %v8188 = vpop.f32.mrb[0].mxu0
    %v8189 = vpop.f32.mrb[0].mxu0
    %8190 = vdwg.mxu0
    %v8191 = vmul.f32 %v8103, 0.5
    %v8192 = vmul.f32 %v8105, 0.5
    %v8193 = vmul.f32 %v8185, 0.5
    %v8194 = vmul.f32 %v8187, 0.5
    %v8195 = vtanh.pop %v8191
    %v8196 = vtanh.pop %v8192
    %v8197 = vtanh.pop %v8193
    %v8198 = vtanh.pop %v8194
    %v8199 = vmul.f32 %v8195, 0.5
    %v8200 = vmul.f32 %v8196, 0.5
    %v8201 = vmul.f32 %v8197, 0.5
    %v8202 = vmul.f32 %v8198, 0.5
    %v8203 = vadd.f32 %v8199, 0.5
    %v8204 = vadd.f32 %v8200, 0.5
    %v8205 = vadd.f32 %v8201, 0.5
    %v8206 = vadd.f32 %v8202, 0.5
    %v8207 = vmul.f32 %v8103, %v8203
    %v8208 = vmul.f32 %v8105, %v8204
    %v8209 = vmul.f32 %v8185, %v8205
    %v8210 = vmul.f32 %v8187, %v8206
    %v8211 = vpack.c.bf16 %v8207, %v8207
    %v8212 = vpack.c.bf16 %v8208, %v8208
    %v8213 = vpack.c.bf16 %v8209, %v8209
    %v8214 = vpack.c.bf16 %v8210, %v8210
    %v8215 = vld [vmem:[#allocation13] sm:$0xff]
    %v8216 = vld [vmem:[#allocation13 + $0x8] sm:$0xff]
    %v8217 = vld [vmem:[#allocation13 + $0x10] sm:$0xff]
    %v8218 = vld [vmem:[#allocation13 + $0x18] sm:$0xff]
    %v8219 = vld [vmem:[#allocation13 + $0x20] sm:$0xff]
    %v8220 = vld [vmem:[#allocation13 + $0x28] sm:$0xff]
    %v8221 = vld [vmem:[#allocation13 + $0x30] sm:$0xff]
    %v8222 = vld [vmem:[#allocation13 + $0x38] sm:$0xff]
    %v8223 = vld [vmem:[#allocation13 + $0x40] sm:$0xff]
    %v8224 = vld [vmem:[#allocation13 + $0x48] sm:$0xf]
    %v8225 = vld [vmem:[#allocation13 + $0x4c] sm:$0xff]
    %v8226 = vld [vmem:[#allocation13 + $0x54] sm:$0xff]
    %v8227 = vld [vmem:[#allocation13 + $0x5c] sm:$0xff]
    %v8228 = vld [vmem:[#allocation13 + $0x64] sm:$0xff]
    %v8229 = vld [vmem:[#allocation13 + $0x6c] sm:$0xff]
    %v8230 = vld [vmem:[#allocation13 + $0x74] sm:$0xff]
    %v8231 = vld [vmem:[#allocation13 + $0x7c] sm:$0xff]
    %v8232 = vld [vmem:[#allocation13 + $0x84] sm:$0xff]
    %v8233 = vld [vmem:[#allocation13 + $0x8c] sm:$0xff]
    %v8234 = vld [vmem:[#allocation13 + $0x94] sm:$0xf]
    %v8235 = vld [vmem:[#allocation13 + $0x98] sm:$0xff]
    %v8236 = vld [vmem:[#allocation13 + $0xa0] sm:$0xff]
    %v8237 = vld [vmem:[#allocation13 + $0xa8] sm:$0xff]
    %v8238 = vld [vmem:[#allocation13 + $0xb0] sm:$0xff]
    %v8239 = vld [vmem:[#allocation13 + $0xb8] sm:$0xff]
    %v8240 = vld [vmem:[#allocation13 + $0xc0] sm:$0xff]
    %v8241 = vld [vmem:[#allocation13 + $0xc8] sm:$0xff]
    %v8242 = vld [vmem:[#allocation13 + $0xd0] sm:$0xff]
    %v8243 = vld [vmem:[#allocation13 + $0xd8] sm:$0xff]
    %v8244 = vld [vmem:[#allocation13 + $0xe0] sm:$0xf]
    %v8245 = vld [vmem:[#allocation13 + $0xe4] sm:$0xff]
    %v8246 = vld [vmem:[#allocation13 + $0xec] sm:$0xff]
    %v8247 = vld [vmem:[#allocation13 + $0xf4] sm:$0xff]
    %v8248 = vld [vmem:[#allocation13 + $0xfc] sm:$0xff]
    %v8249 = vld [vmem:[#allocation13 + $0x104] sm:$0xff]
    %v8250 = vld [vmem:[#allocation13 + $0x10c] sm:$0xff]
    %v8251 = vld [vmem:[#allocation13 + $0x114] sm:$0xff]
    %v8252 = vld [vmem:[#allocation13 + $0x11c] sm:$0xff]
    %v8253 = vld [vmem:[#allocation13 + $0x124] sm:$0xff]
    %v8254 = vld [vmem:[#allocation13 + $0x12c] sm:$0xf]
    %v8255 = vld [vmem:[#allocation13 + $0x130] sm:$0xff]
    %v8256 = vld [vmem:[#allocation13 + $0x138] sm:$0xff]
    %v8257 = vld [vmem:[#allocation13 + $0x140] sm:$0xff]
    %v8258 = vld [vmem:[#allocation13 + $0x148] sm:$0xff]
    %v8259 = vld [vmem:[#allocation13 + $0x150] sm:$0xff]
    %v8260 = vld [vmem:[#allocation13 + $0x158] sm:$0xff]
    %v8261 = vld [vmem:[#allocation13 + $0x160] sm:$0xff]
    %v8262 = vld [vmem:[#allocation13 + $0x168] sm:$0xff]
    %v8263 = vld [vmem:[#allocation13 + $0x170] sm:$0xff]
    %v8264 = vld [vmem:[#allocation13 + $0x178] sm:$0xf]
    %v8265 = vld [vmem:[#allocation13 + $0x17c] sm:$0xff]
    %v8266 = vld [vmem:[#allocation13 + $0x184] sm:$0xff]
    %v8267 = vld [vmem:[#allocation13 + $0x18c] sm:$0xff]
    %v8268 = vld [vmem:[#allocation13 + $0x194] sm:$0xff]
    %v8269 = vld [vmem:[#allocation13 + $0x19c] sm:$0xff]
    %v8270 = vld [vmem:[#allocation13 + $0x1a4] sm:$0xff]
    %v8271 = vld [vmem:[#allocation13 + $0x1ac] sm:$0xff]
    %v8272 = vld [vmem:[#allocation13 + $0x1b4] sm:$0xff]
    %v8273 = vld [vmem:[#allocation13 + $0x1bc] sm:$0xff]
    %v8274 = vld [vmem:[#allocation13 + $0x1c4] sm:$0xf]
    %v8275 = vld [vmem:[#allocation13 + $0x1c8] sm:$0xff]
    %v8276 = vld [vmem:[#allocation13 + $0x1d0] sm:$0xff]
    %v8277 = vld [vmem:[#allocation13 + $0x1d8] sm:$0xff]
    %v8278 = vld [vmem:[#allocation13 + $0x1e0] sm:$0xff]
    %v8279 = vld [vmem:[#allocation13 + $0x1e8] sm:$0xff]
    %v8280 = vld [vmem:[#allocation13 + $0x1f0] sm:$0xff]
    %v8281 = vld [vmem:[#allocation13 + $0x1f8] sm:$0xff]
    %v8282 = vld [vmem:[#allocation13 + $0x200] sm:$0xff]
    %v8283 = vld [vmem:[#allocation13 + $0x208] sm:$0xff]
    %v8284 = vld [vmem:[#allocation13 + $0x210] sm:$0xf]
    %v8285 = vld [vmem:[#allocation13 + $0x214] sm:$0xff]
    %v8286 = vld [vmem:[#allocation13 + $0x21c] sm:$0xff]
    %v8287 = vld [vmem:[#allocation13 + $0x224] sm:$0xff]
    %v8288 = vld [vmem:[#allocation13 + $0x22c] sm:$0xff]
    %v8289 = vld [vmem:[#allocation13 + $0x234] sm:$0xff]
    %v8290 = vld [vmem:[#allocation13 + $0x23c] sm:$0xff]
    %v8291 = vld [vmem:[#allocation13 + $0x244] sm:$0xff]
    %v8292 = vld [vmem:[#allocation13 + $0x24c] sm:$0xff]
    %v8293 = vld [vmem:[#allocation13 + $0x254] sm:$0xff]
    %v8294 = vld [vmem:[#allocation13 + $0x25c] sm:$0xf]
    %v8295 = vld [vmem:[#allocation13 + $0x260] sm:$0xff]
    %v8296 = vld [vmem:[#allocation13 + $0x268] sm:$0xff]
    %v8297 = vld [vmem:[#allocation13 + $0x270] sm:$0xff]
    %v8298 = vld [vmem:[#allocation13 + $0x278] sm:$0xff]
    %v8299 = vld [vmem:[#allocation13 + $0x280] sm:$0xff]
    %v8300 = vld [vmem:[#allocation13 + $0x288] sm:$0xff]
    %v8301 = vld [vmem:[#allocation13 + $0x290] sm:$0xff]
    %v8302 = vld [vmem:[#allocation13 + $0x298] sm:$0xff]
    %v8303 = vld [vmem:[#allocation13 + $0x2a0] sm:$0xff]
    %v8304 = vld [vmem:[#allocation13 + $0x2a8] sm:$0xf]
    %v8305 = vld [vmem:[#allocation13 + $0x2ac] sm:$0xff]
    %v8306 = vld [vmem:[#allocation13 + $0x2b4] sm:$0xff]
    %v8307 = vld [vmem:[#allocation13 + $0x2bc] sm:$0xff]
    %v8308 = vld [vmem:[#allocation13 + $0x2c4] sm:$0xff]
    %v8309 = vld [vmem:[#allocation13 + $0x2cc] sm:$0xff]
    %v8310 = vld [vmem:[#allocation13 + $0x2d4] sm:$0xff]
    %v8311 = vld [vmem:[#allocation13 + $0x2dc] sm:$0xff]
    %v8312 = vld [vmem:[#allocation13 + $0x2e4] sm:$0xff]
    %v8313 = vld [vmem:[#allocation13 + $0x2ec] sm:$0xff]
    %v8314 = vld [vmem:[#allocation13 + $0x2f4] sm:$0xf]
    %v8315 = vld [vmem:[#allocation13 + $0x2f8] sm:$0xff]
    %v8316 = vld [vmem:[#allocation13 + $0x300] sm:$0xff]
    %v8317 = vld [vmem:[#allocation13 + $0x308] sm:$0xff]
    %v8318 = vld [vmem:[#allocation13 + $0x310] sm:$0xff]
    %v8319 = vld [vmem:[#allocation13 + $0x318] sm:$0xff]
    %v8320 = vld [vmem:[#allocation13 + $0x320] sm:$0xff]
    %v8321 = vld [vmem:[#allocation13 + $0x328] sm:$0xff]
    %v8322 = vld [vmem:[#allocation13 + $0x330] sm:$0xff]
    %v8323 = vld [vmem:[#allocation13 + $0x338] sm:$0xff]
    %v8324 = vld [vmem:[#allocation13 + $0x340] sm:$0xf]
    %v8325 = vld [vmem:[#allocation13 + $0x344] sm:$0xff]
    %v8326 = vld [vmem:[#allocation13 + $0x34c] sm:$0xff]
    %v8327 = vld [vmem:[#allocation13 + $0x354] sm:$0xff]
    %v8328 = vld [vmem:[#allocation13 + $0x35c] sm:$0xff]
    %v8329 = vld [vmem:[#allocation13 + $0x364] sm:$0xff]
    %v8330 = vld [vmem:[#allocation13 + $0x36c] sm:$0xff]
    %v8331 = vld [vmem:[#allocation13 + $0x374] sm:$0xff]
    %v8332 = vld [vmem:[#allocation13 + $0x37c] sm:$0xff]
    %v8333 = vld [vmem:[#allocation13 + $0x384] sm:$0xff]
    %v8334 = vld [vmem:[#allocation13 + $0x38c] sm:$0xf]
    %v8335 = vld [vmem:[#allocation13 + $0x390] sm:$0xff]
    %v8336 = vld [vmem:[#allocation13 + $0x398] sm:$0xff]
    %v8337 = vld [vmem:[#allocation13 + $0x3a0] sm:$0xff]
    %v8338 = vld [vmem:[#allocation13 + $0x3a8] sm:$0xff]
    %v8339 = vld [vmem:[#allocation13 + $0x3b0] sm:$0xff]
    %v8340 = vld [vmem:[#allocation13 + $0x3b8] sm:$0xff]
    %v8341 = vld [vmem:[#allocation13 + $0x3c0] sm:$0xff]
    %v8342 = vld [vmem:[#allocation13 + $0x3c8] sm:$0xff]
    %v8343 = vld [vmem:[#allocation13 + $0x3d0] sm:$0xff]
    %v8344 = vld [vmem:[#allocation13 + $0x3d8] sm:$0xf]
    %v8345 = vld [vmem:[#allocation13 + $0x3dc] sm:$0xff]
    %v8346 = vld [vmem:[#allocation13 + $0x3e4] sm:$0xff]
    %v8347 = vld [vmem:[#allocation13 + $0x3ec] sm:$0xff]
    %v8348 = vld [vmem:[#allocation13 + $0x3f4] sm:$0xff]
    %v8349 = vld [vmem:[#allocation13 + $0x3fc] sm:$0xff]
    %v8350 = vld [vmem:[#allocation13 + $0x404] sm:$0xff]
    %v8351 = vld [vmem:[#allocation13 + $0x40c] sm:$0xff]
    %v8352 = vld [vmem:[#allocation13 + $0x414] sm:$0xff]
    %v8353 = vld [vmem:[#allocation13 + $0x41c] sm:$0xff]
    %v8354 = vld [vmem:[#allocation13 + $0x424] sm:$0xf]
    %v8355 = vld [vmem:[#allocation13 + $0x428] sm:$0xff]
    %v8356 = vld [vmem:[#allocation13 + $0x430] sm:$0xff]
    %v8357 = vld [vmem:[#allocation13 + $0x438] sm:$0xff]
    %v8358 = vld [vmem:[#allocation13 + $0x440] sm:$0xff]
    %v8359 = vld [vmem:[#allocation13 + $0x448] sm:$0xff]
    %v8360 = vld [vmem:[#allocation13 + $0x450] sm:$0xff]
    %v8361 = vld [vmem:[#allocation13 + $0x458] sm:$0xff]
    %v8362 = vld [vmem:[#allocation13 + $0x460] sm:$0xff]
    %v8363 = vld [vmem:[#allocation13 + $0x468] sm:$0xff]
    %v8364 = vld [vmem:[#allocation13 + $0x470] sm:$0xf]
    %v8365 = vld [vmem:[#allocation13 + $0x474] sm:$0xff]
    %v8366 = vld [vmem:[#allocation13 + $0x47c] sm:$0xff]
    %v8367 = vld [vmem:[#allocation13 + $0x484] sm:$0xff]
    %v8368 = vld [vmem:[#allocation13 + $0x48c] sm:$0xff]
    %v8369 = vld [vmem:[#allocation13 + $0x494] sm:$0xff]
    %v8370 = vld [vmem:[#allocation13 + $0x49c] sm:$0xff]
    %v8371 = vld [vmem:[#allocation13 + $0x4a4] sm:$0xff]
    %v8372 = vld [vmem:[#allocation13 + $0x4ac] sm:$0xff]
    %v8373 = vld [vmem:[#allocation13 + $0x4b4] sm:$0xff]
    %v8374 = vld [vmem:[#allocation13 + $0x4bc] sm:$0xf]
    %v8375 = vld [vmem:[#allocation13 + $0x4c0] sm:$0xff]
    %v8376 = vld [vmem:[#allocation13 + $0x4c8] sm:$0xff]
    %v8377 = vld [vmem:[#allocation13 + $0x4d0] sm:$0xff]
    %v8378 = vld [vmem:[#allocation13 + $0x4d8] sm:$0xff]
    %v8379 = vld [vmem:[#allocation13 + $0x4e0] sm:$0xff]
    %v8380 = vld [vmem:[#allocation13 + $0x4e8] sm:$0xff]
    %v8381 = vld [vmem:[#allocation13 + $0x4f0] sm:$0xff]
    %v8382 = vld [vmem:[#allocation13 + $0x4f8] sm:$0xff]
    %v8383 = vld [vmem:[#allocation13 + $0x500] sm:$0xff]
    %v8384 = vld [vmem:[#allocation13 + $0x508] sm:$0xf]
    %v8385 = vld [vmem:[#allocation13 + $0x50c] sm:$0xff]
    %v8386 = vld [vmem:[#allocation13 + $0x514] sm:$0xff]
    %v8387 = vld [vmem:[#allocation13 + $0x51c] sm:$0xff]
    %v8388 = vld [vmem:[#allocation13 + $0x524] sm:$0xff]
    %v8389 = vld [vmem:[#allocation13 + $0x52c] sm:$0xff]
    %v8390 = vld [vmem:[#allocation13 + $0x534] sm:$0xff]
    %v8391 = vld [vmem:[#allocation13 + $0x53c] sm:$0xff]
    %v8392 = vld [vmem:[#allocation13 + $0x544] sm:$0xff]
    %v8393 = vld [vmem:[#allocation13 + $0x54c] sm:$0xff]
    %v8394 = vld [vmem:[#allocation13 + $0x554] sm:$0xf]
    %v8395 = vld [vmem:[#allocation13 + $0x558] sm:$0xff]
    %v8396 = vld [vmem:[#allocation13 + $0x560] sm:$0xff]
    %v8397 = vld [vmem:[#allocation13 + $0x568] sm:$0xff]
    %v8398 = vld [vmem:[#allocation13 + $0x570] sm:$0xff]
    %v8399 = vld [vmem:[#allocation13 + $0x578] sm:$0xff]
    %v8400 = vld [vmem:[#allocation13 + $0x580] sm:$0xff]
    %v8401 = vld [vmem:[#allocation13 + $0x588] sm:$0xff]
    %v8402 = vld [vmem:[#allocation13 + $0x590] sm:$0xff]
    %v8403 = vld [vmem:[#allocation13 + $0x598] sm:$0xff]
    %v8404 = vld [vmem:[#allocation13 + $0x5a0] sm:$0xf]
    %v8405 = vld [vmem:[#allocation13 + $0x5a4] sm:$0xff]
    %v8406 = vld [vmem:[#allocation13 + $0x5ac] sm:$0xff]
    %v8407 = vld [vmem:[#allocation13 + $0x5b4] sm:$0xff]
    %v8408 = vld [vmem:[#allocation13 + $0x5bc] sm:$0xff]
    %v8409 = vld [vmem:[#allocation13 + $0x5c4] sm:$0xff]
    %v8410 = vld [vmem:[#allocation13 + $0x5cc] sm:$0xff]
    %v8411 = vld [vmem:[#allocation13 + $0x5d4] sm:$0xff]
    %v8412 = vld [vmem:[#allocation13 + $0x5dc] sm:$0xff]
    %v8413 = vld [vmem:[#allocation13 + $0x5e4] sm:$0xff]
    %v8414 = vld [vmem:[#allocation13 + $0x5ec] sm:$0xf]
    %v8415 = vld [vmem:[#allocation13 + $0x5f0] sm:$0xff]
    %v8416 = vld [vmem:[#allocation13 + $0x5f8] sm:$0xff]
    %v8417 = vld [vmem:[#allocation13 + $0x600] sm:$0xff]
    %v8418 = vld [vmem:[#allocation13 + $0x608] sm:$0xff]
    %v8419 = vld [vmem:[#allocation13 + $0x610] sm:$0xff]
    %v8420 = vld [vmem:[#allocation13 + $0x618] sm:$0xff]
    %v8421 = vld [vmem:[#allocation13 + $0x620] sm:$0xff]
    %v8422 = vld [vmem:[#allocation13 + $0x628] sm:$0xff]
    %v8423 = vld [vmem:[#allocation13 + $0x630] sm:$0xff]
    %v8424 = vld [vmem:[#allocation13 + $0x638] sm:$0xf]
    %v8425 = vld [vmem:[#allocation13 + $0x63c] sm:$0xff]
    %v8426 = vld [vmem:[#allocation13 + $0x644] sm:$0xff]
    %v8427 = vld [vmem:[#allocation13 + $0x64c] sm:$0xff]
    %v8428 = vld [vmem:[#allocation13 + $0x654] sm:$0xff]
    %v8429 = vld [vmem:[#allocation13 + $0x65c] sm:$0xff]
    %v8430 = vld [vmem:[#allocation13 + $0x664] sm:$0xff]
    %v8431 = vld [vmem:[#allocation13 + $0x66c] sm:$0xff]
    %v8432 = vld [vmem:[#allocation13 + $0x674] sm:$0xff]
    %v8433 = vld [vmem:[#allocation13 + $0x67c] sm:$0xff]
    %v8434 = vld [vmem:[#allocation13 + $0x684] sm:$0xf]
    %v8435 = vld [vmem:[#allocation13 + $0x688] sm:$0xff]
    %v8436 = vld [vmem:[#allocation13 + $0x690] sm:$0xff]
    %v8437 = vld [vmem:[#allocation13 + $0x698] sm:$0xff]
    %v8438 = vld [vmem:[#allocation13 + $0x6a0] sm:$0xff]
    %v8439 = vld [vmem:[#allocation13 + $0x6a8] sm:$0xff]
    %v8440 = vld [vmem:[#allocation13 + $0x6b0] sm:$0xff]
    %v8441 = vld [vmem:[#allocation13 + $0x6b8] sm:$0xff]
    %v8442 = vld [vmem:[#allocation13 + $0x6c0] sm:$0xff]
    %v8443 = vld [vmem:[#allocation13 + $0x6c8] sm:$0xff]
    %v8444 = vld [vmem:[#allocation13 + $0x6d0] sm:$0xf]
    %v8445 = vld [vmem:[#allocation13 + $0x6d4] sm:$0xff]
    %v8446 = vld [vmem:[#allocation13 + $0x6dc] sm:$0xff]
    %v8447 = vld [vmem:[#allocation13 + $0x6e4] sm:$0xff]
    %v8448 = vld [vmem:[#allocation13 + $0x6ec] sm:$0xff]
    %v8449 = vld [vmem:[#allocation13 + $0x6f4] sm:$0xff]
    %v8450 = vld [vmem:[#allocation13 + $0x6fc] sm:$0xff]
    %v8451 = vld [vmem:[#allocation13 + $0x704] sm:$0xff]
    %v8452 = vld [vmem:[#allocation13 + $0x70c] sm:$0xff]
    %v8453 = vld [vmem:[#allocation13 + $0x714] sm:$0xff]
    %v8454 = vld [vmem:[#allocation13 + $0x71c] sm:$0xf]
    %v8455 = vld [vmem:[#allocation13 + $0x720] sm:$0xff]
    %v8456 = vld [vmem:[#allocation13 + $0x728] sm:$0xff]
    %v8457 = vld [vmem:[#allocation13 + $0x730] sm:$0xff]
    %v8458 = vld [vmem:[#allocation13 + $0x738] sm:$0xff]
    %v8459 = vld [vmem:[#allocation13 + $0x740] sm:$0xff]
    %v8460 = vld [vmem:[#allocation13 + $0x748] sm:$0xff]
    %v8461 = vld [vmem:[#allocation13 + $0x750] sm:$0xff]
    %v8462 = vld [vmem:[#allocation13 + $0x758] sm:$0xff]
    %v8463 = vld [vmem:[#allocation13 + $0x760] sm:$0xff]
    %v8464 = vld [vmem:[#allocation13 + $0x768] sm:$0xf]
    %v8465 = vld [vmem:[#allocation13 + $0x76c] sm:$0xff]
    %v8466 = vld [vmem:[#allocation13 + $0x774] sm:$0xff]
    %v8467 = vld [vmem:[#allocation13 + $0x77c] sm:$0xff]
    %v8468 = vld [vmem:[#allocation13 + $0x784] sm:$0xff]
    %v8469 = vld [vmem:[#allocation13 + $0x78c] sm:$0xff]
    %v8470 = vld [vmem:[#allocation13 + $0x794] sm:$0xff]
    %v8471 = vld [vmem:[#allocation13 + $0x79c] sm:$0xff]
    %v8472 = vld [vmem:[#allocation13 + $0x7a4] sm:$0xff]
    %v8473 = vld [vmem:[#allocation13 + $0x7ac] sm:$0xff]
    %v8474 = vld [vmem:[#allocation13 + $0x7b4] sm:$0xf]
    %v8475 = vld [vmem:[#allocation13 + $0x7b8] sm:$0xff]
    %v8476 = vld [vmem:[#allocation13 + $0x7c0] sm:$0xff]
    %v8477 = vld [vmem:[#allocation13 + $0x7c8] sm:$0xff]
    %v8478 = vld [vmem:[#allocation13 + $0x7d0] sm:$0xff]
    %v8479 = vld [vmem:[#allocation13 + $0x7d8] sm:$0xff]
    %v8480 = vld [vmem:[#allocation13 + $0x7e0] sm:$0xff]
    %v8481 = vld [vmem:[#allocation13 + $0x7e8] sm:$0xff]
    %v8482 = vld [vmem:[#allocation13 + $0x7f0] sm:$0xff]
    %v8483 = vld [vmem:[#allocation13 + $0x7f8] sm:$0xff]
    %v8484 = vld [vmem:[#allocation13 + $0x800] sm:$0xf]
    %v8485 = vld [vmem:[#allocation13 + $0x804] sm:$0xff]
    %v8486 = vld [vmem:[#allocation13 + $0x80c] sm:$0xff]
    %v8487 = vld [vmem:[#allocation13 + $0x814] sm:$0xff]
    %v8488 = vld [vmem:[#allocation13 + $0x81c] sm:$0xff]
    %v8489 = vld [vmem:[#allocation13 + $0x824] sm:$0xff]
    %v8490 = vld [vmem:[#allocation13 + $0x82c] sm:$0xff]
    %v8491 = vld [vmem:[#allocation13 + $0x834] sm:$0xff]
    %v8492 = vld [vmem:[#allocation13 + $0x83c] sm:$0xff]
    %v8493 = vld [vmem:[#allocation13 + $0x844] sm:$0xff]
    %v8494 = vld [vmem:[#allocation13 + $0x84c] sm:$0xf]
    %v8495 = vld [vmem:[#allocation13 + $0x850] sm:$0xff]
    %v8496 = vld [vmem:[#allocation13 + $0x858] sm:$0xff]
    %v8497 = vld [vmem:[#allocation13 + $0x860] sm:$0xff]
    %v8498 = vld [vmem:[#allocation13 + $0x868] sm:$0xff]
    %v8499 = vld [vmem:[#allocation13 + $0x870] sm:$0xff]
    %v8500 = vld [vmem:[#allocation13 + $0x878] sm:$0xff]
    %v8501 = vld [vmem:[#allocation13 + $0x880] sm:$0xff]
    %v8502 = vld [vmem:[#allocation13 + $0x888] sm:$0xff]
    %v8503 = vld [vmem:[#allocation13 + $0x890] sm:$0xff]
    %v8504 = vld [vmem:[#allocation13 + $0x898] sm:$0xf]
    %v8505 = vld [vmem:[#allocation13 + $0x89c] sm:$0xff]
    %v8506 = vld [vmem:[#allocation13 + $0x8a4] sm:$0xff]
    %v8507 = vld [vmem:[#allocation13 + $0x8ac] sm:$0xff]
    %v8508 = vld [vmem:[#allocation13 + $0x8b4] sm:$0xff]
    %v8509 = vld [vmem:[#allocation13 + $0x8bc] sm:$0xff]
    %v8510 = vld [vmem:[#allocation13 + $0x8c4] sm:$0xff]
    %v8511 = vld [vmem:[#allocation13 + $0x8cc] sm:$0xff]
    %v8512 = vld [vmem:[#allocation13 + $0x8d4] sm:$0xff]
    %v8513 = vld [vmem:[#allocation13 + $0x8dc] sm:$0xff]
    %v8514 = vld [vmem:[#allocation13 + $0x8e4] sm:$0xf]
    %v8515 = vld [vmem:[#allocation13 + $0x8e8] sm:$0xff]
    %v8516 = vld [vmem:[#allocation13 + $0x8f0] sm:$0xff]
    %v8517 = vld [vmem:[#allocation13 + $0x8f8] sm:$0xff]
    %v8518 = vld [vmem:[#allocation13 + $0x900] sm:$0xff]
    %v8519 = vld [vmem:[#allocation13 + $0x908] sm:$0xff]
    %v8520 = vld [vmem:[#allocation13 + $0x910] sm:$0xff]
    %v8521 = vld [vmem:[#allocation13 + $0x918] sm:$0xff]
    %v8522 = vld [vmem:[#allocation13 + $0x920] sm:$0xff]
    %v8523 = vld [vmem:[#allocation13 + $0x928] sm:$0xff]
    %v8524 = vld [vmem:[#allocation13 + $0x930] sm:$0xf]
    %v8525 = vld [vmem:[#allocation13 + $0x934] sm:$0xff]
    %v8526 = vld [vmem:[#allocation13 + $0x93c] sm:$0xff]
    %v8527 = vld [vmem:[#allocation13 + $0x944] sm:$0xff]
    %v8528 = vld [vmem:[#allocation13 + $0x94c] sm:$0xff]
    %v8529 = vld [vmem:[#allocation13 + $0x954] sm:$0xff]
    %v8530 = vld [vmem:[#allocation13 + $0x95c] sm:$0xff]
    %v8531 = vld [vmem:[#allocation13 + $0x964] sm:$0xff]
    %v8532 = vld [vmem:[#allocation13 + $0x96c] sm:$0xff]
    %v8533 = vld [vmem:[#allocation13 + $0x974] sm:$0xff]
    %v8534 = vld [vmem:[#allocation13 + $0x97c] sm:$0xf]
    %v8535 = vld [vmem:[#allocation13 + $0x980] sm:$0xff]
    %v8536 = vld [vmem:[#allocation13 + $0x988] sm:$0xff]
    %v8537 = vld [vmem:[#allocation13 + $0x990] sm:$0xff]
    %v8538 = vld [vmem:[#allocation13 + $0x998] sm:$0xff]
    %v8539 = vld [vmem:[#allocation13 + $0x9a0] sm:$0xff]
    %v8540 = vld [vmem:[#allocation13 + $0x9a8] sm:$0xff]
    %v8541 = vld [vmem:[#allocation13 + $0x9b0] sm:$0xff]
    %v8542 = vld [vmem:[#allocation13 + $0x9b8] sm:$0xff]
    %v8543 = vld [vmem:[#allocation13 + $0x9c0] sm:$0xff]
    %v8544 = vld [vmem:[#allocation13 + $0x9c8] sm:$0xf]
    %v8545 = vld [vmem:[#allocation13 + $0x9cc] sm:$0xff]
    %v8546 = vld [vmem:[#allocation13 + $0x9d4] sm:$0xff]
    %v8547 = vld [vmem:[#allocation13 + $0x9dc] sm:$0xff]
    %v8548 = vld [vmem:[#allocation13 + $0x9e4] sm:$0xff]
    %v8549 = vld [vmem:[#allocation13 + $0x9ec] sm:$0xff]
    %v8550 = vld [vmem:[#allocation13 + $0x9f4] sm:$0xff]
    %v8551 = vld [vmem:[#allocation13 + $0x9fc] sm:$0xff]
    %v8552 = vld [vmem:[#allocation13 + $0xa04] sm:$0xff]
    %v8553 = vld [vmem:[#allocation13 + $0xa0c] sm:$0xff]
    %v8554 = vld [vmem:[#allocation13 + $0xa14] sm:$0xf]
    %v8555 = vld [vmem:[#allocation13 + $0xa18] sm:$0xff]
    %v8556 = vld [vmem:[#allocation13 + $0xa20] sm:$0xff]
    %v8557 = vld [vmem:[#allocation13 + $0xa28] sm:$0xff]
    %v8558 = vld [vmem:[#allocation13 + $0xa30] sm:$0xff]
    %v8559 = vld [vmem:[#allocation13 + $0xa38] sm:$0xff]
    %v8560 = vld [vmem:[#allocation13 + $0xa40] sm:$0xff]
    %v8561 = vld [vmem:[#allocation13 + $0xa48] sm:$0xff]
    %v8562 = vld [vmem:[#allocation13 + $0xa50] sm:$0xff]
    %v8563 = vld [vmem:[#allocation13 + $0xa58] sm:$0xff]
    %v8564 = vld [vmem:[#allocation13 + $0xa60] sm:$0xf]
    %v8565 = vld [vmem:[#allocation13 + $0xa64] sm:$0xff]
    %v8566 = vld [vmem:[#allocation13 + $0xa6c] sm:$0xff]
    %v8567 = vld [vmem:[#allocation13 + $0xa74] sm:$0xff]
    %v8568 = vld [vmem:[#allocation13 + $0xa7c] sm:$0xff]
    %v8569 = vld [vmem:[#allocation13 + $0xa84] sm:$0xff]
    %v8570 = vld [vmem:[#allocation13 + $0xa8c] sm:$0xff]
    %v8571 = vld [vmem:[#allocation13 + $0xa94] sm:$0xff]
    %v8572 = vld [vmem:[#allocation13 + $0xa9c] sm:$0xff]
    %v8573 = vld [vmem:[#allocation13 + $0xaa4] sm:$0xff]
    %v8574 = vld [vmem:[#allocation13 + $0xaac] sm:$0xf]
    %v8575 = vld [vmem:[#allocation13 + $0xab0] sm:$0xff]
    %v8576 = vld [vmem:[#allocation13 + $0xab8] sm:$0xff]
    %v8577 = vld [vmem:[#allocation13 + $0xac0] sm:$0xff]
    %v8578 = vld [vmem:[#allocation13 + $0xac8] sm:$0xff]
    %v8579 = vld [vmem:[#allocation13 + $0xad0] sm:$0xff]
    %v8580 = vld [vmem:[#allocation13 + $0xad8] sm:$0xff]
    %v8581 = vld [vmem:[#allocation13 + $0xae0] sm:$0xff]
    %v8582 = vld [vmem:[#allocation13 + $0xae8] sm:$0xff]
    %v8583 = vld [vmem:[#allocation13 + $0xaf0] sm:$0xff]
    %v8584 = vld [vmem:[#allocation13 + $0xaf8] sm:$0xf]
    %v8585 = vld [vmem:[#allocation13 + $0xafc] sm:$0xff]
    %v8586 = vld [vmem:[#allocation13 + $0xb04] sm:$0xff]
    %v8587 = vld [vmem:[#allocation13 + $0xb0c] sm:$0xff]
    %v8588 = vld [vmem:[#allocation13 + $0xb14] sm:$0xff]
    %v8589 = vld [vmem:[#allocation13 + $0xb1c] sm:$0xff]
    %v8590 = vld [vmem:[#allocation13 + $0xb24] sm:$0xff]
    %v8591 = vld [vmem:[#allocation13 + $0xb2c] sm:$0xff]
    %v8592 = vld [vmem:[#allocation13 + $0xb34] sm:$0xff]
    %v8593 = vld [vmem:[#allocation13 + $0xb3c] sm:$0xff]
    %v8594 = vld [vmem:[#allocation13 + $0xb44] sm:$0xf]
    %v8595 = vld [vmem:[#allocation13 + $0xb48] sm:$0xff]
    %v8596 = vld [vmem:[#allocation13 + $0xb50] sm:$0xff]
    %v8597 = vld [vmem:[#allocation13 + $0xb58] sm:$0xff]
    %v8598 = vld [vmem:[#allocation13 + $0xb60] sm:$0xff]
    %v8599 = vld [vmem:[#allocation13 + $0xb68] sm:$0xff]
    %v8600 = vld [vmem:[#allocation13 + $0xb70] sm:$0xff]
    %v8601 = vld [vmem:[#allocation13 + $0xb78] sm:$0xff]
    %v8602 = vld [vmem:[#allocation13 + $0xb80] sm:$0xff]
    %v8603 = vld [vmem:[#allocation13 + $0xb88] sm:$0xff]
    %v8604 = vld [vmem:[#allocation13 + $0xb90] sm:$0xf]
    %v8605 = vld [vmem:[#allocation13 + $0xb94] sm:$0xff]
    %v8606 = vld [vmem:[#allocation13 + $0xb9c] sm:$0xff]
    %v8607 = vld [vmem:[#allocation13 + $0xba4] sm:$0xff]
    %v8608 = vld [vmem:[#allocation13 + $0xbac] sm:$0xff]
    %v8609 = vld [vmem:[#allocation13 + $0xbb4] sm:$0xff]
    %v8610 = vld [vmem:[#allocation13 + $0xbbc] sm:$0xff]
    %v8611 = vld [vmem:[#allocation13 + $0xbc4] sm:$0xff]
    %v8612 = vld [vmem:[#allocation13 + $0xbcc] sm:$0xff]
    %v8613 = vld [vmem:[#allocation13 + $0xbd4] sm:$0xff]
    %v8614 = vld [vmem:[#allocation13 + $0xbdc] sm:$0xf]
    %v8615 = vld [vmem:[#allocation13 + $0xbe0] sm:$0xff]
    %v8616 = vld [vmem:[#allocation13 + $0xbe8] sm:$0xff]
    %v8617 = vld [vmem:[#allocation13 + $0xbf0] sm:$0xff]
    %v8618 = vld [vmem:[#allocation13 + $0xbf8] sm:$0xff]
    %v8619 = vld [vmem:[#allocation13 + $0xc00] sm:$0xff]
    %v8620 = vld [vmem:[#allocation13 + $0xc08] sm:$0xff]
    %v8621 = vld [vmem:[#allocation13 + $0xc10] sm:$0xff]
    %v8622 = vld [vmem:[#allocation13 + $0xc18] sm:$0xff]
    %v8623 = vld [vmem:[#allocation13 + $0xc20] sm:$0xff]
    %v8624 = vld [vmem:[#allocation13 + $0xc28] sm:$0xf]
    %v8625 = vld [vmem:[#allocation13 + $0xc2c] sm:$0xff]
    %v8626 = vld [vmem:[#allocation13 + $0xc34] sm:$0xff]
    %v8627 = vld [vmem:[#allocation13 + $0xc3c] sm:$0xff]
    %v8628 = vld [vmem:[#allocation13 + $0xc44] sm:$0xff]
    %v8629 = vld [vmem:[#allocation13 + $0xc4c] sm:$0xff]
    %v8630 = vld [vmem:[#allocation13 + $0xc54] sm:$0xff]
    %v8631 = vld [vmem:[#allocation13 + $0xc5c] sm:$0xff]
    %v8632 = vld [vmem:[#allocation13 + $0xc64] sm:$0xff]
    %v8633 = vld [vmem:[#allocation13 + $0xc6c] sm:$0xff]
    %v8634 = vld [vmem:[#allocation13 + $0xc74] sm:$0xf]
    %v8635 = vld [vmem:[#allocation13 + $0xc78] sm:$0xff]
    %v8636 = vld [vmem:[#allocation13 + $0xc80] sm:$0xff]
    %v8637 = vld [vmem:[#allocation13 + $0xc88] sm:$0xff]
    %v8638 = vld [vmem:[#allocation13 + $0xc90] sm:$0xff]
    %v8639 = vld [vmem:[#allocation13 + $0xc98] sm:$0xff]
    %v8640 = vld [vmem:[#allocation13 + $0xca0] sm:$0xff]
    %v8641 = vld [vmem:[#allocation13 + $0xca8] sm:$0xff]
    %v8642 = vld [vmem:[#allocation13 + $0xcb0] sm:$0xff]
    %v8643 = vld [vmem:[#allocation13 + $0xcb8] sm:$0xff]
    %v8644 = vld [vmem:[#allocation13 + $0xcc0] sm:$0xf]
    %v8645 = vld [vmem:[#allocation13 + $0xcc4] sm:$0xff]
    %v8646 = vld [vmem:[#allocation13 + $0xccc] sm:$0xff]
    %v8647 = vld [vmem:[#allocation13 + $0xcd4] sm:$0xff]
    %v8648 = vld [vmem:[#allocation13 + $0xcdc] sm:$0xff]
    %v8649 = vld [vmem:[#allocation13 + $0xce4] sm:$0xff]
    %v8650 = vld [vmem:[#allocation13 + $0xcec] sm:$0xff]
    %v8651 = vld [vmem:[#allocation13 + $0xcf4] sm:$0xff]
    %v8652 = vld [vmem:[#allocation13 + $0xcfc] sm:$0xff]
    %v8653 = vld [vmem:[#allocation13 + $0xd04] sm:$0xff]
    %v8654 = vld [vmem:[#allocation13 + $0xd0c] sm:$0xf]
    %v8655 = vld [vmem:[#allocation13 + $0xd10] sm:$0xff]
    %v8656 = vld [vmem:[#allocation13 + $0xd18] sm:$0xff]
    %v8657 = vld [vmem:[#allocation13 + $0xd20] sm:$0xff]
    %v8658 = vld [vmem:[#allocation13 + $0xd28] sm:$0xff]
    %v8659 = vld [vmem:[#allocation13 + $0xd30] sm:$0xff]
    %v8660 = vld [vmem:[#allocation13 + $0xd38] sm:$0xff]
    %v8661 = vld [vmem:[#allocation13 + $0xd40] sm:$0xff]
    %v8662 = vld [vmem:[#allocation13 + $0xd48] sm:$0xff]
    %v8663 = vld [vmem:[#allocation13 + $0xd50] sm:$0xff]
    %v8664 = vld [vmem:[#allocation13 + $0xd58] sm:$0xf]
    %v8665 = vld [vmem:[#allocation13 + $0xd5c] sm:$0xff]
    %v8666 = vld [vmem:[#allocation13 + $0xd64] sm:$0xff]
    %v8667 = vld [vmem:[#allocation13 + $0xd6c] sm:$0xff]
    %v8668 = vld [vmem:[#allocation13 + $0xd74] sm:$0xff]
    %v8669 = vld [vmem:[#allocation13 + $0xd7c] sm:$0xff]
    %v8670 = vld [vmem:[#allocation13 + $0xd84] sm:$0xff]
    %v8671 = vld [vmem:[#allocation13 + $0xd8c] sm:$0xff]
    %v8672 = vld [vmem:[#allocation13 + $0xd94] sm:$0xff]
    %v8673 = vld [vmem:[#allocation13 + $0xd9c] sm:$0xff]
    %v8674 = vld [vmem:[#allocation13 + $0xda4] sm:$0xf]
    %v8675 = vld [vmem:[#allocation13 + $0xda8] sm:$0xff]
    %v8676 = vld [vmem:[#allocation13 + $0xdb0] sm:$0xff]
    %v8677 = vld [vmem:[#allocation13 + $0xdb8] sm:$0xff]
    %v8678 = vld [vmem:[#allocation13 + $0xdc0] sm:$0xff]
    %v8679 = vld [vmem:[#allocation13 + $0xdc8] sm:$0xff]
    %v8680 = vld [vmem:[#allocation13 + $0xdd0] sm:$0xff]
    %v8681 = vld [vmem:[#allocation13 + $0xdd8] sm:$0xff]
    %v8682 = vld [vmem:[#allocation13 + $0xde0] sm:$0xff]
    %v8683 = vld [vmem:[#allocation13 + $0xde8] sm:$0xff]
    %v8684 = vld [vmem:[#allocation13 + $0xdf0] sm:$0xf]
    %v8685 = vld [vmem:[#allocation13 + $0xdf4] sm:$0xff]
    %v8686 = vld [vmem:[#allocation13 + $0xdfc] sm:$0xff]
    %v8687 = vld [vmem:[#allocation13 + $0xe04] sm:$0xff]
    %v8688 = vld [vmem:[#allocation13 + $0xe0c] sm:$0xff]
    %v8689 = vld [vmem:[#allocation13 + $0xe14] sm:$0xff]
    %v8690 = vld [vmem:[#allocation13 + $0xe1c] sm:$0xff]
    %v8691 = vld [vmem:[#allocation13 + $0xe24] sm:$0xff]
    %v8692 = vld [vmem:[#allocation13 + $0xe2c] sm:$0xff]
    %v8693 = vld [vmem:[#allocation13 + $0xe34] sm:$0xff]
    %v8694 = vld [vmem:[#allocation13 + $0xe3c] sm:$0xf]
    %v8695 = vld [vmem:[#allocation13 + $0xe40] sm:$0xff]
    %v8696 = vld [vmem:[#allocation13 + $0xe48] sm:$0xff]
    %v8697 = vld [vmem:[#allocation13 + $0xe50] sm:$0xff]
    %v8698 = vld [vmem:[#allocation13 + $0xe58] sm:$0xff]
    %v8699 = vld [vmem:[#allocation13 + $0xe60] sm:$0xff]
    %v8700 = vld [vmem:[#allocation13 + $0xe68] sm:$0xff]
    %v8701 = vld [vmem:[#allocation13 + $0xe70] sm:$0xff]
    %v8702 = vld [vmem:[#allocation13 + $0xe78] sm:$0xff]
    %v8703 = vld [vmem:[#allocation13 + $0xe80] sm:$0xff]
    %v8704 = vld [vmem:[#allocation13 + $0xe88] sm:$0xf]
    %v8705 = vld [vmem:[#allocation13 + $0xe8c] sm:$0xff]
    %v8706 = vld [vmem:[#allocation13 + $0xe94] sm:$0xff]
    %v8707 = vld [vmem:[#allocation13 + $0xe9c] sm:$0xff]
    %v8708 = vld [vmem:[#allocation13 + $0xea4] sm:$0xff]
    %v8709 = vld [vmem:[#allocation13 + $0xeac] sm:$0xff]
    %v8710 = vld [vmem:[#allocation13 + $0xeb4] sm:$0xff]
    %v8711 = vld [vmem:[#allocation13 + $0xebc] sm:$0xff]
    %v8712 = vld [vmem:[#allocation13 + $0xec4] sm:$0xff]
    %v8713 = vld [vmem:[#allocation13 + $0xecc] sm:$0xff]
    %v8714 = vld [vmem:[#allocation13 + $0xed4] sm:$0xf]
    %v8715 = vld [vmem:[#allocation13 + $0xed8] sm:$0xff]
    %v8716 = vld [vmem:[#allocation13 + $0xee0] sm:$0xff]
    %v8717 = vld [vmem:[#allocation13 + $0xee8] sm:$0xff]
    %v8718 = vld [vmem:[#allocation13 + $0xef0] sm:$0xff]
    %v8719 = vld [vmem:[#allocation13 + $0xef8] sm:$0xff]
    %v8720 = vld [vmem:[#allocation13 + $0xf00] sm:$0xff]
    %v8721 = vld [vmem:[#allocation13 + $0xf08] sm:$0xff]
    %v8722 = vld [vmem:[#allocation13 + $0xf10] sm:$0xff]
    %v8723 = vld [vmem:[#allocation13 + $0xf18] sm:$0xff]
    %v8724 = vld [vmem:[#allocation13 + $0xf20] sm:$0xf]
    %v8725 = vld [vmem:[#allocation13 + $0xf24] sm:$0xff]
    %v8726 = vld [vmem:[#allocation13 + $0xf2c] sm:$0xff]
    %v8727 = vld [vmem:[#allocation13 + $0xf34] sm:$0xff]
    %v8728 = vld [vmem:[#allocation13 + $0xf3c] sm:$0xff]
    %v8729 = vld [vmem:[#allocation13 + $0xf44] sm:$0xff]
    %v8730 = vld [vmem:[#allocation13 + $0xf4c] sm:$0xff]
    %v8731 = vld [vmem:[#allocation13 + $0xf54] sm:$0xff]
    %v8732 = vld [vmem:[#allocation13 + $0xf5c] sm:$0xff]
    %v8733 = vld [vmem:[#allocation13 + $0xf64] sm:$0xff]
    %v8734 = vld [vmem:[#allocation13 + $0xf6c] sm:$0xf]
    %v8735 = vld [vmem:[#allocation13 + $0xf70] sm:$0xff]
    %v8736 = vld [vmem:[#allocation13 + $0xf78] sm:$0xff]
    %v8737 = vld [vmem:[#allocation13 + $0xf80] sm:$0xff]
    %v8738 = vld [vmem:[#allocation13 + $0xf88] sm:$0xff]
    %v8739 = vld [vmem:[#allocation13 + $0xf90] sm:$0xff]
    %v8740 = vld [vmem:[#allocation13 + $0xf98] sm:$0xff]
    %v8741 = vld [vmem:[#allocation13 + $0xfa0] sm:$0xff]
    %v8742 = vld [vmem:[#allocation13 + $0xfa8] sm:$0xff]
    %v8743 = vld [vmem:[#allocation13 + $0xfb0] sm:$0xff]
    %v8744 = vld [vmem:[#allocation13 + $0xfb8] sm:$0xf]
    %v8745 = vld [vmem:[#allocation13 + $0xfbc] sm:$0xff]
    %v8746 = vld [vmem:[#allocation13 + $0xfc4] sm:$0xff]
    %v8747 = vld [vmem:[#allocation13 + $0xfcc] sm:$0xff]
    %v8748 = vld [vmem:[#allocation13 + $0xfd4] sm:$0xff]
    %v8749 = vld [vmem:[#allocation13 + $0xfdc] sm:$0xff]
    %v8750 = vld [vmem:[#allocation13 + $0xfe4] sm:$0xff]
    %v8751 = vld [vmem:[#allocation13 + $0xfec] sm:$0xff]
    %v8752 = vld [vmem:[#allocation13 + $0xff4] sm:$0xff]
    %v8753 = vld [vmem:[#allocation13 + $0xffc] sm:$0xff]
    %v8754 = vld [vmem:[#allocation13 + $0x1004] sm:$0xf]
    %v8755 = vld [vmem:[#allocation13 + $0x1008] sm:$0xff]
    %v8756 = vld [vmem:[#allocation13 + $0x1010] sm:$0xff]
    %v8757 = vld [vmem:[#allocation13 + $0x1018] sm:$0xff]
    %v8758 = vld [vmem:[#allocation13 + $0x1020] sm:$0xff]
    %v8759 = vld [vmem:[#allocation13 + $0x1028] sm:$0xff]
    %v8760 = vld [vmem:[#allocation13 + $0x1030] sm:$0xff]
    %v8761 = vld [vmem:[#allocation13 + $0x1038] sm:$0xff]
    %v8762 = vld [vmem:[#allocation13 + $0x1040] sm:$0xff]
    %v8763 = vld [vmem:[#allocation13 + $0x1048] sm:$0xff]
    %v8764 = vld [vmem:[#allocation13 + $0x1050] sm:$0xf]
    %v8765 = vld [vmem:[#allocation13 + $0x1054] sm:$0xff]
    %v8766 = vld [vmem:[#allocation13 + $0x105c] sm:$0xff]
    %v8767 = vld [vmem:[#allocation13 + $0x1064] sm:$0xff]
    %v8768 = vld [vmem:[#allocation13 + $0x106c] sm:$0xff]
    %v8769 = vld [vmem:[#allocation13 + $0x1074] sm:$0xff]
    %v8770 = vld [vmem:[#allocation13 + $0x107c] sm:$0xff]
    %v8771 = vld [vmem:[#allocation13 + $0x1084] sm:$0xff]
    %v8772 = vld [vmem:[#allocation13 + $0x108c] sm:$0xff]
    %v8773 = vld [vmem:[#allocation13 + $0x1094] sm:$0xff]
    %v8774 = vld [vmem:[#allocation13 + $0x109c] sm:$0xf]
    %v8775 = vld [vmem:[#allocation13 + $0x10a0] sm:$0xff]
    %v8776 = vld [vmem:[#allocation13 + $0x10a8] sm:$0xff]
    %v8777 = vld [vmem:[#allocation13 + $0x10b0] sm:$0xff]
    %v8778 = vld [vmem:[#allocation13 + $0x10b8] sm:$0xff]
    %v8779 = vld [vmem:[#allocation13 + $0x10c0] sm:$0xff]
    %v8780 = vld [vmem:[#allocation13 + $0x10c8] sm:$0xff]
    %v8781 = vld [vmem:[#allocation13 + $0x10d0] sm:$0xff]
    %v8782 = vld [vmem:[#allocation13 + $0x10d8] sm:$0xff]
    %v8783 = vld [vmem:[#allocation13 + $0x10e0] sm:$0xff]
    %v8784 = vld [vmem:[#allocation13 + $0x10e8] sm:$0xf]
    %v8785 = vld [vmem:[#allocation13 + $0x10ec] sm:$0xff]
    %v8786 = vld [vmem:[#allocation13 + $0x10f4] sm:$0xff]
    %v8787 = vld [vmem:[#allocation13 + $0x10fc] sm:$0xff]
    %v8788 = vld [vmem:[#allocation13 + $0x1104] sm:$0xff]
    %v8789 = vld [vmem:[#allocation13 + $0x110c] sm:$0xff]
    %v8790 = vld [vmem:[#allocation13 + $0x1114] sm:$0xff]
    %v8791 = vld [vmem:[#allocation13 + $0x111c] sm:$0xff]
    %v8792 = vld [vmem:[#allocation13 + $0x1124] sm:$0xff]
    %v8793 = vld [vmem:[#allocation13 + $0x112c] sm:$0xff]
    %v8794 = vld [vmem:[#allocation13 + $0x1134] sm:$0xf]
    %v8795 = vld [vmem:[#allocation13 + $0x1138] sm:$0xff]
    %v8796 = vld [vmem:[#allocation13 + $0x1140] sm:$0xff]
    %v8797 = vld [vmem:[#allocation13 + $0x1148] sm:$0xff]
    %v8798 = vld [vmem:[#allocation13 + $0x1150] sm:$0xff]
    %v8799 = vld [vmem:[#allocation13 + $0x1158] sm:$0xff]
    %v8800 = vld [vmem:[#allocation13 + $0x1160] sm:$0xff]
    %v8801 = vld [vmem:[#allocation13 + $0x1168] sm:$0xff]
    %v8802 = vld [vmem:[#allocation13 + $0x1170] sm:$0xff]
    %v8803 = vld [vmem:[#allocation13 + $0x1178] sm:$0xff]
    %v8804 = vld [vmem:[#allocation13 + $0x1180] sm:$0xf]
    %v8805 = vld [vmem:[#allocation13 + $0x1184] sm:$0xff]
    %v8806 = vld [vmem:[#allocation13 + $0x118c] sm:$0xff]
    %v8807 = vld [vmem:[#allocation13 + $0x1194] sm:$0xff]
    %v8808 = vld [vmem:[#allocation13 + $0x119c] sm:$0xff]
    %v8809 = vld [vmem:[#allocation13 + $0x11a4] sm:$0xff]
    %v8810 = vld [vmem:[#allocation13 + $0x11ac] sm:$0xff]
    %v8811 = vld [vmem:[#allocation13 + $0x11b4] sm:$0xff]
    %v8812 = vld [vmem:[#allocation13 + $0x11bc] sm:$0xff]
    %v8813 = vld [vmem:[#allocation13 + $0x11c4] sm:$0xff]
    %v8814 = vld [vmem:[#allocation13 + $0x11cc] sm:$0xf]
    %v8815 = vld [vmem:[#allocation13 + $0x11d0] sm:$0xff]
    %v8816 = vld [vmem:[#allocation13 + $0x11d8] sm:$0xff]
    %v8817 = vld [vmem:[#allocation13 + $0x11e0] sm:$0xff]
    %v8818 = vld [vmem:[#allocation13 + $0x11e8] sm:$0xff]
    %v8819 = vld [vmem:[#allocation13 + $0x11f0] sm:$0xff]
    %v8820 = vld [vmem:[#allocation13 + $0x11f8] sm:$0xff]
    %v8821 = vld [vmem:[#allocation13 + $0x1200] sm:$0xff]
    %v8822 = vld [vmem:[#allocation13 + $0x1208] sm:$0xff]
    %v8823 = vld [vmem:[#allocation13 + $0x1210] sm:$0xff]
    %v8824 = vld [vmem:[#allocation13 + $0x1218] sm:$0xf]
    %v8825 = vld [vmem:[#allocation13 + $0x121c] sm:$0xff]
    %v8826 = vld [vmem:[#allocation13 + $0x1224] sm:$0xff]
    %v8827 = vld [vmem:[#allocation13 + $0x122c] sm:$0xff]
    %v8828 = vld [vmem:[#allocation13 + $0x1234] sm:$0xff]
    %v8829 = vld [vmem:[#allocation13 + $0x123c] sm:$0xff]
    %v8830 = vld [vmem:[#allocation13 + $0x1244] sm:$0xff]
    %v8831 = vld [vmem:[#allocation13 + $0x124c] sm:$0xff]
    %v8832 = vld [vmem:[#allocation13 + $0x1254] sm:$0xff]
    %v8833 = vld [vmem:[#allocation13 + $0x125c] sm:$0xff]
    %v8834 = vld [vmem:[#allocation13 + $0x1264] sm:$0xf]
    %v8835 = vld [vmem:[#allocation13 + $0x1268] sm:$0xff]
    %v8836 = vld [vmem:[#allocation13 + $0x1270] sm:$0xff]
    %v8837 = vld [vmem:[#allocation13 + $0x1278] sm:$0xff]
    %v8838 = vld [vmem:[#allocation13 + $0x1280] sm:$0xff]
    %v8839 = vld [vmem:[#allocation13 + $0x1288] sm:$0xff]
    %v8840 = vld [vmem:[#allocation13 + $0x1290] sm:$0xff]
    %v8841 = vld [vmem:[#allocation13 + $0x1298] sm:$0xff]
    %v8842 = vld [vmem:[#allocation13 + $0x12a0] sm:$0xff]
    %v8843 = vld [vmem:[#allocation13 + $0x12a8] sm:$0xff]
    %v8844 = vld [vmem:[#allocation13 + $0x12b0] sm:$0xf]
    %v8845 = vld [vmem:[#allocation13 + $0x12b4] sm:$0xff]
    %v8846 = vld [vmem:[#allocation13 + $0x12bc] sm:$0xff]
    %v8847 = vld [vmem:[#allocation13 + $0x12c4] sm:$0xff]
    %v8848 = vld [vmem:[#allocation13 + $0x12cc] sm:$0xff]
    %v8849 = vld [vmem:[#allocation13 + $0x12d4] sm:$0xff]
    %v8850 = vld [vmem:[#allocation13 + $0x12dc] sm:$0xff]
    %v8851 = vld [vmem:[#allocation13 + $0x12e4] sm:$0xff]
    %v8852 = vld [vmem:[#allocation13 + $0x12ec] sm:$0xff]
    %v8853 = vld [vmem:[#allocation13 + $0x12f4] sm:$0xff]
    %v8854 = vld [vmem:[#allocation13 + $0x12fc] sm:$0xf]
    %v8855 = vld [vmem:[#allocation15 + $0x15] sm:$0xff]
    %v8856 = vld [vmem:[#allocation15 + $0x1d] sm:$0xff]
    %v8857 = vld [vmem:[#allocation15 + $0x25] sm:$0x7]
    %v8861 = vlaneseq
    %v8862 = vshrl.u32 %v8861, 7
    %v8863 = vsub.s32 0, %v8862
    %v8864 = vrot.slane %v8855, %v8863
    %v8865 = vlaneseq
    %v8866 = vshrl.u32 %v8865, 7
    %v8867 = vsub.s32 1, %v8866
    %v8868 = vrot.slane %v8855, %v8867
    %v8869 = vlaneseq
    %v8870 = vshrl.u32 %v8869, 7
    %v8871 = vsub.s32 2, %v8870
    %v8872 = vrot.slane %v8855, %v8871
    %v8873 = vlaneseq
    %v8874 = vshrl.u32 %v8873, 7
    %v8875 = vsub.s32 3, %v8874
    %v8876 = vrot.slane %v8855, %v8875
    %v8877 = vlaneseq
    %v8878 = vshrl.u32 %v8877, 7
    %v8879 = vsub.s32 4, %v8878
    %v8880 = vrot.slane %v8855, %v8879
    %v8881 = vlaneseq
    %v8882 = vshrl.u32 %v8881, 7
    %v8883 = vsub.s32 5, %v8882
    %v8884 = vrot.slane %v8855, %v8883
    %v8885 = vlaneseq
    %v8886 = vshrl.u32 %v8885, 7
    %v8887 = vsub.s32 6, %v8886
    %v8888 = vrot.slane %v8855, %v8887
    %v8889 = vlaneseq
    %v8890 = vshrl.u32 %v8889, 7
    %v8891 = vsub.s32 7, %v8890
    %v8892 = vrot.slane %v8855, %v8891
    %v8893 = vlaneseq
    %v8894 = vshrl.u32 %v8893, 7
    %v8895 = vsub.s32 0, %v8894
    %v8896 = vrot.slane %v8856, %v8895
    %v8897 = vlaneseq
    %v8898 = vshrl.u32 %v8897, 7
    %v8899 = vsub.s32 1, %v8898
    %v8900 = vrot.slane %v8856, %v8899
    %v8901 = vlaneseq
    %v8902 = vshrl.u32 %v8901, 7
    %v8903 = vsub.s32 2, %v8902
    %v8904 = vrot.slane %v8856, %v8903
    %v8905 = vlaneseq
    %v8906 = vshrl.u32 %v8905, 7
    %v8907 = vsub.s32 3, %v8906
    %v8908 = vrot.slane %v8856, %v8907
    %v8909 = vlaneseq
    %v8910 = vshrl.u32 %v8909, 7
    %v8911 = vsub.s32 4, %v8910
    %v8912 = vrot.slane %v8856, %v8911
    %v8913 = vlaneseq
    %v8914 = vshrl.u32 %v8913, 7
    %v8915 = vsub.s32 5, %v8914
    %v8916 = vrot.slane %v8856, %v8915
    %v8917 = vlaneseq
    %v8918 = vshrl.u32 %v8917, 7
    %v8919 = vsub.s32 6, %v8918
    %v8920 = vrot.slane %v8856, %v8919
    %v8921 = vlaneseq
    %v8922 = vshrl.u32 %v8921, 7
    %v8923 = vsub.s32 7, %v8922
    %v8924 = vrot.slane %v8856, %v8923
    %v8925 = vlaneseq
    %v8926 = vshrl.u32 %v8925, 7
    %v8927 = vsub.s32 0, %v8926
    %v8928 = vrot.slane %v8857, %v8927
    %v8929 = vlaneseq
    %v8930 = vshrl.u32 %v8929, 7
    %v8931 = vsub.s32 1, %v8930
    %v8932 = vrot.slane %v8857, %v8931
    %v8933 = vlaneseq
    %v8934 = vshrl.u32 %v8933, 7
    %v8935 = vsub.s32 2, %v8934
    %v8936 = vrot.slane %v8857, %v8935
    %v9596 = vunpack.c.l.b16 %v8215
    %v9597 = vunpack.c.h.b16 %v8215
    %v9598 = vunpack.c.l.b16 %v8216
    %v9599 = vunpack.c.h.b16 %v8216
    %v9600 = vunpack.c.l.b16 %v8217
    %v9601 = vunpack.c.h.b16 %v8217
    %v9602 = vunpack.c.l.b16 %v8218
    %v9603 = vunpack.c.h.b16 %v8218
    %v9604 = vunpack.c.l.b16 %v8219
    %v9605 = vunpack.c.h.b16 %v8219
    %v9606 = vunpack.c.l.b16 %v8220
    %v9607 = vunpack.c.h.b16 %v8220
    %v9608 = vunpack.c.l.b16 %v8221
    %v9609 = vunpack.c.h.b16 %v8221
    %v9610 = vunpack.c.l.b16 %v8222
    %v9611 = vunpack.c.h.b16 %v8222
    %v9612 = vunpack.c.l.b16 %v8223
    %v9613 = vunpack.c.h.b16 %v8223
    %v9614 = vunpack.c.l.b16 %v8224
    %v9615 = vunpack.c.l.b16 %v8225
    %v9616 = vunpack.c.h.b16 %v8225
    %v9617 = vunpack.c.l.b16 %v8226
    %v9618 = vunpack.c.h.b16 %v8226
    %v9619 = vunpack.c.l.b16 %v8227
    %v9620 = vunpack.c.h.b16 %v8227
    %v9621 = vunpack.c.l.b16 %v8228
    %v9622 = vunpack.c.h.b16 %v8228
    %v9623 = vunpack.c.l.b16 %v8229
    %v9624 = vunpack.c.h.b16 %v8229
    %v9625 = vunpack.c.l.b16 %v8230
    %v9626 = vunpack.c.h.b16 %v8230
    %v9627 = vunpack.c.l.b16 %v8231
    %v9628 = vunpack.c.h.b16 %v8231
    %v9629 = vunpack.c.l.b16 %v8232
    %v9630 = vunpack.c.h.b16 %v8232
    %v9631 = vunpack.c.l.b16 %v8233
    %v9632 = vunpack.c.h.b16 %v8233
    %v9633 = vunpack.c.l.b16 %v8234
    %v9634 = vunpack.c.l.b16 %v8235
    %v9635 = vunpack.c.h.b16 %v8235
    %v9636 = vunpack.c.l.b16 %v8236
    %v9637 = vunpack.c.h.b16 %v8236
    %v9638 = vunpack.c.l.b16 %v8237
    %v9639 = vunpack.c.h.b16 %v8237
    %v9640 = vunpack.c.l.b16 %v8238
    %v9641 = vunpack.c.h.b16 %v8238
    %v9642 = vunpack.c.l.b16 %v8239
    %v9643 = vunpack.c.h.b16 %v8239
    %v9644 = vunpack.c.l.b16 %v8240
    %v9645 = vunpack.c.h.b16 %v8240
    %v9646 = vunpack.c.l.b16 %v8241
    %v9647 = vunpack.c.h.b16 %v8241
    %v9648 = vunpack.c.l.b16 %v8242
    %v9649 = vunpack.c.h.b16 %v8242
    %v9650 = vunpack.c.l.b16 %v8243
    %v9651 = vunpack.c.h.b16 %v8243
    %v9652 = vunpack.c.l.b16 %v8244
    %v9653 = vunpack.c.l.b16 %v8245
    %v9654 = vunpack.c.h.b16 %v8245
    %v9655 = vunpack.c.l.b16 %v8246
    %v9656 = vunpack.c.h.b16 %v8246
    %v9657 = vunpack.c.l.b16 %v8247
    %v9658 = vunpack.c.h.b16 %v8247
    %v9659 = vunpack.c.l.b16 %v8248
    %v9660 = vunpack.c.h.b16 %v8248
    %v9661 = vunpack.c.l.b16 %v8249
    %v9662 = vunpack.c.h.b16 %v8249
    %v9663 = vunpack.c.l.b16 %v8250
    %v9664 = vunpack.c.h.b16 %v8250
    %v9665 = vunpack.c.l.b16 %v8251
    %v9666 = vunpack.c.h.b16 %v8251
    %v9667 = vunpack.c.l.b16 %v8252
    %v9668 = vunpack.c.h.b16 %v8252
    %v9669 = vunpack.c.l.b16 %v8253
    %v9670 = vunpack.c.h.b16 %v8253
    %v9671 = vunpack.c.l.b16 %v8254
    %v9672 = vunpack.c.l.b16 %v8255
    %v9673 = vunpack.c.h.b16 %v8255
    %v9674 = vunpack.c.l.b16 %v8256
    %v9675 = vunpack.c.h.b16 %v8256
    %v9676 = vunpack.c.l.b16 %v8257
    %v9677 = vunpack.c.h.b16 %v8257
    %v9678 = vunpack.c.l.b16 %v8258
    %v9679 = vunpack.c.h.b16 %v8258
    %v9680 = vunpack.c.l.b16 %v8259
    %v9681 = vunpack.c.h.b16 %v8259
    %v9682 = vunpack.c.l.b16 %v8260
    %v9683 = vunpack.c.h.b16 %v8260
    %v9684 = vunpack.c.l.b16 %v8261
    %v9685 = vunpack.c.h.b16 %v8261
    %v9686 = vunpack.c.l.b16 %v8262
    %v9687 = vunpack.c.h.b16 %v8262
    %v9688 = vunpack.c.l.b16 %v8263
    %v9689 = vunpack.c.h.b16 %v8263
    %v9690 = vunpack.c.l.b16 %v8264
    %v9691 = vunpack.c.l.b16 %v8265
    %v9692 = vunpack.c.h.b16 %v8265
    %v9693 = vunpack.c.l.b16 %v8266
    %v9694 = vunpack.c.h.b16 %v8266
    %v9695 = vunpack.c.l.b16 %v8267
    %v9696 = vunpack.c.h.b16 %v8267
    %v9697 = vunpack.c.l.b16 %v8268
    %v9698 = vunpack.c.h.b16 %v8268
    %v9699 = vunpack.c.l.b16 %v8269
    %v9700 = vunpack.c.h.b16 %v8269
    %v9701 = vunpack.c.l.b16 %v8270
    %v9702 = vunpack.c.h.b16 %v8270
    %v9703 = vunpack.c.l.b16 %v8271
    %v9704 = vunpack.c.h.b16 %v8271
    %v9705 = vunpack.c.l.b16 %v8272
    %v9706 = vunpack.c.h.b16 %v8272
    %v9707 = vunpack.c.l.b16 %v8273
    %v9708 = vunpack.c.h.b16 %v8273
    %v9709 = vunpack.c.l.b16 %v8274
    %v9710 = vunpack.c.l.b16 %v8275
    %v9711 = vunpack.c.h.b16 %v8275
    %v9712 = vunpack.c.l.b16 %v8276
    %v9713 = vunpack.c.h.b16 %v8276
    %v9714 = vunpack.c.l.b16 %v8277
    %v9715 = vunpack.c.h.b16 %v8277
    %v9716 = vunpack.c.l.b16 %v8278
    %v9717 = vunpack.c.h.b16 %v8278
    %v9718 = vunpack.c.l.b16 %v8279
    %v9719 = vunpack.c.h.b16 %v8279
    %v9720 = vunpack.c.l.b16 %v8280
    %v9721 = vunpack.c.h.b16 %v8280
    %v9722 = vunpack.c.l.b16 %v8281
    %v9723 = vunpack.c.h.b16 %v8281
    %v9724 = vunpack.c.l.b16 %v8282
    %v9725 = vunpack.c.h.b16 %v8282
    %v9726 = vunpack.c.l.b16 %v8283
    %v9727 = vunpack.c.h.b16 %v8283
    %v9728 = vunpack.c.l.b16 %v8284
    %v9729 = vunpack.c.l.b16 %v8285
    %v9730 = vunpack.c.h.b16 %v8285
    %v9731 = vunpack.c.l.b16 %v8286
    %v9732 = vunpack.c.h.b16 %v8286
    %v9733 = vunpack.c.l.b16 %v8287
    %v9734 = vunpack.c.h.b16 %v8287
    %v9735 = vunpack.c.l.b16 %v8288
    %v9736 = vunpack.c.h.b16 %v8288
    %v9737 = vunpack.c.l.b16 %v8289
    %v9738 = vunpack.c.h.b16 %v8289
    %v9739 = vunpack.c.l.b16 %v8290
    %v9740 = vunpack.c.h.b16 %v8290
    %v9741 = vunpack.c.l.b16 %v8291
    %v9742 = vunpack.c.h.b16 %v8291
    %v9743 = vunpack.c.l.b16 %v8292
    %v9744 = vunpack.c.h.b16 %v8292
    %v9745 = vunpack.c.l.b16 %v8293
    %v9746 = vunpack.c.h.b16 %v8293
    %v9747 = vunpack.c.l.b16 %v8294
    %v9748 = vunpack.c.l.b16 %v8295
    %v9749 = vunpack.c.h.b16 %v8295
    %v9750 = vunpack.c.l.b16 %v8296
    %v9751 = vunpack.c.h.b16 %v8296
    %v9752 = vunpack.c.l.b16 %v8297
    %v9753 = vunpack.c.h.b16 %v8297
    %v9754 = vunpack.c.l.b16 %v8298
    %v9755 = vunpack.c.h.b16 %v8298
    %v9756 = vunpack.c.l.b16 %v8299
    %v9757 = vunpack.c.h.b16 %v8299
    %v9758 = vunpack.c.l.b16 %v8300
    %v9759 = vunpack.c.h.b16 %v8300
    %v9760 = vunpack.c.l.b16 %v8301
    %v9761 = vunpack.c.h.b16 %v8301
    %v9762 = vunpack.c.l.b16 %v8302
    %v9763 = vunpack.c.h.b16 %v8302
    %v9764 = vunpack.c.l.b16 %v8303
    %v9765 = vunpack.c.h.b16 %v8303
    %v9766 = vunpack.c.l.b16 %v8304
    %v9767 = vunpack.c.l.b16 %v8305
    %v9768 = vunpack.c.h.b16 %v8305
    %v9769 = vunpack.c.l.b16 %v8306
    %v9770 = vunpack.c.h.b16 %v8306
    %v9771 = vunpack.c.l.b16 %v8307
    %v9772 = vunpack.c.h.b16 %v8307
    %v9773 = vunpack.c.l.b16 %v8308
    %v9774 = vunpack.c.h.b16 %v8308
    %v9775 = vunpack.c.l.b16 %v8309
    %v9776 = vunpack.c.h.b16 %v8309
    %v9777 = vunpack.c.l.b16 %v8310
    %v9778 = vunpack.c.h.b16 %v8310
    %v9779 = vunpack.c.l.b16 %v8311
    %v9780 = vunpack.c.h.b16 %v8311
    %v9781 = vunpack.c.l.b16 %v8312
    %v9782 = vunpack.c.h.b16 %v8312
    %v9783 = vunpack.c.l.b16 %v8313
    %v9784 = vunpack.c.h.b16 %v8313
    %v9785 = vunpack.c.l.b16 %v8314
    %v9786 = vunpack.c.l.b16 %v8315
    %v9787 = vunpack.c.h.b16 %v8315
    %v9788 = vunpack.c.l.b16 %v8316
    %v9789 = vunpack.c.h.b16 %v8316
    %v9790 = vunpack.c.l.b16 %v8317
    %v9791 = vunpack.c.h.b16 %v8317
    %v9792 = vunpack.c.l.b16 %v8318
    %v9793 = vunpack.c.h.b16 %v8318
    %v9794 = vunpack.c.l.b16 %v8319
    %v9795 = vunpack.c.h.b16 %v8319
    %v9796 = vunpack.c.l.b16 %v8320
    %v9797 = vunpack.c.h.b16 %v8320
    %v9798 = vunpack.c.l.b16 %v8321
    %v9799 = vunpack.c.h.b16 %v8321
    %v9800 = vunpack.c.l.b16 %v8322
    %v9801 = vunpack.c.h.b16 %v8322
    %v9802 = vunpack.c.l.b16 %v8323
    %v9803 = vunpack.c.h.b16 %v8323
    %v9804 = vunpack.c.l.b16 %v8324
    %v9805 = vunpack.c.l.b16 %v8325
    %v9806 = vunpack.c.h.b16 %v8325
    %v9807 = vunpack.c.l.b16 %v8326
    %v9808 = vunpack.c.h.b16 %v8326
    %v9809 = vunpack.c.l.b16 %v8327
    %v9810 = vunpack.c.h.b16 %v8327
    %v9811 = vunpack.c.l.b16 %v8328
    %v9812 = vunpack.c.h.b16 %v8328
    %v9813 = vunpack.c.l.b16 %v8329
    %v9814 = vunpack.c.h.b16 %v8329
    %v9815 = vunpack.c.l.b16 %v8330
    %v9816 = vunpack.c.h.b16 %v8330
    %v9817 = vunpack.c.l.b16 %v8331
    %v9818 = vunpack.c.h.b16 %v8331
    %v9819 = vunpack.c.l.b16 %v8332
    %v9820 = vunpack.c.h.b16 %v8332
    %v9821 = vunpack.c.l.b16 %v8333
    %v9822 = vunpack.c.h.b16 %v8333
    %v9823 = vunpack.c.l.b16 %v8334
    %v9824 = vunpack.c.l.b16 %v8335
    %v9825 = vunpack.c.h.b16 %v8335
    %v9826 = vunpack.c.l.b16 %v8336
    %v9827 = vunpack.c.h.b16 %v8336
    %v9828 = vunpack.c.l.b16 %v8337
    %v9829 = vunpack.c.h.b16 %v8337
    %v9830 = vunpack.c.l.b16 %v8338
    %v9831 = vunpack.c.h.b16 %v8338
    %v9832 = vunpack.c.l.b16 %v8339
    %v9833 = vunpack.c.h.b16 %v8339
    %v9834 = vunpack.c.l.b16 %v8340
    %v9835 = vunpack.c.h.b16 %v8340
    %v9836 = vunpack.c.l.b16 %v8341
    %v9837 = vunpack.c.h.b16 %v8341
    %v9838 = vunpack.c.l.b16 %v8342
    %v9839 = vunpack.c.h.b16 %v8342
    %v9840 = vunpack.c.l.b16 %v8343
    %v9841 = vunpack.c.h.b16 %v8343
    %v9842 = vunpack.c.l.b16 %v8344
    %v9843 = vunpack.c.l.b16 %v8345
    %v9844 = vunpack.c.h.b16 %v8345
    %v9845 = vunpack.c.l.b16 %v8346
    %v9846 = vunpack.c.h.b16 %v8346
    %v9847 = vunpack.c.l.b16 %v8347
    %v9848 = vunpack.c.h.b16 %v8347
    %v9849 = vunpack.c.l.b16 %v8348
    %v9850 = vunpack.c.h.b16 %v8348
    %v9851 = vunpack.c.l.b16 %v8349
    %v9852 = vunpack.c.h.b16 %v8349
    %v9853 = vunpack.c.l.b16 %v8350
    %v9854 = vunpack.c.h.b16 %v8350
    %v9855 = vunpack.c.l.b16 %v8351
    %v9856 = vunpack.c.h.b16 %v8351
    %v9857 = vunpack.c.l.b16 %v8352
    %v9858 = vunpack.c.h.b16 %v8352
    %v9859 = vunpack.c.l.b16 %v8353
    %v9860 = vunpack.c.h.b16 %v8353
    %v9861 = vunpack.c.l.b16 %v8354
    %v9862 = vunpack.c.l.b16 %v8355
    %v9863 = vunpack.c.h.b16 %v8355
    %v9864 = vunpack.c.l.b16 %v8356
    %v9865 = vunpack.c.h.b16 %v8356
    %v9866 = vunpack.c.l.b16 %v8357
    %v9867 = vunpack.c.h.b16 %v8357
    %v9868 = vunpack.c.l.b16 %v8358
    %v9869 = vunpack.c.h.b16 %v8358
    %v9870 = vunpack.c.l.b16 %v8359
    %v9871 = vunpack.c.h.b16 %v8359
    %v9872 = vunpack.c.l.b16 %v8360
    %v9873 = vunpack.c.h.b16 %v8360
    %v9874 = vunpack.c.l.b16 %v8361
    %v9875 = vunpack.c.h.b16 %v8361
    %v9876 = vunpack.c.l.b16 %v8362
    %v9877 = vunpack.c.h.b16 %v8362
    %v9878 = vunpack.c.l.b16 %v8363
    %v9879 = vunpack.c.h.b16 %v8363
    %v9880 = vunpack.c.l.b16 %v8364
    %v9881 = vunpack.c.l.b16 %v8365
    %v9882 = vunpack.c.h.b16 %v8365
    %v9883 = vunpack.c.l.b16 %v8366
    %v9884 = vunpack.c.h.b16 %v8366
    %v9885 = vunpack.c.l.b16 %v8367
    %v9886 = vunpack.c.h.b16 %v8367
    %v9887 = vunpack.c.l.b16 %v8368
    %v9888 = vunpack.c.h.b16 %v8368
    %v9889 = vunpack.c.l.b16 %v8369
    %v9890 = vunpack.c.h.b16 %v8369
    %v9891 = vunpack.c.l.b16 %v8370
    %v9892 = vunpack.c.h.b16 %v8370
    %v9893 = vunpack.c.l.b16 %v8371
    %v9894 = vunpack.c.h.b16 %v8371
    %v9895 = vunpack.c.l.b16 %v8372
    %v9896 = vunpack.c.h.b16 %v8372
    %v9897 = vunpack.c.l.b16 %v8373
    %v9898 = vunpack.c.h.b16 %v8373
    %v9899 = vunpack.c.l.b16 %v8374
    %v9900 = vunpack.c.l.b16 %v8375
    %v9901 = vunpack.c.h.b16 %v8375
    %v9902 = vunpack.c.l.b16 %v8376
    %v9903 = vunpack.c.h.b16 %v8376
    %v9904 = vunpack.c.l.b16 %v8377
    %v9905 = vunpack.c.h.b16 %v8377
    %v9906 = vunpack.c.l.b16 %v8378
    %v9907 = vunpack.c.h.b16 %v8378
    %v9908 = vunpack.c.l.b16 %v8379
    %v9909 = vunpack.c.h.b16 %v8379
    %v9910 = vunpack.c.l.b16 %v8380
    %v9911 = vunpack.c.h.b16 %v8380
    %v9912 = vunpack.c.l.b16 %v8381
    %v9913 = vunpack.c.h.b16 %v8381
    %v9914 = vunpack.c.l.b16 %v8382
    %v9915 = vunpack.c.h.b16 %v8382
    %v9916 = vunpack.c.l.b16 %v8383
    %v9917 = vunpack.c.h.b16 %v8383
    %v9918 = vunpack.c.l.b16 %v8384
    %v9919 = vunpack.c.l.b16 %v8385
    %v9920 = vunpack.c.h.b16 %v8385
    %v9921 = vunpack.c.l.b16 %v8386
    %v9922 = vunpack.c.h.b16 %v8386
    %v9923 = vunpack.c.l.b16 %v8387
    %v9924 = vunpack.c.h.b16 %v8387
    %v9925 = vunpack.c.l.b16 %v8388
    %v9926 = vunpack.c.h.b16 %v8388
    %v9927 = vunpack.c.l.b16 %v8389
    %v9928 = vunpack.c.h.b16 %v8389
    %v9929 = vunpack.c.l.b16 %v8390
    %v9930 = vunpack.c.h.b16 %v8390
    %v9931 = vunpack.c.l.b16 %v8391
    %v9932 = vunpack.c.h.b16 %v8391
    %v9933 = vunpack.c.l.b16 %v8392
    %v9934 = vunpack.c.h.b16 %v8392
    %v9935 = vunpack.c.l.b16 %v8393
    %v9936 = vunpack.c.h.b16 %v8393
    %v9937 = vunpack.c.l.b16 %v8394
    %v9938 = vunpack.c.l.b16 %v8395
    %v9939 = vunpack.c.h.b16 %v8395
    %v9940 = vunpack.c.l.b16 %v8396
    %v9941 = vunpack.c.h.b16 %v8396
    %v9942 = vunpack.c.l.b16 %v8397
    %v9943 = vunpack.c.h.b16 %v8397
    %v9944 = vunpack.c.l.b16 %v8398
    %v9945 = vunpack.c.h.b16 %v8398
    %v9946 = vunpack.c.l.b16 %v8399
    %v9947 = vunpack.c.h.b16 %v8399
    %v9948 = vunpack.c.l.b16 %v8400
    %v9949 = vunpack.c.h.b16 %v8400
    %v9950 = vunpack.c.l.b16 %v8401
    %v9951 = vunpack.c.h.b16 %v8401
    %v9952 = vunpack.c.l.b16 %v8402
    %v9953 = vunpack.c.h.b16 %v8402
    %v9954 = vunpack.c.l.b16 %v8403
    %v9955 = vunpack.c.h.b16 %v8403
    %v9956 = vunpack.c.l.b16 %v8404
    %v9957 = vunpack.c.l.b16 %v8405
    %v9958 = vunpack.c.h.b16 %v8405
    %v9959 = vunpack.c.l.b16 %v8406
    %v9960 = vunpack.c.h.b16 %v8406
    %v9961 = vunpack.c.l.b16 %v8407
    %v9962 = vunpack.c.h.b16 %v8407
    %v9963 = vunpack.c.l.b16 %v8408
    %v9964 = vunpack.c.h.b16 %v8408
    %v9965 = vunpack.c.l.b16 %v8409
    %v9966 = vunpack.c.h.b16 %v8409
    %v9967 = vunpack.c.l.b16 %v8410
    %v9968 = vunpack.c.h.b16 %v8410
    %v9969 = vunpack.c.l.b16 %v8411
    %v9970 = vunpack.c.h.b16 %v8411
    %v9971 = vunpack.c.l.b16 %v8412
    %v9972 = vunpack.c.h.b16 %v8412
    %v9973 = vunpack.c.l.b16 %v8413
    %v9974 = vunpack.c.h.b16 %v8413
    %v9975 = vunpack.c.l.b16 %v8414
    %v9976 = vunpack.c.l.b16 %v8415
    %v9977 = vunpack.c.h.b16 %v8415
    %v9978 = vunpack.c.l.b16 %v8416
    %v9979 = vunpack.c.h.b16 %v8416
    %v9980 = vunpack.c.l.b16 %v8417
    %v9981 = vunpack.c.h.b16 %v8417
    %v9982 = vunpack.c.l.b16 %v8418
    %v9983 = vunpack.c.h.b16 %v8418
    %v9984 = vunpack.c.l.b16 %v8419
    %v9985 = vunpack.c.h.b16 %v8419
    %v9986 = vunpack.c.l.b16 %v8420
    %v9987 = vunpack.c.h.b16 %v8420
    %v9988 = vunpack.c.l.b16 %v8421
    %v9989 = vunpack.c.h.b16 %v8421
    %v9990 = vunpack.c.l.b16 %v8422
    %v9991 = vunpack.c.h.b16 %v8422
    %v9992 = vunpack.c.l.b16 %v8423
    %v9993 = vunpack.c.h.b16 %v8423
    %v9994 = vunpack.c.l.b16 %v8424
    %v9995 = vunpack.c.l.b16 %v8425
    %v9996 = vunpack.c.h.b16 %v8425
    %v9997 = vunpack.c.l.b16 %v8426
    %v9998 = vunpack.c.h.b16 %v8426
    %v9999 = vunpack.c.l.b16 %v8427
    %v10000 = vunpack.c.h.b16 %v8427
    %v10001 = vunpack.c.l.b16 %v8428
    %v10002 = vunpack.c.h.b16 %v8428
    %v10003 = vunpack.c.l.b16 %v8429
    %v10004 = vunpack.c.h.b16 %v8429
    %v10005 = vunpack.c.l.b16 %v8430
    %v10006 = vunpack.c.h.b16 %v8430
    %v10007 = vunpack.c.l.b16 %v8431
    %v10008 = vunpack.c.h.b16 %v8431
    %v10009 = vunpack.c.l.b16 %v8432
    %v10010 = vunpack.c.h.b16 %v8432
    %v10011 = vunpack.c.l.b16 %v8433
    %v10012 = vunpack.c.h.b16 %v8433
    %v10013 = vunpack.c.l.b16 %v8434
    %v10014 = vunpack.c.l.b16 %v8435
    %v10015 = vunpack.c.h.b16 %v8435
    %v10016 = vunpack.c.l.b16 %v8436
    %v10017 = vunpack.c.h.b16 %v8436
    %v10018 = vunpack.c.l.b16 %v8437
    %v10019 = vunpack.c.h.b16 %v8437
    %v10020 = vunpack.c.l.b16 %v8438
    %v10021 = vunpack.c.h.b16 %v8438
    %v10022 = vunpack.c.l.b16 %v8439
    %v10023 = vunpack.c.h.b16 %v8439
    %v10024 = vunpack.c.l.b16 %v8440
    %v10025 = vunpack.c.h.b16 %v8440
    %v10026 = vunpack.c.l.b16 %v8441
    %v10027 = vunpack.c.h.b16 %v8441
    %v10028 = vunpack.c.l.b16 %v8442
    %v10029 = vunpack.c.h.b16 %v8442
    %v10030 = vunpack.c.l.b16 %v8443
    %v10031 = vunpack.c.h.b16 %v8443
    %v10032 = vunpack.c.l.b16 %v8444
    %v10033 = vunpack.c.l.b16 %v8445
    %v10034 = vunpack.c.h.b16 %v8445
    %v10035 = vunpack.c.l.b16 %v8446
    %v10036 = vunpack.c.h.b16 %v8446
    %v10037 = vunpack.c.l.b16 %v8447
    %v10038 = vunpack.c.h.b16 %v8447
    %v10039 = vunpack.c.l.b16 %v8448
    %v10040 = vunpack.c.h.b16 %v8448
    %v10041 = vunpack.c.l.b16 %v8449
    %v10042 = vunpack.c.h.b16 %v8449
    %v10043 = vunpack.c.l.b16 %v8450
    %v10044 = vunpack.c.h.b16 %v8450
    %v10045 = vunpack.c.l.b16 %v8451
    %v10046 = vunpack.c.h.b16 %v8451
    %v10047 = vunpack.c.l.b16 %v8452
    %v10048 = vunpack.c.h.b16 %v8452
    %v10049 = vunpack.c.l.b16 %v8453
    %v10050 = vunpack.c.h.b16 %v8453
    %v10051 = vunpack.c.l.b16 %v8454
    %v10052 = vunpack.c.l.b16 %v8455
    %v10053 = vunpack.c.h.b16 %v8455
    %v10054 = vunpack.c.l.b16 %v8456
    %v10055 = vunpack.c.h.b16 %v8456
    %v10056 = vunpack.c.l.b16 %v8457
    %v10057 = vunpack.c.h.b16 %v8457
    %v10058 = vunpack.c.l.b16 %v8458
    %v10059 = vunpack.c.h.b16 %v8458
    %v10060 = vunpack.c.l.b16 %v8459
    %v10061 = vunpack.c.h.b16 %v8459
    %v10062 = vunpack.c.l.b16 %v8460
    %v10063 = vunpack.c.h.b16 %v8460
    %v10064 = vunpack.c.l.b16 %v8461
    %v10065 = vunpack.c.h.b16 %v8461
    %v10066 = vunpack.c.l.b16 %v8462
    %v10067 = vunpack.c.h.b16 %v8462
    %v10068 = vunpack.c.l.b16 %v8463
    %v10069 = vunpack.c.h.b16 %v8463
    %v10070 = vunpack.c.l.b16 %v8464
    %v10071 = vunpack.c.l.b16 %v8465
    %v10072 = vunpack.c.h.b16 %v8465
    %v10073 = vunpack.c.l.b16 %v8466
    %v10074 = vunpack.c.h.b16 %v8466
    %v10075 = vunpack.c.l.b16 %v8467
    %v10076 = vunpack.c.h.b16 %v8467
    %v10077 = vunpack.c.l.b16 %v8468
    %v10078 = vunpack.c.h.b16 %v8468
    %v10079 = vunpack.c.l.b16 %v8469
    %v10080 = vunpack.c.h.b16 %v8469
    %v10081 = vunpack.c.l.b16 %v8470
    %v10082 = vunpack.c.h.b16 %v8470
    %v10083 = vunpack.c.l.b16 %v8471
    %v10084 = vunpack.c.h.b16 %v8471
    %v10085 = vunpack.c.l.b16 %v8472
    %v10086 = vunpack.c.h.b16 %v8472
    %v10087 = vunpack.c.l.b16 %v8473
    %v10088 = vunpack.c.h.b16 %v8473
    %v10089 = vunpack.c.l.b16 %v8474
    %v10090 = vunpack.c.l.b16 %v8475
    %v10091 = vunpack.c.h.b16 %v8475
    %v10092 = vunpack.c.l.b16 %v8476
    %v10093 = vunpack.c.h.b16 %v8476
    %v10094 = vunpack.c.l.b16 %v8477
    %v10095 = vunpack.c.h.b16 %v8477
    %v10096 = vunpack.c.l.b16 %v8478
    %v10097 = vunpack.c.h.b16 %v8478
    %v10098 = vunpack.c.l.b16 %v8479
    %v10099 = vunpack.c.h.b16 %v8479
    %v10100 = vunpack.c.l.b16 %v8480
    %v10101 = vunpack.c.h.b16 %v8480
    %v10102 = vunpack.c.l.b16 %v8481
    %v10103 = vunpack.c.h.b16 %v8481
    %v10104 = vunpack.c.l.b16 %v8482
    %v10105 = vunpack.c.h.b16 %v8482
    %v10106 = vunpack.c.l.b16 %v8483
    %v10107 = vunpack.c.h.b16 %v8483
    %v10108 = vunpack.c.l.b16 %v8484
    %v10109 = vunpack.c.l.b16 %v8485
    %v10110 = vunpack.c.h.b16 %v8485
    %v10111 = vunpack.c.l.b16 %v8486
    %v10112 = vunpack.c.h.b16 %v8486
    %v10113 = vunpack.c.l.b16 %v8487
    %v10114 = vunpack.c.h.b16 %v8487
    %v10115 = vunpack.c.l.b16 %v8488
    %v10116 = vunpack.c.h.b16 %v8488
    %v10117 = vunpack.c.l.b16 %v8489
    %v10118 = vunpack.c.h.b16 %v8489
    %v10119 = vunpack.c.l.b16 %v8490
    %v10120 = vunpack.c.h.b16 %v8490
    %v10121 = vunpack.c.l.b16 %v8491
    %v10122 = vunpack.c.h.b16 %v8491
    %v10123 = vunpack.c.l.b16 %v8492
    %v10124 = vunpack.c.h.b16 %v8492
    %v10125 = vunpack.c.l.b16 %v8493
    %v10126 = vunpack.c.h.b16 %v8493
    %v10127 = vunpack.c.l.b16 %v8494
    %v10128 = vunpack.c.l.b16 %v8495
    %v10129 = vunpack.c.h.b16 %v8495
    %v10130 = vunpack.c.l.b16 %v8496
    %v10131 = vunpack.c.h.b16 %v8496
    %v10132 = vunpack.c.l.b16 %v8497
    %v10133 = vunpack.c.h.b16 %v8497
    %v10134 = vunpack.c.l.b16 %v8498
    %v10135 = vunpack.c.h.b16 %v8498
    %v10136 = vunpack.c.l.b16 %v8499
    %v10137 = vunpack.c.h.b16 %v8499
    %v10138 = vunpack.c.l.b16 %v8500
    %v10139 = vunpack.c.h.b16 %v8500
    %v10140 = vunpack.c.l.b16 %v8501
    %v10141 = vunpack.c.h.b16 %v8501
    %v10142 = vunpack.c.l.b16 %v8502
    %v10143 = vunpack.c.h.b16 %v8502
    %v10144 = vunpack.c.l.b16 %v8503
    %v10145 = vunpack.c.h.b16 %v8503
    %v10146 = vunpack.c.l.b16 %v8504
    %v10147 = vunpack.c.l.b16 %v8505
    %v10148 = vunpack.c.h.b16 %v8505
    %v10149 = vunpack.c.l.b16 %v8506
    %v10150 = vunpack.c.h.b16 %v8506
    %v10151 = vunpack.c.l.b16 %v8507
    %v10152 = vunpack.c.h.b16 %v8507
    %v10153 = vunpack.c.l.b16 %v8508
    %v10154 = vunpack.c.h.b16 %v8508
    %v10155 = vunpack.c.l.b16 %v8509
    %v10156 = vunpack.c.h.b16 %v8509
    %v10157 = vunpack.c.l.b16 %v8510
    %v10158 = vunpack.c.h.b16 %v8510
    %v10159 = vunpack.c.l.b16 %v8511
    %v10160 = vunpack.c.h.b16 %v8511
    %v10161 = vunpack.c.l.b16 %v8512
    %v10162 = vunpack.c.h.b16 %v8512
    %v10163 = vunpack.c.l.b16 %v8513
    %v10164 = vunpack.c.h.b16 %v8513
    %v10165 = vunpack.c.l.b16 %v8514
    %v10166 = vunpack.c.l.b16 %v8515
    %v10167 = vunpack.c.h.b16 %v8515
    %v10168 = vunpack.c.l.b16 %v8516
    %v10169 = vunpack.c.h.b16 %v8516
    %v10170 = vunpack.c.l.b16 %v8517
    %v10171 = vunpack.c.h.b16 %v8517
    %v10172 = vunpack.c.l.b16 %v8518
    %v10173 = vunpack.c.h.b16 %v8518
    %v10174 = vunpack.c.l.b16 %v8519
    %v10175 = vunpack.c.h.b16 %v8519
    %v10176 = vunpack.c.l.b16 %v8520
    %v10177 = vunpack.c.h.b16 %v8520
    %v10178 = vunpack.c.l.b16 %v8521
    %v10179 = vunpack.c.h.b16 %v8521
    %v10180 = vunpack.c.l.b16 %v8522
    %v10181 = vunpack.c.h.b16 %v8522
    %v10182 = vunpack.c.l.b16 %v8523
    %v10183 = vunpack.c.h.b16 %v8523
    %v10184 = vunpack.c.l.b16 %v8524
    %v10185 = vunpack.c.l.b16 %v8525
    %v10186 = vunpack.c.h.b16 %v8525
    %v10187 = vunpack.c.l.b16 %v8526
    %v10188 = vunpack.c.h.b16 %v8526
    %v10189 = vunpack.c.l.b16 %v8527
    %v10190 = vunpack.c.h.b16 %v8527
    %v10191 = vunpack.c.l.b16 %v8528
    %v10192 = vunpack.c.h.b16 %v8528
    %v10193 = vunpack.c.l.b16 %v8529
    %v10194 = vunpack.c.h.b16 %v8529
    %v10195 = vunpack.c.l.b16 %v8530
    %v10196 = vunpack.c.h.b16 %v8530
    %v10197 = vunpack.c.l.b16 %v8531
    %v10198 = vunpack.c.h.b16 %v8531
    %v10199 = vunpack.c.l.b16 %v8532
    %v10200 = vunpack.c.h.b16 %v8532
    %v10201 = vunpack.c.l.b16 %v8533
    %v10202 = vunpack.c.h.b16 %v8533
    %v10203 = vunpack.c.l.b16 %v8534
    %v10204 = vunpack.c.l.b16 %v8535
    %v10205 = vunpack.c.h.b16 %v8535
    %v10206 = vunpack.c.l.b16 %v8536
    %v10207 = vunpack.c.h.b16 %v8536
    %v10208 = vunpack.c.l.b16 %v8537
    %v10209 = vunpack.c.h.b16 %v8537
    %v10210 = vunpack.c.l.b16 %v8538
    %v10211 = vunpack.c.h.b16 %v8538
    %v10212 = vunpack.c.l.b16 %v8539
    %v10213 = vunpack.c.h.b16 %v8539
    %v10214 = vunpack.c.l.b16 %v8540
    %v10215 = vunpack.c.h.b16 %v8540
    %v10216 = vunpack.c.l.b16 %v8541
    %v10217 = vunpack.c.h.b16 %v8541
    %v10218 = vunpack.c.l.b16 %v8542
    %v10219 = vunpack.c.h.b16 %v8542
    %v10220 = vunpack.c.l.b16 %v8543
    %v10221 = vunpack.c.h.b16 %v8543
    %v10222 = vunpack.c.l.b16 %v8544
    %v10223 = vunpack.c.l.b16 %v8545
    %v10224 = vunpack.c.h.b16 %v8545
    %v10225 = vunpack.c.l.b16 %v8546
    %v10226 = vunpack.c.h.b16 %v8546
    %v10227 = vunpack.c.l.b16 %v8547
    %v10228 = vunpack.c.h.b16 %v8547
    %v10229 = vunpack.c.l.b16 %v8548
    %v10230 = vunpack.c.h.b16 %v8548
    %v10231 = vunpack.c.l.b16 %v8549
    %v10232 = vunpack.c.h.b16 %v8549
    %v10233 = vunpack.c.l.b16 %v8550
    %v10234 = vunpack.c.h.b16 %v8550
    %v10235 = vunpack.c.l.b16 %v8551
    %v10236 = vunpack.c.h.b16 %v8551
    %v10237 = vunpack.c.l.b16 %v8552
    %v10238 = vunpack.c.h.b16 %v8552
    %v10239 = vunpack.c.l.b16 %v8553
    %v10240 = vunpack.c.h.b16 %v8553
    %v10241 = vunpack.c.l.b16 %v8554
    %v10242 = vunpack.c.l.b16 %v8555
    %v10243 = vunpack.c.h.b16 %v8555
    %v10244 = vunpack.c.l.b16 %v8556
    %v10245 = vunpack.c.h.b16 %v8556
    %v10246 = vunpack.c.l.b16 %v8557
    %v10247 = vunpack.c.h.b16 %v8557
    %v10248 = vunpack.c.l.b16 %v8558
    %v10249 = vunpack.c.h.b16 %v8558
    %v10250 = vunpack.c.l.b16 %v8559
    %v10251 = vunpack.c.h.b16 %v8559
    %v10252 = vunpack.c.l.b16 %v8560
    %v10253 = vunpack.c.h.b16 %v8560
    %v10254 = vunpack.c.l.b16 %v8561
    %v10255 = vunpack.c.h.b16 %v8561
    %v10256 = vunpack.c.l.b16 %v8562
    %v10257 = vunpack.c.h.b16 %v8562
    %v10258 = vunpack.c.l.b16 %v8563
    %v10259 = vunpack.c.h.b16 %v8563
    %v10260 = vunpack.c.l.b16 %v8564
    %v10261 = vunpack.c.l.b16 %v8565
    %v10262 = vunpack.c.h.b16 %v8565
    %v10263 = vunpack.c.l.b16 %v8566
    %v10264 = vunpack.c.h.b16 %v8566
    %v10265 = vunpack.c.l.b16 %v8567
    %v10266 = vunpack.c.h.b16 %v8567
    %v10267 = vunpack.c.l.b16 %v8568
    %v10268 = vunpack.c.h.b16 %v8568
    %v10269 = vunpack.c.l.b16 %v8569
    %v10270 = vunpack.c.h.b16 %v8569
    %v10271 = vunpack.c.l.b16 %v8570
    %v10272 = vunpack.c.h.b16 %v8570
    %v10273 = vunpack.c.l.b16 %v8571
    %v10274 = vunpack.c.h.b16 %v8571
    %v10275 = vunpack.c.l.b16 %v8572
    %v10276 = vunpack.c.h.b16 %v8572
    %v10277 = vunpack.c.l.b16 %v8573
    %v10278 = vunpack.c.h.b16 %v8573
    %v10279 = vunpack.c.l.b16 %v8574
    %v10280 = vunpack.c.l.b16 %v8575
    %v10281 = vunpack.c.h.b16 %v8575
    %v10282 = vunpack.c.l.b16 %v8576
    %v10283 = vunpack.c.h.b16 %v8576
    %v10284 = vunpack.c.l.b16 %v8577
    %v10285 = vunpack.c.h.b16 %v8577
    %v10286 = vunpack.c.l.b16 %v8578
    %v10287 = vunpack.c.h.b16 %v8578
    %v10288 = vunpack.c.l.b16 %v8579
    %v10289 = vunpack.c.h.b16 %v8579
    %v10290 = vunpack.c.l.b16 %v8580
    %v10291 = vunpack.c.h.b16 %v8580
    %v10292 = vunpack.c.l.b16 %v8581
    %v10293 = vunpack.c.h.b16 %v8581
    %v10294 = vunpack.c.l.b16 %v8582
    %v10295 = vunpack.c.h.b16 %v8582
    %v10296 = vunpack.c.l.b16 %v8583
    %v10297 = vunpack.c.h.b16 %v8583
    %v10298 = vunpack.c.l.b16 %v8584
    %v10299 = vunpack.c.l.b16 %v8585
    %v10300 = vunpack.c.h.b16 %v8585
    %v10301 = vunpack.c.l.b16 %v8586
    %v10302 = vunpack.c.h.b16 %v8586
    %v10303 = vunpack.c.l.b16 %v8587
    %v10304 = vunpack.c.h.b16 %v8587
    %v10305 = vunpack.c.l.b16 %v8588
    %v10306 = vunpack.c.h.b16 %v8588
    %v10307 = vunpack.c.l.b16 %v8589
    %v10308 = vunpack.c.h.b16 %v8589
    %v10309 = vunpack.c.l.b16 %v8590
    %v10310 = vunpack.c.h.b16 %v8590
    %v10311 = vunpack.c.l.b16 %v8591
    %v10312 = vunpack.c.h.b16 %v8591
    %v10313 = vunpack.c.l.b16 %v8592
    %v10314 = vunpack.c.h.b16 %v8592
    %v10315 = vunpack.c.l.b16 %v8593
    %v10316 = vunpack.c.h.b16 %v8593
    %v10317 = vunpack.c.l.b16 %v8594
    %v10318 = vunpack.c.l.b16 %v8595
    %v10319 = vunpack.c.h.b16 %v8595
    %v10320 = vunpack.c.l.b16 %v8596
    %v10321 = vunpack.c.h.b16 %v8596
    %v10322 = vunpack.c.l.b16 %v8597
    %v10323 = vunpack.c.h.b16 %v8597
    %v10324 = vunpack.c.l.b16 %v8598
    %v10325 = vunpack.c.h.b16 %v8598
    %v10326 = vunpack.c.l.b16 %v8599
    %v10327 = vunpack.c.h.b16 %v8599
    %v10328 = vunpack.c.l.b16 %v8600
    %v10329 = vunpack.c.h.b16 %v8600
    %v10330 = vunpack.c.l.b16 %v8601
    %v10331 = vunpack.c.h.b16 %v8601
    %v10332 = vunpack.c.l.b16 %v8602
    %v10333 = vunpack.c.h.b16 %v8602
    %v10334 = vunpack.c.l.b16 %v8603
    %v10335 = vunpack.c.h.b16 %v8603
    %v10336 = vunpack.c.l.b16 %v8604
    %v10337 = vunpack.c.l.b16 %v8605
    %v10338 = vunpack.c.h.b16 %v8605
    %v10339 = vunpack.c.l.b16 %v8606
    %v10340 = vunpack.c.h.b16 %v8606
    %v10341 = vunpack.c.l.b16 %v8607
    %v10342 = vunpack.c.h.b16 %v8607
    %v10343 = vunpack.c.l.b16 %v8608
    %v10344 = vunpack.c.h.b16 %v8608
    %v10345 = vunpack.c.l.b16 %v8609
    %v10346 = vunpack.c.h.b16 %v8609
    %v10347 = vunpack.c.l.b16 %v8610
    %v10348 = vunpack.c.h.b16 %v8610
    %v10349 = vunpack.c.l.b16 %v8611
    %v10350 = vunpack.c.h.b16 %v8611
    %v10351 = vunpack.c.l.b16 %v8612
    %v10352 = vunpack.c.h.b16 %v8612
    %v10353 = vunpack.c.l.b16 %v8613
    %v10354 = vunpack.c.h.b16 %v8613
    %v10355 = vunpack.c.l.b16 %v8614
    %v10356 = vunpack.c.l.b16 %v8615
    %v10357 = vunpack.c.h.b16 %v8615
    %v10358 = vunpack.c.l.b16 %v8616
    %v10359 = vunpack.c.h.b16 %v8616
    %v10360 = vunpack.c.l.b16 %v8617
    %v10361 = vunpack.c.h.b16 %v8617
    %v10362 = vunpack.c.l.b16 %v8618
    %v10363 = vunpack.c.h.b16 %v8618
    %v10364 = vunpack.c.l.b16 %v8619
    %v10365 = vunpack.c.h.b16 %v8619
    %v10366 = vunpack.c.l.b16 %v8620
    %v10367 = vunpack.c.h.b16 %v8620
    %v10368 = vunpack.c.l.b16 %v8621
    %v10369 = vunpack.c.h.b16 %v8621
    %v10370 = vunpack.c.l.b16 %v8622
    %v10371 = vunpack.c.h.b16 %v8622
    %v10372 = vunpack.c.l.b16 %v8623
    %v10373 = vunpack.c.h.b16 %v8623
    %v10374 = vunpack.c.l.b16 %v8624
    %v10375 = vunpack.c.l.b16 %v8625
    %v10376 = vunpack.c.h.b16 %v8625
    %v10377 = vunpack.c.l.b16 %v8626
    %v10378 = vunpack.c.h.b16 %v8626
    %v10379 = vunpack.c.l.b16 %v8627
    %v10380 = vunpack.c.h.b16 %v8627
    %v10381 = vunpack.c.l.b16 %v8628
    %v10382 = vunpack.c.h.b16 %v8628
    %v10383 = vunpack.c.l.b16 %v8629
    %v10384 = vunpack.c.h.b16 %v8629
    %v10385 = vunpack.c.l.b16 %v8630
    %v10386 = vunpack.c.h.b16 %v8630
    %v10387 = vunpack.c.l.b16 %v8631
    %v10388 = vunpack.c.h.b16 %v8631
    %v10389 = vunpack.c.l.b16 %v8632
    %v10390 = vunpack.c.h.b16 %v8632
    %v10391 = vunpack.c.l.b16 %v8633
    %v10392 = vunpack.c.h.b16 %v8633
    %v10393 = vunpack.c.l.b16 %v8634
    %v10394 = vunpack.c.l.b16 %v8635
    %v10395 = vunpack.c.h.b16 %v8635
    %v10396 = vunpack.c.l.b16 %v8636
    %v10397 = vunpack.c.h.b16 %v8636
    %v10398 = vunpack.c.l.b16 %v8637
    %v10399 = vunpack.c.h.b16 %v8637
    %v10400 = vunpack.c.l.b16 %v8638
    %v10401 = vunpack.c.h.b16 %v8638
    %v10402 = vunpack.c.l.b16 %v8639
    %v10403 = vunpack.c.h.b16 %v8639
    %v10404 = vunpack.c.l.b16 %v8640
    %v10405 = vunpack.c.h.b16 %v8640
    %v10406 = vunpack.c.l.b16 %v8641
    %v10407 = vunpack.c.h.b16 %v8641
    %v10408 = vunpack.c.l.b16 %v8642
    %v10409 = vunpack.c.h.b16 %v8642
    %v10410 = vunpack.c.l.b16 %v8643
    %v10411 = vunpack.c.h.b16 %v8643
    %v10412 = vunpack.c.l.b16 %v8644
    %v10413 = vunpack.c.l.b16 %v8645
    %v10414 = vunpack.c.h.b16 %v8645
    %v10415 = vunpack.c.l.b16 %v8646
    %v10416 = vunpack.c.h.b16 %v8646
    %v10417 = vunpack.c.l.b16 %v8647
    %v10418 = vunpack.c.h.b16 %v8647
    %v10419 = vunpack.c.l.b16 %v8648
    %v10420 = vunpack.c.h.b16 %v8648
    %v10421 = vunpack.c.l.b16 %v8649
    %v10422 = vunpack.c.h.b16 %v8649
    %v10423 = vunpack.c.l.b16 %v8650
    %v10424 = vunpack.c.h.b16 %v8650
    %v10425 = vunpack.c.l.b16 %v8651
    %v10426 = vunpack.c.h.b16 %v8651
    %v10427 = vunpack.c.l.b16 %v8652
    %v10428 = vunpack.c.h.b16 %v8652
    %v10429 = vunpack.c.l.b16 %v8653
    %v10430 = vunpack.c.h.b16 %v8653
    %v10431 = vunpack.c.l.b16 %v8654
    %v10432 = vunpack.c.l.b16 %v8655
    %v10433 = vunpack.c.h.b16 %v8655
    %v10434 = vunpack.c.l.b16 %v8656
    %v10435 = vunpack.c.h.b16 %v8656
    %v10436 = vunpack.c.l.b16 %v8657
    %v10437 = vunpack.c.h.b16 %v8657
    %v10438 = vunpack.c.l.b16 %v8658
    %v10439 = vunpack.c.h.b16 %v8658
    %v10440 = vunpack.c.l.b16 %v8659
    %v10441 = vunpack.c.h.b16 %v8659
    %v10442 = vunpack.c.l.b16 %v8660
    %v10443 = vunpack.c.h.b16 %v8660
    %v10444 = vunpack.c.l.b16 %v8661
    %v10445 = vunpack.c.h.b16 %v8661
    %v10446 = vunpack.c.l.b16 %v8662
    %v10447 = vunpack.c.h.b16 %v8662
    %v10448 = vunpack.c.l.b16 %v8663
    %v10449 = vunpack.c.h.b16 %v8663
    %v10450 = vunpack.c.l.b16 %v8664
    %v10451 = vunpack.c.l.b16 %v8665
    %v10452 = vunpack.c.h.b16 %v8665
    %v10453 = vunpack.c.l.b16 %v8666
    %v10454 = vunpack.c.h.b16 %v8666
    %v10455 = vunpack.c.l.b16 %v8667
    %v10456 = vunpack.c.h.b16 %v8667
    %v10457 = vunpack.c.l.b16 %v8668
    %v10458 = vunpack.c.h.b16 %v8668
    %v10459 = vunpack.c.l.b16 %v8669
    %v10460 = vunpack.c.h.b16 %v8669
    %v10461 = vunpack.c.l.b16 %v8670
    %v10462 = vunpack.c.h.b16 %v8670
    %v10463 = vunpack.c.l.b16 %v8671
    %v10464 = vunpack.c.h.b16 %v8671
    %v10465 = vunpack.c.l.b16 %v8672
    %v10466 = vunpack.c.h.b16 %v8672
    %v10467 = vunpack.c.l.b16 %v8673
    %v10468 = vunpack.c.h.b16 %v8673
    %v10469 = vunpack.c.l.b16 %v8674
    %v10470 = vunpack.c.l.b16 %v8675
    %v10471 = vunpack.c.h.b16 %v8675
    %v10472 = vunpack.c.l.b16 %v8676
    %v10473 = vunpack.c.h.b16 %v8676
    %v10474 = vunpack.c.l.b16 %v8677
    %v10475 = vunpack.c.h.b16 %v8677
    %v10476 = vunpack.c.l.b16 %v8678
    %v10477 = vunpack.c.h.b16 %v8678
    %v10478 = vunpack.c.l.b16 %v8679
    %v10479 = vunpack.c.h.b16 %v8679
    %v10480 = vunpack.c.l.b16 %v8680
    %v10481 = vunpack.c.h.b16 %v8680
    %v10482 = vunpack.c.l.b16 %v8681
    %v10483 = vunpack.c.h.b16 %v8681
    %v10484 = vunpack.c.l.b16 %v8682
    %v10485 = vunpack.c.h.b16 %v8682
    %v10486 = vunpack.c.l.b16 %v8683
    %v10487 = vunpack.c.h.b16 %v8683
    %v10488 = vunpack.c.l.b16 %v8684
    %v10489 = vunpack.c.l.b16 %v8685
    %v10490 = vunpack.c.h.b16 %v8685
    %v10491 = vunpack.c.l.b16 %v8686
    %v10492 = vunpack.c.h.b16 %v8686
    %v10493 = vunpack.c.l.b16 %v8687
    %v10494 = vunpack.c.h.b16 %v8687
    %v10495 = vunpack.c.l.b16 %v8688
    %v10496 = vunpack.c.h.b16 %v8688
    %v10497 = vunpack.c.l.b16 %v8689
    %v10498 = vunpack.c.h.b16 %v8689
    %v10499 = vunpack.c.l.b16 %v8690
    %v10500 = vunpack.c.h.b16 %v8690
    %v10501 = vunpack.c.l.b16 %v8691
    %v10502 = vunpack.c.h.b16 %v8691
    %v10503 = vunpack.c.l.b16 %v8692
    %v10504 = vunpack.c.h.b16 %v8692
    %v10505 = vunpack.c.l.b16 %v8693
    %v10506 = vunpack.c.h.b16 %v8693
    %v10507 = vunpack.c.l.b16 %v8694
    %v10508 = vunpack.c.l.b16 %v8695
    %v10509 = vunpack.c.h.b16 %v8695
    %v10510 = vunpack.c.l.b16 %v8696
    %v10511 = vunpack.c.h.b16 %v8696
    %v10512 = vunpack.c.l.b16 %v8697
    %v10513 = vunpack.c.h.b16 %v8697
    %v10514 = vunpack.c.l.b16 %v8698
    %v10515 = vunpack.c.h.b16 %v8698
    %v10516 = vunpack.c.l.b16 %v8699
    %v10517 = vunpack.c.h.b16 %v8699
    %v10518 = vunpack.c.l.b16 %v8700
    %v10519 = vunpack.c.h.b16 %v8700
    %v10520 = vunpack.c.l.b16 %v8701
    %v10521 = vunpack.c.h.b16 %v8701
    %v10522 = vunpack.c.l.b16 %v8702
    %v10523 = vunpack.c.h.b16 %v8702
    %v10524 = vunpack.c.l.b16 %v8703
    %v10525 = vunpack.c.h.b16 %v8703
    %v10526 = vunpack.c.l.b16 %v8704
    %v10527 = vunpack.c.l.b16 %v8705
    %v10528 = vunpack.c.h.b16 %v8705
    %v10529 = vunpack.c.l.b16 %v8706
    %v10530 = vunpack.c.h.b16 %v8706
    %v10531 = vunpack.c.l.b16 %v8707
    %v10532 = vunpack.c.h.b16 %v8707
    %v10533 = vunpack.c.l.b16 %v8708
    %v10534 = vunpack.c.h.b16 %v8708
    %v10535 = vunpack.c.l.b16 %v8709
    %v10536 = vunpack.c.h.b16 %v8709
    %v10537 = vunpack.c.l.b16 %v8710
    %v10538 = vunpack.c.h.b16 %v8710
    %v10539 = vunpack.c.l.b16 %v8711
    %v10540 = vunpack.c.h.b16 %v8711
    %v10541 = vunpack.c.l.b16 %v8712
    %v10542 = vunpack.c.h.b16 %v8712
    %v10543 = vunpack.c.l.b16 %v8713
    %v10544 = vunpack.c.h.b16 %v8713
    %v10545 = vunpack.c.l.b16 %v8714
    %v10546 = vunpack.c.l.b16 %v8715
    %v10547 = vunpack.c.h.b16 %v8715
    %v10548 = vunpack.c.l.b16 %v8716
    %v10549 = vunpack.c.h.b16 %v8716
    %v10550 = vunpack.c.l.b16 %v8717
    %v10551 = vunpack.c.h.b16 %v8717
    %v10552 = vunpack.c.l.b16 %v8718
    %v10553 = vunpack.c.h.b16 %v8718
    %v10554 = vunpack.c.l.b16 %v8719
    %v10555 = vunpack.c.h.b16 %v8719
    %v10556 = vunpack.c.l.b16 %v8720
    %v10557 = vunpack.c.h.b16 %v8720
    %v10558 = vunpack.c.l.b16 %v8721
    %v10559 = vunpack.c.h.b16 %v8721
    %v10560 = vunpack.c.l.b16 %v8722
    %v10561 = vunpack.c.h.b16 %v8722
    %v10562 = vunpack.c.l.b16 %v8723
    %v10563 = vunpack.c.h.b16 %v8723
    %v10564 = vunpack.c.l.b16 %v8724
    %v10565 = vunpack.c.l.b16 %v8725
    %v10566 = vunpack.c.h.b16 %v8725
    %v10567 = vunpack.c.l.b16 %v8726
    %v10568 = vunpack.c.h.b16 %v8726
    %v10569 = vunpack.c.l.b16 %v8727
    %v10570 = vunpack.c.h.b16 %v8727
    %v10571 = vunpack.c.l.b16 %v8728
    %v10572 = vunpack.c.h.b16 %v8728
    %v10573 = vunpack.c.l.b16 %v8729
    %v10574 = vunpack.c.h.b16 %v8729
    %v10575 = vunpack.c.l.b16 %v8730
    %v10576 = vunpack.c.h.b16 %v8730
    %v10577 = vunpack.c.l.b16 %v8731
    %v10578 = vunpack.c.h.b16 %v8731
    %v10579 = vunpack.c.l.b16 %v8732
    %v10580 = vunpack.c.h.b16 %v8732
    %v10581 = vunpack.c.l.b16 %v8733
    %v10582 = vunpack.c.h.b16 %v8733
    %v10583 = vunpack.c.l.b16 %v8734
    %v10584 = vunpack.c.l.b16 %v8735
    %v10585 = vunpack.c.h.b16 %v8735
    %v10586 = vunpack.c.l.b16 %v8736
    %v10587 = vunpack.c.h.b16 %v8736
    %v10588 = vunpack.c.l.b16 %v8737
    %v10589 = vunpack.c.h.b16 %v8737
    %v10590 = vunpack.c.l.b16 %v8738
    %v10591 = vunpack.c.h.b16 %v8738
    %v10592 = vunpack.c.l.b16 %v8739
    %v10593 = vunpack.c.h.b16 %v8739
    %v10594 = vunpack.c.l.b16 %v8740
    %v10595 = vunpack.c.h.b16 %v8740
    %v10596 = vunpack.c.l.b16 %v8741
    %v10597 = vunpack.c.h.b16 %v8741
    %v10598 = vunpack.c.l.b16 %v8742
    %v10599 = vunpack.c.h.b16 %v8742
    %v10600 = vunpack.c.l.b16 %v8743
    %v10601 = vunpack.c.h.b16 %v8743
    %v10602 = vunpack.c.l.b16 %v8744
    %v10603 = vunpack.c.l.b16 %v8745
    %v10604 = vunpack.c.h.b16 %v8745
    %v10605 = vunpack.c.l.b16 %v8746
    %v10606 = vunpack.c.h.b16 %v8746
    %v10607 = vunpack.c.l.b16 %v8747
    %v10608 = vunpack.c.h.b16 %v8747
    %v10609 = vunpack.c.l.b16 %v8748
    %v10610 = vunpack.c.h.b16 %v8748
    %v10611 = vunpack.c.l.b16 %v8749
    %v10612 = vunpack.c.h.b16 %v8749
    %v10613 = vunpack.c.l.b16 %v8750
    %v10614 = vunpack.c.h.b16 %v8750
    %v10615 = vunpack.c.l.b16 %v8751
    %v10616 = vunpack.c.h.b16 %v8751
    %v10617 = vunpack.c.l.b16 %v8752
    %v10618 = vunpack.c.h.b16 %v8752
    %v10619 = vunpack.c.l.b16 %v8753
    %v10620 = vunpack.c.h.b16 %v8753
    %v10621 = vunpack.c.l.b16 %v8754
    %v10622 = vunpack.c.l.b16 %v8755
    %v10623 = vunpack.c.h.b16 %v8755
    %v10624 = vunpack.c.l.b16 %v8756
    %v10625 = vunpack.c.h.b16 %v8756
    %v10626 = vunpack.c.l.b16 %v8757
    %v10627 = vunpack.c.h.b16 %v8757
    %v10628 = vunpack.c.l.b16 %v8758
    %v10629 = vunpack.c.h.b16 %v8758
    %v10630 = vunpack.c.l.b16 %v8759
    %v10631 = vunpack.c.h.b16 %v8759
    %v10632 = vunpack.c.l.b16 %v8760
    %v10633 = vunpack.c.h.b16 %v8760
    %v10634 = vunpack.c.l.b16 %v8761
    %v10635 = vunpack.c.h.b16 %v8761
    %v10636 = vunpack.c.l.b16 %v8762
    %v10637 = vunpack.c.h.b16 %v8762
    %v10638 = vunpack.c.l.b16 %v8763
    %v10639 = vunpack.c.h.b16 %v8763
    %v10640 = vunpack.c.l.b16 %v8764
    %v10641 = vunpack.c.l.b16 %v8765
    %v10642 = vunpack.c.h.b16 %v8765
    %v10643 = vunpack.c.l.b16 %v8766
    %v10644 = vunpack.c.h.b16 %v8766
    %v10645 = vunpack.c.l.b16 %v8767
    %v10646 = vunpack.c.h.b16 %v8767
    %v10647 = vunpack.c.l.b16 %v8768
    %v10648 = vunpack.c.h.b16 %v8768
    %v10649 = vunpack.c.l.b16 %v8769
    %v10650 = vunpack.c.h.b16 %v8769
    %v10651 = vunpack.c.l.b16 %v8770
    %v10652 = vunpack.c.h.b16 %v8770
    %v10653 = vunpack.c.l.b16 %v8771
    %v10654 = vunpack.c.h.b16 %v8771
    %v10655 = vunpack.c.l.b16 %v8772
    %v10656 = vunpack.c.h.b16 %v8772
    %v10657 = vunpack.c.l.b16 %v8773
    %v10658 = vunpack.c.h.b16 %v8773
    %v10659 = vunpack.c.l.b16 %v8774
    %v10660 = vunpack.c.l.b16 %v8775
    %v10661 = vunpack.c.h.b16 %v8775
    %v10662 = vunpack.c.l.b16 %v8776
    %v10663 = vunpack.c.h.b16 %v8776
    %v10664 = vunpack.c.l.b16 %v8777
    %v10665 = vunpack.c.h.b16 %v8777
    %v10666 = vunpack.c.l.b16 %v8778
    %v10667 = vunpack.c.h.b16 %v8778
    %v10668 = vunpack.c.l.b16 %v8779
    %v10669 = vunpack.c.h.b16 %v8779
    %v10670 = vunpack.c.l.b16 %v8780
    %v10671 = vunpack.c.h.b16 %v8780
    %v10672 = vunpack.c.l.b16 %v8781
    %v10673 = vunpack.c.h.b16 %v8781
    %v10674 = vunpack.c.l.b16 %v8782
    %v10675 = vunpack.c.h.b16 %v8782
    %v10676 = vunpack.c.l.b16 %v8783
    %v10677 = vunpack.c.h.b16 %v8783
    %v10678 = vunpack.c.l.b16 %v8784
    %v10679 = vunpack.c.l.b16 %v8785
    %v10680 = vunpack.c.h.b16 %v8785
    %v10681 = vunpack.c.l.b16 %v8786
    %v10682 = vunpack.c.h.b16 %v8786
    %v10683 = vunpack.c.l.b16 %v8787
    %v10684 = vunpack.c.h.b16 %v8787
    %v10685 = vunpack.c.l.b16 %v8788
    %v10686 = vunpack.c.h.b16 %v8788
    %v10687 = vunpack.c.l.b16 %v8789
    %v10688 = vunpack.c.h.b16 %v8789
    %v10689 = vunpack.c.l.b16 %v8790
    %v10690 = vunpack.c.h.b16 %v8790
    %v10691 = vunpack.c.l.b16 %v8791
    %v10692 = vunpack.c.h.b16 %v8791
    %v10693 = vunpack.c.l.b16 %v8792
    %v10694 = vunpack.c.h.b16 %v8792
    %v10695 = vunpack.c.l.b16 %v8793
    %v10696 = vunpack.c.h.b16 %v8793
    %v10697 = vunpack.c.l.b16 %v8794
    %v10698 = vunpack.c.l.b16 %v8795
    %v10699 = vunpack.c.h.b16 %v8795
    %v10700 = vunpack.c.l.b16 %v8796
    %v10701 = vunpack.c.h.b16 %v8796
    %v10702 = vunpack.c.l.b16 %v8797
    %v10703 = vunpack.c.h.b16 %v8797
    %v10704 = vunpack.c.l.b16 %v8798
    %v10705 = vunpack.c.h.b16 %v8798
    %v10706 = vunpack.c.l.b16 %v8799
    %v10707 = vunpack.c.h.b16 %v8799
    %v10708 = vunpack.c.l.b16 %v8800
    %v10709 = vunpack.c.h.b16 %v8800
    %v10710 = vunpack.c.l.b16 %v8801
    %v10711 = vunpack.c.h.b16 %v8801
    %v10712 = vunpack.c.l.b16 %v8802
    %v10713 = vunpack.c.h.b16 %v8802
    %v10714 = vunpack.c.l.b16 %v8803
    %v10715 = vunpack.c.h.b16 %v8803
    %v10716 = vunpack.c.l.b16 %v8804
    %v10717 = vunpack.c.l.b16 %v8805
    %v10718 = vunpack.c.h.b16 %v8805
    %v10719 = vunpack.c.l.b16 %v8806
    %v10720 = vunpack.c.h.b16 %v8806
    %v10721 = vunpack.c.l.b16 %v8807
    %v10722 = vunpack.c.h.b16 %v8807
    %v10723 = vunpack.c.l.b16 %v8808
    %v10724 = vunpack.c.h.b16 %v8808
    %v10725 = vunpack.c.l.b16 %v8809
    %v10726 = vunpack.c.h.b16 %v8809
    %v10727 = vunpack.c.l.b16 %v8810
    %v10728 = vunpack.c.h.b16 %v8810
    %v10729 = vunpack.c.l.b16 %v8811
    %v10730 = vunpack.c.h.b16 %v8811
    %v10731 = vunpack.c.l.b16 %v8812
    %v10732 = vunpack.c.h.b16 %v8812
    %v10733 = vunpack.c.l.b16 %v8813
    %v10734 = vunpack.c.h.b16 %v8813
    %v10735 = vunpack.c.l.b16 %v8814
    %v10736 = vunpack.c.l.b16 %v8815
    %v10737 = vunpack.c.h.b16 %v8815
    %v10738 = vunpack.c.l.b16 %v8816
    %v10739 = vunpack.c.h.b16 %v8816
    %v10740 = vunpack.c.l.b16 %v8817
    %v10741 = vunpack.c.h.b16 %v8817
    %v10742 = vunpack.c.l.b16 %v8818
    %v10743 = vunpack.c.h.b16 %v8818
    %v10744 = vunpack.c.l.b16 %v8819
    %v10745 = vunpack.c.h.b16 %v8819
    %v10746 = vunpack.c.l.b16 %v8820
    %v10747 = vunpack.c.h.b16 %v8820
    %v10748 = vunpack.c.l.b16 %v8821
    %v10749 = vunpack.c.h.b16 %v8821
    %v10750 = vunpack.c.l.b16 %v8822
    %v10751 = vunpack.c.h.b16 %v8822
    %v10752 = vunpack.c.l.b16 %v8823
    %v10753 = vunpack.c.h.b16 %v8823
    %v10754 = vunpack.c.l.b16 %v8824
    %v10755 = vunpack.c.l.b16 %v8825
    %v10756 = vunpack.c.h.b16 %v8825
    %v10757 = vunpack.c.l.b16 %v8826
    %v10758 = vunpack.c.h.b16 %v8826
    %v10759 = vunpack.c.l.b16 %v8827
    %v10760 = vunpack.c.h.b16 %v8827
    %v10761 = vunpack.c.l.b16 %v8828
    %v10762 = vunpack.c.h.b16 %v8828
    %v10763 = vunpack.c.l.b16 %v8829
    %v10764 = vunpack.c.h.b16 %v8829
    %v10765 = vunpack.c.l.b16 %v8830
    %v10766 = vunpack.c.h.b16 %v8830
    %v10767 = vunpack.c.l.b16 %v8831
    %v10768 = vunpack.c.h.b16 %v8831
    %v10769 = vunpack.c.l.b16 %v8832
    %v10770 = vunpack.c.h.b16 %v8832
    %v10771 = vunpack.c.l.b16 %v8833
    %v10772 = vunpack.c.h.b16 %v8833
    %v10773 = vunpack.c.l.b16 %v8834
    %v10774 = vunpack.c.l.b16 %v8835
    %v10775 = vunpack.c.h.b16 %v8835
    %v10776 = vunpack.c.l.b16 %v8836
    %v10777 = vunpack.c.h.b16 %v8836
    %v10778 = vunpack.c.l.b16 %v8837
    %v10779 = vunpack.c.h.b16 %v8837
    %v10780 = vunpack.c.l.b16 %v8838
    %v10781 = vunpack.c.h.b16 %v8838
    %v10782 = vunpack.c.l.b16 %v8839
    %v10783 = vunpack.c.h.b16 %v8839
    %v10784 = vunpack.c.l.b16 %v8840
    %v10785 = vunpack.c.h.b16 %v8840
    %v10786 = vunpack.c.l.b16 %v8841
    %v10787 = vunpack.c.h.b16 %v8841
    %v10788 = vunpack.c.l.b16 %v8842
    %v10789 = vunpack.c.h.b16 %v8842
    %v10790 = vunpack.c.l.b16 %v8843
    %v10791 = vunpack.c.h.b16 %v8843
    %v10792 = vunpack.c.l.b16 %v8844
    %v10793 = vunpack.c.l.b16 %v8845
    %v10794 = vunpack.c.h.b16 %v8845
    %v10795 = vunpack.c.l.b16 %v8846
    %v10796 = vunpack.c.h.b16 %v8846
    %v10797 = vunpack.c.l.b16 %v8847
    %v10798 = vunpack.c.h.b16 %v8847
    %v10799 = vunpack.c.l.b16 %v8848
    %v10800 = vunpack.c.h.b16 %v8848
    %v10801 = vunpack.c.l.b16 %v8849
    %v10802 = vunpack.c.h.b16 %v8849
    %v10803 = vunpack.c.l.b16 %v8850
    %v10804 = vunpack.c.h.b16 %v8850
    %v10805 = vunpack.c.l.b16 %v8851
    %v10806 = vunpack.c.h.b16 %v8851
    %v10807 = vunpack.c.l.b16 %v8852
    %v10808 = vunpack.c.h.b16 %v8852
    %v10809 = vunpack.c.l.b16 %v8853
    %v10810 = vunpack.c.h.b16 %v8853
    %v10811 = vunpack.c.l.b16 %v8854
    %v10812 = vpack.c.b16 %v9615, %v9596
    %v10813 = vpack.c.b16 %v9616, %v9597
    %v10814 = vpack.c.b16 %v9617, %v9598
    %v10815 = vpack.c.b16 %v9618, %v9599
    %v10816 = vpack.c.b16 %v9619, %v9600
    %v10817 = vpack.c.b16 %v9620, %v9601
    %v10818 = vpack.c.b16 %v9621, %v9602
    %v10819 = vpack.c.b16 %v9622, %v9603
    %v10820 = vpack.c.b16 %v9623, %v9604
    %v10821 = vpack.c.b16 %v9624, %v9605
    %v10822 = vpack.c.b16 %v9625, %v9606
    %v10823 = vpack.c.b16 %v9626, %v9607
    %v10824 = vpack.c.b16 %v9627, %v9608
    %v10825 = vpack.c.b16 %v9628, %v9609
    %v10826 = vpack.c.b16 %v9629, %v9610
    %v10827 = vpack.c.b16 %v9630, %v9611
    %v10828 = vpack.c.b16 %v9631, %v9612
    %v10829 = vpack.c.b16 %v9632, %v9613
    %v10830 = vpack.c.b16 %v9633, %v9614
    %v10831 = vpack.c.b16 %v9653, %v9634
    %v10832 = vpack.c.b16 %v9654, %v9635
    %v10833 = vpack.c.b16 %v9655, %v9636
    %v10834 = vpack.c.b16 %v9656, %v9637
    %v10835 = vpack.c.b16 %v9657, %v9638
    %v10836 = vpack.c.b16 %v9658, %v9639
    %v10837 = vpack.c.b16 %v9659, %v9640
    %v10838 = vpack.c.b16 %v9660, %v9641
    %v10839 = vpack.c.b16 %v9661, %v9642
    %v10840 = vpack.c.b16 %v9662, %v9643
    %v10841 = vpack.c.b16 %v9663, %v9644
    %v10842 = vpack.c.b16 %v9664, %v9645
    %v10843 = vpack.c.b16 %v9665, %v9646
    %v10844 = vpack.c.b16 %v9666, %v9647
    %v10845 = vpack.c.b16 %v9667, %v9648
    %v10846 = vpack.c.b16 %v9668, %v9649
    %v10847 = vpack.c.b16 %v9669, %v9650
    %v10848 = vpack.c.b16 %v9670, %v9651
    %v10849 = vpack.c.b16 %v9671, %v9652
    %v10850 = vpack.c.b16 %v9691, %v9672
    %v10851 = vpack.c.b16 %v9692, %v9673
    %v10852 = vpack.c.b16 %v9693, %v9674
    %v10853 = vpack.c.b16 %v9694, %v9675
    %v10854 = vpack.c.b16 %v9695, %v9676
    %v10855 = vpack.c.b16 %v9696, %v9677
    %v10856 = vpack.c.b16 %v9697, %v9678
    %v10857 = vpack.c.b16 %v9698, %v9679
    %v10858 = vpack.c.b16 %v9699, %v9680
    %v10859 = vpack.c.b16 %v9700, %v9681
    %v10860 = vpack.c.b16 %v9701, %v9682
    %v10861 = vpack.c.b16 %v9702, %v9683
    %v10862 = vpack.c.b16 %v9703, %v9684
    %v10863 = vpack.c.b16 %v9704, %v9685
    %v10864 = vpack.c.b16 %v9705, %v9686
    %v10865 = vpack.c.b16 %v9706, %v9687
    %v10866 = vpack.c.b16 %v9707, %v9688
    %v10867 = vpack.c.b16 %v9708, %v9689
    %v10868 = vpack.c.b16 %v9709, %v9690
    %v10869 = vpack.c.b16 %v9729, %v9710
    %v10870 = vpack.c.b16 %v9730, %v9711
    %v10871 = vpack.c.b16 %v9731, %v9712
    %v10872 = vpack.c.b16 %v9732, %v9713
    %v10873 = vpack.c.b16 %v9733, %v9714
    %v10874 = vpack.c.b16 %v9734, %v9715
    %v10875 = vpack.c.b16 %v9735, %v9716
    %v10876 = vpack.c.b16 %v9736, %v9717
    %v10877 = vpack.c.b16 %v9737, %v9718
    %v10878 = vpack.c.b16 %v9738, %v9719
    %v10879 = vpack.c.b16 %v9739, %v9720
    %v10880 = vpack.c.b16 %v9740, %v9721
    %v10881 = vpack.c.b16 %v9741, %v9722
    %v10882 = vpack.c.b16 %v9742, %v9723
    %v10883 = vpack.c.b16 %v9743, %v9724
    %v10884 = vpack.c.b16 %v9744, %v9725
    %v10885 = vpack.c.b16 %v9745, %v9726
    %v10886 = vpack.c.b16 %v9746, %v9727
    %v10887 = vpack.c.b16 %v9747, %v9728
    %v10888 = vpack.c.b16 %v9767, %v9748
    %v10889 = vpack.c.b16 %v9768, %v9749
    %v10890 = vpack.c.b16 %v9769, %v9750
    %v10891 = vpack.c.b16 %v9770, %v9751
    %v10892 = vpack.c.b16 %v9771, %v9752
    %v10893 = vpack.c.b16 %v9772, %v9753
    %v10894 = vpack.c.b16 %v9773, %v9754
    %v10895 = vpack.c.b16 %v9774, %v9755
    %v10896 = vpack.c.b16 %v9775, %v9756
    %v10897 = vpack.c.b16 %v9776, %v9757
    %v10898 = vpack.c.b16 %v9777, %v9758
    %v10899 = vpack.c.b16 %v9778, %v9759
    %v10900 = vpack.c.b16 %v9779, %v9760
    %v10901 = vpack.c.b16 %v9780, %v9761
    %v10902 = vpack.c.b16 %v9781, %v9762
    %v10903 = vpack.c.b16 %v9782, %v9763
    %v10904 = vpack.c.b16 %v9783, %v9764
    %v10905 = vpack.c.b16 %v9784, %v9765
    %v10906 = vpack.c.b16 %v9785, %v9766
    %v10907 = vpack.c.b16 %v9805, %v9786
    %v10908 = vpack.c.b16 %v9806, %v9787
    %v10909 = vpack.c.b16 %v9807, %v9788
    %v10910 = vpack.c.b16 %v9808, %v9789
    %v10911 = vpack.c.b16 %v9809, %v9790
    %v10912 = vpack.c.b16 %v9810, %v9791
    %v10913 = vpack.c.b16 %v9811, %v9792
    %v10914 = vpack.c.b16 %v9812, %v9793
    %v10915 = vpack.c.b16 %v9813, %v9794
    %v10916 = vpack.c.b16 %v9814, %v9795
    %v10917 = vpack.c.b16 %v9815, %v9796
    %v10918 = vpack.c.b16 %v9816, %v9797
    %v10919 = vpack.c.b16 %v9817, %v9798
    %v10920 = vpack.c.b16 %v9818, %v9799
    %v10921 = vpack.c.b16 %v9819, %v9800
    %v10922 = vpack.c.b16 %v9820, %v9801
    %v10923 = vpack.c.b16 %v9821, %v9802
    %v10924 = vpack.c.b16 %v9822, %v9803
    %v10925 = vpack.c.b16 %v9823, %v9804
    %v10926 = vpack.c.b16 %v9843, %v9824
    %v10927 = vpack.c.b16 %v9844, %v9825
    %v10928 = vpack.c.b16 %v9845, %v9826
    %v10929 = vpack.c.b16 %v9846, %v9827
    %v10930 = vpack.c.b16 %v9847, %v9828
    %v10931 = vpack.c.b16 %v9848, %v9829
    %v10932 = vpack.c.b16 %v9849, %v9830
    %v10933 = vpack.c.b16 %v9850, %v9831
    %v10934 = vpack.c.b16 %v9851, %v9832
    %v10935 = vpack.c.b16 %v9852, %v9833
    %v10936 = vpack.c.b16 %v9853, %v9834
    %v10937 = vpack.c.b16 %v9854, %v9835
    %v10938 = vpack.c.b16 %v9855, %v9836
    %v10939 = vpack.c.b16 %v9856, %v9837
    %v10940 = vpack.c.b16 %v9857, %v9838
    %v10941 = vpack.c.b16 %v9858, %v9839
    %v10942 = vpack.c.b16 %v9859, %v9840
    %v10943 = vpack.c.b16 %v9860, %v9841
    %v10944 = vpack.c.b16 %v9861, %v9842
    %v10945 = vpack.c.b16 %v9881, %v9862
    %v10946 = vpack.c.b16 %v9882, %v9863
    %v10947 = vpack.c.b16 %v9883, %v9864
    %v10948 = vpack.c.b16 %v9884, %v9865
    %v10949 = vpack.c.b16 %v9885, %v9866
    %v10950 = vpack.c.b16 %v9886, %v9867
    %v10951 = vpack.c.b16 %v9887, %v9868
    %v10952 = vpack.c.b16 %v9888, %v9869
    %v10953 = vpack.c.b16 %v9889, %v9870
    %v10954 = vpack.c.b16 %v9890, %v9871
    %v10955 = vpack.c.b16 %v9891, %v9872
    %v10956 = vpack.c.b16 %v9892, %v9873
    %v10957 = vpack.c.b16 %v9893, %v9874
    %v10958 = vpack.c.b16 %v9894, %v9875
    %v10959 = vpack.c.b16 %v9895, %v9876
    %v10960 = vpack.c.b16 %v9896, %v9877
    %v10961 = vpack.c.b16 %v9897, %v9878
    %v10962 = vpack.c.b16 %v9898, %v9879
    %v10963 = vpack.c.b16 %v9899, %v9880
    %v10964 = vpack.c.b16 %v9919, %v9900
    %v10965 = vpack.c.b16 %v9920, %v9901
    %v10966 = vpack.c.b16 %v9921, %v9902
    %v10967 = vpack.c.b16 %v9922, %v9903
    %v10968 = vpack.c.b16 %v9923, %v9904
    %v10969 = vpack.c.b16 %v9924, %v9905
    %v10970 = vpack.c.b16 %v9925, %v9906
    %v10971 = vpack.c.b16 %v9926, %v9907
    %v10972 = vpack.c.b16 %v9927, %v9908
    %v10973 = vpack.c.b16 %v9928, %v9909
    %v10974 = vpack.c.b16 %v9929, %v9910
    %v10975 = vpack.c.b16 %v9930, %v9911
    %v10976 = vpack.c.b16 %v9931, %v9912
    %v10977 = vpack.c.b16 %v9932, %v9913
    %v10978 = vpack.c.b16 %v9933, %v9914
    %v10979 = vpack.c.b16 %v9934, %v9915
    %v10980 = vpack.c.b16 %v9935, %v9916
    %v10981 = vpack.c.b16 %v9936, %v9917
    %v10982 = vpack.c.b16 %v9937, %v9918
    %v10983 = vpack.c.b16 %v9957, %v9938
    %v10984 = vpack.c.b16 %v9958, %v9939
    %v10985 = vpack.c.b16 %v9959, %v9940
    %v10986 = vpack.c.b16 %v9960, %v9941
    %v10987 = vpack.c.b16 %v9961, %v9942
    %v10988 = vpack.c.b16 %v9962, %v9943
    %v10989 = vpack.c.b16 %v9963, %v9944
    %v10990 = vpack.c.b16 %v9964, %v9945
    %v10991 = vpack.c.b16 %v9965, %v9946
    %v10992 = vpack.c.b16 %v9966, %v9947
    %v10993 = vpack.c.b16 %v9967, %v9948
    %v10994 = vpack.c.b16 %v9968, %v9949
    %v10995 = vpack.c.b16 %v9969, %v9950
    %v10996 = vpack.c.b16 %v9970, %v9951
    %v10997 = vpack.c.b16 %v9971, %v9952
    %v10998 = vpack.c.b16 %v9972, %v9953
    %v10999 = vpack.c.b16 %v9973, %v9954
    %v11000 = vpack.c.b16 %v9974, %v9955
    %v11001 = vpack.c.b16 %v9975, %v9956
    %v11002 = vpack.c.b16 %v9995, %v9976
    %v11003 = vpack.c.b16 %v9996, %v9977
    %v11004 = vpack.c.b16 %v9997, %v9978
    %v11005 = vpack.c.b16 %v9998, %v9979
    %v11006 = vpack.c.b16 %v9999, %v9980
    %v11007 = vpack.c.b16 %v10000, %v9981
    %v11008 = vpack.c.b16 %v10001, %v9982
    %v11009 = vpack.c.b16 %v10002, %v9983
    %v11010 = vpack.c.b16 %v10003, %v9984
    %v11011 = vpack.c.b16 %v10004, %v9985
    %v11012 = vpack.c.b16 %v10005, %v9986
    %v11013 = vpack.c.b16 %v10006, %v9987
    %v11014 = vpack.c.b16 %v10007, %v9988
    %v11015 = vpack.c.b16 %v10008, %v9989
    %v11016 = vpack.c.b16 %v10009, %v9990
    %v11017 = vpack.c.b16 %v10010, %v9991
    %v11018 = vpack.c.b16 %v10011, %v9992
    %v11019 = vpack.c.b16 %v10012, %v9993
    %v11020 = vpack.c.b16 %v10013, %v9994
    %v11021 = vpack.c.b16 %v10033, %v10014
    %v11022 = vpack.c.b16 %v10034, %v10015
    %v11023 = vpack.c.b16 %v10035, %v10016
    %v11024 = vpack.c.b16 %v10036, %v10017
    %v11025 = vpack.c.b16 %v10037, %v10018
    %v11026 = vpack.c.b16 %v10038, %v10019
    %v11027 = vpack.c.b16 %v10039, %v10020
    %v11028 = vpack.c.b16 %v10040, %v10021
    %v11029 = vpack.c.b16 %v10041, %v10022
    %v11030 = vpack.c.b16 %v10042, %v10023
    %v11031 = vpack.c.b16 %v10043, %v10024
    %v11032 = vpack.c.b16 %v10044, %v10025
    %v11033 = vpack.c.b16 %v10045, %v10026
    %v11034 = vpack.c.b16 %v10046, %v10027
    %v11035 = vpack.c.b16 %v10047, %v10028
    %v11036 = vpack.c.b16 %v10048, %v10029
    %v11037 = vpack.c.b16 %v10049, %v10030
    %v11038 = vpack.c.b16 %v10050, %v10031
    %v11039 = vpack.c.b16 %v10051, %v10032
    %v11040 = vpack.c.b16 %v10071, %v10052
    %v11041 = vpack.c.b16 %v10072, %v10053
    %v11042 = vpack.c.b16 %v10073, %v10054
    %v11043 = vpack.c.b16 %v10074, %v10055
    %v11044 = vpack.c.b16 %v10075, %v10056
    %v11045 = vpack.c.b16 %v10076, %v10057
    %v11046 = vpack.c.b16 %v10077, %v10058
    %v11047 = vpack.c.b16 %v10078, %v10059
    %v11048 = vpack.c.b16 %v10079, %v10060
    %v11049 = vpack.c.b16 %v10080, %v10061
    %v11050 = vpack.c.b16 %v10081, %v10062
    %v11051 = vpack.c.b16 %v10082, %v10063
    %v11052 = vpack.c.b16 %v10083, %v10064
    %v11053 = vpack.c.b16 %v10084, %v10065
    %v11054 = vpack.c.b16 %v10085, %v10066
    %v11055 = vpack.c.b16 %v10086, %v10067
    %v11056 = vpack.c.b16 %v10087, %v10068
    %v11057 = vpack.c.b16 %v10088, %v10069
    %v11058 = vpack.c.b16 %v10089, %v10070
    %v11059 = vpack.c.b16 %v10109, %v10090
    %v11060 = vpack.c.b16 %v10110, %v10091
    %v11061 = vpack.c.b16 %v10111, %v10092
    %v11062 = vpack.c.b16 %v10112, %v10093
    %v11063 = vpack.c.b16 %v10113, %v10094
    %v11064 = vpack.c.b16 %v10114, %v10095
    %v11065 = vpack.c.b16 %v10115, %v10096
    %v11066 = vpack.c.b16 %v10116, %v10097
    %v11067 = vpack.c.b16 %v10117, %v10098
    %v11068 = vpack.c.b16 %v10118, %v10099
    %v11069 = vpack.c.b16 %v10119, %v10100
    %v11070 = vpack.c.b16 %v10120, %v10101
    %v11071 = vpack.c.b16 %v10121, %v10102
    %v11072 = vpack.c.b16 %v10122, %v10103
    %v11073 = vpack.c.b16 %v10123, %v10104
    %v11074 = vpack.c.b16 %v10124, %v10105
    %v11075 = vpack.c.b16 %v10125, %v10106
    %v11076 = vpack.c.b16 %v10126, %v10107
    %v11077 = vpack.c.b16 %v10127, %v10108
    %v11078 = vpack.c.b16 %v10147, %v10128
    %v11079 = vpack.c.b16 %v10148, %v10129
    %v11080 = vpack.c.b16 %v10149, %v10130
    %v11081 = vpack.c.b16 %v10150, %v10131
    %v11082 = vpack.c.b16 %v10151, %v10132
    %v11083 = vpack.c.b16 %v10152, %v10133
    %v11084 = vpack.c.b16 %v10153, %v10134
    %v11085 = vpack.c.b16 %v10154, %v10135
    %v11086 = vpack.c.b16 %v10155, %v10136
    %v11087 = vpack.c.b16 %v10156, %v10137
    %v11088 = vpack.c.b16 %v10157, %v10138
    %v11089 = vpack.c.b16 %v10158, %v10139
    %v11090 = vpack.c.b16 %v10159, %v10140
    %v11091 = vpack.c.b16 %v10160, %v10141
    %v11092 = vpack.c.b16 %v10161, %v10142
    %v11093 = vpack.c.b16 %v10162, %v10143
    %v11094 = vpack.c.b16 %v10163, %v10144
    %v11095 = vpack.c.b16 %v10164, %v10145
    %v11096 = vpack.c.b16 %v10165, %v10146
    %v11097 = vpack.c.b16 %v10185, %v10166
    %v11098 = vpack.c.b16 %v10186, %v10167
    %v11099 = vpack.c.b16 %v10187, %v10168
    %v11100 = vpack.c.b16 %v10188, %v10169
    %v11101 = vpack.c.b16 %v10189, %v10170
    %v11102 = vpack.c.b16 %v10190, %v10171
    %v11103 = vpack.c.b16 %v10191, %v10172
    %v11104 = vpack.c.b16 %v10192, %v10173
    %v11105 = vpack.c.b16 %v10193, %v10174
    %v11106 = vpack.c.b16 %v10194, %v10175
    %v11107 = vpack.c.b16 %v10195, %v10176
    %v11108 = vpack.c.b16 %v10196, %v10177
    %v11109 = vpack.c.b16 %v10197, %v10178
    %v11110 = vpack.c.b16 %v10198, %v10179
    %v11111 = vpack.c.b16 %v10199, %v10180
    %v11112 = vpack.c.b16 %v10200, %v10181
    %v11113 = vpack.c.b16 %v10201, %v10182
    %v11114 = vpack.c.b16 %v10202, %v10183
    %v11115 = vpack.c.b16 %v10203, %v10184
    %v11116 = vpack.c.b16 %v10223, %v10204
    %v11117 = vpack.c.b16 %v10224, %v10205
    %v11118 = vpack.c.b16 %v10225, %v10206
    %v11119 = vpack.c.b16 %v10226, %v10207
    %v11120 = vpack.c.b16 %v10227, %v10208
    %v11121 = vpack.c.b16 %v10228, %v10209
    %v11122 = vpack.c.b16 %v10229, %v10210
    %v11123 = vpack.c.b16 %v10230, %v10211
    %v11124 = vpack.c.b16 %v10231, %v10212
    %v11125 = vpack.c.b16 %v10232, %v10213
    %v11126 = vpack.c.b16 %v10233, %v10214
    %v11127 = vpack.c.b16 %v10234, %v10215
    %v11128 = vpack.c.b16 %v10235, %v10216
    %v11129 = vpack.c.b16 %v10236, %v10217
    %v11130 = vpack.c.b16 %v10237, %v10218
    %v11131 = vpack.c.b16 %v10238, %v10219
    %v11132 = vpack.c.b16 %v10239, %v10220
    %v11133 = vpack.c.b16 %v10240, %v10221
    %v11134 = vpack.c.b16 %v10241, %v10222
    %v11135 = vpack.c.b16 %v10261, %v10242
    %v11136 = vpack.c.b16 %v10262, %v10243
    %v11137 = vpack.c.b16 %v10263, %v10244
    %v11138 = vpack.c.b16 %v10264, %v10245
    %v11139 = vpack.c.b16 %v10265, %v10246
    %v11140 = vpack.c.b16 %v10266, %v10247
    %v11141 = vpack.c.b16 %v10267, %v10248
    %v11142 = vpack.c.b16 %v10268, %v10249
    %v11143 = vpack.c.b16 %v10269, %v10250
    %v11144 = vpack.c.b16 %v10270, %v10251
    %v11145 = vpack.c.b16 %v10271, %v10252
    %v11146 = vpack.c.b16 %v10272, %v10253
    %v11147 = vpack.c.b16 %v10273, %v10254
    %v11148 = vpack.c.b16 %v10274, %v10255
    %v11149 = vpack.c.b16 %v10275, %v10256
    %v11150 = vpack.c.b16 %v10276, %v10257
    %v11151 = vpack.c.b16 %v10277, %v10258
    %v11152 = vpack.c.b16 %v10278, %v10259
    %v11153 = vpack.c.b16 %v10279, %v10260
    %v11154 = vpack.c.b16 %v10299, %v10280
    %v11155 = vpack.c.b16 %v10300, %v10281
    %v11156 = vpack.c.b16 %v10301, %v10282
    %v11157 = vpack.c.b16 %v10302, %v10283
    %v11158 = vpack.c.b16 %v10303, %v10284
    %v11159 = vpack.c.b16 %v10304, %v10285
    %v11160 = vpack.c.b16 %v10305, %v10286
    %v11161 = vpack.c.b16 %v10306, %v10287
    %v11162 = vpack.c.b16 %v10307, %v10288
    %v11163 = vpack.c.b16 %v10308, %v10289
    %v11164 = vpack.c.b16 %v10309, %v10290
    %v11165 = vpack.c.b16 %v10310, %v10291
    %v11166 = vpack.c.b16 %v10311, %v10292
    %v11167 = vpack.c.b16 %v10312, %v10293
    %v11168 = vpack.c.b16 %v10313, %v10294
    %v11169 = vpack.c.b16 %v10314, %v10295
    %v11170 = vpack.c.b16 %v10315, %v10296
    %v11171 = vpack.c.b16 %v10316, %v10297
    %v11172 = vpack.c.b16 %v10317, %v10298
    %v11173 = vpack.c.b16 %v10337, %v10318
    %v11174 = vpack.c.b16 %v10338, %v10319
    %v11175 = vpack.c.b16 %v10339, %v10320
    %v11176 = vpack.c.b16 %v10340, %v10321
    %v11177 = vpack.c.b16 %v10341, %v10322
    %v11178 = vpack.c.b16 %v10342, %v10323
    %v11179 = vpack.c.b16 %v10343, %v10324
    %v11180 = vpack.c.b16 %v10344, %v10325
    %v11181 = vpack.c.b16 %v10345, %v10326
    %v11182 = vpack.c.b16 %v10346, %v10327
    %v11183 = vpack.c.b16 %v10347, %v10328
    %v11184 = vpack.c.b16 %v10348, %v10329
    %v11185 = vpack.c.b16 %v10349, %v10330
    %v11186 = vpack.c.b16 %v10350, %v10331
    %v11187 = vpack.c.b16 %v10351, %v10332
    %v11188 = vpack.c.b16 %v10352, %v10333
    %v11189 = vpack.c.b16 %v10353, %v10334
    %v11190 = vpack.c.b16 %v10354, %v10335
    %v11191 = vpack.c.b16 %v10355, %v10336
    %v11192 = vpack.c.b16 %v10375, %v10356
    %v11193 = vpack.c.b16 %v10376, %v10357
    %v11194 = vpack.c.b16 %v10377, %v10358
    %v11195 = vpack.c.b16 %v10378, %v10359
    %v11196 = vpack.c.b16 %v10379, %v10360
    %v11197 = vpack.c.b16 %v10380, %v10361
    %v11198 = vpack.c.b16 %v10381, %v10362
    %v11199 = vpack.c.b16 %v10382, %v10363
    %v11200 = vpack.c.b16 %v10383, %v10364
    %v11201 = vpack.c.b16 %v10384, %v10365
    %v11202 = vpack.c.b16 %v10385, %v10366
    %v11203 = vpack.c.b16 %v10386, %v10367
    %v11204 = vpack.c.b16 %v10387, %v10368
    %v11205 = vpack.c.b16 %v10388, %v10369
    %v11206 = vpack.c.b16 %v10389, %v10370
    %v11207 = vpack.c.b16 %v10390, %v10371
    %v11208 = vpack.c.b16 %v10391, %v10372
    %v11209 = vpack.c.b16 %v10392, %v10373
    %v11210 = vpack.c.b16 %v10393, %v10374
    %v11211 = vpack.c.b16 %v10413, %v10394
    %v11212 = vpack.c.b16 %v10414, %v10395
    %v11213 = vpack.c.b16 %v10415, %v10396
    %v11214 = vpack.c.b16 %v10416, %v10397
    %v11215 = vpack.c.b16 %v10417, %v10398
    %v11216 = vpack.c.b16 %v10418, %v10399
    %v11217 = vpack.c.b16 %v10419, %v10400
    %v11218 = vpack.c.b16 %v10420, %v10401
    %v11219 = vpack.c.b16 %v10421, %v10402
    %v11220 = vpack.c.b16 %v10422, %v10403
    %v11221 = vpack.c.b16 %v10423, %v10404
    %v11222 = vpack.c.b16 %v10424, %v10405
    %v11223 = vpack.c.b16 %v10425, %v10406
    %v11224 = vpack.c.b16 %v10426, %v10407
    %v11225 = vpack.c.b16 %v10427, %v10408
    %v11226 = vpack.c.b16 %v10428, %v10409
    %v11227 = vpack.c.b16 %v10429, %v10410
    %v11228 = vpack.c.b16 %v10430, %v10411
    %v11229 = vpack.c.b16 %v10431, %v10412
    %v11230 = vpack.c.b16 %v10451, %v10432
    %v11231 = vpack.c.b16 %v10452, %v10433
    %v11232 = vpack.c.b16 %v10453, %v10434
    %v11233 = vpack.c.b16 %v10454, %v10435
    %v11234 = vpack.c.b16 %v10455, %v10436
    %v11235 = vpack.c.b16 %v10456, %v10437
    %v11236 = vpack.c.b16 %v10457, %v10438
    %v11237 = vpack.c.b16 %v10458, %v10439
    %v11238 = vpack.c.b16 %v10459, %v10440
    %v11239 = vpack.c.b16 %v10460, %v10441
    %v11240 = vpack.c.b16 %v10461, %v10442
    %v11241 = vpack.c.b16 %v10462, %v10443
    %v11242 = vpack.c.b16 %v10463, %v10444
    %v11243 = vpack.c.b16 %v10464, %v10445
    %v11244 = vpack.c.b16 %v10465, %v10446
    %v11245 = vpack.c.b16 %v10466, %v10447
    %v11246 = vpack.c.b16 %v10467, %v10448
    %v11247 = vpack.c.b16 %v10468, %v10449
    %v11248 = vpack.c.b16 %v10469, %v10450
    %v11249 = vpack.c.b16 %v10489, %v10470
    %v11250 = vpack.c.b16 %v10490, %v10471
    %v11251 = vpack.c.b16 %v10491, %v10472
    %v11252 = vpack.c.b16 %v10492, %v10473
    %v11253 = vpack.c.b16 %v10493, %v10474
    %v11254 = vpack.c.b16 %v10494, %v10475
    %v11255 = vpack.c.b16 %v10495, %v10476
    %v11256 = vpack.c.b16 %v10496, %v10477
    %v11257 = vpack.c.b16 %v10497, %v10478
    %v11258 = vpack.c.b16 %v10498, %v10479
    %v11259 = vpack.c.b16 %v10499, %v10480
    %v11260 = vpack.c.b16 %v10500, %v10481
    %v11261 = vpack.c.b16 %v10501, %v10482
    %v11262 = vpack.c.b16 %v10502, %v10483
    %v11263 = vpack.c.b16 %v10503, %v10484
    %v11264 = vpack.c.b16 %v10504, %v10485
    %v11265 = vpack.c.b16 %v10505, %v10486
    %v11266 = vpack.c.b16 %v10506, %v10487
    %v11267 = vpack.c.b16 %v10507, %v10488
    %v11268 = vpack.c.b16 %v10527, %v10508
    %v11269 = vpack.c.b16 %v10528, %v10509
    %v11270 = vpack.c.b16 %v10529, %v10510
    %v11271 = vpack.c.b16 %v10530, %v10511
    %v11272 = vpack.c.b16 %v10531, %v10512
    %v11273 = vpack.c.b16 %v10532, %v10513
    %v11274 = vpack.c.b16 %v10533, %v10514
    %v11275 = vpack.c.b16 %v10534, %v10515
    %v11276 = vpack.c.b16 %v10535, %v10516
    %v11277 = vpack.c.b16 %v10536, %v10517
    %v11278 = vpack.c.b16 %v10537, %v10518
    %v11279 = vpack.c.b16 %v10538, %v10519
    %v11280 = vpack.c.b16 %v10539, %v10520
    %v11281 = vpack.c.b16 %v10540, %v10521
    %v11282 = vpack.c.b16 %v10541, %v10522
    %v11283 = vpack.c.b16 %v10542, %v10523
    %v11284 = vpack.c.b16 %v10543, %v10524
    %v11285 = vpack.c.b16 %v10544, %v10525
    %v11286 = vpack.c.b16 %v10545, %v10526
    %v11287 = vpack.c.b16 %v10565, %v10546
    %v11288 = vpack.c.b16 %v10566, %v10547
    %v11289 = vpack.c.b16 %v10567, %v10548
    %v11290 = vpack.c.b16 %v10568, %v10549
    %v11291 = vpack.c.b16 %v10569, %v10550
    %v11292 = vpack.c.b16 %v10570, %v10551
    %v11293 = vpack.c.b16 %v10571, %v10552
    %v11294 = vpack.c.b16 %v10572, %v10553
    %v11295 = vpack.c.b16 %v10573, %v10554
    %v11296 = vpack.c.b16 %v10574, %v10555
    %v11297 = vpack.c.b16 %v10575, %v10556
    %v11298 = vpack.c.b16 %v10576, %v10557
    %v11299 = vpack.c.b16 %v10577, %v10558
    %v11300 = vpack.c.b16 %v10578, %v10559
    %v11301 = vpack.c.b16 %v10579, %v10560
    %v11302 = vpack.c.b16 %v10580, %v10561
    %v11303 = vpack.c.b16 %v10581, %v10562
    %v11304 = vpack.c.b16 %v10582, %v10563
    %v11305 = vpack.c.b16 %v10583, %v10564
    %v11306 = vpack.c.b16 %v10603, %v10584
    %v11307 = vpack.c.b16 %v10604, %v10585
    %v11308 = vpack.c.b16 %v10605, %v10586
    %v11309 = vpack.c.b16 %v10606, %v10587
    %v11310 = vpack.c.b16 %v10607, %v10588
    %v11311 = vpack.c.b16 %v10608, %v10589
    %v11312 = vpack.c.b16 %v10609, %v10590
    %v11313 = vpack.c.b16 %v10610, %v10591
    %v11314 = vpack.c.b16 %v10611, %v10592
    %v11315 = vpack.c.b16 %v10612, %v10593
    %v11316 = vpack.c.b16 %v10613, %v10594
    %v11317 = vpack.c.b16 %v10614, %v10595
    %v11318 = vpack.c.b16 %v10615, %v10596
    %v11319 = vpack.c.b16 %v10616, %v10597
    %v11320 = vpack.c.b16 %v10617, %v10598
    %v11321 = vpack.c.b16 %v10618, %v10599
    %v11322 = vpack.c.b16 %v10619, %v10600
    %v11323 = vpack.c.b16 %v10620, %v10601
    %v11324 = vpack.c.b16 %v10621, %v10602
    %v11325 = vpack.c.b16 %v10641, %v10622
    %v11326 = vpack.c.b16 %v10642, %v10623
    %v11327 = vpack.c.b16 %v10643, %v10624
    %v11328 = vpack.c.b16 %v10644, %v10625
    %v11329 = vpack.c.b16 %v10645, %v10626
    %v11330 = vpack.c.b16 %v10646, %v10627
    %v11331 = vpack.c.b16 %v10647, %v10628
    %v11332 = vpack.c.b16 %v10648, %v10629
    %v11333 = vpack.c.b16 %v10649, %v10630
    %v11334 = vpack.c.b16 %v10650, %v10631
    %v11335 = vpack.c.b16 %v10651, %v10632
    %v11336 = vpack.c.b16 %v10652, %v10633
    %v11337 = vpack.c.b16 %v10653, %v10634
    %v11338 = vpack.c.b16 %v10654, %v10635
    %v11339 = vpack.c.b16 %v10655, %v10636
    %v11340 = vpack.c.b16 %v10656, %v10637
    %v11341 = vpack.c.b16 %v10657, %v10638
    %v11342 = vpack.c.b16 %v10658, %v10639
    %v11343 = vpack.c.b16 %v10659, %v10640
    %v11344 = vpack.c.b16 %v10679, %v10660
    %v11345 = vpack.c.b16 %v10680, %v10661
    %v11346 = vpack.c.b16 %v10681, %v10662
    %v11347 = vpack.c.b16 %v10682, %v10663
    %v11348 = vpack.c.b16 %v10683, %v10664
    %v11349 = vpack.c.b16 %v10684, %v10665
    %v11350 = vpack.c.b16 %v10685, %v10666
    %v11351 = vpack.c.b16 %v10686, %v10667
    %v11352 = vpack.c.b16 %v10687, %v10668
    %v11353 = vpack.c.b16 %v10688, %v10669
    %v11354 = vpack.c.b16 %v10689, %v10670
    %v11355 = vpack.c.b16 %v10690, %v10671
    %v11356 = vpack.c.b16 %v10691, %v10672
    %v11357 = vpack.c.b16 %v10692, %v10673
    %v11358 = vpack.c.b16 %v10693, %v10674
    %v11359 = vpack.c.b16 %v10694, %v10675
    %v11360 = vpack.c.b16 %v10695, %v10676
    %v11361 = vpack.c.b16 %v10696, %v10677
    %v11362 = vpack.c.b16 %v10697, %v10678
    %v11363 = vpack.c.b16 %v10717, %v10698
    %v11364 = vpack.c.b16 %v10718, %v10699
    %v11365 = vpack.c.b16 %v10719, %v10700
    %v11366 = vpack.c.b16 %v10720, %v10701
    %v11367 = vpack.c.b16 %v10721, %v10702
    %v11368 = vpack.c.b16 %v10722, %v10703
    %v11369 = vpack.c.b16 %v10723, %v10704
    %v11370 = vpack.c.b16 %v10724, %v10705
    %v11371 = vpack.c.b16 %v10725, %v10706
    %v11372 = vpack.c.b16 %v10726, %v10707
    %v11373 = vpack.c.b16 %v10727, %v10708
    %v11374 = vpack.c.b16 %v10728, %v10709
    %v11375 = vpack.c.b16 %v10729, %v10710
    %v11376 = vpack.c.b16 %v10730, %v10711
    %v11377 = vpack.c.b16 %v10731, %v10712
    %v11378 = vpack.c.b16 %v10732, %v10713
    %v11379 = vpack.c.b16 %v10733, %v10714
    %v11380 = vpack.c.b16 %v10734, %v10715
    %v11381 = vpack.c.b16 %v10735, %v10716
    %v11382 = vpack.c.b16 %v10755, %v10736
    %v11383 = vpack.c.b16 %v10756, %v10737
    %v11384 = vpack.c.b16 %v10757, %v10738
    %v11385 = vpack.c.b16 %v10758, %v10739
    %v11386 = vpack.c.b16 %v10759, %v10740
    %v11387 = vpack.c.b16 %v10760, %v10741
    %v11388 = vpack.c.b16 %v10761, %v10742
    %v11389 = vpack.c.b16 %v10762, %v10743
    %v11390 = vpack.c.b16 %v10763, %v10744
    %v11391 = vpack.c.b16 %v10764, %v10745
    %v11392 = vpack.c.b16 %v10765, %v10746
    %v11393 = vpack.c.b16 %v10766, %v10747
    %v11394 = vpack.c.b16 %v10767, %v10748
    %v11395 = vpack.c.b16 %v10768, %v10749
    %v11396 = vpack.c.b16 %v10769, %v10750
    %v11397 = vpack.c.b16 %v10770, %v10751
    %v11398 = vpack.c.b16 %v10771, %v10752
    %v11399 = vpack.c.b16 %v10772, %v10753
    %v11400 = vpack.c.b16 %v10773, %v10754
    %v11401 = vpack.c.b16 %v10793, %v10774
    %v11402 = vpack.c.b16 %v10794, %v10775
    %v11403 = vpack.c.b16 %v10795, %v10776
    %v11404 = vpack.c.b16 %v10796, %v10777
    %v11405 = vpack.c.b16 %v10797, %v10778
    %v11406 = vpack.c.b16 %v10798, %v10779
    %v11407 = vpack.c.b16 %v10799, %v10780
    %v11408 = vpack.c.b16 %v10800, %v10781
    %v11409 = vpack.c.b16 %v10801, %v10782
    %v11410 = vpack.c.b16 %v10802, %v10783
    %v11411 = vpack.c.b16 %v10803, %v10784
    %v11412 = vpack.c.b16 %v10804, %v10785
    %v11413 = vpack.c.b16 %v10805, %v10786
    %v11414 = vpack.c.b16 %v10806, %v10787
    %v11415 = vpack.c.b16 %v10807, %v10788
    %v11416 = vpack.c.b16 %v10808, %v10789
    %v11417 = vpack.c.b16 %v10809, %v10790
    %v11418 = vpack.c.b16 %v10810, %v10791
    %v11419 = vpack.c.b16 %v10811, %v10792
    %12028 = vmatprep.subr.bf16.mxu0 %v10813
    %12029 = vmatpush1.bf16.msra.mxu0 %v10812
    %12030 = vmatprep.subr.bf16.mxu0 %v10832
    %12031 = vmatpush1.bf16.msra.mxu0 %v10831
    %12032 = vmatprep.subr.bf16.mxu0 %v10851
    %12033 = vmatpush1.bf16.msra.mxu0 %v10850
    %12034 = vmatprep.subr.bf16.mxu0 %v10870
    %12035 = vmatpush1.bf16.msra.mxu0 %v10869
    %12036 = vmatprep.subr.bf16.mxu0 %v10889
    %12037 = vmatpush1.bf16.msra.mxu0 %v10888
    %12038 = vmatprep.subr.bf16.mxu0 %v10908
    %12039 = vmatpush1.bf16.msra.mxu0 %v10907
    %12040 = vmatprep.subr.bf16.mxu0 %v10927
    %12041 = vmatpush1.bf16.msra.mxu0 %v10926
    %12042 = vmatprep.subr.bf16.mxu0 %v10946
    %12043 = vmatpush1.bf16.msra.mxu0 %v10945
    %12044 = vmatprep.subr.bf16.mxu0 %v10965
    %12045 = vmatpush1.bf16.msra.mxu0 %v10964
    %12046 = vmatprep.subr.bf16.mxu0 %v10984
    %12047 = vmatpush1.bf16.msra.mxu0 %v10983
    %12048 = vmatprep.subr.bf16.mxu0 %v11003
    %12049 = vmatpush1.bf16.msra.mxu0 %v11002
    %12050 = vmatprep.subr.bf16.mxu0 %v11022
    %12051 = vmatpush1.bf16.msra.mxu0 %v11021
    %12052 = vmatprep.subr.bf16.mxu0 %v11041
    %12053 = vmatpush1.bf16.msra.mxu0 %v11040
    %12054 = vmatprep.subr.bf16.mxu0 %v11060
    %12055 = vmatpush1.bf16.msra.mxu0 %v11059
    %12056 = vmatprep.subr.bf16.mxu0 %v11079
    %12057 = vmatpush1.bf16.msra.mxu0 %v11078
    %12058 = vmatprep.subr.bf16.mxu0 %v11098
    %12059 = vmatpush1.bf16.msra.mxu0 %v11097
    %12060 = vmatprep.mubr.bf16.mxu0 %v8212
    %12061 = vmatmul.mubr.bf16.gmra.mrb[0].mxu0 %v8211
    %v12062 = vpop.f32.mrb[0].mxu0
    %v12063 = vadd.f32 %v8864, %v12062
    %v12064 = vpop.f32.mrb[0].mxu0
    %v12065 = vadd.f32 %v8868, %v12064
    %v12066 = vpop.f32.mrb[0].mxu0
    %v12067 = vpop.f32.mrb[0].mxu0
    %12068 = vdwg.mxu0
    %12069 = vmatprep.subr.bf16.mxu0 %v11117
    %12070 = vmatpush1.bf16.msra.mxu0 %v11116
    %12071 = vmatprep.subr.bf16.mxu0 %v11136
    %12072 = vmatpush1.bf16.msra.mxu0 %v11135
    %12073 = vmatprep.subr.bf16.mxu0 %v11155
    %12074 = vmatpush1.bf16.msra.mxu0 %v11154
    %12075 = vmatprep.subr.bf16.mxu0 %v11174
    %12076 = vmatpush1.bf16.msra.mxu0 %v11173
    %12077 = vmatprep.subr.bf16.mxu0 %v11193
    %12078 = vmatpush1.bf16.msra.mxu0 %v11192
    %12079 = vmatprep.subr.bf16.mxu0 %v11212
    %12080 = vmatpush1.bf16.msra.mxu0 %v11211
    %12081 = vmatprep.subr.bf16.mxu0 %v11231
    %12082 = vmatpush1.bf16.msra.mxu0 %v11230
    %12083 = vmatprep.subr.bf16.mxu0 %v11250
    %12084 = vmatpush1.bf16.msra.mxu0 %v11249
    %12085 = vmatprep.subr.bf16.mxu0 %v11269
    %12086 = vmatpush1.bf16.msra.mxu0 %v11268
    %12087 = vmatprep.subr.bf16.mxu0 %v11288
    %12088 = vmatpush1.bf16.msra.mxu0 %v11287
    %12089 = vmatprep.subr.bf16.mxu0 %v11307
    %12090 = vmatpush1.bf16.msra.mxu0 %v11306
    %12091 = vmatprep.subr.bf16.mxu0 %v11326
    %12092 = vmatpush1.bf16.msra.mxu0 %v11325
    %12093 = vmatprep.subr.bf16.mxu0 %v11345
    %12094 = vmatpush1.bf16.msra.mxu0 %v11344
    %12095 = vmatprep.subr.bf16.mxu0 %v11364
    %12096 = vmatpush1.bf16.msra.mxu0 %v11363
    %12097 = vmatprep.subr.bf16.mxu0 %v11383
    %12098 = vmatpush1.bf16.msra.mxu0 %v11382
    %12099 = vmatprep.subr.bf16.mxu0 %v11402
    %12100 = vmatpush1.bf16.msra.mxu0 %v11401
    %12101 = vmatprep.mubr.bf16.mxu0 %v8214
    %12102 = vmatmul.mubr.bf16.gmra.mrb[0].mxu0 %v8213
    %v12103 = vpop.f32.mrb[0].mxu0
    %v12104 = vadd.f32 %v12063, %v12103
    %v12105 = vpop.f32.mrb[0].mxu0
    %v12106 = vadd.f32 %v12065, %v12105
    %v12107 = vpop.f32.mrb[0].mxu0
    %v12108 = vpop.f32.mrb[0].mxu0
    %12109 = vdwg.mxu0
    %12110 = vmatprep.subr.bf16.mxu0 %v10815
    %12111 = vmatpush1.bf16.msra.mxu0 %v10814
    %12112 = vmatprep.subr.bf16.mxu0 %v10834
    %12113 = vmatpush1.bf16.msra.mxu0 %v10833
    %12114 = vmatprep.subr.bf16.mxu0 %v10853
    %12115 = vmatpush1.bf16.msra.mxu0 %v10852
    %12116 = vmatprep.subr.bf16.mxu0 %v10872
    %12117 = vmatpush1.bf16.msra.mxu0 %v10871
    %12118 = vmatprep.subr.bf16.mxu0 %v10891
    %12119 = vmatpush1.bf16.msra.mxu0 %v10890
    %12120 = vmatprep.subr.bf16.mxu0 %v10910
    %12121 = vmatpush1.bf16.msra.mxu0 %v10909
    %12122 = vmatprep.subr.bf16.mxu0 %v10929
    %12123 = vmatpush1.bf16.msra.mxu0 %v10928
    %12124 = vmatprep.subr.bf16.mxu0 %v10948
    %12125 = vmatpush1.bf16.msra.mxu0 %v10947
    %12126 = vmatprep.subr.bf16.mxu0 %v10967
    %12127 = vmatpush1.bf16.msra.mxu0 %v10966
    %12128 = vmatprep.subr.bf16.mxu0 %v10986
    %12129 = vmatpush1.bf16.msra.mxu0 %v10985
    %12130 = vmatprep.subr.bf16.mxu0 %v11005
    %12131 = vmatpush1.bf16.msra.mxu0 %v11004
    %12132 = vmatprep.subr.bf16.mxu0 %v11024
    %12133 = vmatpush1.bf16.msra.mxu0 %v11023
    %12134 = vmatprep.subr.bf16.mxu0 %v11043
    %12135 = vmatpush1.bf16.msra.mxu0 %v11042
    %12136 = vmatprep.subr.bf16.mxu0 %v11062
    %12137 = vmatpush1.bf16.msra.mxu0 %v11061
    %12138 = vmatprep.subr.bf16.mxu0 %v11081
    %12139 = vmatpush1.bf16.msra.mxu0 %v11080
    %12140 = vmatprep.subr.bf16.mxu0 %v11100
    %12141 = vmatpush1.bf16.msra.mxu0 %v11099
    %12142 = vmatprep.mubr.bf16.mxu0 %v8212
    %12143 = vmatmul.mubr.bf16.gmra.mrb[0].mxu0 %v8211
    %v12144 = vpop.f32.mrb[0].mxu0
    %v12145 = vadd.f32 %v8872, %v12144
    %v12146 = vpop.f32.mrb[0].mxu0
    %v12147 = vadd.f32 %v8876, %v12146
    %v12148 = vpop.f32.mrb[0].mxu0
    %v12149 = vpop.f32.mrb[0].mxu0
    %12150 = vdwg.mxu0
    %12151 = vmatprep.subr.bf16.mxu0 %v11119
    %12152 = vmatpush1.bf16.msra.mxu0 %v11118
    %12153 = vmatprep.subr.bf16.mxu0 %v11138
    %12154 = vmatpush1.bf16.msra.mxu0 %v11137
    %12155 = vmatprep.subr.bf16.mxu0 %v11157
    %12156 = vmatpush1.bf16.msra.mxu0 %v11156
    %12157 = vmatprep.subr.bf16.mxu0 %v11176
    %12158 = vmatpush1.bf16.msra.mxu0 %v11175
    %12159 = vmatprep.subr.bf16.mxu0 %v11195
    %12160 = vmatpush1.bf16.msra.mxu0 %v11194
    %12161 = vmatprep.subr.bf16.mxu0 %v11214
    %12162 = vmatpush1.bf16.msra.mxu0 %v11213
    %12163 = vmatprep.subr.bf16.mxu0 %v11233
    %12164 = vmatpush1.bf16.msra.mxu0 %v11232
    %12165 = vmatprep.subr.bf16.mxu0 %v11252
    %12166 = vmatpush1.bf16.msra.mxu0 %v11251
    %12167 = vmatprep.subr.bf16.mxu0 %v11271
    %12168 = vmatpush1.bf16.msra.mxu0 %v11270
    %12169 = vmatprep.subr.bf16.mxu0 %v11290
    %12170 = vmatpush1.bf16.msra.mxu0 %v11289
    %12171 = vmatprep.subr.bf16.mxu0 %v11309
    %12172 = vmatpush1.bf16.msra.mxu0 %v11308
    %12173 = vmatprep.subr.bf16.mxu0 %v11328
    %12174 = vmatpush1.bf16.msra.mxu0 %v11327
    %12175 = vmatprep.subr.bf16.mxu0 %v11347
    %12176 = vmatpush1.bf16.msra.mxu0 %v11346
    %12177 = vmatprep.subr.bf16.mxu0 %v11366
    %12178 = vmatpush1.bf16.msra.mxu0 %v11365
    %12179 = vmatprep.subr.bf16.mxu0 %v11385
    %12180 = vmatpush1.bf16.msra.mxu0 %v11384
    %12181 = vmatprep.subr.bf16.mxu0 %v11404
    %12182 = vmatpush1.bf16.msra.mxu0 %v11403
    %12183 = vmatprep.mubr.bf16.mxu0 %v8214
    %12184 = vmatmul.mubr.bf16.gmra.mrb[0].mxu0 %v8213
    %v12185 = vpop.f32.mrb[0].mxu0
    %v12186 = vadd.f32 %v12145, %v12185
    %v12187 = vpop.f32.mrb[0].mxu0
    %v12188 = vadd.f32 %v12147, %v12187
    %v12189 = vpop.f32.mrb[0].mxu0
    %v12190 = vpop.f32.mrb[0].mxu0
    %12191 = vdwg.mxu0
    %12192 = vmatprep.subr.bf16.mxu0 %v10817
    %12193 = vmatpush1.bf16.msra.mxu0 %v10816
    %12194 = vmatprep.subr.bf16.mxu0 %v10836
    %12195 = vmatpush1.bf16.msra.mxu0 %v10835
    %12196 = vmatprep.subr.bf16.mxu0 %v10855
    %12197 = vmatpush1.bf16.msra.mxu0 %v10854
    %12198 = vmatprep.subr.bf16.mxu0 %v10874
    %12199 = vmatpush1.bf16.msra.mxu0 %v10873
    %12200 = vmatprep.subr.bf16.mxu0 %v10893
    %12201 = vmatpush1.bf16.msra.mxu0 %v10892
    %12202 = vmatprep.subr.bf16.mxu0 %v10912
    %12203 = vmatpush1.bf16.msra.mxu0 %v10911
    %12204 = vmatprep.subr.bf16.mxu0 %v10931
    %12205 = vmatpush1.bf16.msra.mxu0 %v10930
    %12206 = vmatprep.subr.bf16.mxu0 %v10950
    %12207 = vmatpush1.bf16.msra.mxu0 %v10949
    %12208 = vmatprep.subr.bf16.mxu0 %v10969
    %12209 = vmatpush1.bf16.msra.mxu0 %v10968
    %12210 = vmatprep.subr.bf16.mxu0 %v10988
    %12211 = vmatpush1.bf16.msra.mxu0 %v10987
    %12212 = vmatprep.subr.bf16.mxu0 %v11007
    %12213 = vmatpush1.bf16.msra.mxu0 %v11006
    %12214 = vmatprep.subr.bf16.mxu0 %v11026
    %12215 = vmatpush1.bf16.msra.mxu0 %v11025
    %12216 = vmatprep.subr.bf16.mxu0 %v11045
    %12217 = vmatpush1.bf16.msra.mxu0 %v11044
    %12218 = vmatprep.subr.bf16.mxu0 %v11064
    %12219 = vmatpush1.bf16.msra.mxu0 %v11063
    %12220 = vmatprep.subr.bf16.mxu0 %v11083
    %12221 = vmatpush1.bf16.msra.mxu0 %v11082
    %12222 = vmatprep.subr.bf16.mxu0 %v11102
    %12223 = vmatpush1.bf16.msra.mxu0 %v11101
    %12224 = vmatprep.mubr.bf16.mxu0 %v8212
    %12225 = vmatmul.mubr.bf16.gmra.mrb[0].mxu0 %v8211
    %v12226 = vpop.f32.mrb[0].mxu0
    %v12227 = vadd.f32 %v8880, %v12226
    %v12228 = vpop.f32.mrb[0].mxu0
    %v12229 = vadd.f32 %v8884, %v12228
    %v12230 = vpop.f32.mrb[0].mxu0
    %v12231 = vpop.f32.mrb[0].mxu0
    %12232 = vdwg.mxu0
    %12233 = vmatprep.subr.bf16.mxu0 %v11121
    %12234 = vmatpush1.bf16.msra.mxu0 %v11120
    %12235 = vmatprep.subr.bf16.mxu0 %v11140
    %12236 = vmatpush1.bf16.msra.mxu0 %v11139
    %12237 = vmatprep.subr.bf16.mxu0 %v11159
    %12238 = vmatpush1.bf16.msra.mxu0 %v11158
    %12239 = vmatprep.subr.bf16.mxu0 %v11178
    %12240 = vmatpush1.bf16.msra.mxu0 %v11177
    %12241 = vmatprep.subr.bf16.mxu0 %v11197
    %12242 = vmatpush1.bf16.msra.mxu0 %v11196
    %12243 = vmatprep.subr.bf16.mxu0 %v11216
    %12244 = vmatpush1.bf16.msra.mxu0 %v11215
    %12245 = vmatprep.subr.bf16.mxu0 %v11235
    %12246 = vmatpush1.bf16.msra.mxu0 %v11234
    %12247 = vmatprep.subr.bf16.mxu0 %v11254
    %12248 = vmatpush1.bf16.msra.mxu0 %v11253
    %12249 = vmatprep.subr.bf16.mxu0 %v11273
    %12250 = vmatpush1.bf16.msra.mxu0 %v11272
    %12251 = vmatprep.subr.bf16.mxu0 %v11292
    %12252 = vmatpush1.bf16.msra.mxu0 %v11291
    %12253 = vmatprep.subr.bf16.mxu0 %v11311
    %12254 = vmatpush1.bf16.msra.mxu0 %v11310
    %12255 = vmatprep.subr.bf16.mxu0 %v11330
    %12256 = vmatpush1.bf16.msra.mxu0 %v11329
    %12257 = vmatprep.subr.bf16.mxu0 %v11349
    %12258 = vmatpush1.bf16.msra.mxu0 %v11348
    %12259 = vmatprep.subr.bf16.mxu0 %v11368
    %12260 = vmatpush1.bf16.msra.mxu0 %v11367
    %12261 = vmatprep.subr.bf16.mxu0 %v11387
    %12262 = vmatpush1.bf16.msra.mxu0 %v11386
    %12263 = vmatprep.subr.bf16.mxu0 %v11406
    %12264 = vmatpush1.bf16.msra.mxu0 %v11405
    %12265 = vmatprep.mubr.bf16.mxu0 %v8214
    %12266 = vmatmul.mubr.bf16.gmra.mrb[0].mxu0 %v8213
    %v12267 = vpop.f32.mrb[0].mxu0
    %v12268 = vadd.f32 %v12227, %v12267
    %v12269 = vpop.f32.mrb[0].mxu0
    %v12270 = vadd.f32 %v12229, %v12269
    %v12271 = vpop.f32.mrb[0].mxu0
    %v12272 = vpop.f32.mrb[0].mxu0
    %12273 = vdwg.mxu0
    %12274 = vmatprep.subr.bf16.mxu0 %v10819
    %12275 = vmatpush1.bf16.msra.mxu0 %v10818
    %12276 = vmatprep.subr.bf16.mxu0 %v10838
    %12277 = vmatpush1.bf16.msra.mxu0 %v10837
    %12278 = vmatprep.subr.bf16.mxu0 %v10857
    %12279 = vmatpush1.bf16.msra.mxu0 %v10856
    %12280 = vmatprep.subr.bf16.mxu0 %v10876
    %12281 = vmatpush1.bf16.msra.mxu0 %v10875
    %12282 = vmatprep.subr.bf16.mxu0 %v10895
    %12283 = vmatpush1.bf16.msra.mxu0 %v10894
    %12284 = vmatprep.subr.bf16.mxu0 %v10914
    %12285 = vmatpush1.bf16.msra.mxu0 %v10913
    %12286 = vmatprep.subr.bf16.mxu0 %v10933
    %12287 = vmatpush1.bf16.msra.mxu0 %v10932
    %12288 = vmatprep.subr.bf16.mxu0 %v10952
    %12289 = vmatpush1.bf16.msra.mxu0 %v10951
    %12290 = vmatprep.subr.bf16.mxu0 %v10971
    %12291 = vmatpush1.bf16.msra.mxu0 %v10970
    %12292 = vmatprep.subr.bf16.mxu0 %v10990
    %12293 = vmatpush1.bf16.msra.mxu0 %v10989
    %12294 = vmatprep.subr.bf16.mxu0 %v11009
    %12295 = vmatpush1.bf16.msra.mxu0 %v11008
    %12296 = vmatprep.subr.bf16.mxu0 %v11028
    %12297 = vmatpush1.bf16.msra.mxu0 %v11027
    %12298 = vmatprep.subr.bf16.mxu0 %v11047
    %12299 = vmatpush1.bf16.msra.mxu0 %v11046
    %12300 = vmatprep.subr.bf16.mxu0 %v11066
    %12301 = vmatpush1.bf16.msra.mxu0 %v11065
    %12302 = vmatprep.subr.bf16.mxu0 %v11085
    %12303 = vmatpush1.bf16.msra.mxu0 %v11084
    %12304 = vmatprep.subr.bf16.mxu0 %v11104
    %12305 = vmatpush1.bf16.msra.mxu0 %v11103
    %12306 = vmatprep.mubr.bf16.mxu0 %v8212
    %12307 = vmatmul.mubr.bf16.gmra.mrb[0].mxu0 %v8211
    %v12308 = vpop.f32.mrb[0].mxu0
    %v12309 = vadd.f32 %v8888, %v12308
    %v12310 = vpop.f32.mrb[0].mxu0
    %v12311 = vadd.f32 %v8892, %v12310
    %v12312 = vpop.f32.mrb[0].mxu0
    %v12313 = vpop.f32.mrb[0].mxu0
    %12314 = vdwg.mxu0
    %12315 = vmatprep.subr.bf16.mxu0 %v11123
    %12316 = vmatpush1.bf16.msra.mxu0 %v11122
    %12317 = vmatprep.subr.bf16.mxu0 %v11142
    %12318 = vmatpush1.bf16.msra.mxu0 %v11141
    %12319 = vmatprep.subr.bf16.mxu0 %v11161
    %12320 = vmatpush1.bf16.msra.mxu0 %v11160
    %12321 = vmatprep.subr.bf16.mxu0 %v11180
    %12322 = vmatpush1.bf16.msra.mxu0 %v11179
    %12323 = vmatprep.subr.bf16.mxu0 %v11199
    %12324 = vmatpush1.bf16.msra.mxu0 %v11198
    %12325 = vmatprep.subr.bf16.mxu0 %v11218
    %12326 = vmatpush1.bf16.msra.mxu0 %v11217
    %12327 = vmatprep.subr.bf16.mxu0 %v11237
    %12328 = vmatpush1.bf16.msra.mxu0 %v11236
    %12329 = vmatprep.subr.bf16.mxu0 %v11256
    %12330 = vmatpush1.bf16.msra.mxu0 %v11255
    %12331 = vmatprep.subr.bf16.mxu0 %v11275
    %12332 = vmatpush1.bf16.msra.mxu0 %v11274
    %12333 = vmatprep.subr.bf16.mxu0 %v11294
    %12334 = vmatpush1.bf16.msra.mxu0 %v11293
    %12335 = vmatprep.subr.bf16.mxu0 %v11313
    %12336 = vmatpush1.bf16.msra.mxu0 %v11312
    %12337 = vmatprep.subr.bf16.mxu0 %v11332
    %12338 = vmatpush1.bf16.msra.mxu0 %v11331
    %12339 = vmatprep.subr.bf16.mxu0 %v11351
    %12340 = vmatpush1.bf16.msra.mxu0 %v11350
    %12341 = vmatprep.subr.bf16.mxu0 %v11370
    %12342 = vmatpush1.bf16.msra.mxu0 %v11369
    %12343 = vmatprep.subr.bf16.mxu0 %v11389
    %12344 = vmatpush1.bf16.msra.mxu0 %v11388
    %12345 = vmatprep.subr.bf16.mxu0 %v11408
    %12346 = vmatpush1.bf16.msra.mxu0 %v11407
    %12347 = vmatprep.mubr.bf16.mxu0 %v8214
    %12348 = vmatmul.mubr.bf16.gmra.mrb[0].mxu0 %v8213
    %v12349 = vpop.f32.mrb[0].mxu0
    %v12350 = vadd.f32 %v12309, %v12349
    %v12351 = vpop.f32.mrb[0].mxu0
    %v12352 = vadd.f32 %v12311, %v12351
    %v12353 = vpop.f32.mrb[0].mxu0
    %v12354 = vpop.f32.mrb[0].mxu0
    %12355 = vdwg.mxu0
    %12356 = vmatprep.subr.bf16.mxu0 %v10821
    %12357 = vmatpush1.bf16.msra.mxu0 %v10820
    %12358 = vmatprep.subr.bf16.mxu0 %v10840
    %12359 = vmatpush1.bf16.msra.mxu0 %v10839
    %12360 = vmatprep.subr.bf16.mxu0 %v10859
    %12361 = vmatpush1.bf16.msra.mxu0 %v10858
    %12362 = vmatprep.subr.bf16.mxu0 %v10878
    %12363 = vmatpush1.bf16.msra.mxu0 %v10877
    %12364 = vmatprep.subr.bf16.mxu0 %v10897
    %12365 = vmatpush1.bf16.msra.mxu0 %v10896
    %12366 = vmatprep.subr.bf16.mxu0 %v10916
    %12367 = vmatpush1.bf16.msra.mxu0 %v10915
    %12368 = vmatprep.subr.bf16.mxu0 %v10935
    %12369 = vmatpush1.bf16.msra.mxu0 %v10934
    %12370 = vmatprep.subr.bf16.mxu0 %v10954
    %12371 = vmatpush1.bf16.msra.mxu0 %v10953
    %12372 = vmatprep.subr.bf16.mxu0 %v10973
    %12373 = vmatpush1.bf16.msra.mxu0 %v10972
    %12374 = vmatprep.subr.bf16.mxu0 %v10992
    %12375 = vmatpush1.bf16.msra.mxu0 %v10991
    %12376 = vmatprep.subr.bf16.mxu0 %v11011
    %12377 = vmatpush1.bf16.msra.mxu0 %v11010
    %12378 = vmatprep.subr.bf16.mxu0 %v11030
    %12379 = vmatpush1.bf16.msra.mxu0 %v11029
    %12380 = vmatprep.subr.bf16.mxu0 %v11049
    %12381 = vmatpush1.bf16.msra.mxu0 %v11048
    %12382 = vmatprep.subr.bf16.mxu0 %v11068
    %12383 = vmatpush1.bf16.msra.mxu0 %v11067
    %12384 = vmatprep.subr.bf16.mxu0 %v11087
    %12385 = vmatpush1.bf16.msra.mxu0 %v11086
    %12386 = vmatprep.subr.bf16.mxu0 %v11106
    %12387 = vmatpush1.bf16.msra.mxu0 %v11105
    %12388 = vmatprep.mubr.bf16.mxu0 %v8212
    %12389 = vmatmul.mubr.bf16.gmra.mrb[0].mxu0 %v8211
    %v12390 = vpop.f32.mrb[0].mxu0
    %v12391 = vadd.f32 %v8896, %v12390
    %v12392 = vpop.f32.mrb[0].mxu0
    %v12393 = vadd.f32 %v8900, %v12392
    %v12394 = vpop.f32.mrb[0].mxu0
    %v12395 = vpop.f32.mrb[0].mxu0
    %12396 = vdwg.mxu0
    %12397 = vmatprep.subr.bf16.mxu0 %v11125
    %12398 = vmatpush1.bf16.msra.mxu0 %v11124
    %12399 = vmatprep.subr.bf16.mxu0 %v11144
    %12400 = vmatpush1.bf16.msra.mxu0 %v11143
    %12401 = vmatprep.subr.bf16.mxu0 %v11163
    %12402 = vmatpush1.bf16.msra.mxu0 %v11162
    %12403 = vmatprep.subr.bf16.mxu0 %v11182
    %12404 = vmatpush1.bf16.msra.mxu0 %v11181
    %12405 = vmatprep.subr.bf16.mxu0 %v11201
    %12406 = vmatpush1.bf16.msra.mxu0 %v11200
    %12407 = vmatprep.subr.bf16.mxu0 %v11220
    %12408 = vmatpush1.bf16.msra.mxu0 %v11219
    %12409 = vmatprep.subr.bf16.mxu0 %v11239
    %12410 = vmatpush1.bf16.msra.mxu0 %v11238
    %12411 = vmatprep.subr.bf16.mxu0 %v11258
    %12412 = vmatpush1.bf16.msra.mxu0 %v11257
    %12413 = vmatprep.subr.bf16.mxu0 %v11277
    %12414 = vmatpush1.bf16.msra.mxu0 %v11276
    %12415 = vmatprep.subr.bf16.mxu0 %v11296
    %12416 = vmatpush1.bf16.msra.mxu0 %v11295
    %12417 = vmatprep.subr.bf16.mxu0 %v11315
    %12418 = vmatpush1.bf16.msra.mxu0 %v11314
    %12419 = vmatprep.subr.bf16.mxu0 %v11334
    %12420 = vmatpush1.bf16.msra.mxu0 %v11333
    %12421 = vmatprep.subr.bf16.mxu0 %v11353
    %12422 = vmatpush1.bf16.msra.mxu0 %v11352
    %12423 = vmatprep.subr.bf16.mxu0 %v11372
    %12424 = vmatpush1.bf16.msra.mxu0 %v11371
    %12425 = vmatprep.subr.bf16.mxu0 %v11391
    %12426 = vmatpush1.bf16.msra.mxu0 %v11390
    %12427 = vmatprep.subr.bf16.mxu0 %v11410
    %12428 = vmatpush1.bf16.msra.mxu0 %v11409
    %12429 = vmatprep.mubr.bf16.mxu0 %v8214
    %12430 = vmatmul.mubr.bf16.gmra.mrb[0].mxu0 %v8213
    %v12431 = vpop.f32.mrb[0].mxu0
    %v12432 = vadd.f32 %v12391, %v12431
    %v12433 = vpop.f32.mrb[0].mxu0
    %v12434 = vadd.f32 %v12393, %v12433
    %v12435 = vpop.f32.mrb[0].mxu0
    %v12436 = vpop.f32.mrb[0].mxu0
    %12437 = vdwg.mxu0
    %12438 = vmatprep.subr.bf16.mxu0 %v10823
    %12439 = vmatpush1.bf16.msra.mxu0 %v10822
    %12440 = vmatprep.subr.bf16.mxu0 %v10842
    %12441 = vmatpush1.bf16.msra.mxu0 %v10841
    %12442 = vmatprep.subr.bf16.mxu0 %v10861
    %12443 = vmatpush1.bf16.msra.mxu0 %v10860
    %12444 = vmatprep.subr.bf16.mxu0 %v10880
    %12445 = vmatpush1.bf16.msra.mxu0 %v10879
    %12446 = vmatprep.subr.bf16.mxu0 %v10899
    %12447 = vmatpush1.bf16.msra.mxu0 %v10898
    %12448 = vmatprep.subr.bf16.mxu0 %v10918
    %12449 = vmatpush1.bf16.msra.mxu0 %v10917
    %12450 = vmatprep.subr.bf16.mxu0 %v10937
    %12451 = vmatpush1.bf16.msra.mxu0 %v10936
    %12452 = vmatprep.subr.bf16.mxu0 %v10956
    %12453 = vmatpush1.bf16.msra.mxu0 %v10955
    %12454 = vmatprep.subr.bf16.mxu0 %v10975
    %12455 = vmatpush1.bf16.msra.mxu0 %v10974
    %12456 = vmatprep.subr.bf16.mxu0 %v10994
    %12457 = vmatpush1.bf16.msra.mxu0 %v10993
    %12458 = vmatprep.subr.bf16.mxu0 %v11013
    %12459 = vmatpush1.bf16.msra.mxu0 %v11012
    %12460 = vmatprep.subr.bf16.mxu0 %v11032
    %12461 = vmatpush1.bf16.msra.mxu0 %v11031
    %12462 = vmatprep.subr.bf16.mxu0 %v11051
    %12463 = vmatpush1.bf16.msra.mxu0 %v11050
    %12464 = vmatprep.subr.bf16.mxu0 %v11070
    %12465 = vmatpush1.bf16.msra.mxu0 %v11069
    %12466 = vmatprep.subr.bf16.mxu0 %v11089
    %12467 = vmatpush1.bf16.msra.mxu0 %v11088
    %12468 = vmatprep.subr.bf16.mxu0 %v11108
    %12469 = vmatpush1.bf16.msra.mxu0 %v11107
    %12470 = vmatprep.mubr.bf16.mxu0 %v8212
    %12471 = vmatmul.mubr.bf16.gmra.mrb[0].mxu0 %v8211
    %v12472 = vpop.f32.mrb[0].mxu0
    %v12473 = vadd.f32 %v8904, %v12472
    %v12474 = vpop.f32.mrb[0].mxu0
    %v12475 = vadd.f32 %v8908, %v12474
    %v12476 = vpop.f32.mrb[0].mxu0
    %v12477 = vpop.f32.mrb[0].mxu0
    %12478 = vdwg.mxu0
    %12479 = vmatprep.subr.bf16.mxu0 %v11127
    %12480 = vmatpush1.bf16.msra.mxu0 %v11126
    %12481 = vmatprep.subr.bf16.mxu0 %v11146
    %12482 = vmatpush1.bf16.msra.mxu0 %v11145
    %12483 = vmatprep.subr.bf16.mxu0 %v11165
    %12484 = vmatpush1.bf16.msra.mxu0 %v11164
    %12485 = vmatprep.subr.bf16.mxu0 %v11184
    %12486 = vmatpush1.bf16.msra.mxu0 %v11183
    %12487 = vmatprep.subr.bf16.mxu0 %v11203
    %12488 = vmatpush1.bf16.msra.mxu0 %v11202
    %12489 = vmatprep.subr.bf16.mxu0 %v11222
    %12490 = vmatpush1.bf16.msra.mxu0 %v11221
    %12491 = vmatprep.subr.bf16.mxu0 %v11241
    %12492 = vmatpush1.bf16.msra.mxu0 %v11240
    %12493 = vmatprep.subr.bf16.mxu0 %v11260
    %12494 = vmatpush1.bf16.msra.mxu0 %v11259
    %12495 = vmatprep.subr.bf16.mxu0 %v11279
    %12496 = vmatpush1.bf16.msra.mxu0 %v11278
    %12497 = vmatprep.subr.bf16.mxu0 %v11298
    %12498 = vmatpush1.bf16.msra.mxu0 %v11297
    %12499 = vmatprep.subr.bf16.mxu0 %v11317
    %12500 = vmatpush1.bf16.msra.mxu0 %v11316
    %12501 = vmatprep.subr.bf16.mxu0 %v11336
    %12502 = vmatpush1.bf16.msra.mxu0 %v11335
    %12503 = vmatprep.subr.bf16.mxu0 %v11355
    %12504 = vmatpush1.bf16.msra.mxu0 %v11354
    %12505 = vmatprep.subr.bf16.mxu0 %v11374
    %12506 = vmatpush1.bf16.msra.mxu0 %v11373
    %12507 = vmatprep.subr.bf16.mxu0 %v11393
    %12508 = vmatpush1.bf16.msra.mxu0 %v11392
    %12509 = vmatprep.subr.bf16.mxu0 %v11412
    %12510 = vmatpush1.bf16.msra.mxu0 %v11411
    %12511 = vmatprep.mubr.bf16.mxu0 %v8214
    %12512 = vmatmul.mubr.bf16.gmra.mrb[0].mxu0 %v8213
    %v12513 = vpop.f32.mrb[0].mxu0
    %v12514 = vadd.f32 %v12473, %v12513
    %v12515 = vpop.f32.mrb[0].mxu0
    %v12516 = vadd.f32 %v12475, %v12515
    %v12517 = vpop.f32.mrb[0].mxu0
    %v12518 = vpop.f32.mrb[0].mxu0
    %12519 = vdwg.mxu0
    %12520 = vmatprep.subr.bf16.mxu0 %v10825
    %12521 = vmatpush1.bf16.msra.mxu0 %v10824
    %12522 = vmatprep.subr.bf16.mxu0 %v10844
    %12523 = vmatpush1.bf16.msra.mxu0 %v10843
    %12524 = vmatprep.subr.bf16.mxu0 %v10863
    %12525 = vmatpush1.bf16.msra.mxu0 %v10862
    %12526 = vmatprep.subr.bf16.mxu0 %v10882
    %12527 = vmatpush1.bf16.msra.mxu0 %v10881
    %12528 = vmatprep.subr.bf16.mxu0 %v10901
    %12529 = vmatpush1.bf16.msra.mxu0 %v10900
    %12530 = vmatprep.subr.bf16.mxu0 %v10920
    %12531 = vmatpush1.bf16.msra.mxu0 %v10919
    %12532 = vmatprep.subr.bf16.mxu0 %v10939
    %12533 = vmatpush1.bf16.msra.mxu0 %v10938
    %12534 = vmatprep.subr.bf16.mxu0 %v10958
    %12535 = vmatpush1.bf16.msra.mxu0 %v10957
    %12536 = vmatprep.subr.bf16.mxu0 %v10977
    %12537 = vmatpush1.bf16.msra.mxu0 %v10976
    %12538 = vmatprep.subr.bf16.mxu0 %v10996
    %12539 = vmatpush1.bf16.msra.mxu0 %v10995
    %12540 = vmatprep.subr.bf16.mxu0 %v11015
    %12541 = vmatpush1.bf16.msra.mxu0 %v11014
    %12542 = vmatprep.subr.bf16.mxu0 %v11034
    %12543 = vmatpush1.bf16.msra.mxu0 %v11033
    %12544 = vmatprep.subr.bf16.mxu0 %v11053
    %12545 = vmatpush1.bf16.msra.mxu0 %v11052
    %12546 = vmatprep.subr.bf16.mxu0 %v11072
    %12547 = vmatpush1.bf16.msra.mxu0 %v11071
    %12548 = vmatprep.subr.bf16.mxu0 %v11091
    %12549 = vmatpush1.bf16.msra.mxu0 %v11090
    %12550 = vmatprep.subr.bf16.mxu0 %v11110
    %12551 = vmatpush1.bf16.msra.mxu0 %v11109
    %12552 = vmatprep.mubr.bf16.mxu0 %v8212
    %12553 = vmatmul.mubr.bf16.gmra.mrb[0].mxu0 %v8211
    %v12554 = vpop.f32.mrb[0].mxu0
    %v12555 = vadd.f32 %v8912, %v12554
    %v12556 = vpop.f32.mrb[0].mxu0
    %v12557 = vadd.f32 %v8916, %v12556
    %v12558 = vpop.f32.mrb[0].mxu0
    %v12559 = vpop.f32.mrb[0].mxu0
    %12560 = vdwg.mxu0
    %12561 = vmatprep.subr.bf16.mxu0 %v11129
    %12562 = vmatpush1.bf16.msra.mxu0 %v11128
    %12563 = vmatprep.subr.bf16.mxu0 %v11148
    %12564 = vmatpush1.bf16.msra.mxu0 %v11147
    %12565 = vmatprep.subr.bf16.mxu0 %v11167
    %12566 = vmatpush1.bf16.msra.mxu0 %v11166
    %12567 = vmatprep.subr.bf16.mxu0 %v11186
    %12568 = vmatpush1.bf16.msra.mxu0 %v11185
    %12569 = vmatprep.subr.bf16.mxu0 %v11205
    %12570 = vmatpush1.bf16.msra.mxu0 %v11204
    %12571 = vmatprep.subr.bf16.mxu0 %v11224
    %12572 = vmatpush1.bf16.msra.mxu0 %v11223
    %12573 = vmatprep.subr.bf16.mxu0 %v11243
    %12574 = vmatpush1.bf16.msra.mxu0 %v11242
    %12575 = vmatprep.subr.bf16.mxu0 %v11262
    %12576 = vmatpush1.bf16.msra.mxu0 %v11261
    %12577 = vmatprep.subr.bf16.mxu0 %v11281
    %12578 = vmatpush1.bf16.msra.mxu0 %v11280
    %12579 = vmatprep.subr.bf16.mxu0 %v11300
    %12580 = vmatpush1.bf16.msra.mxu0 %v11299
    %12581 = vmatprep.subr.bf16.mxu0 %v11319
    %12582 = vmatpush1.bf16.msra.mxu0 %v11318
    %12583 = vmatprep.subr.bf16.mxu0 %v11338
    %12584 = vmatpush1.bf16.msra.mxu0 %v11337
    %12585 = vmatprep.subr.bf16.mxu0 %v11357
    %12586 = vmatpush1.bf16.msra.mxu0 %v11356
    %12587 = vmatprep.subr.bf16.mxu0 %v11376
    %12588 = vmatpush1.bf16.msra.mxu0 %v11375
    %12589 = vmatprep.subr.bf16.mxu0 %v11395
    %12590 = vmatpush1.bf16.msra.mxu0 %v11394
    %12591 = vmatprep.subr.bf16.mxu0 %v11414
    %12592 = vmatpush1.bf16.msra.mxu0 %v11413
    %12593 = vmatprep.mubr.bf16.mxu0 %v8214
    %12594 = vmatmul.mubr.bf16.gmra.mrb[0].mxu0 %v8213
    %v12595 = vpop.f32.mrb[0].mxu0
    %v12596 = vadd.f32 %v12555, %v12595
    %v12597 = vpop.f32.mrb[0].mxu0
    %v12598 = vadd.f32 %v12557, %v12597
    %v12599 = vpop.f32.mrb[0].mxu0
    %v12600 = vpop.f32.mrb[0].mxu0
    %12601 = vdwg.mxu0
    %12602 = vmatprep.subr.bf16.mxu0 %v10827
    %12603 = vmatpush1.bf16.msra.mxu0 %v10826
    %12604 = vmatprep.subr.bf16.mxu0 %v10846
    %12605 = vmatpush1.bf16.msra.mxu0 %v10845
    %12606 = vmatprep.subr.bf16.mxu0 %v10865
    %12607 = vmatpush1.bf16.msra.mxu0 %v10864
    %12608 = vmatprep.subr.bf16.mxu0 %v10884
    %12609 = vmatpush1.bf16.msra.mxu0 %v10883
    %12610 = vmatprep.subr.bf16.mxu0 %v10903
    %12611 = vmatpush1.bf16.msra.mxu0 %v10902
    %12612 = vmatprep.subr.bf16.mxu0 %v10922
    %12613 = vmatpush1.bf16.msra.mxu0 %v10921
    %12614 = vmatprep.subr.bf16.mxu0 %v10941
    %12615 = vmatpush1.bf16.msra.mxu0 %v10940
    %12616 = vmatprep.subr.bf16.mxu0 %v10960
    %12617 = vmatpush1.bf16.msra.mxu0 %v10959
    %12618 = vmatprep.subr.bf16.mxu0 %v10979
    %12619 = vmatpush1.bf16.msra.mxu0 %v10978
    %12620 = vmatprep.subr.bf16.mxu0 %v10998
    %12621 = vmatpush1.bf16.msra.mxu0 %v10997
    %12622 = vmatprep.subr.bf16.mxu0 %v11017
    %12623 = vmatpush1.bf16.msra.mxu0 %v11016
    %12624 = vmatprep.subr.bf16.mxu0 %v11036
    %12625 = vmatpush1.bf16.msra.mxu0 %v11035
    %12626 = vmatprep.subr.bf16.mxu0 %v11055
    %12627 = vmatpush1.bf16.msra.mxu0 %v11054
    %12628 = vmatprep.subr.bf16.mxu0 %v11074
    %12629 = vmatpush1.bf16.msra.mxu0 %v11073
    %12630 = vmatprep.subr.bf16.mxu0 %v11093
    %12631 = vmatpush1.bf16.msra.mxu0 %v11092
    %12632 = vmatprep.subr.bf16.mxu0 %v11112
    %12633 = vmatpush1.bf16.msra.mxu0 %v11111
    %12634 = vmatprep.mubr.bf16.mxu0 %v8212
    %12635 = vmatmul.mubr.bf16.gmra.mrb[0].mxu0 %v8211
    %v12636 = vpop.f32.mrb[0].mxu0
    %v12637 = vadd.f32 %v8920, %v12636
    %v12638 = vpop.f32.mrb[0].mxu0
    %v12639 = vadd.f32 %v8924, %v12638
    %v12640 = vpop.f32.mrb[0].mxu0
    %v12641 = vpop.f32.mrb[0].mxu0
    %12642 = vdwg.mxu0
    %12643 = vmatprep.subr.bf16.mxu0 %v11131
    %12644 = vmatpush1.bf16.msra.mxu0 %v11130
    %12645 = vmatprep.subr.bf16.mxu0 %v11150
    %12646 = vmatpush1.bf16.msra.mxu0 %v11149
    %12647 = vmatprep.subr.bf16.mxu0 %v11169
    %12648 = vmatpush1.bf16.msra.mxu0 %v11168
    %12649 = vmatprep.subr.bf16.mxu0 %v11188
    %12650 = vmatpush1.bf16.msra.mxu0 %v11187
    %12651 = vmatprep.subr.bf16.mxu0 %v11207
    %12652 = vmatpush1.bf16.msra.mxu0 %v11206
    %12653 = vmatprep.subr.bf16.mxu0 %v11226
    %12654 = vmatpush1.bf16.msra.mxu0 %v11225
    %12655 = vmatprep.subr.bf16.mxu0 %v11245
    %12656 = vmatpush1.bf16.msra.mxu0 %v11244
    %12657 = vmatprep.subr.bf16.mxu0 %v11264
    %12658 = vmatpush1.bf16.msra.mxu0 %v11263
    %12659 = vmatprep.subr.bf16.mxu0 %v11283
    %12660 = vmatpush1.bf16.msra.mxu0 %v11282
    %12661 = vmatprep.subr.bf16.mxu0 %v11302
    %12662 = vmatpush1.bf16.msra.mxu0 %v11301
    %12663 = vmatprep.subr.bf16.mxu0 %v11321
    %12664 = vmatpush1.bf16.msra.mxu0 %v11320
    %12665 = vmatprep.subr.bf16.mxu0 %v11340
    %12666 = vmatpush1.bf16.msra.mxu0 %v11339
    %12667 = vmatprep.subr.bf16.mxu0 %v11359
    %12668 = vmatpush1.bf16.msra.mxu0 %v11358
    %12669 = vmatprep.subr.bf16.mxu0 %v11378
    %12670 = vmatpush1.bf16.msra.mxu0 %v11377
    %12671 = vmatprep.subr.bf16.mxu0 %v11397
    %12672 = vmatpush1.bf16.msra.mxu0 %v11396
    %12673 = vmatprep.subr.bf16.mxu0 %v11416
    %12674 = vmatpush1.bf16.msra.mxu0 %v11415
    %12675 = vmatprep.mubr.bf16.mxu0 %v8214
    %12676 = vmatmul.mubr.bf16.gmra.mrb[0].mxu0 %v8213
    %v12677 = vpop.f32.mrb[0].mxu0
    %v12678 = vadd.f32 %v12637, %v12677
    %v12679 = vpop.f32.mrb[0].mxu0
    %v12680 = vadd.f32 %v12639, %v12679
    %v12681 = vpop.f32.mrb[0].mxu0
    %v12682 = vpop.f32.mrb[0].mxu0
    %12683 = vdwg.mxu0
    %12684 = vmatprep.subr.bf16.mxu0 %v10829
    %12685 = vmatpush1.bf16.msra.mxu0 %v10828
    %12686 = vmatprep.subr.bf16.mxu0 %v10848
    %12687 = vmatpush1.bf16.msra.mxu0 %v10847
    %12688 = vmatprep.subr.bf16.mxu0 %v10867
    %12689 = vmatpush1.bf16.msra.mxu0 %v10866
    %12690 = vmatprep.subr.bf16.mxu0 %v10886
    %12691 = vmatpush1.bf16.msra.mxu0 %v10885
    %12692 = vmatprep.subr.bf16.mxu0 %v10905
    %12693 = vmatpush1.bf16.msra.mxu0 %v10904
    %12694 = vmatprep.subr.bf16.mxu0 %v10924
    %12695 = vmatpush1.bf16.msra.mxu0 %v10923
    %12696 = vmatprep.subr.bf16.mxu0 %v10943
    %12697 = vmatpush1.bf16.msra.mxu0 %v10942
    %12698 = vmatprep.subr.bf16.mxu0 %v10962
    %12699 = vmatpush1.bf16.msra.mxu0 %v10961
    %12700 = vmatprep.subr.bf16.mxu0 %v10981
    %12701 = vmatpush1.bf16.msra.mxu0 %v10980
    %12702 = vmatprep.subr.bf16.mxu0 %v11000
    %12703 = vmatpush1.bf16.msra.mxu0 %v10999
    %12704 = vmatprep.subr.bf16.mxu0 %v11019
    %12705 = vmatpush1.bf16.msra.mxu0 %v11018
    %12706 = vmatprep.subr.bf16.mxu0 %v11038
    %12707 = vmatpush1.bf16.msra.mxu0 %v11037
    %12708 = vmatprep.subr.bf16.mxu0 %v11057
    %12709 = vmatpush1.bf16.msra.mxu0 %v11056
    %12710 = vmatprep.subr.bf16.mxu0 %v11076
    %12711 = vmatpush1.bf16.msra.mxu0 %v11075
    %12712 = vmatprep.subr.bf16.mxu0 %v11095
    %12713 = vmatpush1.bf16.msra.mxu0 %v11094
    %12714 = vmatprep.subr.bf16.mxu0 %v11114
    %12715 = vmatpush1.bf16.msra.mxu0 %v11113
    %12716 = vmatprep.mubr.bf16.mxu0 %v8212
    %12717 = vmatmul.mubr.bf16.gmra.mrb[0].mxu0 %v8211
    %v12718 = vpop.f32.mrb[0].mxu0
    %v12719 = vadd.f32 %v8928, %v12718
    %v12720 = vpop.f32.mrb[0].mxu0
    %v12721 = vadd.f32 %v8932, %v12720
    %v12722 = vpop.f32.mrb[0].mxu0
    %v12723 = vpop.f32.mrb[0].mxu0
    %12724 = vdwg.mxu0
    %12725 = vmatprep.subr.bf16.mxu0 %v11133
    %12726 = vmatpush1.bf16.msra.mxu0 %v11132
    %12727 = vmatprep.subr.bf16.mxu0 %v11152
    %12728 = vmatpush1.bf16.msra.mxu0 %v11151
    %12729 = vmatprep.subr.bf16.mxu0 %v11171
    %12730 = vmatpush1.bf16.msra.mxu0 %v11170
    %12731 = vmatprep.subr.bf16.mxu0 %v11190
    %12732 = vmatpush1.bf16.msra.mxu0 %v11189
    %12733 = vmatprep.subr.bf16.mxu0 %v11209
    %12734 = vmatpush1.bf16.msra.mxu0 %v11208
    %12735 = vmatprep.subr.bf16.mxu0 %v11228
    %12736 = vmatpush1.bf16.msra.mxu0 %v11227
    %12737 = vmatprep.subr.bf16.mxu0 %v11247
    %12738 = vmatpush1.bf16.msra.mxu0 %v11246
    %12739 = vmatprep.subr.bf16.mxu0 %v11266
    %12740 = vmatpush1.bf16.msra.mxu0 %v11265
    %12741 = vmatprep.subr.bf16.mxu0 %v11285
    %12742 = vmatpush1.bf16.msra.mxu0 %v11284
    %12743 = vmatprep.subr.bf16.mxu0 %v11304
    %12744 = vmatpush1.bf16.msra.mxu0 %v11303
    %12745 = vmatprep.subr.bf16.mxu0 %v11323
    %12746 = vmatpush1.bf16.msra.mxu0 %v11322
    %12747 = vmatprep.subr.bf16.mxu0 %v11342
    %12748 = vmatpush1.bf16.msra.mxu0 %v11341
    %12749 = vmatprep.subr.bf16.mxu0 %v11361
    %12750 = vmatpush1.bf16.msra.mxu0 %v11360
    %12751 = vmatprep.subr.bf16.mxu0 %v11380
    %12752 = vmatpush1.bf16.msra.mxu0 %v11379
    %12753 = vmatprep.subr.bf16.mxu0 %v11399
    %12754 = vmatpush1.bf16.msra.mxu0 %v11398
    %12755 = vmatprep.subr.bf16.mxu0 %v11418
    %12756 = vmatpush1.bf16.msra.mxu0 %v11417
    %12757 = vmatprep.mubr.bf16.mxu0 %v8214
    %12758 = vmatmul.mubr.bf16.gmra.mrb[0].mxu0 %v8213
    %v12759 = vpop.f32.mrb[0].mxu0
    %v12760 = vadd.f32 %v12719, %v12759
    %v12761 = vpop.f32.mrb[0].mxu0
    %v12762 = vadd.f32 %v12721, %v12761
    %v12763 = vpop.f32.mrb[0].mxu0
    %v12764 = vpop.f32.mrb[0].mxu0
    %12765 = vdwg.mxu0
    %12766 = vmatprep.subr.bf16.mxu0 0
    %12767 = vmatpush1.bf16.msra.mxu0 %v10830
    %12768 = vmatprep.subr.bf16.mxu0 0
    %12769 = vmatpush1.bf16.msra.mxu0 %v10849
    %12770 = vmatprep.subr.bf16.mxu0 0
    %12771 = vmatpush1.bf16.msra.mxu0 %v10868
    %12772 = vmatprep.subr.bf16.mxu0 0
    %12773 = vmatpush1.bf16.msra.mxu0 %v10887
    %12774 = vmatprep.subr.bf16.mxu0 0
    %12775 = vmatpush1.bf16.msra.mxu0 %v10906
    %12776 = vmatprep.subr.bf16.mxu0 0
    %12777 = vmatpush1.bf16.msra.mxu0 %v10925
    %12778 = vmatprep.subr.bf16.mxu0 0
    %12779 = vmatpush1.bf16.msra.mxu0 %v10944
    %12780 = vmatprep.subr.bf16.mxu0 0
    %12781 = vmatpush1.bf16.msra.mxu0 %v10963
    %12782 = vmatprep.subr.bf16.mxu0 0
    %12783 = vmatpush1.bf16.msra.mxu0 %v10982
    %12784 = vmatprep.subr.bf16.mxu0 0
    %12785 = vmatpush1.bf16.msra.mxu0 %v11001
    %12786 = vmatprep.subr.bf16.mxu0 0
    %12787 = vmatpush1.bf16.msra.mxu0 %v11020
    %12788 = vmatprep.subr.bf16.mxu0 0
    %12789 = vmatpush1.bf16.msra.mxu0 %v11039
    %12790 = vmatprep.subr.bf16.mxu0 0
    %12791 = vmatpush1.bf16.msra.mxu0 %v11058
    %12792 = vmatprep.subr.bf16.mxu0 0
    %12793 = vmatpush1.bf16.msra.mxu0 %v11077
    %12794 = vmatprep.subr.bf16.mxu0 0
    %12795 = vmatpush1.bf16.msra.mxu0 %v11096
    %12796 = vmatprep.subr.bf16.mxu0 0
    %12797 = vmatpush1.bf16.msra.mxu0 %v11115
    %12798 = vmatprep.mubr.bf16.mxu0 %v8212
    %12799 = vmatmul.mubr.bf16.gmra.mrb[0].mxu0 %v8211
    %v12800 = vpop.f32.mrb[0].mxu0
    %v12801 = vadd.f32 %v8936, %v12800
    %v12802 = vpop.f32.mrb[0].mxu0
    %v12803 = vpop.f32.mrb[0].mxu0
    %v12804 = vpop.f32.mrb[0].mxu0
    %12805 = vdwg.mxu0
    %12806 = vmatprep.subr.bf16.mxu0 0
    %12807 = vmatpush1.bf16.msra.mxu0 %v11134
    %12808 = vmatprep.subr.bf16.mxu0 0
    %12809 = vmatpush1.bf16.msra.mxu0 %v11153
    %12810 = vmatprep.subr.bf16.mxu0 0
    %12811 = vmatpush1.bf16.msra.mxu0 %v11172
    %12812 = vmatprep.subr.bf16.mxu0 0
    %12813 = vmatpush1.bf16.msra.mxu0 %v11191
    %12814 = vmatprep.subr.bf16.mxu0 0
    %12815 = vmatpush1.bf16.msra.mxu0 %v11210
    %12816 = vmatprep.subr.bf16.mxu0 0
    %12817 = vmatpush1.bf16.msra.mxu0 %v11229
    %12818 = vmatprep.subr.bf16.mxu0 0
    %12819 = vmatpush1.bf16.msra.mxu0 %v11248
    %12820 = vmatprep.subr.bf16.mxu0 0
    %12821 = vmatpush1.bf16.msra.mxu0 %v11267
    %12822 = vmatprep.subr.bf16.mxu0 0
    %12823 = vmatpush1.bf16.msra.mxu0 %v11286
    %12824 = vmatprep.subr.bf16.mxu0 0
    %12825 = vmatpush1.bf16.msra.mxu0 %v11305
    %12826 = vmatprep.subr.bf16.mxu0 0
    %12827 = vmatpush1.bf16.msra.mxu0 %v11324
    %12828 = vmatprep.subr.bf16.mxu0 0
    %12829 = vmatpush1.bf16.msra.mxu0 %v11343
    %12830 = vmatprep.subr.bf16.mxu0 0
    %12831 = vmatpush1.bf16.msra.mxu0 %v11362
    %12832 = vmatprep.subr.bf16.mxu0 0
    %12833 = vmatpush1.bf16.msra.mxu0 %v11381
    %12834 = vmatprep.subr.bf16.mxu0 0
    %12835 = vmatpush1.bf16.msra.mxu0 %v11400
    %12836 = vmatprep.subr.bf16.mxu0 0
    %12837 = vmatpush1.bf16.msra.mxu0 %v11419
    %12838 = vmatprep.mubr.bf16.mxu0 %v8214
    %12839 = vmatmul.mubr.bf16.gmra.mrb[0].mxu0 %v8213
    %v12840 = vpop.f32.mrb[0].mxu0
    %v12841 = vadd.f32 %v12801, %v12840
    %v12842 = vpop.f32.mrb[0].mxu0
    %v12843 = vpop.f32.mrb[0].mxu0
    %v12844 = vpop.f32.mrb[0].mxu0
    %12845 = vdwg.mxu0
    %v12846 = vpack.c.bf16 %v12104, %v12104
    %v12847 = vpack.c.bf16 %v12106, %v12106
    %v12848 = vpack.c.bf16 %v12186, %v12186
    %v12849 = vpack.c.bf16 %v12188, %v12188
    %v12850 = vpack.c.bf16 %v12268, %v12268
    %v12851 = vpack.c.bf16 %v12270, %v12270
    %v12852 = vpack.c.bf16 %v12350, %v12350
    %v12853 = vpack.c.bf16 %v12352, %v12352
    %v12854 = vpack.c.bf16 %v12432, %v12432
    %v12855 = vpack.c.bf16 %v12434, %v12434
    %v12856 = vpack.c.bf16 %v12514, %v12514
    %v12857 = vpack.c.bf16 %v12516, %v12516
    %v12858 = vpack.c.bf16 %v12596, %v12596
    %v12859 = vpack.c.bf16 %v12598, %v12598
    %v12860 = vpack.c.bf16 %v12678, %v12678
    %v12861 = vpack.c.bf16 %v12680, %v12680
    %v12862 = vpack.c.bf16 %v12760, %v12760
    %v12863 = vpack.c.bf16 %v12762, %v12762
    %v12864 = vpack.c.bf16 %v12841, %v12841
    %v12884 = vunpack.c.l.b16 %v12846
    %v12885 = vunpack.c.l.b16 %v12847
    %v12886 = vunpack.c.l.b16 %v12848
    %v12887 = vunpack.c.l.b16 %v12849
    %v12888 = vunpack.c.l.b16 %v12850
    %v12889 = vunpack.c.l.b16 %v12851
    %v12890 = vunpack.c.l.b16 %v12852
    %v12891 = vunpack.c.l.b16 %v12853
    %v12892 = vunpack.c.l.b16 %v12854
    %v12893 = vunpack.c.l.b16 %v12855
    %v12894 = vunpack.c.l.b16 %v12856
    %v12895 = vunpack.c.l.b16 %v12857
    %v12896 = vunpack.c.l.b16 %v12858
    %v12897 = vunpack.c.l.b16 %v12859
    %v12898 = vunpack.c.l.b16 %v12860
    %v12899 = vunpack.c.l.b16 %v12861
    %v12900 = vunpack.c.l.b16 %v12862
    %v12901 = vunpack.c.l.b16 %v12863
    %v12902 = vunpack.c.l.b16 %v12864
    %v12903 = vpack.c.b16 %v12885, %v12884
    %v12904 = vpack.c.b16 %v12887, %v12886
    %v12905 = vpack.c.b16 %v12889, %v12888
    %v12906 = vpack.c.b16 %v12891, %v12890
    %v12907 = vpack.c.b16 %v12893, %v12892
    %v12908 = vpack.c.b16 %v12895, %v12894
    %v12909 = vpack.c.b16 %v12897, %v12896
    %v12910 = vpack.c.b16 %v12899, %v12898
    %v12911 = vpack.c.b16 %v12901, %v12900
    %v12912 = vpack.c.b16 %v12902, %v12902
    %12923 = vst [vmem:[%s10] sm:$0xff] %v12903
    %12924 = vst [vmem:[%s10 + $0x8] sm:$0xff] %v12904
    %12925 = vst [vmem:[%s10 + $0x10] sm:$0xff] %v12905
    %12926 = vst [vmem:[%s10 + $0x18] sm:$0xff] %v12906
    %12927 = vst [vmem:[%s10 + $0x20] sm:$0xff] %v12907
    %12928 = vst [vmem:[%s10 + $0x28] sm:$0xff] %v12908
    %12929 = vst [vmem:[%s10 + $0x30] sm:$0xff] %v12909
    %12930 = vst [vmem:[%s10 + $0x38] sm:$0xff] %v12910
    %12931 = vst [vmem:[%s10 + $0x40] sm:$0xff] %v12911
    %12932 = vst [vmem:[%s10 + $0x48] sm:$0xf] %v12912
    %12933 = vst [vmem:[%s11] sm:$0xff] %v6063
    // Predicated region
    $region78: #{ssvae_forward.1} parent=1 // pred_check
      _
    $region79: #{ssvae_forward.1} parent=1 // pred_check_branch
      %12935 = sbr.rel (0) target = $region81
    $region80: #{ssvae_forward.1} parent=1 // pred_region
      _
    $region81: #{ssvae_forward.1} parent=1 // pred_fallthru
      _
    // Predicated region
    $region82: #{ssvae_forward.1} parent=1 // pred_check
      _
    $region83: #{ssvae_forward.1} parent=1 // pred_check_branch
      %12937 = sbr.rel (0) target = $region85
    $region84: #{ssvae_forward.1} parent=1 // pred_region
      _
    $region85: #{ssvae_forward.1} parent=1 // pred_fallthru
      _
    // Predicated region
    $region86: #{ssvae_forward.1} parent=1 // pred_check
      _
    $region87: #{ssvae_forward.1} parent=1 // pred_check_branch
      %12939 = sbr.rel (0) target = $region89
    $region88: #{ssvae_forward.1} parent=1 // pred_region
      _
    $region89: #{ssvae_forward.1} parent=1 // pred_fallthru
      _
    // Predicated region
    $region90: #{ssvae_forward.1} parent=1 // pred_check
      _
    $region91: #{ssvae_forward.1} parent=1 // pred_check_branch
      %12941 = sbr.rel (0) target = $region93
    $region92: #{ssvae_forward.1} parent=1 // pred_region
      _
    $region93: #{ssvae_forward.1} parent=1 // pred_fallthru
      _
    %12942 = vsyncpa [#allocation3], 1
    %12943 = vsyncpa [#allocation5], 1
    %12944 = vsyncpa [#allocation8], 1
    %12945 = vsyncpa [#allocation11], 1
    %12946 = vsyncpa [#allocation14], 1

</llo_original>
